<compile_context>
chip_gen: v6e
topology: v6e:2x2x1
jax: 0.10.0
libtpu: 0.0.40
codegen_flags: <defaults>
</compile_context>

<pallas_src>
import functools

import jax
import jax.numpy as jnp
from jax import lax
from jax.experimental import pallas as pl
from jax.experimental.pallas import tpu as pltpu


# ----------------------------------------------------------------------------
# Pallas kernel (one batch element per grid step; subsets unrolled inside)
# ----------------------------------------------------------------------------
def _spatial_ctrgcn_kernel(
    x_ref,        # (1, C_in, T*V)      lane-dense input
    tmean_ref,    # (T*V, V)            constant time-averaging matrix (1/T on the diagonal tiles)
    At_ref,       # (S, 1, V*V)         adjacency, transposed (A^T) and flattened v-major/u-minor
    w1_ref,       # (S, rel, C_in)
    b1_ref,       # (S, rel, 1)
    w2_ref,       # (S, rel, C_in)
    b2_ref,       # (S, rel, 1)
    w3_ref,       # (S, C_out, C_in)
    b3_ref,       # (S, C_out, 1)
    w4_ref,       # (S, C_out, rel)     already scaled by alpha
    b4_ref,       # (S, C_out, 1)       already scaled by alpha
    bn_scale_ref, # (C_out, 1)          folded BatchNorm scale
    bn_shift_ref, # (C_out, 1)          folded BatchNorm shift
    wd_ref,       # (C_out, C_in)       folded residual ("down") weight (unused unless 'conv')
    bd_ref,       # (C_out, 1)          folded residual bias            (unused unless 'conv')
    o_ref,        # (1, C_out, T*V)
    *, S, T, V, C_out, residual_mode,
):
    f32 = jnp.float32
    rel = w1_ref.shape[1]

    x = x_ref[0].astype(f32)                                        # (C_in, T*V)  lane-dense
    # mean over T as a single MXU matmul:  xm[c, v] = (1/T) * sum_t x[c, t*V + v]
    xm = jnp.dot(x, tmean_ref[...].astype(f32),
                 preferred_element_type=f32)                        # (C_in, V)

    acc = None                                                      # (C_out, T, V) f32, SSA
    for s in range(S):                                              # S is small (3) -> unrolled
        w1 = w1_ref[s].astype(f32); b1 = b1_ref[s].astype(f32)
        w2 = w2_ref[s].astype(f32); b2 = b2_ref[s].astype(f32)
        w3 = w3_ref[s].astype(f32); b3 = b3_ref[s].astype(f32)
        w4 = w4_ref[s].astype(f32); b4 = b4_ref[s].astype(f32)
        At = At_ref[s].astype(f32)                                  # (1, V*V) == A[s]^T flattened

        # conv1(x).mean(-2) / conv2(x).mean(-2): 1x1 conv commutes with the mean over T.
        x1 = jnp.dot(w1, xm, preferred_element_type=f32) + b1       # (rel, V)
        x2 = jnp.dot(w2, xm, preferred_element_type=f32) + b2       # (rel, V)

        # conv3(x): one lane-dense matmul over the flattened T*V axis.
        x3 = jnp.dot(w3, x, preferred_element_type=f32) + b3        # (C_out, T*V)
        x3 = x3.reshape(C_out, T, V)                                # (C_out, T, V)

        # Relation tensor, computed directly in transposed form:
        #   m[c, v, u]  = tanh(x1[c, u] - x2[c, v])          ( = M[c, u, v] of the reference )
        #   rT[o, v, u] = alpha*conv4(M)[o, u, v] + A[u, v]  ( = r[o, u, v] transposed )
        m = jnp.tanh(x1[:, None, :] - x2[:, :, None])                # (rel, V, V)
        rT = (jnp.dot(w4, m.reshape(rel, V * V),
                      preferred_element_type=f32) + b4 + At)         # (C_out, V*V)
        rT = rT.reshape(C_out, V, V)                                  # rT[o, v, u]

        # einsum('ncuv,nctv->nctu') == per-channel (T,V)@(V,U) — transpose-free batched matmul.
        z = lax.dot_general(x3, rT,
                            dimension_numbers=(((2,), (1,)), ((0,), (0,))),
                            preferred_element_type=f32)               # (C_out, T, V)
        acc = z if acc is None else acc + z

    # BatchNorm (folded, inference mode) on the lane-dense layout.
    y = acc.reshape(C_out, T * V)
    y = y * bn_scale_ref[...] + bn_shift_ref[...]

    # Residual branch (subset independent, computed once).
    if residual_mode == 'conv':
        y = y + jnp.dot(wd_ref[...].astype(f32), x,
                        preferred_element_type=f32) + bd_ref[...]
    elif residual_mode == 'identity':
        y = y + x                                                     # C_in == C_out
    # residual_mode == 'none': nothing to add

    # ReLU + single full-tile (C_out, 128-lane) store.
    o_ref[0] = jnp.maximum(y, 0.0).astype(o_ref.dtype)


# ----------------------------------------------------------------------------
# Wrapper
# ----------------------------------------------------------------------------
def spatial_ctrgcn_block(x, p, eps=1e-5):
    N, C_in, T, V = x.shape
    S, rel, _ = p['w1'].shape
    C_out = p['w3'].shape[1]
    alpha = p['alpha']
    TV = T * V

    f32 = jnp.float32
    x_flat = x.reshape(N, C_in, TV).astype(f32)

    # constant (T*V, V) averaging matrix: xm = x_flat @ tmean
    tmean = (jnp.tile(jnp.eye(V, dtype=f32), (T, 1)) / T)

    # adjacency, transposed per subset and flattened (v-major, u-minor)
    At = jnp.transpose(p['A'].astype(f32), (0, 2, 1)).reshape(S, 1, V * V)

    # fold alpha into conv4
    w4_eff = (p['w4'] * alpha).astype(f32)
    b4_eff = (p['b4'] * alpha).astype(f32)

    # fold main BatchNorm (inference)
    bn_s = p['bn_gamma'] / jnp.sqrt(p['bn_var'] + eps)
    bn_scale = bn_s.reshape(C_out, 1).astype(f32)
    bn_shift = (p['bn_beta'] - p['bn_mean'] * bn_s).reshape(C_out, 1).astype(f32)

    # fold the residual ("down") branch
    if not p['residual']:
        residual_mode = 'none'
        wd_f = jnp.zeros((C_out, C_in), f32)
        bd_f = jnp.zeros((C_out, 1), f32)
    elif C_in != C_out:
        residual_mode = 'conv'
        sd = p['bnd_gamma'] / jnp.sqrt(p['bnd_var'] + eps)
        wd_f = (sd[:, None] * p['wd']).astype(f32)
        bd_f = (sd * (p['bd'] - p['bnd_mean']) + p['bnd_beta']).reshape(C_out, 1).astype(f32)
    else:
        residual_mode = 'identity'
        wd_f = jnp.zeros((C_out, C_in), f32)
        bd_f = jnp.zeros((C_out, 1), f32)

    kernel = functools.partial(_spatial_ctrgcn_kernel, S=S, T=T, V=V,
                               C_out=C_out, residual_mode=residual_mode)

    shared2 = lambda n: (0, 0)
    shared3 = lambda n: (0, 0, 0)

    out = pl.pallas_call(
        kernel,
        out_shape=jax.ShapeDtypeStruct((N, C_out, TV), f32),
        grid_spec=pltpu.PrefetchScalarGridSpec(
            num_scalar_prefetch=0,
            grid=(N,),
            in_specs=[
                pl.BlockSpec((1, C_in, TV), lambda n: (n, 0, 0)),    # x (lane-dense)
                pl.BlockSpec((TV, V), shared2),                      # time-averaging matrix
                pl.BlockSpec((S, 1, V * V), shared3),                # A^T (flattened)
                pl.BlockSpec((S, rel, C_in), shared3),               # w1
                pl.BlockSpec((S, rel, 1), shared3),                  # b1
                pl.BlockSpec((S, rel, C_in), shared3),               # w2
                pl.BlockSpec((S, rel, 1), shared3),                  # b2
                pl.BlockSpec((S, C_out, C_in), shared3),             # w3
                pl.BlockSpec((S, C_out, 1), shared3),                # b3
                pl.BlockSpec((S, C_out, rel), shared3),              # w4 * alpha
                pl.BlockSpec((S, C_out, 1), shared3),                # b4 * alpha
                pl.BlockSpec((C_out, 1), shared2),                   # bn scale
                pl.BlockSpec((C_out, 1), shared2),                   # bn shift
                pl.BlockSpec((C_out, C_in), shared2),                # folded residual weight
                pl.BlockSpec((C_out, 1), shared2),                   # folded residual bias
            ],
            out_specs=pl.BlockSpec((1, C_out, TV), lambda n: (n, 0, 0)),
        ),
        compiler_params=pltpu.CompilerParams(
            dimension_semantics=("parallel",)),                      # batch sharded across TCs
    )(x_flat, tmean, At,
      p['w1'].astype(f32), p['b1'].astype(f32),
      p['w2'].astype(f32), p['b2'].astype(f32),
      p['w3'].astype(f32), p['b3'].astype(f32),
      w4_eff, b4_eff, bn_scale, bn_shift, wd_f, bd_f)

    return out.reshape(N, C_out, T, V)


# ----------------------------------------------------------------------------
# Deterministic parameter initialization (mirrors the module __init__ shapes)
# ----------------------------------------------------------------------------
def init_params(key, in_channels, out_channels, max_graph_distance, V,
                residual=True):
    rel = 8 if in_channels in (3, 9) else in_channels // 8
    S = max_graph_distance + 1
    keys = list(jax.random.split(key, 32))
    kit = iter(keys)

    def nrm(shape, scale=0.1):
        return (scale * jax.random.normal(next(kit), shape)).astype(jnp.float32)

    p = {
        'w1': nrm((S, rel, in_channels)),
        'b1': nrm((S, rel, 1)),
        'w2': nrm((S, rel, in_channels)),
        'b2': nrm((S, rel, 1)),
        'w3': nrm((S, out_channels, in_channels)),
        'b3': nrm((S, out_channels, 1)),
        'w4': nrm((S, out_channels, rel)),
        'b4': nrm((S, out_channels, 1)),
        'A': nrm((S, V, V), scale=0.5),            # adaptive PA parameter
        'alpha': jnp.float32(0.5),                 # torch init is 0; nonzero to exercise conv4 path
        'bn_gamma': 1.0 + nrm((out_channels,)),
        'bn_beta': nrm((out_channels,)),
        'bn_mean': nrm((out_channels,)),
        'bn_var': 1.0 + jnp.abs(nrm((out_channels,))),
        'residual': residual,
    }
    if residual and in_channels != out_channels:
        p.update({
            'wd': nrm((out_channels, in_channels)),
            'bd': nrm((out_channels,)),
            'bnd_gamma': 1.0 + nrm((out_channels,)),
            'bnd_beta': nrm((out_channels,)),
            'bnd_mean': nrm((out_channels,)),
            'bnd_var': 1.0 + jnp.abs(nrm((out_channels,))),
        })
    return p


# ----------------------------------------------------------------------------
# Pure-JAX reference (direct transcription of the PyTorch forward)
# ----------------------------------------------------------------------------
def reference_forward(x, p, eps=1e-5):
    N, C_in, T, V = x.shape
    S = p['A'].shape[0]
    C_out = p['w3'].shape[1]
    alpha = p['alpha']
    y = None
    for i in range(S):
        c1 = jnp.einsum('oc,nctv->notv', p['w1'][i], x) + p['b1'][i].reshape(1, -1, 1, 1)
        c2 = jnp.einsum('oc,nctv->notv', p['w2'][i], x) + p['b2'][i].reshape(1, -1, 1, 1)
        x3 = jnp.einsum('oc,nctv->notv', p['w3'][i], x) + p['b3'][i].reshape(1, -1, 1, 1)
        x1 = c1.mean(axis=2)                                   # (N, rel, V)
        x2 = c2.mean(axis=2)
        m = jnp.tanh(x1[:, :, :, None] - x2[:, :, None, :])    # (N, rel, V, V)
        r = jnp.einsum('oc,ncuv->nouv', p['w4'][i], m) + p['b4'][i].reshape(1, -1, 1, 1)
        r = r * alpha + p['A'][i][None, None]
        z = jnp.einsum('ncuv,nctv->nctu', r, x3)
        y = z if y is None else y + z
    bn_s = p['bn_gamma'] / jnp.sqrt(p['bn_var'] + eps)
    y = y * bn_s.reshape(1, -1, 1, 1) + (p['bn_beta'] - p['bn_mean'] * bn_s).reshape(1, -1, 1, 1)
    if not p['residual']:
        d = 0.0
    elif C_in != C_out:
        d = jnp.einsum('oc,nctv->notv', p['wd'], x) + p['bd'].reshape(1, -1, 1, 1)
        sd = p['bnd_gamma'] / jnp.sqrt(p['bnd_var'] + eps)
        d = (d - p['bnd_mean'].reshape(1, -1, 1, 1)) * sd.reshape(1, -1, 1, 1) \
            + p['bnd_beta'].reshape(1, -1, 1, 1)
    else:
        d = x
    return jnp.maximum(y + d, 0.0)


# ----------------------------------------------------------------------------
if __name__ == "__main__":
    key = jax.random.PRNGKey(0)
    N, C_in, C_out, T, V = 2, 3, 16, 8, 16   # T*V = 128 -> lane-dense blocks
    max_graph_distance = 2                   # -> num_subset = 3

    kx, kp = jax.random.split(key)
    x = jax.random.normal(kx, (N, C_in, T, V), dtype=jnp.float32)
    params = init_params(kp, C_in, C_out, max_graph_distance, V, residual=True)

    out = jax.block_until_ready(spatial_ctrgcn_block(x, params))

    ref = reference_forward(x, params)
    assert out.shape == (N, C_out, T, V), out.shape
    assert bool(jnp.all(jnp.isfinite(out)))
    max_err = float(jnp.max(jnp.abs(out - ref)))
    assert max_err < 1e-2, f"max abs error vs reference: {max_err}"

    print("KERNEL_OK")
</pallas_src>

<mosaic_0001>
module attributes {stable_mosaic.version = 11 : i64} {
  func.func @_spatial_ctrgcn_kernel(%arg0: i32, %arg1: memref<1x3x128xf32, #tpu.memory_space<vmem>>, %arg2: memref<128x16xf32, #tpu.memory_space<vmem>>, %arg3: memref<3x1x256xf32, #tpu.memory_space<vmem>>, %arg4: memref<3x8x3xf32, #tpu.memory_space<vmem>>, %arg5: memref<3x8x1xf32, #tpu.memory_space<vmem>>, %arg6: memref<3x8x3xf32, #tpu.memory_space<vmem>>, %arg7: memref<3x8x1xf32, #tpu.memory_space<vmem>>, %arg8: memref<3x16x3xf32, #tpu.memory_space<vmem>>, %arg9: memref<3x16x1xf32, #tpu.memory_space<vmem>>, %arg10: memref<3x16x8xf32, #tpu.memory_space<vmem>>, %arg11: memref<3x16x1xf32, #tpu.memory_space<vmem>>, %arg12: memref<16x1xf32, #tpu.memory_space<vmem>>, %arg13: memref<16x1xf32, #tpu.memory_space<vmem>>, %arg14: memref<16x3xf32, #tpu.memory_space<vmem>>, %arg15: memref<16x1xf32, #tpu.memory_space<vmem>>, %arg16: memref<1x16x128xf32, #tpu.memory_space<vmem>>) attributes {dimension_semantics = [#tpu.dimension_semantics<parallel>], iteration_bounds = array<i64: 2>, scalar_prefetch = 0 : i64, scratch_operands = 0 : i64, tpu.core_type = #tpu.core_type<tc>, window_params = [{transform_indices = @transform_0, window_bounds = array<i64: 1, 3, 128>}, {pipeline_mode = #tpu.pipeline_mode<synchronous>, transform_indices = @transform_1, window_bounds = array<i64: 128, 16>}, {pipeline_mode = #tpu.pipeline_mode<synchronous>, transform_indices = @transform_2, window_bounds = array<i64: 3, 1, 256>}, {pipeline_mode = #tpu.pipeline_mode<synchronous>, transform_indices = @transform_3, window_bounds = array<i64: 3, 8, 3>}, {pipeline_mode = #tpu.pipeline_mode<synchronous>, transform_indices = @transform_4, window_bounds = array<i64: 3, 8, 1>}, {pipeline_mode = #tpu.pipeline_mode<synchronous>, transform_indices = @transform_5, window_bounds = array<i64: 3, 8, 3>}, {pipeline_mode = #tpu.pipeline_mode<synchronous>, transform_indices = @transform_6, window_bounds = array<i64: 3, 8, 1>}, {pipeline_mode = #tpu.pipeline_mode<synchronous>, transform_indices = @transform_7, window_bounds = array<i64: 3, 16, 3>}, {pipeline_mode = #tpu.pipeline_mode<synchronous>, transform_indices = @transform_8, window_bounds = array<i64: 3, 16, 1>}, {pipeline_mode = #tpu.pipeline_mode<synchronous>, transform_indices = @transform_9, window_bounds = array<i64: 3, 16, 8>}, {pipeline_mode = #tpu.pipeline_mode<synchronous>, transform_indices = @transform_10, window_bounds = array<i64: 3, 16, 1>}, {pipeline_mode = #tpu.pipeline_mode<synchronous>, transform_indices = @transform_11, window_bounds = array<i64: 16, 1>}, {pipeline_mode = #tpu.pipeline_mode<synchronous>, transform_indices = @transform_12, window_bounds = array<i64: 16, 1>}, {pipeline_mode = #tpu.pipeline_mode<synchronous>, transform_indices = @transform_13, window_bounds = array<i64: 16, 3>}, {pipeline_mode = #tpu.pipeline_mode<synchronous>, transform_indices = @transform_14, window_bounds = array<i64: 16, 1>}, {transform_indices = @transform_15, window_bounds = array<i64: 1, 16, 128>}]} {
    %c0 = arith.constant 0 : index
    %c0_0 = arith.constant 0 : index
    %c0_1 = arith.constant 0 : index
    %0 = vector.load %arg1[%c0, %c0_0, %c0_1] : memref<1x3x128xf32, #tpu.memory_space<vmem>>, vector<1x3x128xf32>
    %1 = vector.shape_cast %0 : vector<1x3x128xf32> to vector<3x128xf32>
    %c0_2 = arith.constant 0 : index
    %c0_3 = arith.constant 0 : index
    %2 = vector.load %arg2[%c0_2, %c0_3] : memref<128x16xf32, #tpu.memory_space<vmem>>, vector<128x16xf32>
    %cst = arith.constant dense<0.000000e+00> : vector<3x16xf32>
    %3 = tpu.matmul %1, %2, %cst {dimension_numbers = #tpu.dot_dimension_numbers<[1], [0], [0], [1], [0, 0, 1, 1], [], []>} : vector<3x128xf32>, vector<128x16xf32>, vector<3x16xf32> -> vector<3x16xf32>
    %c0_4 = arith.constant 0 : index
    %c0_5 = arith.constant 0 : index
    %c0_6 = arith.constant 0 : index
    %4 = vector.load %arg4[%c0_4, %c0_5, %c0_6] : memref<3x8x3xf32, #tpu.memory_space<vmem>>, vector<1x8x3xf32>
    %5 = vector.shape_cast %4 : vector<1x8x3xf32> to vector<8x3xf32>
    %c0_7 = arith.constant 0 : index
    %c0_8 = arith.constant 0 : index
    %c0_9 = arith.constant 0 : index
    %6 = vector.load %arg5[%c0_7, %c0_8, %c0_9] : memref<3x8x1xf32, #tpu.memory_space<vmem>>, vector<1x8x1xf32>
    %7 = vector.shape_cast %6 : vector<1x8x1xf32> to vector<8x1xf32>
    %c0_10 = arith.constant 0 : index
    %c0_11 = arith.constant 0 : index
    %c0_12 = arith.constant 0 : index
    %8 = vector.load %arg6[%c0_10, %c0_11, %c0_12] : memref<3x8x3xf32, #tpu.memory_space<vmem>>, vector<1x8x3xf32>
    %9 = vector.shape_cast %8 : vector<1x8x3xf32> to vector<8x3xf32>
    %c0_13 = arith.constant 0 : index
    %c0_14 = arith.constant 0 : index
    %c0_15 = arith.constant 0 : index
    %10 = vector.load %arg7[%c0_13, %c0_14, %c0_15] : memref<3x8x1xf32, #tpu.memory_space<vmem>>, vector<1x8x1xf32>
    %11 = vector.shape_cast %10 : vector<1x8x1xf32> to vector<8x1xf32>
    %c0_16 = arith.constant 0 : index
    %c0_17 = arith.constant 0 : index
    %c0_18 = arith.constant 0 : index
    %12 = vector.load %arg8[%c0_16, %c0_17, %c0_18] : memref<3x16x3xf32, #tpu.memory_space<vmem>>, vector<1x16x3xf32>
    %13 = vector.shape_cast %12 : vector<1x16x3xf32> to vector<16x3xf32>
    %c0_19 = arith.constant 0 : index
    %c0_20 = arith.constant 0 : index
    %c0_21 = arith.constant 0 : index
    %14 = vector.load %arg9[%c0_19, %c0_20, %c0_21] : memref<3x16x1xf32, #tpu.memory_space<vmem>>, vector<1x16x1xf32>
    %15 = vector.shape_cast %14 : vector<1x16x1xf32> to vector<16x1xf32>
    %c0_22 = arith.constant 0 : index
    %c0_23 = arith.constant 0 : index
    %c0_24 = arith.constant 0 : index
    %16 = vector.load %arg10[%c0_22, %c0_23, %c0_24] : memref<3x16x8xf32, #tpu.memory_space<vmem>>, vector<1x16x8xf32>
    %17 = vector.shape_cast %16 : vector<1x16x8xf32> to vector<16x8xf32>
    %c0_25 = arith.constant 0 : index
    %c0_26 = arith.constant 0 : index
    %c0_27 = arith.constant 0 : index
    %18 = vector.load %arg11[%c0_25, %c0_26, %c0_27] : memref<3x16x1xf32, #tpu.memory_space<vmem>>, vector<1x16x1xf32>
    %19 = vector.shape_cast %18 : vector<1x16x1xf32> to vector<16x1xf32>
    %c0_28 = arith.constant 0 : index
    %c0_29 = arith.constant 0 : index
    %c0_30 = arith.constant 0 : index
    %20 = vector.load %arg3[%c0_28, %c0_29, %c0_30] : memref<3x1x256xf32, #tpu.memory_space<vmem>>, vector<1x1x256xf32>
    %21 = vector.shape_cast %20 : vector<1x1x256xf32> to vector<1x256xf32>
    %cst_31 = arith.constant dense<0.000000e+00> : vector<8x16xf32>
    %22 = tpu.matmul %5, %3, %cst_31 {dimension_numbers = #tpu.dot_dimension_numbers<[1], [0], [0], [1], [0, 0, 1, 1], [], []>} : vector<8x3xf32>, vector<3x16xf32>, vector<8x16xf32> -> vector<8x16xf32>
    %23 = vector.broadcast %7 : vector<8x1xf32> to vector<8x16xf32>
    %24 = arith.addf %22, %23 : vector<8x16xf32>
    %cst_32 = arith.constant dense<0.000000e+00> : vector<8x16xf32>
    %25 = tpu.matmul %9, %3, %cst_32 {dimension_numbers = #tpu.dot_dimension_numbers<[1], [0], [0], [1], [0, 0, 1, 1], [], []>} : vector<8x3xf32>, vector<3x16xf32>, vector<8x16xf32> -> vector<8x16xf32>
    %26 = vector.broadcast %11 : vector<8x1xf32> to vector<8x16xf32>
    %27 = arith.addf %25, %26 : vector<8x16xf32>
    %cst_33 = arith.constant dense<0.000000e+00> : vector<16x128xf32>
    %28 = tpu.matmul %13, %1, %cst_33 {dimension_numbers = #tpu.dot_dimension_numbers<[1], [0], [0], [1], [0, 0, 1, 1], [], []>} : vector<16x3xf32>, vector<3x128xf32>, vector<16x128xf32> -> vector<16x128xf32>
    %29 = vector.broadcast %15 : vector<16x1xf32> to vector<16x128xf32>
    %30 = arith.addf %28, %29 : vector<16x128xf32>
    %31 = vector.shape_cast %30 : vector<16x128xf32> to vector<16x8x16xf32>
    %32 = vector.shape_cast %24 : vector<8x16xf32> to vector<8x1x16xf32>
    %33 = vector.shape_cast %27 : vector<8x16xf32> to vector<8x16x1xf32>
    %34 = vector.broadcast %32 : vector<8x1x16xf32> to vector<8x16x16xf32>
    %35 = vector.broadcast %33 : vector<8x16x1xf32> to vector<8x16x16xf32>
    %36 = arith.subf %34, %35 : vector<8x16x16xf32>
    %37 = math.tanh %36 : vector<8x16x16xf32>
    %38 = vector.shape_cast %37 : vector<8x16x16xf32> to vector<8x256xf32>
    %cst_34 = arith.constant dense<0.000000e+00> : vector<16x256xf32>
    %39 = tpu.matmul %17, %38, %cst_34 {dimension_numbers = #tpu.dot_dimension_numbers<[1], [0], [0], [1], [0, 0, 1, 1], [], []>} : vector<16x8xf32>, vector<8x256xf32>, vector<16x256xf32> -> vector<16x256xf32>
    %40 = vector.broadcast %19 : vector<16x1xf32> to vector<16x256xf32>
    %41 = arith.addf %39, %40 : vector<16x256xf32>
    %42 = vector.broadcast %21 : vector<1x256xf32> to vector<16x256xf32>
    %43 = arith.addf %41, %42 : vector<16x256xf32>
    %44 = vector.shape_cast %43 : vector<16x256xf32> to vector<16x16x16xf32>
    %cst_35 = arith.constant dense<0.000000e+00> : vector<16x8x16xf32>
    %45 = tpu.matmul %31, %44, %cst_35 {dimension_numbers = #tpu.dot_dimension_numbers<[2], [1], [1], [2], [0, 0, 0, 1, 1, 2], [0], [0]>} : vector<16x8x16xf32>, vector<16x16x16xf32>, vector<16x8x16xf32> -> vector<16x8x16xf32>
    %c1 = arith.constant 1 : index
    %c0_36 = arith.constant 0 : index
    %c0_37 = arith.constant 0 : index
    %46 = vector.load %arg4[%c1, %c0_36, %c0_37] : memref<3x8x3xf32, #tpu.memory_space<vmem>>, vector<1x8x3xf32>
    %47 = vector.shape_cast %46 : vector<1x8x3xf32> to vector<8x3xf32>
    %c1_38 = arith.constant 1 : index
    %c0_39 = arith.constant 0 : index
    %c0_40 = arith.constant 0 : index
    %48 = vector.load %arg5[%c1_38, %c0_39, %c0_40] : memref<3x8x1xf32, #tpu.memory_space<vmem>>, vector<1x8x1xf32>
    %49 = vector.shape_cast %48 : vector<1x8x1xf32> to vector<8x1xf32>
    %c1_41 = arith.constant 1 : index
    %c0_42 = arith.constant 0 : index
    %c0_43 = arith.constant 0 : index
    %50 = vector.load %arg6[%c1_41, %c0_42, %c0_43] : memref<3x8x3xf32, #tpu.memory_space<vmem>>, vector<1x8x3xf32>
    %51 = vector.shape_cast %50 : vector<1x8x3xf32> to vector<8x3xf32>
    %c1_44 = arith.constant 1 : index
    %c0_45 = arith.constant 0 : index
    %c0_46 = arith.constant 0 : index
    %52 = vector.load %arg7[%c1_44, %c0_45, %c0_46] : memref<3x8x1xf32, #tpu.memory_space<vmem>>, vector<1x8x1xf32>
    %53 = vector.shape_cast %52 : vector<1x8x1xf32> to vector<8x1xf32>
    %c1_47 = arith.constant 1 : index
    %c0_48 = arith.constant 0 : index
    %c0_49 = arith.constant 0 : index
    %54 = vector.load %arg8[%c1_47, %c0_48, %c0_49] : memref<3x16x3xf32, #tpu.memory_space<vmem>>, vector<1x16x3xf32>
    %55 = vector.shape_cast %54 : vector<1x16x3xf32> to vector<16x3xf32>
    %c1_50 = arith.constant 1 : index
    %c0_51 = arith.constant 0 : index
    %c0_52 = arith.constant 0 : index
    %56 = vector.load %arg9[%c1_50, %c0_51, %c0_52] : memref<3x16x1xf32, #tpu.memory_space<vmem>>, vector<1x16x1xf32>
    %57 = vector.shape_cast %56 : vector<1x16x1xf32> to vector<16x1xf32>
    %c1_53 = arith.constant 1 : index
    %c0_54 = arith.constant 0 : index
    %c0_55 = arith.constant 0 : index
    %58 = vector.load %arg10[%c1_53, %c0_54, %c0_55] : memref<3x16x8xf32, #tpu.memory_space<vmem>>, vector<1x16x8xf32>
    %59 = vector.shape_cast %58 : vector<1x16x8xf32> to vector<16x8xf32>
    %c1_56 = arith.constant 1 : index
    %c0_57 = arith.constant 0 : index
    %c0_58 = arith.constant 0 : index
    %60 = vector.load %arg11[%c1_56, %c0_57, %c0_58] : memref<3x16x1xf32, #tpu.memory_space<vmem>>, vector<1x16x1xf32>
    %61 = vector.shape_cast %60 : vector<1x16x1xf32> to vector<16x1xf32>
    %c1_59 = arith.constant 1 : index
    %c0_60 = arith.constant 0 : index
    %c0_61 = arith.constant 0 : index
    %62 = vector.load %arg3[%c1_59, %c0_60, %c0_61] : memref<3x1x256xf32, #tpu.memory_space<vmem>>, vector<1x1x256xf32>
    %63 = vector.shape_cast %62 : vector<1x1x256xf32> to vector<1x256xf32>
    %cst_62 = arith.constant dense<0.000000e+00> : vector<8x16xf32>
    %64 = tpu.matmul %47, %3, %cst_62 {dimension_numbers = #tpu.dot_dimension_numbers<[1], [0], [0], [1], [0, 0, 1, 1], [], []>} : vector<8x3xf32>, vector<3x16xf32>, vector<8x16xf32> -> vector<8x16xf32>
    %65 = vector.broadcast %49 : vector<8x1xf32> to vector<8x16xf32>
    %66 = arith.addf %64, %65 : vector<8x16xf32>
    %cst_63 = arith.constant dense<0.000000e+00> : vector<8x16xf32>
    %67 = tpu.matmul %51, %3, %cst_63 {dimension_numbers = #tpu.dot_dimension_numbers<[1], [0], [0], [1], [0, 0, 1, 1], [], []>} : vector<8x3xf32>, vector<3x16xf32>, vector<8x16xf32> -> vector<8x16xf32>
    %68 = vector.broadcast %53 : vector<8x1xf32> to vector<8x16xf32>
    %69 = arith.addf %67, %68 : vector<8x16xf32>
    %cst_64 = arith.constant dense<0.000000e+00> : vector<16x128xf32>
    %70 = tpu.matmul %55, %1, %cst_64 {dimension_numbers = #tpu.dot_dimension_numbers<[1], [0], [0], [1], [0, 0, 1, 1], [], []>} : vector<16x3xf32>, vector<3x128xf32>, vector<16x128xf32> -> vector<16x128xf32>
    %71 = vector.broadcast %57 : vector<16x1xf32> to vector<16x128xf32>
    %72 = arith.addf %70, %71 : vector<16x128xf32>
    %73 = vector.shape_cast %72 : vector<16x128xf32> to vector<16x8x16xf32>
    %74 = vector.shape_cast %66 : vector<8x16xf32> to vector<8x1x16xf32>
    %75 = vector.shape_cast %69 : vector<8x16xf32> to vector<8x16x1xf32>
    %76 = vector.broadcast %74 : vector<8x1x16xf32> to vector<8x16x16xf32>
    %77 = vector.broadcast %75 : vector<8x16x1xf32> to vector<8x16x16xf32>
    %78 = arith.subf %76, %77 : vector<8x16x16xf32>
    %79 = math.tanh %78 : vector<8x16x16xf32>
    %80 = vector.shape_cast %79 : vector<8x16x16xf32> to vector<8x256xf32>
    %cst_65 = arith.constant dense<0.000000e+00> : vector<16x256xf32>
    %81 = tpu.matmul %59, %80, %cst_65 {dimension_numbers = #tpu.dot_dimension_numbers<[1], [0], [0], [1], [0, 0, 1, 1], [], []>} : vector<16x8xf32>, vector<8x256xf32>, vector<16x256xf32> -> vector<16x256xf32>
    %82 = vector.broadcast %61 : vector<16x1xf32> to vector<16x256xf32>
    %83 = arith.addf %81, %82 : vector<16x256xf32>
    %84 = vector.broadcast %63 : vector<1x256xf32> to vector<16x256xf32>
    %85 = arith.addf %83, %84 : vector<16x256xf32>
    %86 = vector.shape_cast %85 : vector<16x256xf32> to vector<16x16x16xf32>
    %cst_66 = arith.constant dense<0.000000e+00> : vector<16x8x16xf32>
    %87 = tpu.matmul %73, %86, %cst_66 {dimension_numbers = #tpu.dot_dimension_numbers<[2], [1], [1], [2], [0, 0, 0, 1, 1, 2], [0], [0]>} : vector<16x8x16xf32>, vector<16x16x16xf32>, vector<16x8x16xf32> -> vector<16x8x16xf32>
    %88 = arith.addf %45, %87 : vector<16x8x16xf32>
    %c2 = arith.constant 2 : index
    %c0_67 = arith.constant 0 : index
    %c0_68 = arith.constant 0 : index
    %89 = vector.load %arg4[%c2, %c0_67, %c0_68] : memref<3x8x3xf32, #tpu.memory_space<vmem>>, vector<1x8x3xf32>
    %90 = vector.shape_cast %89 : vector<1x8x3xf32> to vector<8x3xf32>
    %c2_69 = arith.constant 2 : index
    %c0_70 = arith.constant 0 : index
    %c0_71 = arith.constant 0 : index
    %91 = vector.load %arg5[%c2_69, %c0_70, %c0_71] : memref<3x8x1xf32, #tpu.memory_space<vmem>>, vector<1x8x1xf32>
    %92 = vector.shape_cast %91 : vector<1x8x1xf32> to vector<8x1xf32>
    %c2_72 = arith.constant 2 : index
    %c0_73 = arith.constant 0 : index
    %c0_74 = arith.constant 0 : index
    %93 = vector.load %arg6[%c2_72, %c0_73, %c0_74] : memref<3x8x3xf32, #tpu.memory_space<vmem>>, vector<1x8x3xf32>
    %94 = vector.shape_cast %93 : vector<1x8x3xf32> to vector<8x3xf32>
    %c2_75 = arith.constant 2 : index
    %c0_76 = arith.constant 0 : index
    %c0_77 = arith.constant 0 : index
    %95 = vector.load %arg7[%c2_75, %c0_76, %c0_77] : memref<3x8x1xf32, #tpu.memory_space<vmem>>, vector<1x8x1xf32>
    %96 = vector.shape_cast %95 : vector<1x8x1xf32> to vector<8x1xf32>
    %c2_78 = arith.constant 2 : index
    %c0_79 = arith.constant 0 : index
    %c0_80 = arith.constant 0 : index
    %97 = vector.load %arg8[%c2_78, %c0_79, %c0_80] : memref<3x16x3xf32, #tpu.memory_space<vmem>>, vector<1x16x3xf32>
    %98 = vector.shape_cast %97 : vector<1x16x3xf32> to vector<16x3xf32>
    %c2_81 = arith.constant 2 : index
    %c0_82 = arith.constant 0 : index
    %c0_83 = arith.constant 0 : index
    %99 = vector.load %arg9[%c2_81, %c0_82, %c0_83] : memref<3x16x1xf32, #tpu.memory_space<vmem>>, vector<1x16x1xf32>
    %100 = vector.shape_cast %99 : vector<1x16x1xf32> to vector<16x1xf32>
    %c2_84 = arith.constant 2 : index
    %c0_85 = arith.constant 0 : index
    %c0_86 = arith.constant 0 : index
    %101 = vector.load %arg10[%c2_84, %c0_85, %c0_86] : memref<3x16x8xf32, #tpu.memory_space<vmem>>, vector<1x16x8xf32>
    %102 = vector.shape_cast %101 : vector<1x16x8xf32> to vector<16x8xf32>
    %c2_87 = arith.constant 2 : index
    %c0_88 = arith.constant 0 : index
    %c0_89 = arith.constant 0 : index
    %103 = vector.load %arg11[%c2_87, %c0_88, %c0_89] : memref<3x16x1xf32, #tpu.memory_space<vmem>>, vector<1x16x1xf32>
    %104 = vector.shape_cast %103 : vector<1x16x1xf32> to vector<16x1xf32>
    %c2_90 = arith.constant 2 : index
    %c0_91 = arith.constant 0 : index
    %c0_92 = arith.constant 0 : index
    %105 = vector.load %arg3[%c2_90, %c0_91, %c0_92] : memref<3x1x256xf32, #tpu.memory_space<vmem>>, vector<1x1x256xf32>
    %106 = vector.shape_cast %105 : vector<1x1x256xf32> to vector<1x256xf32>
    %cst_93 = arith.constant dense<0.000000e+00> : vector<8x16xf32>
    %107 = tpu.matmul %90, %3, %cst_93 {dimension_numbers = #tpu.dot_dimension_numbers<[1], [0], [0], [1], [0, 0, 1, 1], [], []>} : vector<8x3xf32>, vector<3x16xf32>, vector<8x16xf32> -> vector<8x16xf32>
    %108 = vector.broadcast %92 : vector<8x1xf32> to vector<8x16xf32>
    %109 = arith.addf %107, %108 : vector<8x16xf32>
    %cst_94 = arith.constant dense<0.000000e+00> : vector<8x16xf32>
    %110 = tpu.matmul %94, %3, %cst_94 {dimension_numbers = #tpu.dot_dimension_numbers<[1], [0], [0], [1], [0, 0, 1, 1], [], []>} : vector<8x3xf32>, vector<3x16xf32>, vector<8x16xf32> -> vector<8x16xf32>
    %111 = vector.broadcast %96 : vector<8x1xf32> to vector<8x16xf32>
    %112 = arith.addf %110, %111 : vector<8x16xf32>
    %cst_95 = arith.constant dense<0.000000e+00> : vector<16x128xf32>
    %113 = tpu.matmul %98, %1, %cst_95 {dimension_numbers = #tpu.dot_dimension_numbers<[1], [0], [0], [1], [0, 0, 1, 1], [], []>} : vector<16x3xf32>, vector<3x128xf32>, vector<16x128xf32> -> vector<16x128xf32>
    %114 = vector.broadcast %100 : vector<16x1xf32> to vector<16x128xf32>
    %115 = arith.addf %113, %114 : vector<16x128xf32>
    %116 = vector.shape_cast %115 : vector<16x128xf32> to vector<16x8x16xf32>
    %117 = vector.shape_cast %109 : vector<8x16xf32> to vector<8x1x16xf32>
    %118 = vector.shape_cast %112 : vector<8x16xf32> to vector<8x16x1xf32>
    %119 = vector.broadcast %117 : vector<8x1x16xf32> to vector<8x16x16xf32>
    %120 = vector.broadcast %118 : vector<8x16x1xf32> to vector<8x16x16xf32>
    %121 = arith.subf %119, %120 : vector<8x16x16xf32>
    %122 = math.tanh %121 : vector<8x16x16xf32>
    %123 = vector.shape_cast %122 : vector<8x16x16xf32> to vector<8x256xf32>
    %cst_96 = arith.constant dense<0.000000e+00> : vector<16x256xf32>
    %124 = tpu.matmul %102, %123, %cst_96 {dimension_numbers = #tpu.dot_dimension_numbers<[1], [0], [0], [1], [0, 0, 1, 1], [], []>} : vector<16x8xf32>, vector<8x256xf32>, vector<16x256xf32> -> vector<16x256xf32>
    %125 = vector.broadcast %104 : vector<16x1xf32> to vector<16x256xf32>
    %126 = arith.addf %124, %125 : vector<16x256xf32>
    %127 = vector.broadcast %106 : vector<1x256xf32> to vector<16x256xf32>
    %128 = arith.addf %126, %127 : vector<16x256xf32>
    %129 = vector.shape_cast %128 : vector<16x256xf32> to vector<16x16x16xf32>
    %cst_97 = arith.constant dense<0.000000e+00> : vector<16x8x16xf32>
    %130 = tpu.matmul %116, %129, %cst_97 {dimension_numbers = #tpu.dot_dimension_numbers<[2], [1], [1], [2], [0, 0, 0, 1, 1, 2], [0], [0]>} : vector<16x8x16xf32>, vector<16x16x16xf32>, vector<16x8x16xf32> -> vector<16x8x16xf32>
    %131 = arith.addf %88, %130 : vector<16x8x16xf32>
    %132 = vector.shape_cast %131 : vector<16x8x16xf32> to vector<16x128xf32>
    %c0_98 = arith.constant 0 : index
    %c0_99 = arith.constant 0 : index
    %133 = vector.load %arg12[%c0_98, %c0_99] : memref<16x1xf32, #tpu.memory_space<vmem>>, vector<16x1xf32>
    %134 = vector.broadcast %133 : vector<16x1xf32> to vector<16x128xf32>
    %135 = arith.mulf %132, %134 : vector<16x128xf32>
    %c0_100 = arith.constant 0 : index
    %c0_101 = arith.constant 0 : index
    %136 = vector.load %arg13[%c0_100, %c0_101] : memref<16x1xf32, #tpu.memory_space<vmem>>, vector<16x1xf32>
    %137 = vector.broadcast %136 : vector<16x1xf32> to vector<16x128xf32>
    %138 = arith.addf %135, %137 : vector<16x128xf32>
    %c0_102 = arith.constant 0 : index
    %c0_103 = arith.constant 0 : index
    %139 = vector.load %arg14[%c0_102, %c0_103] : memref<16x3xf32, #tpu.memory_space<vmem>>, vector<16x3xf32>
    %cst_104 = arith.constant dense<0.000000e+00> : vector<16x128xf32>
    %140 = tpu.matmul %139, %1, %cst_104 {dimension_numbers = #tpu.dot_dimension_numbers<[1], [0], [0], [1], [0, 0, 1, 1], [], []>} : vector<16x3xf32>, vector<3x128xf32>, vector<16x128xf32> -> vector<16x128xf32>
    %141 = arith.addf %138, %140 : vector<16x128xf32>
    %c0_105 = arith.constant 0 : index
    %c0_106 = arith.constant 0 : index
    %142 = vector.load %arg15[%c0_105, %c0_106] : memref<16x1xf32, #tpu.memory_space<vmem>>, vector<16x1xf32>
    %143 = vector.broadcast %142 : vector<16x1xf32> to vector<16x128xf32>
    %144 = arith.addf %141, %143 : vector<16x128xf32>
    %cst_107 = arith.constant 0.000000e+00 : f32
    %145 = vector.broadcast %cst_107 : f32 to vector<16x128xf32>
    %146 = arith.maximumf %144, %145 : vector<16x128xf32>
    %c0_108 = arith.constant 0 : index
    %c0_109 = arith.constant 0 : index
    %c0_110 = arith.constant 0 : index
    %147 = vector.load %arg16[%c0_108, %c0_109, %c0_110] : memref<1x16x128xf32, #tpu.memory_space<vmem>>, vector<1x16x128xf32>
    %148 = vector.shape_cast %147 : vector<1x16x128xf32> to vector<16x128xf32>
    %149 = vector.shape_cast %146 : vector<16x128xf32> to vector<1x16x128xf32>
    tpu.vector_store %arg16[%c0_108, %c0_109, %c0_110], %149 {strides = array<i32>} : memref<1x16x128xf32, #tpu.memory_space<vmem>>, vector<1x16x128xf32>,
    return
  }
  func.func @transform_0(%arg0: i32) -> (i32, i32, i32) {
    %c0_i32 = arith.constant 0 : i32
    %c0_i32_0 = arith.constant 0 : i32
    %c0_i32_1 = arith.constant 0 : i32
    return %arg0, %c0_i32, %c0_i32_0 : i32, i32, i32
  }
  func.func @transform_1(%arg0: i32) -> (i32, i32) {
    %c0_i32 = arith.constant 0 : i32
    %c0_i32_0 = arith.constant 0 : i32
    %c0_i32_1 = arith.constant 0 : i32
    return %c0_i32, %c0_i32_0 : i32, i32
  }
  func.func @transform_2(%arg0: i32) -> (i32, i32, i32) {
    %c0_i32 = arith.constant 0 : i32
    %c0_i32_0 = arith.constant 0 : i32
    %c0_i32_1 = arith.constant 0 : i32
    %c0_i32_2 = arith.constant 0 : i32
    return %c0_i32, %c0_i32_0, %c0_i32_1 : i32, i32, i32
  }
  func.func @transform_3(%arg0: i32) -> (i32, i32, i32) {
    %c0_i32 = arith.constant 0 : i32
    %c0_i32_0 = arith.constant 0 : i32
    %c0_i32_1 = arith.constant 0 : i32
    %c0_i32_2 = arith.constant 0 : i32
    return %c0_i32, %c0_i32_0, %c0_i32_1 : i32, i32, i32
  }
  func.func @transform_4(%arg0: i32) -> (i32, i32, i32) {
    %c0_i32 = arith.constant 0 : i32
    %c0_i32_0 = arith.constant 0 : i32
    %c0_i32_1 = arith.constant 0 : i32
    %c0_i32_2 = arith.constant 0 : i32
    return %c0_i32, %c0_i32_0, %c0_i32_1 : i32, i32, i32
  }
  func.func @transform_5(%arg0: i32) -> (i32, i32, i32) {
    %c0_i32 = arith.constant 0 : i32
    %c0_i32_0 = arith.constant 0 : i32
    %c0_i32_1 = arith.constant 0 : i32
    %c0_i32_2 = arith.constant 0 : i32
    return %c0_i32, %c0_i32_0, %c0_i32_1 : i32, i32, i32
  }
  func.func @transform_6(%arg0: i32) -> (i32, i32, i32) {
    %c0_i32 = arith.constant 0 : i32
    %c0_i32_0 = arith.constant 0 : i32
    %c0_i32_1 = arith.constant 0 : i32
    %c0_i32_2 = arith.constant 0 : i32
    return %c0_i32, %c0_i32_0, %c0_i32_1 : i32, i32, i32
  }
  func.func @transform_7(%arg0: i32) -> (i32, i32, i32) {
    %c0_i32 = arith.constant 0 : i32
    %c0_i32_0 = arith.constant 0 : i32
    %c0_i32_1 = arith.constant 0 : i32
    %c0_i32_2 = arith.constant 0 : i32
    return %c0_i32, %c0_i32_0, %c0_i32_1 : i32, i32, i32
  }
  func.func @transform_8(%arg0: i32) -> (i32, i32, i32) {
    %c0_i32 = arith.constant 0 : i32
    %c0_i32_0 = arith.constant 0 : i32
    %c0_i32_1 = arith.constant 0 : i32
    %c0_i32_2 = arith.constant 0 : i32
    return %c0_i32, %c0_i32_0, %c0_i32_1 : i32, i32, i32
  }
  func.func @transform_9(%arg0: i32) -> (i32, i32, i32) {
    %c0_i32 = arith.constant 0 : i32
    %c0_i32_0 = arith.constant 0 : i32
    %c0_i32_1 = arith.constant 0 : i32
    %c0_i32_2 = arith.constant 0 : i32
    return %c0_i32, %c0_i32_0, %c0_i32_1 : i32, i32, i32
  }
  func.func @transform_10(%arg0: i32) -> (i32, i32, i32) {
    %c0_i32 = arith.constant 0 : i32
    %c0_i32_0 = arith.constant 0 : i32
    %c0_i32_1 = arith.constant 0 : i32
    %c0_i32_2 = arith.constant 0 : i32
    return %c0_i32, %c0_i32_0, %c0_i32_1 : i32, i32, i32
  }
  func.func @transform_11(%arg0: i32) -> (i32, i32) {
    %c0_i32 = arith.constant 0 : i32
    %c0_i32_0 = arith.constant 0 : i32
    %c0_i32_1 = arith.constant 0 : i32
    return %c0_i32, %c0_i32_0 : i32, i32
  }
  func.func @transform_12(%arg0: i32) -> (i32, i32) {
    %c0_i32 = arith.constant 0 : i32
    %c0_i32_0 = arith.constant 0 : i32
    %c0_i32_1 = arith.constant 0 : i32
    return %c0_i32, %c0_i32_0 : i32, i32
  }
  func.func @transform_13(%arg0: i32) -> (i32, i32) {
    %c0_i32 = arith.constant 0 : i32
    %c0_i32_0 = arith.constant 0 : i32
    %c0_i32_1 = arith.constant 0 : i32
    return %c0_i32, %c0_i32_0 : i32, i32
  }
  func.func @transform_14(%arg0: i32) -> (i32, i32) {
    %c0_i32 = arith.constant 0 : i32
    %c0_i32_0 = arith.constant 0 : i32
    %c0_i32_1 = arith.constant 0 : i32
    return %c0_i32, %c0_i32_0 : i32, i32
  }
  func.func @transform_15(%arg0: i32) -> (i32, i32, i32) {
    %c0_i32 = arith.constant 0 : i32
    %c0_i32_0 = arith.constant 0 : i32
    %c0_i32_1 = arith.constant 0 : i32
    return %arg0, %c0_i32, %c0_i32_0 : i32, i32, i32
  }
}

</mosaic_0001>

<llo_original>
// kernel: tpu_custom_call.1
$region0: #{tpu_custom_call.1}
  #allocation0 [shape = 'u32[]', space=smem, size = 0x4, offset = 0x4, fixed_abs, tag = 'smem constant byte address 0x4 - core index']
  #allocation1 [shape = 'u32[144,128]{1,0:T(1,128)}', space=vmem, size = 0x12000, scoped, tag = 'internal scratch']
  %s0 = inlined_call_operand.vmem [shape: f32[2,3,128], index: 0, kind: input, shape index: {}]
  %s1 = inlined_call_operand.vmem [shape: f32[128,16], index: 1, kind: input, shape index: {}]
  %s2 = inlined_call_operand.vmem [shape: f32[3,1,256], index: 2, kind: input, shape index: {}]
  %s3 = inlined_call_operand.vmem [shape: f32[3,8,3], index: 3, kind: input, shape index: {}]
  %s4 = inlined_call_operand.vmem [shape: f32[3,8,1], index: 4, kind: input, shape index: {}]
  %s5 = inlined_call_operand.vmem [shape: f32[3,8,3], index: 5, kind: input, shape index: {}]
  %s6 = inlined_call_operand.vmem [shape: f32[3,8,1], index: 6, kind: input, shape index: {}]
  %s7 = inlined_call_operand.vmem [shape: f32[3,16,3], index: 7, kind: input, shape index: {}]
  %s8 = inlined_call_operand.vmem [shape: f32[3,16,1], index: 8, kind: input, shape index: {}]
  %s9 = inlined_call_operand.vmem [shape: f32[3,16,8], index: 9, kind: input, shape index: {}]
  %s10 = inlined_call_operand.vmem [shape: f32[3,16,1], index: 10, kind: input, shape index: {}]
  %s11 = inlined_call_operand.vmem [shape: f32[16,1], index: 11, kind: input, shape index: {}]
  %s12 = inlined_call_operand.vmem [shape: f32[16,1], index: 12, kind: input, shape index: {}]
  %s13 = inlined_call_operand.vmem [shape: f32[16,3], index: 13, kind: input, shape index: {}]
  %s14 = inlined_call_operand.vmem [shape: f32[16,1], index: 14, kind: input, shape index: {}]
  %s15 = inlined_call_operand.hbm [shape: f32[2,16,128], index: 15, kind: output, shape index: {}]
  %s16 = sld [smem:[#allocation0]]
  $region93: #{tpu_custom_call.1} parent=0
    _
  %s18 = ssub.s32 1, %s16
  %s19 = scalar_select 0, %s18, %s16
  $region1: #{tpu_custom_call.1} parent=0
    #allocation2 [shape = 'u8[16384]{0}', space=vmem, size = 0x4000, scoped, tag = 'output window, operand 0']
    #allocation3 [shape = 's32[2]{0}', space=sflag, size = 0x8, scoped, tag = 'scoped memory for tpu_custom_call.1']
    %20 = vsyncpa [#allocation3], 0
    %s21 = scalar_lea.sflag [#allocation3], 1
    %22 = vsyncpa %s21, 0
    loop: start=0, step=1, limit=4
    $region2: #{tpu_custom_call.1} parent=1 // loop_pre_header
      _
    $region3: #{tpu_custom_call.1} parent=1 // loop_header
      %s24 = sphi 0, %s28
      %p25 = scmp.ge.s32.totalorder %s24, 4
      %s34 = sphi 0, %s36
      %s37 = sphi 0, %s34
      %s38 = sphi 0, %s37
      %s54 = sphi 0, %s38
      %s58 = sphi 0, %s58
      %s60 = sphi 0, %s58
      %s61 = sphi 0, %s60
      %s75 = sphi 0, %s61
      %s79 = sphi 0, %s79
      %s81 = sphi 0, %s79
      %s82 = sphi 0, %s81
      %s96 = sphi 0, %s82
      %s100 = sphi 0, %s100
      %s102 = sphi 0, %s100
      %s103 = sphi 0, %s102
      %s117 = sphi 0, %s103
      %s121 = sphi 0, %s121
      %s123 = sphi 0, %s121
      %s124 = sphi 0, %s123
      %s138 = sphi 0, %s124
      %s142 = sphi 0, %s142
      %s144 = sphi 0, %s142
      %s145 = sphi 0, %s144
      %s159 = sphi 0, %s145
      %s163 = sphi 0, %s163
      %s165 = sphi 0, %s163
      %s166 = sphi 0, %s165
      %s180 = sphi 0, %s166
      %s184 = sphi 0, %s184
      %s186 = sphi 0, %s184
      %s187 = sphi 0, %s186
      %s201 = sphi 0, %s187
      %s205 = sphi 0, %s205
      %s207 = sphi 0, %s205
      %s208 = sphi 0, %s207
      %s222 = sphi 0, %s208
      %s226 = sphi 0, %s226
      %s228 = sphi 0, %s226
      %s229 = sphi 0, %s228
      %s243 = sphi 0, %s229
      %s247 = sphi 0, %s247
      %s249 = sphi 0, %s247
      %s250 = sphi 0, %s249
      %s264 = sphi 0, %s250
      %s268 = sphi 0, %s268
      %s270 = sphi 0, %s268
      %s271 = sphi 0, %s270
      %s285 = sphi 0, %s271
      %s289 = sphi 0, %s289
      %s291 = sphi 0, %s289
      %s292 = sphi 0, %s291
      %s306 = sphi 0, %s292
      %s310 = sphi 0, %s310
      %s312 = sphi 0, %s310
      %s313 = sphi 0, %s312
      %s327 = sphi 0, %s313
      %s331 = sphi 0, %s331
      %s333 = sphi 0, %s331
      %s334 = sphi 0, %s333
      %s348 = sphi 0, %s334
      %s354 = sphi 0, %s356
      %s357 = sphi 0, %s354
      %s358 = sphi 0, %s357
      %s374 = sphi 0, %s358
    $region4: #{tpu_custom_call.1} parent=1 // loop_header_branch
      %27 = sbr.rel (%p25) target = $region8
    $region5: #{tpu_custom_call.1} parent=1 // loop_body
      %s29 = ssub.s32 %s24, 1
      %s30 = ssub.s32 %s24, 2
      %s31 = sadd.s32 %s24, 1
      %s32 = ssub.s32 %s24, %s31
      %p33 = scmp.eq.s32.totalorder %s32, 0
      %s35 = sadd.s32 %s34, 1
      %s36 = scalar_select %p33, %s34, %s35
      %p39 = pneg %p33
      %p40 = scmp.eq.s32.totalorder %s24, 1
      %p41 = por %p39, %p40
      %p42 = scmp.ne.s32.totalorder %s34, %s37
      %p43 = scmp.eq.s32.totalorder %s24, 0
      %p44 = por %p42, %p43
      %p45 = scmp.ne.s32.totalorder %s34, %s37
      %p46 = scmp.eq.s32.totalorder %s29, 1
      %p47 = por %p45, %p46
      %p48 = scmp.ne.s32.totalorder %s37, %s38
      %p49 = scmp.eq.s32.totalorder %s29, 0
      %p50 = por %p48, %p49
      %p51 = scmp.ne.s32.totalorder %s37, %s38
      %p52 = scmp.eq.s32.totalorder %s30, 1
      %p53 = por %p51, %p52
      %p55 = scmp.ne.s32.totalorder %s38, %s54
      %p56 = scmp.eq.s32.totalorder %s30, 0
      %p57 = por %p55, %p56
      %s59 = sadd.s32 %s58, 1
      %p62 = scmp.eq.s32.totalorder %s24, 1
      %p63 = scmp.ne.s32.totalorder %s58, %s60
      %p64 = scmp.eq.s32.totalorder %s24, 0
      %p65 = por %p63, %p64
      %p66 = scmp.ne.s32.totalorder %s58, %s60
      %p67 = scmp.eq.s32.totalorder %s29, 1
      %p68 = por %p66, %p67
      %p69 = scmp.ne.s32.totalorder %s60, %s61
      %p70 = scmp.eq.s32.totalorder %s29, 0
      %p71 = por %p69, %p70
      %p72 = scmp.ne.s32.totalorder %s60, %s61
      %p73 = scmp.eq.s32.totalorder %s30, 1
      %p74 = por %p72, %p73
      %p76 = scmp.ne.s32.totalorder %s61, %s75
      %p77 = scmp.eq.s32.totalorder %s30, 0
      %p78 = por %p76, %p77
      %s80 = sadd.s32 %s79, 1
      %p83 = scmp.eq.s32.totalorder %s24, 1
      %p84 = scmp.ne.s32.totalorder %s79, %s81
      %p85 = scmp.eq.s32.totalorder %s24, 0
      %p86 = por %p84, %p85
      %p87 = scmp.ne.s32.totalorder %s79, %s81
      %p88 = scmp.eq.s32.totalorder %s29, 1
      %p89 = por %p87, %p88
      %p90 = scmp.ne.s32.totalorder %s81, %s82
      %p91 = scmp.eq.s32.totalorder %s29, 0
      %p92 = por %p90, %p91
      %p93 = scmp.ne.s32.totalorder %s81, %s82
      %p94 = scmp.eq.s32.totalorder %s30, 1
      %p95 = por %p93, %p94
      %p97 = scmp.ne.s32.totalorder %s82, %s96
      %p98 = scmp.eq.s32.totalorder %s30, 0
      %p99 = por %p97, %p98
      %s101 = sadd.s32 %s100, 1
      %p104 = scmp.eq.s32.totalorder %s24, 1
      %p105 = scmp.ne.s32.totalorder %s100, %s102
      %p106 = scmp.eq.s32.totalorder %s24, 0
      %p107 = por %p105, %p106
      %p108 = scmp.ne.s32.totalorder %s100, %s102
      %p109 = scmp.eq.s32.totalorder %s29, 1
      %p110 = por %p108, %p109
      %p111 = scmp.ne.s32.totalorder %s102, %s103
      %p112 = scmp.eq.s32.totalorder %s29, 0
      %p113 = por %p111, %p112
      %p114 = scmp.ne.s32.totalorder %s102, %s103
      %p115 = scmp.eq.s32.totalorder %s30, 1
      %p116 = por %p114, %p115
      %p118 = scmp.ne.s32.totalorder %s103, %s117
      %p119 = scmp.eq.s32.totalorder %s30, 0
      %p120 = por %p118, %p119
      %s122 = sadd.s32 %s121, 1
      %p125 = scmp.eq.s32.totalorder %s24, 1
      %p126 = scmp.ne.s32.totalorder %s121, %s123
      %p127 = scmp.eq.s32.totalorder %s24, 0
      %p128 = por %p126, %p127
      %p129 = scmp.ne.s32.totalorder %s121, %s123
      %p130 = scmp.eq.s32.totalorder %s29, 1
      %p131 = por %p129, %p130
      %p132 = scmp.ne.s32.totalorder %s123, %s124
      %p133 = scmp.eq.s32.totalorder %s29, 0
      %p134 = por %p132, %p133
      %p135 = scmp.ne.s32.totalorder %s123, %s124
      %p136 = scmp.eq.s32.totalorder %s30, 1
      %p137 = por %p135, %p136
      %p139 = scmp.ne.s32.totalorder %s124, %s138
      %p140 = scmp.eq.s32.totalorder %s30, 0
      %p141 = por %p139, %p140
      %s143 = sadd.s32 %s142, 1
      %p146 = scmp.eq.s32.totalorder %s24, 1
      %p147 = scmp.ne.s32.totalorder %s142, %s144
      %p148 = scmp.eq.s32.totalorder %s24, 0
      %p149 = por %p147, %p148
      %p150 = scmp.ne.s32.totalorder %s142, %s144
      %p151 = scmp.eq.s32.totalorder %s29, 1
      %p152 = por %p150, %p151
      %p153 = scmp.ne.s32.totalorder %s144, %s145
      %p154 = scmp.eq.s32.totalorder %s29, 0
      %p155 = por %p153, %p154
      %p156 = scmp.ne.s32.totalorder %s144, %s145
      %p157 = scmp.eq.s32.totalorder %s30, 1
      %p158 = por %p156, %p157
      %p160 = scmp.ne.s32.totalorder %s145, %s159
      %p161 = scmp.eq.s32.totalorder %s30, 0
      %p162 = por %p160, %p161
      %s164 = sadd.s32 %s163, 1
      %p167 = scmp.eq.s32.totalorder %s24, 1
      %p168 = scmp.ne.s32.totalorder %s163, %s165
      %p169 = scmp.eq.s32.totalorder %s24, 0
      %p170 = por %p168, %p169
      %p171 = scmp.ne.s32.totalorder %s163, %s165
      %p172 = scmp.eq.s32.totalorder %s29, 1
      %p173 = por %p171, %p172
      %p174 = scmp.ne.s32.totalorder %s165, %s166
      %p175 = scmp.eq.s32.totalorder %s29, 0
      %p176 = por %p174, %p175
      %p177 = scmp.ne.s32.totalorder %s165, %s166
      %p178 = scmp.eq.s32.totalorder %s30, 1
      %p179 = por %p177, %p178
      %p181 = scmp.ne.s32.totalorder %s166, %s180
      %p182 = scmp.eq.s32.totalorder %s30, 0
      %p183 = por %p181, %p182
      %s185 = sadd.s32 %s184, 1
      %p188 = scmp.eq.s32.totalorder %s24, 1
      %p189 = scmp.ne.s32.totalorder %s184, %s186
      %p190 = scmp.eq.s32.totalorder %s24, 0
      %p191 = por %p189, %p190
      %p192 = scmp.ne.s32.totalorder %s184, %s186
      %p193 = scmp.eq.s32.totalorder %s29, 1
      %p194 = por %p192, %p193
      %p195 = scmp.ne.s32.totalorder %s186, %s187
      %p196 = scmp.eq.s32.totalorder %s29, 0
      %p197 = por %p195, %p196
      %p198 = scmp.ne.s32.totalorder %s186, %s187
      %p199 = scmp.eq.s32.totalorder %s30, 1
      %p200 = por %p198, %p199
      %p202 = scmp.ne.s32.totalorder %s187, %s201
      %p203 = scmp.eq.s32.totalorder %s30, 0
      %p204 = por %p202, %p203
      %s206 = sadd.s32 %s205, 1
      %p209 = scmp.eq.s32.totalorder %s24, 1
      %p210 = scmp.ne.s32.totalorder %s205, %s207
      %p211 = scmp.eq.s32.totalorder %s24, 0
      %p212 = por %p210, %p211
      %p213 = scmp.ne.s32.totalorder %s205, %s207
      %p214 = scmp.eq.s32.totalorder %s29, 1
      %p215 = por %p213, %p214
      %p216 = scmp.ne.s32.totalorder %s207, %s208
      %p217 = scmp.eq.s32.totalorder %s29, 0
      %p218 = por %p216, %p217
      %p219 = scmp.ne.s32.totalorder %s207, %s208
      %p220 = scmp.eq.s32.totalorder %s30, 1
      %p221 = por %p219, %p220
      %p223 = scmp.ne.s32.totalorder %s208, %s222
      %p224 = scmp.eq.s32.totalorder %s30, 0
      %p225 = por %p223, %p224
      %s227 = sadd.s32 %s226, 1
      %p230 = scmp.eq.s32.totalorder %s24, 1
      %p231 = scmp.ne.s32.totalorder %s226, %s228
      %p232 = scmp.eq.s32.totalorder %s24, 0
      %p233 = por %p231, %p232
      %p234 = scmp.ne.s32.totalorder %s226, %s228
      %p235 = scmp.eq.s32.totalorder %s29, 1
      %p236 = por %p234, %p235
      %p237 = scmp.ne.s32.totalorder %s228, %s229
      %p238 = scmp.eq.s32.totalorder %s29, 0
      %p239 = por %p237, %p238
      %p240 = scmp.ne.s32.totalorder %s228, %s229
      %p241 = scmp.eq.s32.totalorder %s30, 1
      %p242 = por %p240, %p241
      %p244 = scmp.ne.s32.totalorder %s229, %s243
      %p245 = scmp.eq.s32.totalorder %s30, 0
      %p246 = por %p244, %p245
      %s248 = sadd.s32 %s247, 1
      %p251 = scmp.eq.s32.totalorder %s24, 1
      %p252 = scmp.ne.s32.totalorder %s247, %s249
      %p253 = scmp.eq.s32.totalorder %s24, 0
      %p254 = por %p252, %p253
      %p255 = scmp.ne.s32.totalorder %s247, %s249
      %p256 = scmp.eq.s32.totalorder %s29, 1
      %p257 = por %p255, %p256
      %p258 = scmp.ne.s32.totalorder %s249, %s250
      %p259 = scmp.eq.s32.totalorder %s29, 0
      %p260 = por %p258, %p259
      %p261 = scmp.ne.s32.totalorder %s249, %s250
      %p262 = scmp.eq.s32.totalorder %s30, 1
      %p263 = por %p261, %p262
      %p265 = scmp.ne.s32.totalorder %s250, %s264
      %p266 = scmp.eq.s32.totalorder %s30, 0
      %p267 = por %p265, %p266
      %s269 = sadd.s32 %s268, 1
      %p272 = scmp.eq.s32.totalorder %s24, 1
      %p273 = scmp.ne.s32.totalorder %s268, %s270
      %p274 = scmp.eq.s32.totalorder %s24, 0
      %p275 = por %p273, %p274
      %p276 = scmp.ne.s32.totalorder %s268, %s270
      %p277 = scmp.eq.s32.totalorder %s29, 1
      %p278 = por %p276, %p277
      %p279 = scmp.ne.s32.totalorder %s270, %s271
      %p280 = scmp.eq.s32.totalorder %s29, 0
      %p281 = por %p279, %p280
      %p282 = scmp.ne.s32.totalorder %s270, %s271
      %p283 = scmp.eq.s32.totalorder %s30, 1
      %p284 = por %p282, %p283
      %p286 = scmp.ne.s32.totalorder %s271, %s285
      %p287 = scmp.eq.s32.totalorder %s30, 0
      %p288 = por %p286, %p287
      %s290 = sadd.s32 %s289, 1
      %p293 = scmp.eq.s32.totalorder %s24, 1
      %p294 = scmp.ne.s32.totalorder %s289, %s291
      %p295 = scmp.eq.s32.totalorder %s24, 0
      %p296 = por %p294, %p295
      %p297 = scmp.ne.s32.totalorder %s289, %s291
      %p298 = scmp.eq.s32.totalorder %s29, 1
      %p299 = por %p297, %p298
      %p300 = scmp.ne.s32.totalorder %s291, %s292
      %p301 = scmp.eq.s32.totalorder %s29, 0
      %p302 = por %p300, %p301
      %p303 = scmp.ne.s32.totalorder %s291, %s292
      %p304 = scmp.eq.s32.totalorder %s30, 1
      %p305 = por %p303, %p304
      %p307 = scmp.ne.s32.totalorder %s292, %s306
      %p308 = scmp.eq.s32.totalorder %s30, 0
      %p309 = por %p307, %p308
      %s311 = sadd.s32 %s310, 1
      %p314 = scmp.eq.s32.totalorder %s24, 1
      %p315 = scmp.ne.s32.totalorder %s310, %s312
      %p316 = scmp.eq.s32.totalorder %s24, 0
      %p317 = por %p315, %p316
      %p318 = scmp.ne.s32.totalorder %s310, %s312
      %p319 = scmp.eq.s32.totalorder %s29, 1
      %p320 = por %p318, %p319
      %p321 = scmp.ne.s32.totalorder %s312, %s313
      %p322 = scmp.eq.s32.totalorder %s29, 0
      %p323 = por %p321, %p322
      %p324 = scmp.ne.s32.totalorder %s312, %s313
      %p325 = scmp.eq.s32.totalorder %s30, 1
      %p326 = por %p324, %p325
      %p328 = scmp.ne.s32.totalorder %s313, %s327
      %p329 = scmp.eq.s32.totalorder %s30, 0
      %p330 = por %p328, %p329
      %s332 = sadd.s32 %s331, 1
      %p335 = scmp.eq.s32.totalorder %s24, 1
      %p336 = scmp.ne.s32.totalorder %s331, %s333
      %p337 = scmp.eq.s32.totalorder %s24, 0
      %p338 = por %p336, %p337
      %p339 = scmp.ne.s32.totalorder %s331, %s333
      %p340 = scmp.eq.s32.totalorder %s29, 1
      %p341 = por %p339, %p340
      %p342 = scmp.ne.s32.totalorder %s333, %s334
      %p343 = scmp.eq.s32.totalorder %s29, 0
      %p344 = por %p342, %p343
      %p345 = scmp.ne.s32.totalorder %s333, %s334
      %p346 = scmp.eq.s32.totalorder %s30, 1
      %p347 = por %p345, %p346
      %p349 = scmp.ne.s32.totalorder %s334, %s348
      %p350 = scmp.eq.s32.totalorder %s30, 0
      %p351 = por %p349, %p350
      %s352 = ssub.s32 %s24, %s31
      %p353 = scmp.eq.s32.totalorder %s352, 0
      %s355 = sadd.s32 %s354, 1
      %s356 = scalar_select %p353, %s354, %s355
      %p359 = pneg %p353
      %p360 = scmp.eq.s32.totalorder %s24, 1
      %p361 = por %p359, %p360
      %p362 = scmp.ne.s32.totalorder %s354, %s357
      %p363 = scmp.eq.s32.totalorder %s24, 0
      %p364 = por %p362, %p363
      %p365 = scmp.ne.s32.totalorder %s354, %s357
      %p366 = scmp.eq.s32.totalorder %s29, 1
      %p367 = por %p365, %p366
      %p368 = scmp.ne.s32.totalorder %s357, %s358
      %p369 = scmp.eq.s32.totalorder %s29, 0
      %p370 = por %p368, %p369
      %p371 = scmp.ne.s32.totalorder %s357, %s358
      %p372 = scmp.eq.s32.totalorder %s30, 1
      %p373 = por %p371, %p372
      %p375 = scmp.ne.s32.totalorder %s358, %s374
      %p376 = scmp.eq.s32.totalorder %s30, 0
      %p377 = por %p375, %p376
      %p378 = scmp.le.s32.totalorder 1, %s24
      %p379 = scmp.lt.s32.totalorder %s24, 3
      %p380 = pnand %p378, %p379
      %p381 = pneg %p380
      // Predicated region
      $region9: #{tpu_custom_call.1} parent=5 // pred_check
        _
      $region10: #{tpu_custom_call.1} parent=5 // pred_check_branch
        %383 = sbr.rel (%p380) target = $region12
      $region11: #{tpu_custom_call.1} parent=5 // pred_region
        %s384 = ssub.s32 %s24, 1
        // Predicated region
        $region13: #{tpu_custom_call.1} parent=11 // pred_check
          %p385 = pneg %p71
        $region14: #{tpu_custom_call.1} parent=11 // pred_check_branch
          %387 = sbr.rel (%p385) target = $region16
        $region15: #{tpu_custom_call.1} parent=11 // pred_region
          _
        $region16: #{tpu_custom_call.1} parent=11 // pred_fallthru
          _
        // Predicated region
        $region17: #{tpu_custom_call.1} parent=11 // pred_check
          %p388 = pneg %p92
        $region18: #{tpu_custom_call.1} parent=11 // pred_check_branch
          %390 = sbr.rel (%p388) target = $region20
        $region19: #{tpu_custom_call.1} parent=11 // pred_region
          _
        $region20: #{tpu_custom_call.1} parent=11 // pred_fallthru
          _
        // Predicated region
        $region21: #{tpu_custom_call.1} parent=11 // pred_check
          %p391 = pneg %p113
        $region22: #{tpu_custom_call.1} parent=11 // pred_check_branch
          %393 = sbr.rel (%p391) target = $region24
        $region23: #{tpu_custom_call.1} parent=11 // pred_region
          _
        $region24: #{tpu_custom_call.1} parent=11 // pred_fallthru
          _
        // Predicated region
        $region25: #{tpu_custom_call.1} parent=11 // pred_check
          %p394 = pneg %p134
        $region26: #{tpu_custom_call.1} parent=11 // pred_check_branch
          %396 = sbr.rel (%p394) target = $region28
        $region27: #{tpu_custom_call.1} parent=11 // pred_region
          _
        $region28: #{tpu_custom_call.1} parent=11 // pred_fallthru
          _
        // Predicated region
        $region29: #{tpu_custom_call.1} parent=11 // pred_check
          %p397 = pneg %p155
        $region30: #{tpu_custom_call.1} parent=11 // pred_check_branch
          %399 = sbr.rel (%p397) target = $region32
        $region31: #{tpu_custom_call.1} parent=11 // pred_region
          _
        $region32: #{tpu_custom_call.1} parent=11 // pred_fallthru
          _
        // Predicated region
        $region33: #{tpu_custom_call.1} parent=11 // pred_check
          %p400 = pneg %p176
        $region34: #{tpu_custom_call.1} parent=11 // pred_check_branch
          %402 = sbr.rel (%p400) target = $region36
        $region35: #{tpu_custom_call.1} parent=11 // pred_region
          _
        $region36: #{tpu_custom_call.1} parent=11 // pred_fallthru
          _
        // Predicated region
        $region37: #{tpu_custom_call.1} parent=11 // pred_check
          %p403 = pneg %p197
        $region38: #{tpu_custom_call.1} parent=11 // pred_check_branch
          %405 = sbr.rel (%p403) target = $region40
        $region39: #{tpu_custom_call.1} parent=11 // pred_region
          _
        $region40: #{tpu_custom_call.1} parent=11 // pred_fallthru
          _
        // Predicated region
        $region41: #{tpu_custom_call.1} parent=11 // pred_check
          %p406 = pneg %p218
        $region42: #{tpu_custom_call.1} parent=11 // pred_check_branch
          %408 = sbr.rel (%p406) target = $region44
        $region43: #{tpu_custom_call.1} parent=11 // pred_region
          _
        $region44: #{tpu_custom_call.1} parent=11 // pred_fallthru
          _
        // Predicated region
        $region45: #{tpu_custom_call.1} parent=11 // pred_check
          %p409 = pneg %p239
        $region46: #{tpu_custom_call.1} parent=11 // pred_check_branch
          %411 = sbr.rel (%p409) target = $region48
        $region47: #{tpu_custom_call.1} parent=11 // pred_region
          _
        $region48: #{tpu_custom_call.1} parent=11 // pred_fallthru
          _
        // Predicated region
        $region49: #{tpu_custom_call.1} parent=11 // pred_check
          %p412 = pneg %p260
        $region50: #{tpu_custom_call.1} parent=11 // pred_check_branch
          %414 = sbr.rel (%p412) target = $region52
        $region51: #{tpu_custom_call.1} parent=11 // pred_region
          _
        $region52: #{tpu_custom_call.1} parent=11 // pred_fallthru
          _
        // Predicated region
        $region53: #{tpu_custom_call.1} parent=11 // pred_check
          %p415 = pneg %p281
        $region54: #{tpu_custom_call.1} parent=11 // pred_check_branch
          %417 = sbr.rel (%p415) target = $region56
        $region55: #{tpu_custom_call.1} parent=11 // pred_region
          _
        $region56: #{tpu_custom_call.1} parent=11 // pred_fallthru
          _
        // Predicated region
        $region57: #{tpu_custom_call.1} parent=11 // pred_check
          %p418 = pneg %p302
        $region58: #{tpu_custom_call.1} parent=11 // pred_check_branch
          %420 = sbr.rel (%p418) target = $region60
        $region59: #{tpu_custom_call.1} parent=11 // pred_region
          _
        $region60: #{tpu_custom_call.1} parent=11 // pred_fallthru
          _
        // Predicated region
        $region61: #{tpu_custom_call.1} parent=11 // pred_check
          %p421 = pneg %p323
        $region62: #{tpu_custom_call.1} parent=11 // pred_check_branch
          %423 = sbr.rel (%p421) target = $region64
        $region63: #{tpu_custom_call.1} parent=11 // pred_region
          _
        $region64: #{tpu_custom_call.1} parent=11 // pred_fallthru
          _
        // Predicated region
        $region65: #{tpu_custom_call.1} parent=11 // pred_check
          %p424 = pneg %p344
        $region66: #{tpu_custom_call.1} parent=11 // pred_check_branch
          %426 = sbr.rel (%p424) target = $region68
        $region67: #{tpu_custom_call.1} parent=11 // pred_region
          _
        $region68: #{tpu_custom_call.1} parent=11 // pred_fallthru
          _
      $region12: #{tpu_custom_call.1} parent=5 // pred_fallthru
        _
      %p427 = scmp.lt.s32.totalorder %s24, 2
      // Predicated region
      $region69: #{tpu_custom_call.1} parent=5 // pred_check
        %p428 = pneg %p427
      $region70: #{tpu_custom_call.1} parent=5 // pred_check_branch
        %430 = sbr.rel (%p428) target = $region72
      $region71: #{tpu_custom_call.1} parent=5 // pred_region
        // Predicated region
        $region73: #{tpu_custom_call.1} parent=71 // pred_check
          %p431 = pneg %p44
        $region74: #{tpu_custom_call.1} parent=71 // pred_check_branch
          %433 = sbr.rel (%p431) target = $region76
        $region75: #{tpu_custom_call.1} parent=71 // pred_region
          %p434 = scmp.lt.s32.totalorder %s24, 1
          %s435 = scalar_select %p434, %s24, 1
          %s436 = smul.addr %s435, 4
          %s437 = scalar_lea.vmem %s0, %s436
        $region76: #{tpu_custom_call.1} parent=71 // pred_fallthru
          _
      $region72: #{tpu_custom_call.1} parent=5 // pred_fallthru
        _
      %p438 = scmp.le.s32.totalorder 1, %s24
      %p439 = scmp.lt.s32.totalorder %s24, 3
      %p440 = pnand %p438, %p439
      %p441 = pneg %p440
      // Predicated region
      $region77: #{tpu_custom_call.1} parent=5 // pred_check
        _
      $region78: #{tpu_custom_call.1} parent=5 // pred_check_branch
        %443 = sbr.rel (%p440) target = $region80
      $region79: #{tpu_custom_call.1} parent=5 // pred_region
        %s444 = ssub.s32 %s24, 1
        %p445 = scmp.lt.s32.totalorder %s29, 1
        %s446 = scalar_select %p445, %s29, 1
        %s447 = smul.addr %s446, 4
        %s448 = scalar_lea.vmem %s0, %s447
        %p449 = pneg %p50
        %p450 = pneg %p47
        %p451 = pneg %p71
        %p452 = pneg %p68
        %p453 = pneg %p92
        %p454 = pneg %p89
        %p455 = pneg %p113
        %p456 = pneg %p110
        %p457 = pneg %p134
        %p458 = pneg %p131
        %p459 = pneg %p155
        %p460 = pneg %p152
        %p461 = pneg %p176
        %p462 = pneg %p173
        %p463 = pneg %p197
        %p464 = pneg %p194
        %p465 = pneg %p218
        %p466 = pneg %p215
        %p467 = pneg %p239
        %p468 = pneg %p236
        %p469 = pneg %p260
        %p470 = pneg %p257
        %p471 = pneg %p281
        %p472 = pneg %p278
        %p473 = pneg %p302
        %p474 = pneg %p299
        %p475 = pneg %p323
        %p476 = pneg %p320
        %p477 = pneg %p344
        %p478 = pneg %p341
        %p479 = pneg %p370
        %p480 = pneg %p367
        %s481 = sand.u32 %s357, 1
        %s482 = scalar_lea.sflag [#allocation3], %s481
        %s483 = sand.u32 %s357, 1
        %s484 = smul.addr %s483, 16
        %s485 = scalar_lea.vmem [#allocation2], %s484
        %p486 = scmp.lt.s32.totalorder %s29, 1
        %s487 = scalar_select %p486, %s29, 1
        %s488 = smul.addr %s487, 4
        %s489 = scalar_lea.vmem %s0, %s488
        %v490 = vld [vmem:[%s489] sm:$0x7]
        %v491 = vld [vmem:[%s1] sm:$0xff]
        %v492 = vld [vmem:[%s1 + $0x8] sm:$0xff]
        %v493 = vld [vmem:[%s1 + $0x10] sm:$0xff]
        %v494 = vld [vmem:[%s1 + $0x18] sm:$0xff]
        %v495 = vld [vmem:[%s1 + $0x20] sm:$0xff]
        %v496 = vld [vmem:[%s1 + $0x28] sm:$0xff]
        %v497 = vld [vmem:[%s1 + $0x30] sm:$0xff]
        %v498 = vld [vmem:[%s1 + $0x38] sm:$0xff]
        %v499 = vld [vmem:[%s1 + $0x40] sm:$0xff]
        %v500 = vld [vmem:[%s1 + $0x48] sm:$0xff]
        %v501 = vld [vmem:[%s1 + $0x50] sm:$0xff]
        %v502 = vld [vmem:[%s1 + $0x58] sm:$0xff]
        %v503 = vld [vmem:[%s1 + $0x60] sm:$0xff]
        %v504 = vld [vmem:[%s1 + $0x68] sm:$0xff]
        %v505 = vld [vmem:[%s1 + $0x70] sm:$0xff]
        %v506 = vld [vmem:[%s1 + $0x78] sm:$0xff]
        %507 = vmatprep.subr.mxu0 0.0
        %508 = vmatpush1.msra.mxu0 %v506
        %509 = vmatprep.subr.mxu0 0.0
        %510 = vmatpush1.msra.mxu0 %v505
        %511 = vmatprep.subr.mxu0 0.0
        %512 = vmatpush1.msra.mxu0 %v504
        %513 = vmatprep.subr.mxu0 0.0
        %514 = vmatpush1.msra.mxu0 %v503
        %515 = vmatprep.subr.mxu0 0.0
        %516 = vmatpush1.msra.mxu0 %v502
        %517 = vmatprep.subr.mxu0 0.0
        %518 = vmatpush1.msra.mxu0 %v501
        %519 = vmatprep.subr.mxu0 0.0
        %520 = vmatpush1.msra.mxu0 %v500
        %521 = vmatprep.subr.mxu0 0.0
        %522 = vmatpush1.msra.mxu0 %v499
        %523 = vmatprep.subr.mxu0 0.0
        %524 = vmatpush1.msra.mxu0 %v498
        %525 = vmatprep.subr.mxu0 0.0
        %526 = vmatpush1.msra.mxu0 %v497
        %527 = vmatprep.subr.mxu0 0.0
        %528 = vmatpush1.msra.mxu0 %v496
        %529 = vmatprep.subr.mxu0 0.0
        %530 = vmatpush1.msra.mxu0 %v495
        %531 = vmatprep.subr.mxu0 0.0
        %532 = vmatpush1.msra.mxu0 %v494
        %533 = vmatprep.subr.mxu0 0.0
        %534 = vmatpush1.msra.mxu0 %v493
        %535 = vmatprep.subr.mxu0 0.0
        %536 = vmatpush1.msra.mxu0 %v492
        %537 = vmatprep.subr.mxu0 0.0
        %538 = vmatpush1.msra.mxu0 %v491
        %539 = vmatprep.subr.mxu0 0.0
        %540 = vmatpush2.msra.mxu0 0.0
        %541 = vmatprep.subr.mxu0 0.0
        %542 = vmatpush2.msra.mxu0 0.0
        %543 = vmatprep.subr.mxu0 0.0
        %544 = vmatpush2.msra.mxu0 0.0
        %545 = vmatprep.subr.mxu0 0.0
        %546 = vmatpush2.msra.mxu0 0.0
        %547 = vmatprep.subr.mxu0 0.0
        %548 = vmatpush2.msra.mxu0 0.0
        %549 = vmatprep.subr.mxu0 0.0
        %550 = vmatpush2.msra.mxu0 0.0
        %551 = vmatprep.subr.mxu0 0.0
        %552 = vmatpush2.msra.mxu0 0.0
        %553 = vmatprep.subr.mxu0 0.0
        %554 = vmatpush2.msra.mxu0 0.0
        %555 = vmatprep.subr.mxu0 0.0
        %556 = vmatpush2.msra.mxu0 0.0
        %557 = vmatprep.subr.mxu0 0.0
        %558 = vmatpush2.msra.mxu0 0.0
        %559 = vmatprep.subr.mxu0 0.0
        %560 = vmatpush2.msra.mxu0 0.0
        %561 = vmatprep.subr.mxu0 0.0
        %562 = vmatpush2.msra.mxu0 0.0
        %563 = vmatprep.subr.mxu0 0.0
        %564 = vmatpush2.msra.mxu0 0.0
        %565 = vmatprep.subr.mxu0 0.0
        %566 = vmatpush2.msra.mxu0 0.0
        %567 = vmatprep.subr.mxu0 0.0
        %568 = vmatpush2.msra.mxu0 0.0
        %569 = vmatprep.subr.mxu0 0.0
        %570 = vmatpush2.msra.mxu0 0.0
        %571 = vmatprep.mubr.f32.mxu0 0.0
        %572 = vmatmul.mubr.f32.gmra.mxu0 %v490
        %v573 = vpop.f32.mrf.mxu0
        %v574 = vadd.f32 0.0, %v573
        %v575 = vpop.f32.mrf.mxu0
        %576 = vdwg.mxu0
        %v577 = vld [vmem:[%s3] sm:$0xff]
        %v578 = vld [vmem:[%s4] sm:$0xff]
        %v579 = vld [vmem:[%s5] sm:$0xff]
        %v580 = vld [vmem:[%s6] sm:$0xff]
        %v581 = vld [vmem:[%s7] sm:$0xff]
        %v582 = vld [vmem:[%s7 + $0x8] sm:$0xff]
        %v583 = vld [vmem:[%s8] sm:$0xff]
        %v584 = vld [vmem:[%s8 + $0x8] sm:$0xff]
        %v585 = vld [vmem:[%s9] sm:$0xff]
        %v586 = vld [vmem:[%s9 + $0x8] sm:$0xff]
        %v587 = vld [vmem:[%s10] sm:$0xff]
        %v588 = vld [vmem:[%s10 + $0x8] sm:$0xff]
        %v589 = vld [vmem:[%s2] sm:$0x3]
        %591 = vset.pattern.permute.xlu0 0
        %592 = vperm.xlu0 %591, %v578
        %v593 = vpop.permute.xlu0 %592
        %vm595 = vcmask 23552
        %v597 = vsel %vm595, %v577, 0
        %vm599 = vcmask 1042432
        %v601 = vsel %vm599, %v574, 0
        %603 = vmatprep.subr.mxu0 0.0
        %604 = vmatpush1.msra.mxu0 0.0
        %605 = vmatprep.subr.mxu0 0.0
        %606 = vmatpush1.msra.mxu0 0.0
        %607 = vmatprep.subr.mxu0 0.0
        %608 = vmatpush1.msra.mxu0 0.0
        %609 = vmatprep.subr.mxu0 0.0
        %610 = vmatpush1.msra.mxu0 0.0
        %611 = vmatprep.subr.mxu0 0.0
        %612 = vmatpush1.msra.mxu0 0.0
        %613 = vmatprep.subr.mxu0 0.0
        %614 = vmatpush1.msra.mxu0 0.0
        %615 = vmatprep.subr.mxu0 0.0
        %616 = vmatpush1.msra.mxu0 0.0
        %617 = vmatprep.subr.mxu0 0.0
        %618 = vmatpush1.msra.mxu0 0.0
        %619 = vmatprep.subr.mxu0 0.0
        %620 = vmatpush1.msra.mxu0 0.0
        %621 = vmatprep.subr.mxu0 0.0
        %622 = vmatpush1.msra.mxu0 0.0
        %623 = vmatprep.subr.mxu0 0.0
        %624 = vmatpush1.msra.mxu0 0.0
        %625 = vmatprep.subr.mxu0 0.0
        %626 = vmatpush1.msra.mxu0 0.0
        %627 = vmatprep.subr.mxu0 0.0
        %628 = vmatpush1.msra.mxu0 0.0
        %629 = vmatprep.subr.mxu0 0.0
        %630 = vmatpush1.msra.mxu0 0.0
        %631 = vmatprep.subr.mxu0 0.0
        %632 = vmatpush1.msra.mxu0 0.0
        %633 = vmatprep.subr.mxu0 0.0
        %634 = vmatpush1.msra.mxu0 %v601
        %635 = vmatprep.subr.mxu0 0.0
        %636 = vmatpush2.msra.mxu0 0.0
        %637 = vmatprep.subr.mxu0 0.0
        %638 = vmatpush2.msra.mxu0 0.0
        %639 = vmatprep.subr.mxu0 0.0
        %640 = vmatpush2.msra.mxu0 0.0
        %641 = vmatprep.subr.mxu0 0.0
        %642 = vmatpush2.msra.mxu0 0.0
        %643 = vmatprep.subr.mxu0 0.0
        %644 = vmatpush2.msra.mxu0 0.0
        %645 = vmatprep.subr.mxu0 0.0
        %646 = vmatpush2.msra.mxu0 0.0
        %647 = vmatprep.subr.mxu0 0.0
        %648 = vmatpush2.msra.mxu0 0.0
        %649 = vmatprep.subr.mxu0 0.0
        %650 = vmatpush2.msra.mxu0 0.0
        %651 = vmatprep.subr.mxu0 0.0
        %652 = vmatpush2.msra.mxu0 0.0
        %653 = vmatprep.subr.mxu0 0.0
        %654 = vmatpush2.msra.mxu0 0.0
        %655 = vmatprep.subr.mxu0 0.0
        %656 = vmatpush2.msra.mxu0 0.0
        %657 = vmatprep.subr.mxu0 0.0
        %658 = vmatpush2.msra.mxu0 0.0
        %659 = vmatprep.subr.mxu0 0.0
        %660 = vmatpush2.msra.mxu0 0.0
        %661 = vmatprep.subr.mxu0 0.0
        %662 = vmatpush2.msra.mxu0 0.0
        %663 = vmatprep.subr.mxu0 0.0
        %664 = vmatpush2.msra.mxu0 0.0
        %665 = vmatprep.subr.mxu0 0.0
        %666 = vmatpush2.msra.mxu0 0.0
        %667 = vmatprep.mubr.f32.mxu0 0.0
        %668 = vmatmul.mubr.f32.gmra.mxu0 %v597
        %v669 = vpop.f32.mrf.mxu0
        %v670 = vadd.f32 %v593, %v669
        %v671 = vpop.f32.mrf.mxu0
        %672 = vdwg.mxu0
        %674 = vset.pattern.permute.xlu0 0
        %675 = vperm.xlu0 %674, %v580
        %v676 = vpop.permute.xlu0 %675
        %v679 = vsel %vm595, %v579, 0
        %681 = vmatprep.subr.mxu0 0.0
        %682 = vmatpush1.msra.mxu0 0.0
        %683 = vmatprep.subr.mxu0 0.0
        %684 = vmatpush1.msra.mxu0 0.0
        %685 = vmatprep.subr.mxu0 0.0
        %686 = vmatpush1.msra.mxu0 0.0
        %687 = vmatprep.subr.mxu0 0.0
        %688 = vmatpush1.msra.mxu0 0.0
        %689 = vmatprep.subr.mxu0 0.0
        %690 = vmatpush1.msra.mxu0 0.0
        %691 = vmatprep.subr.mxu0 0.0
        %692 = vmatpush1.msra.mxu0 0.0
        %693 = vmatprep.subr.mxu0 0.0
        %694 = vmatpush1.msra.mxu0 0.0
        %695 = vmatprep.subr.mxu0 0.0
        %696 = vmatpush1.msra.mxu0 0.0
        %697 = vmatprep.subr.mxu0 0.0
        %698 = vmatpush1.msra.mxu0 0.0
        %699 = vmatprep.subr.mxu0 0.0
        %700 = vmatpush1.msra.mxu0 0.0
        %701 = vmatprep.subr.mxu0 0.0
        %702 = vmatpush1.msra.mxu0 0.0
        %703 = vmatprep.subr.mxu0 0.0
        %704 = vmatpush1.msra.mxu0 0.0
        %705 = vmatprep.subr.mxu0 0.0
        %706 = vmatpush1.msra.mxu0 0.0
        %707 = vmatprep.subr.mxu0 0.0
        %708 = vmatpush1.msra.mxu0 0.0
        %709 = vmatprep.subr.mxu0 0.0
        %710 = vmatpush1.msra.mxu0 0.0
        %711 = vmatprep.subr.mxu0 0.0
        %712 = vmatpush1.msra.mxu0 %v601
        %713 = vmatprep.subr.mxu0 0.0
        %714 = vmatpush2.msra.mxu0 0.0
        %715 = vmatprep.subr.mxu0 0.0
        %716 = vmatpush2.msra.mxu0 0.0
        %717 = vmatprep.subr.mxu0 0.0
        %718 = vmatpush2.msra.mxu0 0.0
        %719 = vmatprep.subr.mxu0 0.0
        %720 = vmatpush2.msra.mxu0 0.0
        %721 = vmatprep.subr.mxu0 0.0
        %722 = vmatpush2.msra.mxu0 0.0
        %723 = vmatprep.subr.mxu0 0.0
        %724 = vmatpush2.msra.mxu0 0.0
        %725 = vmatprep.subr.mxu0 0.0
        %726 = vmatpush2.msra.mxu0 0.0
        %727 = vmatprep.subr.mxu0 0.0
        %728 = vmatpush2.msra.mxu0 0.0
        %729 = vmatprep.subr.mxu0 0.0
        %730 = vmatpush2.msra.mxu0 0.0
        %731 = vmatprep.subr.mxu0 0.0
        %732 = vmatpush2.msra.mxu0 0.0
        %733 = vmatprep.subr.mxu0 0.0
        %734 = vmatpush2.msra.mxu0 0.0
        %735 = vmatprep.subr.mxu0 0.0
        %736 = vmatpush2.msra.mxu0 0.0
        %737 = vmatprep.subr.mxu0 0.0
        %738 = vmatpush2.msra.mxu0 0.0
        %739 = vmatprep.subr.mxu0 0.0
        %740 = vmatpush2.msra.mxu0 0.0
        %741 = vmatprep.subr.mxu0 0.0
        %742 = vmatpush2.msra.mxu0 0.0
        %743 = vmatprep.subr.mxu0 0.0
        %744 = vmatpush2.msra.mxu0 0.0
        %745 = vmatprep.mubr.f32.mxu0 0.0
        %746 = vmatmul.mubr.f32.gmra.mxu0 %v679
        %v747 = vpop.f32.mrf.mxu0
        %v748 = vadd.f32 %v676, %v747
        %v749 = vpop.f32.mrf.mxu0
        %750 = vdwg.mxu0
        %752 = vset.pattern.permute.xlu0 0
        %753 = vperm.xlu0 %752, %v583
        %v754 = vpop.permute.xlu0 %753
        %757 = vset.pattern.permute.xlu0 0
        %758 = vperm.xlu0 %757, %v584
        %v759 = vpop.permute.xlu0 %758
        %v762 = vsel %vm595, %v581, 0
        %v765 = vsel %vm595, %v582, 0
        %v768 = vsel %vm599, %v490, 0
        %770 = vmatprep.subr.mxu0 0.0
        %771 = vmatpush1.msra.mxu0 0.0
        %772 = vmatprep.subr.mxu0 0.0
        %773 = vmatpush1.msra.mxu0 0.0
        %774 = vmatprep.subr.mxu0 0.0
        %775 = vmatpush1.msra.mxu0 0.0
        %776 = vmatprep.subr.mxu0 0.0
        %777 = vmatpush1.msra.mxu0 0.0
        %778 = vmatprep.subr.mxu0 0.0
        %779 = vmatpush1.msra.mxu0 0.0
        %780 = vmatprep.subr.mxu0 0.0
        %781 = vmatpush1.msra.mxu0 0.0
        %782 = vmatprep.subr.mxu0 0.0
        %783 = vmatpush1.msra.mxu0 0.0
        %784 = vmatprep.subr.mxu0 0.0
        %785 = vmatpush1.msra.mxu0 0.0
        %786 = vmatprep.subr.mxu0 0.0
        %787 = vmatpush1.msra.mxu0 0.0
        %788 = vmatprep.subr.mxu0 0.0
        %789 = vmatpush1.msra.mxu0 0.0
        %790 = vmatprep.subr.mxu0 0.0
        %791 = vmatpush1.msra.mxu0 0.0
        %792 = vmatprep.subr.mxu0 0.0
        %793 = vmatpush1.msra.mxu0 0.0
        %794 = vmatprep.subr.mxu0 0.0
        %795 = vmatpush1.msra.mxu0 0.0
        %796 = vmatprep.subr.mxu0 0.0
        %797 = vmatpush1.msra.mxu0 0.0
        %798 = vmatprep.subr.mxu0 0.0
        %799 = vmatpush1.msra.mxu0 0.0
        %800 = vmatprep.subr.mxu0 0.0
        %801 = vmatpush1.msra.mxu0 %v768
        %802 = vmatprep.subr.mxu0 0.0
        %803 = vmatpush2.msra.mxu0 0.0
        %804 = vmatprep.subr.mxu0 0.0
        %805 = vmatpush2.msra.mxu0 0.0
        %806 = vmatprep.subr.mxu0 0.0
        %807 = vmatpush2.msra.mxu0 0.0
        %808 = vmatprep.subr.mxu0 0.0
        %809 = vmatpush2.msra.mxu0 0.0
        %810 = vmatprep.subr.mxu0 0.0
        %811 = vmatpush2.msra.mxu0 0.0
        %812 = vmatprep.subr.mxu0 0.0
        %813 = vmatpush2.msra.mxu0 0.0
        %814 = vmatprep.subr.mxu0 0.0
        %815 = vmatpush2.msra.mxu0 0.0
        %816 = vmatprep.subr.mxu0 0.0
        %817 = vmatpush2.msra.mxu0 0.0
        %818 = vmatprep.subr.mxu0 0.0
        %819 = vmatpush2.msra.mxu0 0.0
        %820 = vmatprep.subr.mxu0 0.0
        %821 = vmatpush2.msra.mxu0 0.0
        %822 = vmatprep.subr.mxu0 0.0
        %823 = vmatpush2.msra.mxu0 0.0
        %824 = vmatprep.subr.mxu0 0.0
        %825 = vmatpush2.msra.mxu0 0.0
        %826 = vmatprep.subr.mxu0 0.0
        %827 = vmatpush2.msra.mxu0 0.0
        %828 = vmatprep.subr.mxu0 0.0
        %829 = vmatpush2.msra.mxu0 0.0
        %830 = vmatprep.subr.mxu0 0.0
        %831 = vmatpush2.msra.mxu0 0.0
        %832 = vmatprep.subr.mxu0 0.0
        %833 = vmatpush2.msra.mxu0 0.0
        %834 = vmatprep.mubr.f32.mxu0 0.0
        %835 = vmatmul.mubr.f32.gmra.mxu0 %v762
        %v836 = vpop.f32.mrf.mxu0
        %v837 = vadd.f32 %v754, %v836
        %v838 = vpop.f32.mrf.mxu0
        %839 = vmatprep.mubr.f32.mxu0 0.0
        %840 = vmatmul.mubr.f32.gmra.mxu0 %v765
        %v841 = vpop.f32.mrf.mxu0
        %v842 = vadd.f32 %v759, %v841
        %v843 = vpop.f32.mrf.mxu0
        %844 = vdwg.mxu0
        %847 = vrot.lane.b32.xlu0 %v837, 112
        %v848 = vpop.permute.xlu0 %847
        %849 = vrot.lane.b32.xlu0 %v842, 112
        %v850 = vpop.permute.xlu0 %849
        %853 = vrot.lane.b32.xlu0 %v837, 96
        %v854 = vpop.permute.xlu0 %853
        %855 = vrot.lane.b32.xlu0 %v842, 96
        %v856 = vpop.permute.xlu0 %855
        %859 = vrot.lane.b32.xlu0 %v837, 80
        %v860 = vpop.permute.xlu0 %859
        %861 = vrot.lane.b32.xlu0 %v842, 80
        %v862 = vpop.permute.xlu0 %861
        %865 = vrot.lane.b32.xlu0 %v837, 64
        %v866 = vpop.permute.xlu0 %865
        %867 = vrot.lane.b32.xlu0 %v842, 64
        %v868 = vpop.permute.xlu0 %867
        %871 = vrot.lane.b32.xlu0 %v837, 48
        %v872 = vpop.permute.xlu0 %871
        %873 = vrot.lane.b32.xlu0 %v842, 48
        %v874 = vpop.permute.xlu0 %873
        %877 = vrot.lane.b32.xlu0 %v837, 32
        %v878 = vpop.permute.xlu0 %877
        %879 = vrot.lane.b32.xlu0 %v842, 32
        %v880 = vpop.permute.xlu0 %879
        %883 = vrot.lane.b32.xlu0 %v837, 16
        %v884 = vpop.permute.xlu0 %883
        %885 = vrot.lane.b32.xlu0 %v842, 16
        %v886 = vpop.permute.xlu0 %885
        %v889 = vcombine.low %v837, %v854
        %v890 = vcombine.high %v837, %v854
        %v892 = vunpack.c.l.s4 1983009808
        %v893 = vunpack.c.0.s8 %v892
        %v894 = vlaneseq
        %v895 = vshrl.u32 %v894, 7
        %v896 = vsub.s32 %v893, %v895
        %v897 = vrot.slane %v889, %v896
        %v899 = vunpack.c.l.s4 1983009808
        %v900 = vunpack.c.0.s8 %v899
        %v901 = vlaneseq
        %v902 = vshrl.u32 %v901, 7
        %v903 = vsub.s32 %v900, %v902
        %v904 = vrot.slane %v890, %v903
        %v905 = vcombine.low %v848, %v860
        %v906 = vcombine.high %v848, %v860
        %v908 = vunpack.c.l.s4 1983009808
        %v909 = vunpack.c.0.s8 %v908
        %v910 = vlaneseq
        %v911 = vshrl.u32 %v910, 7
        %v912 = vsub.s32 %v909, %v911
        %v913 = vrot.slane %v905, %v912
        %v915 = vunpack.c.l.s4 1983009808
        %v916 = vunpack.c.0.s8 %v915
        %v917 = vlaneseq
        %v918 = vshrl.u32 %v917, 7
        %v919 = vsub.s32 %v916, %v918
        %v920 = vrot.slane %v906, %v919
        %v921 = vcombine.low %v866, %v878
        %v922 = vcombine.high %v866, %v878
        %v924 = vunpack.c.l.s4 1983009808
        %v925 = vunpack.c.0.s8 %v924
        %v926 = vlaneseq
        %v927 = vshrl.u32 %v926, 7
        %v928 = vsub.s32 %v925, %v927
        %v929 = vrot.slane %v921, %v928
        %v931 = vunpack.c.l.s4 1983009808
        %v932 = vunpack.c.0.s8 %v931
        %v933 = vlaneseq
        %v934 = vshrl.u32 %v933, 7
        %v935 = vsub.s32 %v932, %v934
        %v936 = vrot.slane %v922, %v935
        %v937 = vcombine.low %v872, %v884
        %v938 = vcombine.high %v872, %v884
        %v940 = vunpack.c.l.s4 1983009808
        %v941 = vunpack.c.0.s8 %v940
        %v942 = vlaneseq
        %v943 = vshrl.u32 %v942, 7
        %v944 = vsub.s32 %v941, %v943
        %v945 = vrot.slane %v937, %v944
        %v947 = vunpack.c.l.s4 1983009808
        %v948 = vunpack.c.0.s8 %v947
        %v949 = vlaneseq
        %v950 = vshrl.u32 %v949, 7
        %v951 = vsub.s32 %v948, %v950
        %v952 = vrot.slane %v938, %v951
        %v953 = vcombine.low %v897, %v913
        %v954 = vcombine.high %v897, %v913
        %v956 = vunpack.c.l.s4 1934713408
        %v957 = vunpack.c.0.s8 %v956
        %v958 = vlaneseq
        %v959 = vshrl.u32 %v958, 7
        %v960 = vsub.s32 %v957, %v959
        %v961 = vrot.slane %v953, %v960
        %v963 = vunpack.c.l.s4 1934713408
        %v964 = vunpack.c.0.s8 %v963
        %v965 = vlaneseq
        %v966 = vshrl.u32 %v965, 7
        %v967 = vsub.s32 %v964, %v966
        %v968 = vrot.slane %v954, %v967
        %v969 = vcombine.low %v904, %v920
        %v970 = vcombine.high %v904, %v920
        %v972 = vunpack.c.l.s4 1934713408
        %v973 = vunpack.c.0.s8 %v972
        %v974 = vlaneseq
        %v975 = vshrl.u32 %v974, 7
        %v976 = vsub.s32 %v973, %v975
        %v977 = vrot.slane %v969, %v976
        %v979 = vunpack.c.l.s4 1934713408
        %v980 = vunpack.c.0.s8 %v979
        %v981 = vlaneseq
        %v982 = vshrl.u32 %v981, 7
        %v983 = vsub.s32 %v980, %v982
        %v984 = vrot.slane %v970, %v983
        %v985 = vcombine.low %v929, %v945
        %v986 = vcombine.high %v929, %v945
        %v988 = vunpack.c.l.s4 1934713408
        %v989 = vunpack.c.0.s8 %v988
        %v990 = vlaneseq
        %v991 = vshrl.u32 %v990, 7
        %v992 = vsub.s32 %v989, %v991
        %v993 = vrot.slane %v985, %v992
        %v995 = vunpack.c.l.s4 1934713408
        %v996 = vunpack.c.0.s8 %v995
        %v997 = vlaneseq
        %v998 = vshrl.u32 %v997, 7
        %v999 = vsub.s32 %v996, %v998
        %v1000 = vrot.slane %v986, %v999
        %v1001 = vcombine.low %v936, %v952
        %v1002 = vcombine.high %v936, %v952
        %v1004 = vunpack.c.l.s4 1934713408
        %v1005 = vunpack.c.0.s8 %v1004
        %v1006 = vlaneseq
        %v1007 = vshrl.u32 %v1006, 7
        %v1008 = vsub.s32 %v1005, %v1007
        %v1009 = vrot.slane %v1001, %v1008
        %v1011 = vunpack.c.l.s4 1934713408
        %v1012 = vunpack.c.0.s8 %v1011
        %v1013 = vlaneseq
        %v1014 = vshrl.u32 %v1013, 7
        %v1015 = vsub.s32 %v1012, %v1014
        %v1016 = vrot.slane %v1002, %v1015
        %v1017 = vcombine.low %v961, %v993
        %v1018 = vcombine.high %v961, %v993
        %v1019 = vcombine.low %v968, %v1000
        %v1020 = vcombine.high %v968, %v1000
        %v1021 = vcombine.low %v977, %v1009
        %v1022 = vcombine.high %v977, %v1009
        %v1023 = vcombine.low %v984, %v1016
        %v1024 = vcombine.high %v984, %v1016
        %v1025 = vcombine.low %v842, %v856
        %v1026 = vcombine.high %v842, %v856
        %v1028 = vunpack.c.l.s4 1983009808
        %v1029 = vunpack.c.0.s8 %v1028
        %v1030 = vlaneseq
        %v1031 = vshrl.u32 %v1030, 7
        %v1032 = vsub.s32 %v1029, %v1031
        %v1033 = vrot.slane %v1025, %v1032
        %v1035 = vunpack.c.l.s4 1983009808
        %v1036 = vunpack.c.0.s8 %v1035
        %v1037 = vlaneseq
        %v1038 = vshrl.u32 %v1037, 7
        %v1039 = vsub.s32 %v1036, %v1038
        %v1040 = vrot.slane %v1026, %v1039
        %v1041 = vcombine.low %v850, %v862
        %v1042 = vcombine.high %v850, %v862
        %v1044 = vunpack.c.l.s4 1983009808
        %v1045 = vunpack.c.0.s8 %v1044
        %v1046 = vlaneseq
        %v1047 = vshrl.u32 %v1046, 7
        %v1048 = vsub.s32 %v1045, %v1047
        %v1049 = vrot.slane %v1041, %v1048
        %v1051 = vunpack.c.l.s4 1983009808
        %v1052 = vunpack.c.0.s8 %v1051
        %v1053 = vlaneseq
        %v1054 = vshrl.u32 %v1053, 7
        %v1055 = vsub.s32 %v1052, %v1054
        %v1056 = vrot.slane %v1042, %v1055
        %v1057 = vcombine.low %v868, %v880
        %v1058 = vcombine.high %v868, %v880
        %v1060 = vunpack.c.l.s4 1983009808
        %v1061 = vunpack.c.0.s8 %v1060
        %v1062 = vlaneseq
        %v1063 = vshrl.u32 %v1062, 7
        %v1064 = vsub.s32 %v1061, %v1063
        %v1065 = vrot.slane %v1057, %v1064
        %v1067 = vunpack.c.l.s4 1983009808
        %v1068 = vunpack.c.0.s8 %v1067
        %v1069 = vlaneseq
        %v1070 = vshrl.u32 %v1069, 7
        %v1071 = vsub.s32 %v1068, %v1070
        %v1072 = vrot.slane %v1058, %v1071
        %v1073 = vcombine.low %v874, %v886
        %v1074 = vcombine.high %v874, %v886
        %v1076 = vunpack.c.l.s4 1983009808
        %v1077 = vunpack.c.0.s8 %v1076
        %v1078 = vlaneseq
        %v1079 = vshrl.u32 %v1078, 7
        %v1080 = vsub.s32 %v1077, %v1079
        %v1081 = vrot.slane %v1073, %v1080
        %v1083 = vunpack.c.l.s4 1983009808
        %v1084 = vunpack.c.0.s8 %v1083
        %v1085 = vlaneseq
        %v1086 = vshrl.u32 %v1085, 7
        %v1087 = vsub.s32 %v1084, %v1086
        %v1088 = vrot.slane %v1074, %v1087
        %v1089 = vcombine.low %v1033, %v1049
        %v1090 = vcombine.high %v1033, %v1049
        %v1092 = vunpack.c.l.s4 1934713408
        %v1093 = vunpack.c.0.s8 %v1092
        %v1094 = vlaneseq
        %v1095 = vshrl.u32 %v1094, 7
        %v1096 = vsub.s32 %v1093, %v1095
        %v1097 = vrot.slane %v1089, %v1096
        %v1099 = vunpack.c.l.s4 1934713408
        %v1100 = vunpack.c.0.s8 %v1099
        %v1101 = vlaneseq
        %v1102 = vshrl.u32 %v1101, 7
        %v1103 = vsub.s32 %v1100, %v1102
        %v1104 = vrot.slane %v1090, %v1103
        %v1105 = vcombine.low %v1040, %v1056
        %v1106 = vcombine.high %v1040, %v1056
        %v1108 = vunpack.c.l.s4 1934713408
        %v1109 = vunpack.c.0.s8 %v1108
        %v1110 = vlaneseq
        %v1111 = vshrl.u32 %v1110, 7
        %v1112 = vsub.s32 %v1109, %v1111
        %v1113 = vrot.slane %v1105, %v1112
        %v1115 = vunpack.c.l.s4 1934713408
        %v1116 = vunpack.c.0.s8 %v1115
        %v1117 = vlaneseq
        %v1118 = vshrl.u32 %v1117, 7
        %v1119 = vsub.s32 %v1116, %v1118
        %v1120 = vrot.slane %v1106, %v1119
        %v1121 = vcombine.low %v1065, %v1081
        %v1122 = vcombine.high %v1065, %v1081
        %v1124 = vunpack.c.l.s4 1934713408
        %v1125 = vunpack.c.0.s8 %v1124
        %v1126 = vlaneseq
        %v1127 = vshrl.u32 %v1126, 7
        %v1128 = vsub.s32 %v1125, %v1127
        %v1129 = vrot.slane %v1121, %v1128
        %v1131 = vunpack.c.l.s4 1934713408
        %v1132 = vunpack.c.0.s8 %v1131
        %v1133 = vlaneseq
        %v1134 = vshrl.u32 %v1133, 7
        %v1135 = vsub.s32 %v1132, %v1134
        %v1136 = vrot.slane %v1122, %v1135
        %v1137 = vcombine.low %v1072, %v1088
        %v1138 = vcombine.high %v1072, %v1088
        %v1140 = vunpack.c.l.s4 1934713408
        %v1141 = vunpack.c.0.s8 %v1140
        %v1142 = vlaneseq
        %v1143 = vshrl.u32 %v1142, 7
        %v1144 = vsub.s32 %v1141, %v1143
        %v1145 = vrot.slane %v1137, %v1144
        %v1147 = vunpack.c.l.s4 1934713408
        %v1148 = vunpack.c.0.s8 %v1147
        %v1149 = vlaneseq
        %v1150 = vshrl.u32 %v1149, 7
        %v1151 = vsub.s32 %v1148, %v1150
        %v1152 = vrot.slane %v1138, %v1151
        %v1153 = vcombine.low %v1097, %v1129
        %v1154 = vcombine.high %v1097, %v1129
        %v1155 = vcombine.low %v1104, %v1136
        %v1156 = vcombine.high %v1104, %v1136
        %v1157 = vcombine.low %v1113, %v1145
        %v1158 = vcombine.high %v1113, %v1145
        %v1159 = vcombine.low %v1120, %v1152
        %v1160 = vcombine.high %v1120, %v1152
        %v1162 = vcombine.high %v670, %v670
        %v1164 = vunpack.c.l.s4 1966171168
        %v1165 = vunpack.c.0.s8 %v1164
        %v1166 = vlaneseq
        %v1167 = vshrl.u32 %v1166, 7
        %v1168 = vsub.s32 %v1165, %v1167
        %v1169 = vrot.slane %v670, %v1168
        %v1171 = vunpack.c.l.s4 1966171168
        %v1172 = vunpack.c.0.s8 %v1171
        %v1173 = vlaneseq
        %v1174 = vshrl.u32 %v1173, 7
        %v1175 = vsub.s32 %v1172, %v1174
        %v1176 = vrot.slane %v1162, %v1175
        %v1177 = vcombine.high %v1169, %v1169
        %v1178 = vcombine.high %v1176, %v1176
        %v1180 = vunpack.c.l.s4 1966171168
        %v1181 = vunpack.c.0.s8 %v1180
        %v1182 = vlaneseq
        %v1183 = vshrl.u32 %v1182, 7
        %v1184 = vsub.s32 %v1181, %v1183
        %v1185 = vrot.slane %v1169, %v1184
        %v1187 = vunpack.c.l.s4 1966171168
        %v1188 = vunpack.c.0.s8 %v1187
        %v1189 = vlaneseq
        %v1190 = vshrl.u32 %v1189, 7
        %v1191 = vsub.s32 %v1188, %v1190
        %v1192 = vrot.slane %v1176, %v1191
        %v1194 = vunpack.c.l.s4 1966171168
        %v1195 = vunpack.c.0.s8 %v1194
        %v1196 = vlaneseq
        %v1197 = vshrl.u32 %v1196, 7
        %v1198 = vsub.s32 %v1195, %v1197
        %v1199 = vrot.slane %v1177, %v1198
        %v1201 = vunpack.c.l.s4 1966171168
        %v1202 = vunpack.c.0.s8 %v1201
        %v1203 = vlaneseq
        %v1204 = vshrl.u32 %v1203, 7
        %v1205 = vsub.s32 %v1202, %v1204
        %v1206 = vrot.slane %v1178, %v1205
        %v1207 = vcombine.high %v1185, %v1185
        %v1208 = vcombine.high %v1192, %v1192
        %v1209 = vcombine.high %v1199, %v1199
        %v1210 = vcombine.high %v1206, %v1206
        %v1211 = vlaneseq
        %v1212 = vshrl.u32 %v1211, 7
        %v1213 = vsub.s32 0, %v1212
        %v1214 = vrot.slane %v748, %v1213
        %1216 = vbcast.lane.b32.xlu0 %v1214, 256
        %v1217 = vpop.permute.xlu0 %1216
        %s1219 = sor.u32 256, 8
        %1220 = vbcast.lane.b32.xlu0 %v1214, %s1219
        %v1221 = vpop.permute.xlu0 %1220
        %v1222 = vlaneseq
        %v1223 = vshrl.u32 %v1222, 7
        %v1224 = vsub.s32 1, %v1223
        %v1225 = vrot.slane %v748, %v1224
        %1227 = vbcast.lane.b32.xlu0 %v1225, 256
        %v1228 = vpop.permute.xlu0 %1227
        %s1230 = sor.u32 256, 8
        %1231 = vbcast.lane.b32.xlu0 %v1225, %s1230
        %v1232 = vpop.permute.xlu0 %1231
        %v1233 = vlaneseq
        %v1234 = vshrl.u32 %v1233, 7
        %v1235 = vsub.s32 2, %v1234
        %v1236 = vrot.slane %v748, %v1235
        %1238 = vbcast.lane.b32.xlu0 %v1236, 256
        %v1239 = vpop.permute.xlu0 %1238
        %s1241 = sor.u32 256, 8
        %1242 = vbcast.lane.b32.xlu0 %v1236, %s1241
        %v1243 = vpop.permute.xlu0 %1242
        %v1244 = vlaneseq
        %v1245 = vshrl.u32 %v1244, 7
        %v1246 = vsub.s32 3, %v1245
        %v1247 = vrot.slane %v748, %v1246
        %1249 = vbcast.lane.b32.xlu0 %v1247, 256
        %v1250 = vpop.permute.xlu0 %1249
        %s1252 = sor.u32 256, 8
        %1253 = vbcast.lane.b32.xlu0 %v1247, %s1252
        %v1254 = vpop.permute.xlu0 %1253
        %v1255 = vlaneseq
        %v1256 = vshrl.u32 %v1255, 7
        %v1257 = vsub.s32 4, %v1256
        %v1258 = vrot.slane %v748, %v1257
        %1260 = vbcast.lane.b32.xlu0 %v1258, 256
        %v1261 = vpop.permute.xlu0 %1260
        %s1263 = sor.u32 256, 8
        %1264 = vbcast.lane.b32.xlu0 %v1258, %s1263
        %v1265 = vpop.permute.xlu0 %1264
        %v1266 = vlaneseq
        %v1267 = vshrl.u32 %v1266, 7
        %v1268 = vsub.s32 5, %v1267
        %v1269 = vrot.slane %v748, %v1268
        %1271 = vbcast.lane.b32.xlu0 %v1269, 256
        %v1272 = vpop.permute.xlu0 %1271
        %s1274 = sor.u32 256, 8
        %1275 = vbcast.lane.b32.xlu0 %v1269, %s1274
        %v1276 = vpop.permute.xlu0 %1275
        %v1277 = vlaneseq
        %v1278 = vshrl.u32 %v1277, 7
        %v1279 = vsub.s32 6, %v1278
        %v1280 = vrot.slane %v748, %v1279
        %1282 = vbcast.lane.b32.xlu0 %v1280, 256
        %v1283 = vpop.permute.xlu0 %1282
        %s1285 = sor.u32 256, 8
        %1286 = vbcast.lane.b32.xlu0 %v1280, %s1285
        %v1287 = vpop.permute.xlu0 %1286
        %v1288 = vlaneseq
        %v1289 = vshrl.u32 %v1288, 7
        %v1290 = vsub.s32 7, %v1289
        %v1291 = vrot.slane %v748, %v1290
        %1293 = vbcast.lane.b32.xlu0 %v1291, 256
        %v1294 = vpop.permute.xlu0 %1293
        %s1296 = sor.u32 256, 8
        %1297 = vbcast.lane.b32.xlu0 %v1291, %s1296
        %v1298 = vpop.permute.xlu0 %1297
        %v1299 = vlaneseq
        %v1300 = vshrl.u32 %v1299, 7
        %v1301 = vsub.s32 0, %v1300
        %v1302 = vrot.slane %v1185, %v1301
        %v1303 = vlaneseq
        %v1304 = vshrl.u32 %v1303, 7
        %v1305 = vsub.s32 0, %v1304
        %v1306 = vrot.slane %v1199, %v1305
        %v1307 = vlaneseq
        %v1308 = vshrl.u32 %v1307, 7
        %v1309 = vsub.s32 0, %v1308
        %v1310 = vrot.slane %v1207, %v1309
        %v1311 = vlaneseq
        %v1312 = vshrl.u32 %v1311, 7
        %v1313 = vsub.s32 0, %v1312
        %v1314 = vrot.slane %v1209, %v1313
        %v1315 = vlaneseq
        %v1316 = vshrl.u32 %v1315, 7
        %v1317 = vsub.s32 0, %v1316
        %v1318 = vrot.slane %v1192, %v1317
        %v1319 = vlaneseq
        %v1320 = vshrl.u32 %v1319, 7
        %v1321 = vsub.s32 0, %v1320
        %v1322 = vrot.slane %v1206, %v1321
        %v1323 = vlaneseq
        %v1324 = vshrl.u32 %v1323, 7
        %v1325 = vsub.s32 0, %v1324
        %v1326 = vrot.slane %v1208, %v1325
        %v1327 = vlaneseq
        %v1328 = vshrl.u32 %v1327, 7
        %v1329 = vsub.s32 0, %v1328
        %v1330 = vrot.slane %v1210, %v1329
        %v1339 = vsub.f32 %v1302, %v1217
        %v1340 = vsub.f32 %v1302, %v1221
        %v1341 = vsub.f32 %v1306, %v1228
        %v1342 = vsub.f32 %v1306, %v1232
        %v1343 = vsub.f32 %v1310, %v1239
        %v1344 = vsub.f32 %v1310, %v1243
        %v1345 = vsub.f32 %v1314, %v1250
        %v1346 = vsub.f32 %v1314, %v1254
        %v1347 = vsub.f32 %v1318, %v1261
        %v1348 = vsub.f32 %v1318, %v1265
        %v1349 = vsub.f32 %v1322, %v1272
        %v1350 = vsub.f32 %v1322, %v1276
        %v1351 = vsub.f32 %v1326, %v1283
        %v1352 = vsub.f32 %v1326, %v1287
        %v1353 = vsub.f32 %v1330, %v1294
        %v1354 = vsub.f32 %v1330, %v1298
        %v1355 = vtanh.pop %v1339
        %v1356 = vtanh.pop %v1340
        %v1357 = vtanh.pop %v1341
        %v1358 = vtanh.pop %v1342
        %v1359 = vtanh.pop %v1343
        %v1360 = vtanh.pop %v1344
        %v1361 = vtanh.pop %v1345
        %v1362 = vtanh.pop %v1346
        %v1363 = vtanh.pop %v1347
        %v1364 = vtanh.pop %v1348
        %v1365 = vtanh.pop %v1349
        %v1366 = vtanh.pop %v1350
        %v1367 = vtanh.pop %v1351
        %v1368 = vtanh.pop %v1352
        %v1369 = vtanh.pop %v1353
        %v1370 = vtanh.pop %v1354
        %v1371 = vcombine.low %v1355, %v1359
        %v1372 = vcombine.high %v1355, %v1359
        %v1374 = vunpack.c.l.s4 1983009808
        %v1375 = vunpack.c.0.s8 %v1374
        %v1376 = vlaneseq
        %v1377 = vshrl.u32 %v1376, 7
        %v1378 = vsub.s32 %v1375, %v1377
        %v1379 = vrot.slane %v1371, %v1378
        %v1381 = vunpack.c.l.s4 1983009808
        %v1382 = vunpack.c.0.s8 %v1381
        %v1383 = vlaneseq
        %v1384 = vshrl.u32 %v1383, 7
        %v1385 = vsub.s32 %v1382, %v1384
        %v1386 = vrot.slane %v1372, %v1385
        %v1387 = vcombine.low %v1357, %v1361
        %v1388 = vcombine.high %v1357, %v1361
        %v1390 = vunpack.c.l.s4 1983009808
        %v1391 = vunpack.c.0.s8 %v1390
        %v1392 = vlaneseq
        %v1393 = vshrl.u32 %v1392, 7
        %v1394 = vsub.s32 %v1391, %v1393
        %v1395 = vrot.slane %v1387, %v1394
        %v1397 = vunpack.c.l.s4 1983009808
        %v1398 = vunpack.c.0.s8 %v1397
        %v1399 = vlaneseq
        %v1400 = vshrl.u32 %v1399, 7
        %v1401 = vsub.s32 %v1398, %v1400
        %v1402 = vrot.slane %v1388, %v1401
        %v1403 = vcombine.low %v1363, %v1367
        %v1404 = vcombine.high %v1363, %v1367
        %v1406 = vunpack.c.l.s4 1983009808
        %v1407 = vunpack.c.0.s8 %v1406
        %v1408 = vlaneseq
        %v1409 = vshrl.u32 %v1408, 7
        %v1410 = vsub.s32 %v1407, %v1409
        %v1411 = vrot.slane %v1403, %v1410
        %v1413 = vunpack.c.l.s4 1983009808
        %v1414 = vunpack.c.0.s8 %v1413
        %v1415 = vlaneseq
        %v1416 = vshrl.u32 %v1415, 7
        %v1417 = vsub.s32 %v1414, %v1416
        %v1418 = vrot.slane %v1404, %v1417
        %v1419 = vcombine.low %v1365, %v1369
        %v1420 = vcombine.high %v1365, %v1369
        %v1422 = vunpack.c.l.s4 1983009808
        %v1423 = vunpack.c.0.s8 %v1422
        %v1424 = vlaneseq
        %v1425 = vshrl.u32 %v1424, 7
        %v1426 = vsub.s32 %v1423, %v1425
        %v1427 = vrot.slane %v1419, %v1426
        %v1429 = vunpack.c.l.s4 1983009808
        %v1430 = vunpack.c.0.s8 %v1429
        %v1431 = vlaneseq
        %v1432 = vshrl.u32 %v1431, 7
        %v1433 = vsub.s32 %v1430, %v1432
        %v1434 = vrot.slane %v1420, %v1433
        %v1435 = vcombine.low %v1379, %v1395
        %v1436 = vcombine.high %v1379, %v1395
        %v1438 = vunpack.c.l.s4 1934713408
        %v1439 = vunpack.c.0.s8 %v1438
        %v1440 = vlaneseq
        %v1441 = vshrl.u32 %v1440, 7
        %v1442 = vsub.s32 %v1439, %v1441
        %v1443 = vrot.slane %v1435, %v1442
        %v1445 = vunpack.c.l.s4 1934713408
        %v1446 = vunpack.c.0.s8 %v1445
        %v1447 = vlaneseq
        %v1448 = vshrl.u32 %v1447, 7
        %v1449 = vsub.s32 %v1446, %v1448
        %v1450 = vrot.slane %v1436, %v1449
        %v1451 = vcombine.low %v1386, %v1402
        %v1452 = vcombine.high %v1386, %v1402
        %v1454 = vunpack.c.l.s4 1934713408
        %v1455 = vunpack.c.0.s8 %v1454
        %v1456 = vlaneseq
        %v1457 = vshrl.u32 %v1456, 7
        %v1458 = vsub.s32 %v1455, %v1457
        %v1459 = vrot.slane %v1451, %v1458
        %v1461 = vunpack.c.l.s4 1934713408
        %v1462 = vunpack.c.0.s8 %v1461
        %v1463 = vlaneseq
        %v1464 = vshrl.u32 %v1463, 7
        %v1465 = vsub.s32 %v1462, %v1464
        %v1466 = vrot.slane %v1452, %v1465
        %v1467 = vcombine.low %v1411, %v1427
        %v1468 = vcombine.high %v1411, %v1427
        %v1470 = vunpack.c.l.s4 1934713408
        %v1471 = vunpack.c.0.s8 %v1470
        %v1472 = vlaneseq
        %v1473 = vshrl.u32 %v1472, 7
        %v1474 = vsub.s32 %v1471, %v1473
        %v1475 = vrot.slane %v1467, %v1474
        %v1477 = vunpack.c.l.s4 1934713408
        %v1478 = vunpack.c.0.s8 %v1477
        %v1479 = vlaneseq
        %v1480 = vshrl.u32 %v1479, 7
        %v1481 = vsub.s32 %v1478, %v1480
        %v1482 = vrot.slane %v1468, %v1481
        %v1483 = vcombine.low %v1418, %v1434
        %v1484 = vcombine.high %v1418, %v1434
        %v1486 = vunpack.c.l.s4 1934713408
        %v1487 = vunpack.c.0.s8 %v1486
        %v1488 = vlaneseq
        %v1489 = vshrl.u32 %v1488, 7
        %v1490 = vsub.s32 %v1487, %v1489
        %v1491 = vrot.slane %v1483, %v1490
        %v1493 = vunpack.c.l.s4 1934713408
        %v1494 = vunpack.c.0.s8 %v1493
        %v1495 = vlaneseq
        %v1496 = vshrl.u32 %v1495, 7
        %v1497 = vsub.s32 %v1494, %v1496
        %v1498 = vrot.slane %v1484, %v1497
        %v1499 = vcombine.low %v1443, %v1475
        %v1500 = vcombine.high %v1443, %v1475
        %v1501 = vcombine.low %v1450, %v1482
        %v1502 = vcombine.high %v1450, %v1482
        %v1503 = vcombine.low %v1459, %v1491
        %v1504 = vcombine.high %v1459, %v1491
        %v1505 = vcombine.low %v1466, %v1498
        %v1506 = vcombine.high %v1466, %v1498
        %v1507 = vcombine.low %v1356, %v1360
        %v1508 = vcombine.high %v1356, %v1360
        %v1510 = vunpack.c.l.s4 1983009808
        %v1511 = vunpack.c.0.s8 %v1510
        %v1512 = vlaneseq
        %v1513 = vshrl.u32 %v1512, 7
        %v1514 = vsub.s32 %v1511, %v1513
        %v1515 = vrot.slane %v1507, %v1514
        %v1517 = vunpack.c.l.s4 1983009808
        %v1518 = vunpack.c.0.s8 %v1517
        %v1519 = vlaneseq
        %v1520 = vshrl.u32 %v1519, 7
        %v1521 = vsub.s32 %v1518, %v1520
        %v1522 = vrot.slane %v1508, %v1521
        %v1523 = vcombine.low %v1358, %v1362
        %v1524 = vcombine.high %v1358, %v1362
        %v1526 = vunpack.c.l.s4 1983009808
        %v1527 = vunpack.c.0.s8 %v1526
        %v1528 = vlaneseq
        %v1529 = vshrl.u32 %v1528, 7
        %v1530 = vsub.s32 %v1527, %v1529
        %v1531 = vrot.slane %v1523, %v1530
        %v1533 = vunpack.c.l.s4 1983009808
        %v1534 = vunpack.c.0.s8 %v1533
        %v1535 = vlaneseq
        %v1536 = vshrl.u32 %v1535, 7
        %v1537 = vsub.s32 %v1534, %v1536
        %v1538 = vrot.slane %v1524, %v1537
        %v1539 = vcombine.low %v1364, %v1368
        %v1540 = vcombine.high %v1364, %v1368
        %v1542 = vunpack.c.l.s4 1983009808
        %v1543 = vunpack.c.0.s8 %v1542
        %v1544 = vlaneseq
        %v1545 = vshrl.u32 %v1544, 7
        %v1546 = vsub.s32 %v1543, %v1545
        %v1547 = vrot.slane %v1539, %v1546
        %v1549 = vunpack.c.l.s4 1983009808
        %v1550 = vunpack.c.0.s8 %v1549
        %v1551 = vlaneseq
        %v1552 = vshrl.u32 %v1551, 7
        %v1553 = vsub.s32 %v1550, %v1552
        %v1554 = vrot.slane %v1540, %v1553
        %v1555 = vcombine.low %v1366, %v1370
        %v1556 = vcombine.high %v1366, %v1370
        %v1558 = vunpack.c.l.s4 1983009808
        %v1559 = vunpack.c.0.s8 %v1558
        %v1560 = vlaneseq
        %v1561 = vshrl.u32 %v1560, 7
        %v1562 = vsub.s32 %v1559, %v1561
        %v1563 = vrot.slane %v1555, %v1562
        %v1565 = vunpack.c.l.s4 1983009808
        %v1566 = vunpack.c.0.s8 %v1565
        %v1567 = vlaneseq
        %v1568 = vshrl.u32 %v1567, 7
        %v1569 = vsub.s32 %v1566, %v1568
        %v1570 = vrot.slane %v1556, %v1569
        %v1571 = vcombine.low %v1515, %v1531
        %v1572 = vcombine.high %v1515, %v1531
        %v1574 = vunpack.c.l.s4 1934713408
        %v1575 = vunpack.c.0.s8 %v1574
        %v1576 = vlaneseq
        %v1577 = vshrl.u32 %v1576, 7
        %v1578 = vsub.s32 %v1575, %v1577
        %v1579 = vrot.slane %v1571, %v1578
        %v1581 = vunpack.c.l.s4 1934713408
        %v1582 = vunpack.c.0.s8 %v1581
        %v1583 = vlaneseq
        %v1584 = vshrl.u32 %v1583, 7
        %v1585 = vsub.s32 %v1582, %v1584
        %v1586 = vrot.slane %v1572, %v1585
        %v1587 = vcombine.low %v1522, %v1538
        %v1588 = vcombine.high %v1522, %v1538
        %v1590 = vunpack.c.l.s4 1934713408
        %v1591 = vunpack.c.0.s8 %v1590
        %v1592 = vlaneseq
        %v1593 = vshrl.u32 %v1592, 7
        %v1594 = vsub.s32 %v1591, %v1593
        %v1595 = vrot.slane %v1587, %v1594
        %v1597 = vunpack.c.l.s4 1934713408
        %v1598 = vunpack.c.0.s8 %v1597
        %v1599 = vlaneseq
        %v1600 = vshrl.u32 %v1599, 7
        %v1601 = vsub.s32 %v1598, %v1600
        %v1602 = vrot.slane %v1588, %v1601
        %v1603 = vcombine.low %v1547, %v1563
        %v1604 = vcombine.high %v1547, %v1563
        %v1606 = vunpack.c.l.s4 1934713408
        %v1607 = vunpack.c.0.s8 %v1606
        %v1608 = vlaneseq
        %v1609 = vshrl.u32 %v1608, 7
        %v1610 = vsub.s32 %v1607, %v1609
        %v1611 = vrot.slane %v1603, %v1610
        %v1613 = vunpack.c.l.s4 1934713408
        %v1614 = vunpack.c.0.s8 %v1613
        %v1615 = vlaneseq
        %v1616 = vshrl.u32 %v1615, 7
        %v1617 = vsub.s32 %v1614, %v1616
        %v1618 = vrot.slane %v1604, %v1617
        %v1619 = vcombine.low %v1554, %v1570
        %v1620 = vcombine.high %v1554, %v1570
        %v1622 = vunpack.c.l.s4 1934713408
        %v1623 = vunpack.c.0.s8 %v1622
        %v1624 = vlaneseq
        %v1625 = vshrl.u32 %v1624, 7
        %v1626 = vsub.s32 %v1623, %v1625
        %v1627 = vrot.slane %v1619, %v1626
        %v1629 = vunpack.c.l.s4 1934713408
        %v1630 = vunpack.c.0.s8 %v1629
        %v1631 = vlaneseq
        %v1632 = vshrl.u32 %v1631, 7
        %v1633 = vsub.s32 %v1630, %v1632
        %v1634 = vrot.slane %v1620, %v1633
        %v1635 = vcombine.low %v1579, %v1611
        %v1636 = vcombine.high %v1579, %v1611
        %v1637 = vcombine.low %v1586, %v1618
        %v1638 = vcombine.high %v1586, %v1618
        %v1639 = vcombine.low %v1595, %v1627
        %v1640 = vcombine.high %v1595, %v1627
        %v1641 = vcombine.low %v1602, %v1634
        %v1642 = vcombine.high %v1602, %v1634
        %1644 = vrot.lane.b32.xlu0 %v1500, 16
        %v1645 = vpop.permute.xlu0 %1644
        %1648 = vrot.lane.b32.xlu0 %v1501, 32
        %v1649 = vpop.permute.xlu0 %1648
        %1652 = vrot.lane.b32.xlu0 %v1502, 48
        %v1653 = vpop.permute.xlu0 %1652
        %1656 = vrot.lane.b32.xlu0 %v1503, 64
        %v1657 = vpop.permute.xlu0 %1656
        %1660 = vrot.lane.b32.xlu0 %v1504, 80
        %v1661 = vpop.permute.xlu0 %1660
        %1664 = vrot.lane.b32.xlu0 %v1505, 96
        %v1665 = vpop.permute.xlu0 %1664
        %1668 = vrot.lane.b32.xlu0 %v1506, 112
        %v1669 = vpop.permute.xlu0 %1668
        %1672 = vrot.lane.b32.xlu0 %v1636, 16
        %v1673 = vpop.permute.xlu0 %1672
        %1676 = vrot.lane.b32.xlu0 %v1637, 32
        %v1677 = vpop.permute.xlu0 %1676
        %1680 = vrot.lane.b32.xlu0 %v1638, 48
        %v1681 = vpop.permute.xlu0 %1680
        %1684 = vrot.lane.b32.xlu0 %v1639, 64
        %v1685 = vpop.permute.xlu0 %1684
        %1688 = vrot.lane.b32.xlu0 %v1640, 80
        %v1689 = vpop.permute.xlu0 %1688
        %1692 = vrot.lane.b32.xlu0 %v1641, 96
        %v1693 = vpop.permute.xlu0 %1692
        %1696 = vrot.lane.b32.xlu0 %v1642, 112
        %v1697 = vpop.permute.xlu0 %1696
        %vm1699 = vcmask 130048
        %v1700 = vsel %vm1699, %v1499, %v1645
        %vm1701 = vcmask 261120
        %v1702 = vsel %vm1701, %v1700, %v1649
        %vm1703 = vcmask 392192
        %v1704 = vsel %vm1703, %v1702, %v1653
        %vm1705 = vcmask 523264
        %v1706 = vsel %vm1705, %v1704, %v1657
        %vm1707 = vcmask 654336
        %v1708 = vsel %vm1707, %v1706, %v1661
        %vm1709 = vcmask 785408
        %v1710 = vsel %vm1709, %v1708, %v1665
        %vm1711 = vcmask 916480
        %v1712 = vsel %vm1711, %v1710, %v1669
        %v1713 = vsel %vm1699, %v1635, %v1673
        %v1714 = vsel %vm1701, %v1713, %v1677
        %v1715 = vsel %vm1703, %v1714, %v1681
        %v1716 = vsel %vm1705, %v1715, %v1685
        %v1717 = vsel %vm1707, %v1716, %v1689
        %v1718 = vsel %vm1709, %v1717, %v1693
        %v1719 = vsel %vm1711, %v1718, %v1697
        %1721 = vset.pattern.permute.xlu0 0
        %1722 = vperm.xlu0 %1721, %v587
        %v1723 = vpop.permute.xlu0 %1722
        %1726 = vset.pattern.permute.xlu0 0
        %1727 = vperm.xlu0 %1726, %v588
        %v1728 = vpop.permute.xlu0 %1727
        %vm1730 = vcmask 64512
        %v1732 = vsel %vm1730, %v585, 0
        %v1735 = vsel %vm1730, %v586, 0
        %1737 = vmatprep.subr.mxu0 0.0
        %1738 = vmatpush1.msra.mxu0 0.0
        %1739 = vmatprep.subr.mxu0 0.0
        %1740 = vmatpush1.msra.mxu0 0.0
        %1741 = vmatprep.subr.mxu0 0.0
        %1742 = vmatpush1.msra.mxu0 0.0
        %1743 = vmatprep.subr.mxu0 0.0
        %1744 = vmatpush1.msra.mxu0 0.0
        %1745 = vmatprep.subr.mxu0 0.0
        %1746 = vmatpush1.msra.mxu0 0.0
        %1747 = vmatprep.subr.mxu0 0.0
        %1748 = vmatpush1.msra.mxu0 0.0
        %1749 = vmatprep.subr.mxu0 0.0
        %1750 = vmatpush1.msra.mxu0 0.0
        %1751 = vmatprep.subr.mxu0 0.0
        %1752 = vmatpush1.msra.mxu0 0.0
        %1753 = vmatprep.subr.mxu0 0.0
        %1754 = vmatpush1.msra.mxu0 0.0
        %1755 = vmatprep.subr.mxu0 0.0
        %1756 = vmatpush1.msra.mxu0 0.0
        %1757 = vmatprep.subr.mxu0 0.0
        %1758 = vmatpush1.msra.mxu0 0.0
        %1759 = vmatprep.subr.mxu0 0.0
        %1760 = vmatpush1.msra.mxu0 0.0
        %1761 = vmatprep.subr.mxu0 0.0
        %1762 = vmatpush1.msra.mxu0 0.0
        %1763 = vmatprep.subr.mxu0 0.0
        %1764 = vmatpush1.msra.mxu0 0.0
        %1765 = vmatprep.subr.mxu0 0.0
        %1766 = vmatpush1.msra.mxu0 0.0
        %1767 = vmatprep.subr.mxu0 %v1719
        %1768 = vmatpush1.msra.mxu0 %v1712
        %1769 = vmatprep.subr.mxu0 0.0
        %1770 = vmatpush2.msra.mxu0 0.0
        %1771 = vmatprep.subr.mxu0 0.0
        %1772 = vmatpush2.msra.mxu0 0.0
        %1773 = vmatprep.subr.mxu0 0.0
        %1774 = vmatpush2.msra.mxu0 0.0
        %1775 = vmatprep.subr.mxu0 0.0
        %1776 = vmatpush2.msra.mxu0 0.0
        %1777 = vmatprep.subr.mxu0 0.0
        %1778 = vmatpush2.msra.mxu0 0.0
        %1779 = vmatprep.subr.mxu0 0.0
        %1780 = vmatpush2.msra.mxu0 0.0
        %1781 = vmatprep.subr.mxu0 0.0
        %1782 = vmatpush2.msra.mxu0 0.0
        %1783 = vmatprep.subr.mxu0 0.0
        %1784 = vmatpush2.msra.mxu0 0.0
        %1785 = vmatprep.subr.mxu0 0.0
        %1786 = vmatpush2.msra.mxu0 0.0
        %1787 = vmatprep.subr.mxu0 0.0
        %1788 = vmatpush2.msra.mxu0 0.0
        %1789 = vmatprep.subr.mxu0 0.0
        %1790 = vmatpush2.msra.mxu0 0.0
        %1791 = vmatprep.subr.mxu0 0.0
        %1792 = vmatpush2.msra.mxu0 0.0
        %1793 = vmatprep.subr.mxu0 0.0
        %1794 = vmatpush2.msra.mxu0 0.0
        %1795 = vmatprep.subr.mxu0 0.0
        %1796 = vmatpush2.msra.mxu0 0.0
        %1797 = vmatprep.subr.mxu0 0.0
        %1798 = vmatpush2.msra.mxu0 0.0
        %1799 = vmatprep.subr.mxu0 0.0
        %1800 = vmatpush2.msra.mxu0 0.0
        %1801 = vmatprep.mubr.f32.mxu0 0.0
        %1802 = vmatmul.mubr.f32.gmra.mxu0 %v1732
        %v1803 = vpop.f32.mrf.mxu0
        %v1804 = vadd.f32 %v1723, %v1803
        %v1805 = vpop.f32.mrf.mxu0
        %v1806 = vadd.f32 %v1723, %v1805
        %1807 = vmatprep.mubr.f32.mxu0 0.0
        %1808 = vmatmul.mubr.f32.gmra.mxu0 %v1735
        %v1809 = vpop.f32.mrf.mxu0
        %v1810 = vadd.f32 %v1728, %v1809
        %v1811 = vpop.f32.mrf.mxu0
        %v1812 = vadd.f32 %v1728, %v1811
        %1813 = vdwg.mxu0
        %v1815 = vlaneseq
        %v1816 = vshrl.u32 %v1815, 7
        %v1817 = vsub.s32 0, %v1816
        %v1818 = vrot.slane %v589, %v1817
        %v1819 = vlaneseq
        %v1820 = vshrl.u32 %v1819, 7
        %v1821 = vsub.s32 1, %v1820
        %v1822 = vrot.slane %v589, %v1821
        %v1825 = vadd.f32 %v1804, %v1818
        %v1826 = vadd.f32 %v1806, %v1822
        %v1827 = vadd.f32 %v1810, %v1818
        %v1828 = vadd.f32 %v1812, %v1822
        %1831 = vrot.lane.b32.xlu0 %v1825, 112
        %v1832 = vpop.permute.xlu0 %1831
        %1833 = vrot.lane.b32.xlu0 %v1827, 112
        %v1834 = vpop.permute.xlu0 %1833
        %1837 = vrot.lane.b32.xlu0 %v1825, 96
        %v1838 = vpop.permute.xlu0 %1837
        %1839 = vrot.lane.b32.xlu0 %v1827, 96
        %v1840 = vpop.permute.xlu0 %1839
        %1843 = vrot.lane.b32.xlu0 %v1825, 80
        %v1844 = vpop.permute.xlu0 %1843
        %1845 = vrot.lane.b32.xlu0 %v1827, 80
        %v1846 = vpop.permute.xlu0 %1845
        %1849 = vrot.lane.b32.xlu0 %v1825, 64
        %v1850 = vpop.permute.xlu0 %1849
        %1851 = vrot.lane.b32.xlu0 %v1827, 64
        %v1852 = vpop.permute.xlu0 %1851
        %1855 = vrot.lane.b32.xlu0 %v1825, 48
        %v1856 = vpop.permute.xlu0 %1855
        %1857 = vrot.lane.b32.xlu0 %v1827, 48
        %v1858 = vpop.permute.xlu0 %1857
        %1861 = vrot.lane.b32.xlu0 %v1825, 32
        %v1862 = vpop.permute.xlu0 %1861
        %1863 = vrot.lane.b32.xlu0 %v1827, 32
        %v1864 = vpop.permute.xlu0 %1863
        %1867 = vrot.lane.b32.xlu0 %v1825, 16
        %v1868 = vpop.permute.xlu0 %1867
        %1869 = vrot.lane.b32.xlu0 %v1827, 16
        %v1870 = vpop.permute.xlu0 %1869
        %1875 = vrot.lane.b32.xlu0 %v1826, 112
        %v1876 = vpop.permute.xlu0 %1875
        %1877 = vrot.lane.b32.xlu0 %v1828, 112
        %v1878 = vpop.permute.xlu0 %1877
        %1881 = vrot.lane.b32.xlu0 %v1826, 96
        %v1882 = vpop.permute.xlu0 %1881
        %1883 = vrot.lane.b32.xlu0 %v1828, 96
        %v1884 = vpop.permute.xlu0 %1883
        %1887 = vrot.lane.b32.xlu0 %v1826, 80
        %v1888 = vpop.permute.xlu0 %1887
        %1889 = vrot.lane.b32.xlu0 %v1828, 80
        %v1890 = vpop.permute.xlu0 %1889
        %1893 = vrot.lane.b32.xlu0 %v1826, 64
        %v1894 = vpop.permute.xlu0 %1893
        %1895 = vrot.lane.b32.xlu0 %v1828, 64
        %v1896 = vpop.permute.xlu0 %1895
        %1899 = vrot.lane.b32.xlu0 %v1826, 48
        %v1900 = vpop.permute.xlu0 %1899
        %1901 = vrot.lane.b32.xlu0 %v1828, 48
        %v1902 = vpop.permute.xlu0 %1901
        %1905 = vrot.lane.b32.xlu0 %v1826, 32
        %v1906 = vpop.permute.xlu0 %1905
        %1907 = vrot.lane.b32.xlu0 %v1828, 32
        %v1908 = vpop.permute.xlu0 %1907
        %1911 = vrot.lane.b32.xlu0 %v1826, 16
        %v1912 = vpop.permute.xlu0 %1911
        %1913 = vrot.lane.b32.xlu0 %v1828, 16
        %v1914 = vpop.permute.xlu0 %1913
        %v1917 = vcombine.low %v1825, %v1838
        %v1918 = vcombine.high %v1825, %v1838
        %v1920 = vunpack.c.l.s4 1983009808
        %v1921 = vunpack.c.0.s8 %v1920
        %v1922 = vlaneseq
        %v1923 = vshrl.u32 %v1922, 7
        %v1924 = vsub.s32 %v1921, %v1923
        %v1925 = vrot.slane %v1917, %v1924
        %v1927 = vunpack.c.l.s4 1983009808
        %v1928 = vunpack.c.0.s8 %v1927
        %v1929 = vlaneseq
        %v1930 = vshrl.u32 %v1929, 7
        %v1931 = vsub.s32 %v1928, %v1930
        %v1932 = vrot.slane %v1918, %v1931
        %v1933 = vcombine.low %v1832, %v1844
        %v1934 = vcombine.high %v1832, %v1844
        %v1936 = vunpack.c.l.s4 1983009808
        %v1937 = vunpack.c.0.s8 %v1936
        %v1938 = vlaneseq
        %v1939 = vshrl.u32 %v1938, 7
        %v1940 = vsub.s32 %v1937, %v1939
        %v1941 = vrot.slane %v1933, %v1940
        %v1943 = vunpack.c.l.s4 1983009808
        %v1944 = vunpack.c.0.s8 %v1943
        %v1945 = vlaneseq
        %v1946 = vshrl.u32 %v1945, 7
        %v1947 = vsub.s32 %v1944, %v1946
        %v1948 = vrot.slane %v1934, %v1947
        %v1949 = vcombine.low %v1850, %v1862
        %v1950 = vcombine.high %v1850, %v1862
        %v1952 = vunpack.c.l.s4 1983009808
        %v1953 = vunpack.c.0.s8 %v1952
        %v1954 = vlaneseq
        %v1955 = vshrl.u32 %v1954, 7
        %v1956 = vsub.s32 %v1953, %v1955
        %v1957 = vrot.slane %v1949, %v1956
        %v1959 = vunpack.c.l.s4 1983009808
        %v1960 = vunpack.c.0.s8 %v1959
        %v1961 = vlaneseq
        %v1962 = vshrl.u32 %v1961, 7
        %v1963 = vsub.s32 %v1960, %v1962
        %v1964 = vrot.slane %v1950, %v1963
        %v1965 = vcombine.low %v1856, %v1868
        %v1966 = vcombine.high %v1856, %v1868
        %v1968 = vunpack.c.l.s4 1983009808
        %v1969 = vunpack.c.0.s8 %v1968
        %v1970 = vlaneseq
        %v1971 = vshrl.u32 %v1970, 7
        %v1972 = vsub.s32 %v1969, %v1971
        %v1973 = vrot.slane %v1965, %v1972
        %v1975 = vunpack.c.l.s4 1983009808
        %v1976 = vunpack.c.0.s8 %v1975
        %v1977 = vlaneseq
        %v1978 = vshrl.u32 %v1977, 7
        %v1979 = vsub.s32 %v1976, %v1978
        %v1980 = vrot.slane %v1966, %v1979
        %v1981 = vcombine.low %v1925, %v1941
        %v1982 = vcombine.high %v1925, %v1941
        %v1984 = vunpack.c.l.s4 1934713408
        %v1985 = vunpack.c.0.s8 %v1984
        %v1986 = vlaneseq
        %v1987 = vshrl.u32 %v1986, 7
        %v1988 = vsub.s32 %v1985, %v1987
        %v1989 = vrot.slane %v1981, %v1988
        %v1991 = vunpack.c.l.s4 1934713408
        %v1992 = vunpack.c.0.s8 %v1991
        %v1993 = vlaneseq
        %v1994 = vshrl.u32 %v1993, 7
        %v1995 = vsub.s32 %v1992, %v1994
        %v1996 = vrot.slane %v1982, %v1995
        %v1997 = vcombine.low %v1932, %v1948
        %v1998 = vcombine.high %v1932, %v1948
        %v2000 = vunpack.c.l.s4 1934713408
        %v2001 = vunpack.c.0.s8 %v2000
        %v2002 = vlaneseq
        %v2003 = vshrl.u32 %v2002, 7
        %v2004 = vsub.s32 %v2001, %v2003
        %v2005 = vrot.slane %v1997, %v2004
        %v2007 = vunpack.c.l.s4 1934713408
        %v2008 = vunpack.c.0.s8 %v2007
        %v2009 = vlaneseq
        %v2010 = vshrl.u32 %v2009, 7
        %v2011 = vsub.s32 %v2008, %v2010
        %v2012 = vrot.slane %v1998, %v2011
        %v2013 = vcombine.low %v1957, %v1973
        %v2014 = vcombine.high %v1957, %v1973
        %v2016 = vunpack.c.l.s4 1934713408
        %v2017 = vunpack.c.0.s8 %v2016
        %v2018 = vlaneseq
        %v2019 = vshrl.u32 %v2018, 7
        %v2020 = vsub.s32 %v2017, %v2019
        %v2021 = vrot.slane %v2013, %v2020
        %v2023 = vunpack.c.l.s4 1934713408
        %v2024 = vunpack.c.0.s8 %v2023
        %v2025 = vlaneseq
        %v2026 = vshrl.u32 %v2025, 7
        %v2027 = vsub.s32 %v2024, %v2026
        %v2028 = vrot.slane %v2014, %v2027
        %v2029 = vcombine.low %v1964, %v1980
        %v2030 = vcombine.high %v1964, %v1980
        %v2032 = vunpack.c.l.s4 1934713408
        %v2033 = vunpack.c.0.s8 %v2032
        %v2034 = vlaneseq
        %v2035 = vshrl.u32 %v2034, 7
        %v2036 = vsub.s32 %v2033, %v2035
        %v2037 = vrot.slane %v2029, %v2036
        %v2039 = vunpack.c.l.s4 1934713408
        %v2040 = vunpack.c.0.s8 %v2039
        %v2041 = vlaneseq
        %v2042 = vshrl.u32 %v2041, 7
        %v2043 = vsub.s32 %v2040, %v2042
        %v2044 = vrot.slane %v2030, %v2043
        %v2045 = vcombine.low %v1989, %v2021
        %v2046 = vcombine.high %v1989, %v2021
        %v2047 = vcombine.low %v1996, %v2028
        %v2048 = vcombine.high %v1996, %v2028
        %v2049 = vcombine.low %v2005, %v2037
        %v2050 = vcombine.high %v2005, %v2037
        %v2051 = vcombine.low %v2012, %v2044
        %v2052 = vcombine.high %v2012, %v2044
        %v2053 = vcombine.low %v1826, %v1882
        %v2054 = vcombine.high %v1826, %v1882
        %v2056 = vunpack.c.l.s4 1983009808
        %v2057 = vunpack.c.0.s8 %v2056
        %v2058 = vlaneseq
        %v2059 = vshrl.u32 %v2058, 7
        %v2060 = vsub.s32 %v2057, %v2059
        %v2061 = vrot.slane %v2053, %v2060
        %v2063 = vunpack.c.l.s4 1983009808
        %v2064 = vunpack.c.0.s8 %v2063
        %v2065 = vlaneseq
        %v2066 = vshrl.u32 %v2065, 7
        %v2067 = vsub.s32 %v2064, %v2066
        %v2068 = vrot.slane %v2054, %v2067
        %v2069 = vcombine.low %v1876, %v1888
        %v2070 = vcombine.high %v1876, %v1888
        %v2072 = vunpack.c.l.s4 1983009808
        %v2073 = vunpack.c.0.s8 %v2072
        %v2074 = vlaneseq
        %v2075 = vshrl.u32 %v2074, 7
        %v2076 = vsub.s32 %v2073, %v2075
        %v2077 = vrot.slane %v2069, %v2076
        %v2079 = vunpack.c.l.s4 1983009808
        %v2080 = vunpack.c.0.s8 %v2079
        %v2081 = vlaneseq
        %v2082 = vshrl.u32 %v2081, 7
        %v2083 = vsub.s32 %v2080, %v2082
        %v2084 = vrot.slane %v2070, %v2083
        %v2085 = vcombine.low %v1894, %v1906
        %v2086 = vcombine.high %v1894, %v1906
        %v2088 = vunpack.c.l.s4 1983009808
        %v2089 = vunpack.c.0.s8 %v2088
        %v2090 = vlaneseq
        %v2091 = vshrl.u32 %v2090, 7
        %v2092 = vsub.s32 %v2089, %v2091
        %v2093 = vrot.slane %v2085, %v2092
        %v2095 = vunpack.c.l.s4 1983009808
        %v2096 = vunpack.c.0.s8 %v2095
        %v2097 = vlaneseq
        %v2098 = vshrl.u32 %v2097, 7
        %v2099 = vsub.s32 %v2096, %v2098
        %v2100 = vrot.slane %v2086, %v2099
        %v2101 = vcombine.low %v1900, %v1912
        %v2102 = vcombine.high %v1900, %v1912
        %v2104 = vunpack.c.l.s4 1983009808
        %v2105 = vunpack.c.0.s8 %v2104
        %v2106 = vlaneseq
        %v2107 = vshrl.u32 %v2106, 7
        %v2108 = vsub.s32 %v2105, %v2107
        %v2109 = vrot.slane %v2101, %v2108
        %v2111 = vunpack.c.l.s4 1983009808
        %v2112 = vunpack.c.0.s8 %v2111
        %v2113 = vlaneseq
        %v2114 = vshrl.u32 %v2113, 7
        %v2115 = vsub.s32 %v2112, %v2114
        %v2116 = vrot.slane %v2102, %v2115
        %v2117 = vcombine.low %v2061, %v2077
        %v2118 = vcombine.high %v2061, %v2077
        %v2120 = vunpack.c.l.s4 1934713408
        %v2121 = vunpack.c.0.s8 %v2120
        %v2122 = vlaneseq
        %v2123 = vshrl.u32 %v2122, 7
        %v2124 = vsub.s32 %v2121, %v2123
        %v2125 = vrot.slane %v2117, %v2124
        %v2127 = vunpack.c.l.s4 1934713408
        %v2128 = vunpack.c.0.s8 %v2127
        %v2129 = vlaneseq
        %v2130 = vshrl.u32 %v2129, 7
        %v2131 = vsub.s32 %v2128, %v2130
        %v2132 = vrot.slane %v2118, %v2131
        %v2133 = vcombine.low %v2068, %v2084
        %v2134 = vcombine.high %v2068, %v2084
        %v2136 = vunpack.c.l.s4 1934713408
        %v2137 = vunpack.c.0.s8 %v2136
        %v2138 = vlaneseq
        %v2139 = vshrl.u32 %v2138, 7
        %v2140 = vsub.s32 %v2137, %v2139
        %v2141 = vrot.slane %v2133, %v2140
        %v2143 = vunpack.c.l.s4 1934713408
        %v2144 = vunpack.c.0.s8 %v2143
        %v2145 = vlaneseq
        %v2146 = vshrl.u32 %v2145, 7
        %v2147 = vsub.s32 %v2144, %v2146
        %v2148 = vrot.slane %v2134, %v2147
        %v2149 = vcombine.low %v2093, %v2109
        %v2150 = vcombine.high %v2093, %v2109
        %v2152 = vunpack.c.l.s4 1934713408
        %v2153 = vunpack.c.0.s8 %v2152
        %v2154 = vlaneseq
        %v2155 = vshrl.u32 %v2154, 7
        %v2156 = vsub.s32 %v2153, %v2155
        %v2157 = vrot.slane %v2149, %v2156
        %v2159 = vunpack.c.l.s4 1934713408
        %v2160 = vunpack.c.0.s8 %v2159
        %v2161 = vlaneseq
        %v2162 = vshrl.u32 %v2161, 7
        %v2163 = vsub.s32 %v2160, %v2162
        %v2164 = vrot.slane %v2150, %v2163
        %v2165 = vcombine.low %v2100, %v2116
        %v2166 = vcombine.high %v2100, %v2116
        %v2168 = vunpack.c.l.s4 1934713408
        %v2169 = vunpack.c.0.s8 %v2168
        %v2170 = vlaneseq
        %v2171 = vshrl.u32 %v2170, 7
        %v2172 = vsub.s32 %v2169, %v2171
        %v2173 = vrot.slane %v2165, %v2172
        %v2175 = vunpack.c.l.s4 1934713408
        %v2176 = vunpack.c.0.s8 %v2175
        %v2177 = vlaneseq
        %v2178 = vshrl.u32 %v2177, 7
        %v2179 = vsub.s32 %v2176, %v2178
        %v2180 = vrot.slane %v2166, %v2179
        %v2181 = vcombine.low %v2125, %v2157
        %v2182 = vcombine.high %v2125, %v2157
        %v2183 = vcombine.low %v2132, %v2164
        %v2184 = vcombine.high %v2132, %v2164
        %v2185 = vcombine.low %v2141, %v2173
        %v2186 = vcombine.high %v2141, %v2173
        %v2187 = vcombine.low %v2148, %v2180
        %v2188 = vcombine.high %v2148, %v2180
        %v2189 = vcombine.low %v1827, %v1840
        %v2190 = vcombine.high %v1827, %v1840
        %v2192 = vunpack.c.l.s4 1983009808
        %v2193 = vunpack.c.0.s8 %v2192
        %v2194 = vlaneseq
        %v2195 = vshrl.u32 %v2194, 7
        %v2196 = vsub.s32 %v2193, %v2195
        %v2197 = vrot.slane %v2189, %v2196
        %v2199 = vunpack.c.l.s4 1983009808
        %v2200 = vunpack.c.0.s8 %v2199
        %v2201 = vlaneseq
        %v2202 = vshrl.u32 %v2201, 7
        %v2203 = vsub.s32 %v2200, %v2202
        %v2204 = vrot.slane %v2190, %v2203
        %v2205 = vcombine.low %v1834, %v1846
        %v2206 = vcombine.high %v1834, %v1846
        %v2208 = vunpack.c.l.s4 1983009808
        %v2209 = vunpack.c.0.s8 %v2208
        %v2210 = vlaneseq
        %v2211 = vshrl.u32 %v2210, 7
        %v2212 = vsub.s32 %v2209, %v2211
        %v2213 = vrot.slane %v2205, %v2212
        %v2215 = vunpack.c.l.s4 1983009808
        %v2216 = vunpack.c.0.s8 %v2215
        %v2217 = vlaneseq
        %v2218 = vshrl.u32 %v2217, 7
        %v2219 = vsub.s32 %v2216, %v2218
        %v2220 = vrot.slane %v2206, %v2219
        %v2221 = vcombine.low %v1852, %v1864
        %v2222 = vcombine.high %v1852, %v1864
        %v2224 = vunpack.c.l.s4 1983009808
        %v2225 = vunpack.c.0.s8 %v2224
        %v2226 = vlaneseq
        %v2227 = vshrl.u32 %v2226, 7
        %v2228 = vsub.s32 %v2225, %v2227
        %v2229 = vrot.slane %v2221, %v2228
        %v2231 = vunpack.c.l.s4 1983009808
        %v2232 = vunpack.c.0.s8 %v2231
        %v2233 = vlaneseq
        %v2234 = vshrl.u32 %v2233, 7
        %v2235 = vsub.s32 %v2232, %v2234
        %v2236 = vrot.slane %v2222, %v2235
        %v2237 = vcombine.low %v1858, %v1870
        %v2238 = vcombine.high %v1858, %v1870
        %v2240 = vunpack.c.l.s4 1983009808
        %v2241 = vunpack.c.0.s8 %v2240
        %v2242 = vlaneseq
        %v2243 = vshrl.u32 %v2242, 7
        %v2244 = vsub.s32 %v2241, %v2243
        %v2245 = vrot.slane %v2237, %v2244
        %v2247 = vunpack.c.l.s4 1983009808
        %v2248 = vunpack.c.0.s8 %v2247
        %v2249 = vlaneseq
        %v2250 = vshrl.u32 %v2249, 7
        %v2251 = vsub.s32 %v2248, %v2250
        %v2252 = vrot.slane %v2238, %v2251
        %v2253 = vcombine.low %v2197, %v2213
        %v2254 = vcombine.high %v2197, %v2213
        %v2256 = vunpack.c.l.s4 1934713408
        %v2257 = vunpack.c.0.s8 %v2256
        %v2258 = vlaneseq
        %v2259 = vshrl.u32 %v2258, 7
        %v2260 = vsub.s32 %v2257, %v2259
        %v2261 = vrot.slane %v2253, %v2260
        %v2263 = vunpack.c.l.s4 1934713408
        %v2264 = vunpack.c.0.s8 %v2263
        %v2265 = vlaneseq
        %v2266 = vshrl.u32 %v2265, 7
        %v2267 = vsub.s32 %v2264, %v2266
        %v2268 = vrot.slane %v2254, %v2267
        %v2269 = vcombine.low %v2204, %v2220
        %v2270 = vcombine.high %v2204, %v2220
        %v2272 = vunpack.c.l.s4 1934713408
        %v2273 = vunpack.c.0.s8 %v2272
        %v2274 = vlaneseq
        %v2275 = vshrl.u32 %v2274, 7
        %v2276 = vsub.s32 %v2273, %v2275
        %v2277 = vrot.slane %v2269, %v2276
        %v2279 = vunpack.c.l.s4 1934713408
        %v2280 = vunpack.c.0.s8 %v2279
        %v2281 = vlaneseq
        %v2282 = vshrl.u32 %v2281, 7
        %v2283 = vsub.s32 %v2280, %v2282
        %v2284 = vrot.slane %v2270, %v2283
        %v2285 = vcombine.low %v2229, %v2245
        %v2286 = vcombine.high %v2229, %v2245
        %v2288 = vunpack.c.l.s4 1934713408
        %v2289 = vunpack.c.0.s8 %v2288
        %v2290 = vlaneseq
        %v2291 = vshrl.u32 %v2290, 7
        %v2292 = vsub.s32 %v2289, %v2291
        %v2293 = vrot.slane %v2285, %v2292
        %v2295 = vunpack.c.l.s4 1934713408
        %v2296 = vunpack.c.0.s8 %v2295
        %v2297 = vlaneseq
        %v2298 = vshrl.u32 %v2297, 7
        %v2299 = vsub.s32 %v2296, %v2298
        %v2300 = vrot.slane %v2286, %v2299
        %v2301 = vcombine.low %v2236, %v2252
        %v2302 = vcombine.high %v2236, %v2252
        %v2304 = vunpack.c.l.s4 1934713408
        %v2305 = vunpack.c.0.s8 %v2304
        %v2306 = vlaneseq
        %v2307 = vshrl.u32 %v2306, 7
        %v2308 = vsub.s32 %v2305, %v2307
        %v2309 = vrot.slane %v2301, %v2308
        %v2311 = vunpack.c.l.s4 1934713408
        %v2312 = vunpack.c.0.s8 %v2311
        %v2313 = vlaneseq
        %v2314 = vshrl.u32 %v2313, 7
        %v2315 = vsub.s32 %v2312, %v2314
        %v2316 = vrot.slane %v2302, %v2315
        %v2317 = vcombine.low %v2261, %v2293
        %v2318 = vcombine.high %v2261, %v2293
        %v2319 = vcombine.low %v2268, %v2300
        %v2320 = vcombine.high %v2268, %v2300
        %v2321 = vcombine.low %v2277, %v2309
        %v2322 = vcombine.high %v2277, %v2309
        %v2323 = vcombine.low %v2284, %v2316
        %v2324 = vcombine.high %v2284, %v2316
        %v2325 = vcombine.low %v1828, %v1884
        %v2326 = vcombine.high %v1828, %v1884
        %v2328 = vunpack.c.l.s4 1983009808
        %v2329 = vunpack.c.0.s8 %v2328
        %v2330 = vlaneseq
        %v2331 = vshrl.u32 %v2330, 7
        %v2332 = vsub.s32 %v2329, %v2331
        %v2333 = vrot.slane %v2325, %v2332
        %v2335 = vunpack.c.l.s4 1983009808
        %v2336 = vunpack.c.0.s8 %v2335
        %v2337 = vlaneseq
        %v2338 = vshrl.u32 %v2337, 7
        %v2339 = vsub.s32 %v2336, %v2338
        %v2340 = vrot.slane %v2326, %v2339
        %v2341 = vcombine.low %v1878, %v1890
        %v2342 = vcombine.high %v1878, %v1890
        %v2344 = vunpack.c.l.s4 1983009808
        %v2345 = vunpack.c.0.s8 %v2344
        %v2346 = vlaneseq
        %v2347 = vshrl.u32 %v2346, 7
        %v2348 = vsub.s32 %v2345, %v2347
        %v2349 = vrot.slane %v2341, %v2348
        %v2351 = vunpack.c.l.s4 1983009808
        %v2352 = vunpack.c.0.s8 %v2351
        %v2353 = vlaneseq
        %v2354 = vshrl.u32 %v2353, 7
        %v2355 = vsub.s32 %v2352, %v2354
        %v2356 = vrot.slane %v2342, %v2355
        %v2357 = vcombine.low %v1896, %v1908
        %v2358 = vcombine.high %v1896, %v1908
        %v2360 = vunpack.c.l.s4 1983009808
        %v2361 = vunpack.c.0.s8 %v2360
        %v2362 = vlaneseq
        %v2363 = vshrl.u32 %v2362, 7
        %v2364 = vsub.s32 %v2361, %v2363
        %v2365 = vrot.slane %v2357, %v2364
        %v2367 = vunpack.c.l.s4 1983009808
        %v2368 = vunpack.c.0.s8 %v2367
        %v2369 = vlaneseq
        %v2370 = vshrl.u32 %v2369, 7
        %v2371 = vsub.s32 %v2368, %v2370
        %v2372 = vrot.slane %v2358, %v2371
        %v2373 = vcombine.low %v1902, %v1914
        %v2374 = vcombine.high %v1902, %v1914
        %v2376 = vunpack.c.l.s4 1983009808
        %v2377 = vunpack.c.0.s8 %v2376
        %v2378 = vlaneseq
        %v2379 = vshrl.u32 %v2378, 7
        %v2380 = vsub.s32 %v2377, %v2379
        %v2381 = vrot.slane %v2373, %v2380
        %v2383 = vunpack.c.l.s4 1983009808
        %v2384 = vunpack.c.0.s8 %v2383
        %v2385 = vlaneseq
        %v2386 = vshrl.u32 %v2385, 7
        %v2387 = vsub.s32 %v2384, %v2386
        %v2388 = vrot.slane %v2374, %v2387
        %v2389 = vcombine.low %v2333, %v2349
        %v2390 = vcombine.high %v2333, %v2349
        %v2392 = vunpack.c.l.s4 1934713408
        %v2393 = vunpack.c.0.s8 %v2392
        %v2394 = vlaneseq
        %v2395 = vshrl.u32 %v2394, 7
        %v2396 = vsub.s32 %v2393, %v2395
        %v2397 = vrot.slane %v2389, %v2396
        %v2399 = vunpack.c.l.s4 1934713408
        %v2400 = vunpack.c.0.s8 %v2399
        %v2401 = vlaneseq
        %v2402 = vshrl.u32 %v2401, 7
        %v2403 = vsub.s32 %v2400, %v2402
        %v2404 = vrot.slane %v2390, %v2403
        %v2405 = vcombine.low %v2340, %v2356
        %v2406 = vcombine.high %v2340, %v2356
        %v2408 = vunpack.c.l.s4 1934713408
        %v2409 = vunpack.c.0.s8 %v2408
        %v2410 = vlaneseq
        %v2411 = vshrl.u32 %v2410, 7
        %v2412 = vsub.s32 %v2409, %v2411
        %v2413 = vrot.slane %v2405, %v2412
        %v2415 = vunpack.c.l.s4 1934713408
        %v2416 = vunpack.c.0.s8 %v2415
        %v2417 = vlaneseq
        %v2418 = vshrl.u32 %v2417, 7
        %v2419 = vsub.s32 %v2416, %v2418
        %v2420 = vrot.slane %v2406, %v2419
        %v2421 = vcombine.low %v2365, %v2381
        %v2422 = vcombine.high %v2365, %v2381
        %v2424 = vunpack.c.l.s4 1934713408
        %v2425 = vunpack.c.0.s8 %v2424
        %v2426 = vlaneseq
        %v2427 = vshrl.u32 %v2426, 7
        %v2428 = vsub.s32 %v2425, %v2427
        %v2429 = vrot.slane %v2421, %v2428
        %v2431 = vunpack.c.l.s4 1934713408
        %v2432 = vunpack.c.0.s8 %v2431
        %v2433 = vlaneseq
        %v2434 = vshrl.u32 %v2433, 7
        %v2435 = vsub.s32 %v2432, %v2434
        %v2436 = vrot.slane %v2422, %v2435
        %v2437 = vcombine.low %v2372, %v2388
        %v2438 = vcombine.high %v2372, %v2388
        %v2440 = vunpack.c.l.s4 1934713408
        %v2441 = vunpack.c.0.s8 %v2440
        %v2442 = vlaneseq
        %v2443 = vshrl.u32 %v2442, 7
        %v2444 = vsub.s32 %v2441, %v2443
        %v2445 = vrot.slane %v2437, %v2444
        %v2447 = vunpack.c.l.s4 1934713408
        %v2448 = vunpack.c.0.s8 %v2447
        %v2449 = vlaneseq
        %v2450 = vshrl.u32 %v2449, 7
        %v2451 = vsub.s32 %v2448, %v2450
        %v2452 = vrot.slane %v2438, %v2451
        %v2453 = vcombine.low %v2397, %v2429
        %v2454 = vcombine.high %v2397, %v2429
        %v2455 = vcombine.low %v2404, %v2436
        %v2456 = vcombine.high %v2404, %v2436
        %v2457 = vcombine.low %v2413, %v2445
        %v2458 = vcombine.high %v2413, %v2445
        %v2459 = vcombine.low %v2420, %v2452
        %v2460 = vcombine.high %v2420, %v2452
        %s2461 = scalar_lea.vmem %s3, 8
        %v2462 = vld [vmem:[%s2461] sm:$0xff]
        %s2463 = scalar_lea.vmem %s4, 8
        %v2464 = vld [vmem:[%s2463] sm:$0xff]
        %s2465 = scalar_lea.vmem %s5, 8
        %v2466 = vld [vmem:[%s2465] sm:$0xff]
        %s2467 = scalar_lea.vmem %s6, 8
        %v2468 = vld [vmem:[%s2467] sm:$0xff]
        %s2469 = scalar_lea.vmem %s7, 16
        %v2470 = vld [vmem:[%s2469] sm:$0xff]
        %v2471 = vld [vmem:[%s2469 + $0x8] sm:$0xff]
        %s2472 = scalar_lea.vmem %s8, 16
        %v2473 = vld [vmem:[%s2472] sm:$0xff]
        %v2474 = vld [vmem:[%s2472 + $0x8] sm:$0xff]
        %s2475 = scalar_lea.vmem %s9, 16
        %v2476 = vld [vmem:[%s2475] sm:$0xff]
        %v2477 = vld [vmem:[%s2475 + $0x8] sm:$0xff]
        %s2478 = scalar_lea.vmem %s10, 16
        %v2479 = vld [vmem:[%s2478] sm:$0xff]
        %v2480 = vld [vmem:[%s2478 + $0x8] sm:$0xff]
        %s2481 = scalar_lea.vmem %s2, 2
        %v2482 = vld [vmem:[%s2481] sm:$0x3]
        %2484 = vset.pattern.permute.xlu0 0
        %2485 = vperm.xlu0 %2484, %v2464
        %v2486 = vpop.permute.xlu0 %2485
        %v2489 = vsel %vm595, %v2462, 0
        %2491 = vmatprep.subr.mxu0 0.0
        %2492 = vmatpush1.msra.mxu0 0.0
        %2493 = vmatprep.subr.mxu0 0.0
        %2494 = vmatpush1.msra.mxu0 0.0
        %2495 = vmatprep.subr.mxu0 0.0
        %2496 = vmatpush1.msra.mxu0 0.0
        %2497 = vmatprep.subr.mxu0 0.0
        %2498 = vmatpush1.msra.mxu0 0.0
        %2499 = vmatprep.subr.mxu0 0.0
        %2500 = vmatpush1.msra.mxu0 0.0
        %2501 = vmatprep.subr.mxu0 0.0
        %2502 = vmatpush1.msra.mxu0 0.0
        %2503 = vmatprep.subr.mxu0 0.0
        %2504 = vmatpush1.msra.mxu0 0.0
        %2505 = vmatprep.subr.mxu0 0.0
        %2506 = vmatpush1.msra.mxu0 0.0
        %2507 = vmatprep.subr.mxu0 0.0
        %2508 = vmatpush1.msra.mxu0 0.0
        %2509 = vmatprep.subr.mxu0 0.0
        %2510 = vmatpush1.msra.mxu0 0.0
        %2511 = vmatprep.subr.mxu0 0.0
        %2512 = vmatpush1.msra.mxu0 0.0
        %2513 = vmatprep.subr.mxu0 0.0
        %2514 = vmatpush1.msra.mxu0 0.0
        %2515 = vmatprep.subr.mxu0 0.0
        %2516 = vmatpush1.msra.mxu0 0.0
        %2517 = vmatprep.subr.mxu0 0.0
        %2518 = vmatpush1.msra.mxu0 0.0
        %2519 = vmatprep.subr.mxu0 0.0
        %2520 = vmatpush1.msra.mxu0 0.0
        %2521 = vmatprep.subr.mxu0 0.0
        %2522 = vmatpush1.msra.mxu0 %v601
        %2523 = vmatprep.subr.mxu0 0.0
        %2524 = vmatpush2.msra.mxu0 0.0
        %2525 = vmatprep.subr.mxu0 0.0
        %2526 = vmatpush2.msra.mxu0 0.0
        %2527 = vmatprep.subr.mxu0 0.0
        %2528 = vmatpush2.msra.mxu0 0.0
        %2529 = vmatprep.subr.mxu0 0.0
        %2530 = vmatpush2.msra.mxu0 0.0
        %2531 = vmatprep.subr.mxu0 0.0
        %2532 = vmatpush2.msra.mxu0 0.0
        %2533 = vmatprep.subr.mxu0 0.0
        %2534 = vmatpush2.msra.mxu0 0.0
        %2535 = vmatprep.subr.mxu0 0.0
        %2536 = vmatpush2.msra.mxu0 0.0
        %2537 = vmatprep.subr.mxu0 0.0
        %2538 = vmatpush2.msra.mxu0 0.0
        %2539 = vmatprep.subr.mxu0 0.0
        %2540 = vmatpush2.msra.mxu0 0.0
        %2541 = vmatprep.subr.mxu0 0.0
        %2542 = vmatpush2.msra.mxu0 0.0
        %2543 = vmatprep.subr.mxu0 0.0
        %2544 = vmatpush2.msra.mxu0 0.0
        %2545 = vmatprep.subr.mxu0 0.0
        %2546 = vmatpush2.msra.mxu0 0.0
        %2547 = vmatprep.subr.mxu0 0.0
        %2548 = vmatpush2.msra.mxu0 0.0
        %2549 = vmatprep.subr.mxu0 0.0
        %2550 = vmatpush2.msra.mxu0 0.0
        %2551 = vmatprep.subr.mxu0 0.0
        %2552 = vmatpush2.msra.mxu0 0.0
        %2553 = vmatprep.subr.mxu0 0.0
        %2554 = vmatpush2.msra.mxu0 0.0
        %2555 = vmatprep.mubr.f32.mxu0 0.0
        %2556 = vmatmul.mubr.f32.gmra.mxu0 %v2489
        %v2557 = vpop.f32.mrf.mxu0
        %v2558 = vadd.f32 %v2486, %v2557
        %v2559 = vpop.f32.mrf.mxu0
        %2560 = vdwg.mxu0
        %2562 = vset.pattern.permute.xlu0 0
        %2563 = vperm.xlu0 %2562, %v2468
        %v2564 = vpop.permute.xlu0 %2563
        %v2567 = vsel %vm595, %v2466, 0
        %2569 = vmatprep.subr.mxu0 0.0
        %2570 = vmatpush1.msra.mxu0 0.0
        %2571 = vmatprep.subr.mxu0 0.0
        %2572 = vmatpush1.msra.mxu0 0.0
        %2573 = vmatprep.subr.mxu0 0.0
        %2574 = vmatpush1.msra.mxu0 0.0
        %2575 = vmatprep.subr.mxu0 0.0
        %2576 = vmatpush1.msra.mxu0 0.0
        %2577 = vmatprep.subr.mxu0 0.0
        %2578 = vmatpush1.msra.mxu0 0.0
        %2579 = vmatprep.subr.mxu0 0.0
        %2580 = vmatpush1.msra.mxu0 0.0
        %2581 = vmatprep.subr.mxu0 0.0
        %2582 = vmatpush1.msra.mxu0 0.0
        %2583 = vmatprep.subr.mxu0 0.0
        %2584 = vmatpush1.msra.mxu0 0.0
        %2585 = vmatprep.subr.mxu0 0.0
        %2586 = vmatpush1.msra.mxu0 0.0
        %2587 = vmatprep.subr.mxu0 0.0
        %2588 = vmatpush1.msra.mxu0 0.0
        %2589 = vmatprep.subr.mxu0 0.0
        %2590 = vmatpush1.msra.mxu0 0.0
        %2591 = vmatprep.subr.mxu0 0.0
        %2592 = vmatpush1.msra.mxu0 0.0
        %2593 = vmatprep.subr.mxu0 0.0
        %2594 = vmatpush1.msra.mxu0 0.0
        %2595 = vmatprep.subr.mxu0 0.0
        %2596 = vmatpush1.msra.mxu0 0.0
        %2597 = vmatprep.subr.mxu0 0.0
        %2598 = vmatpush1.msra.mxu0 0.0
        %2599 = vmatprep.subr.mxu0 0.0
        %2600 = vmatpush1.msra.mxu0 %v601
        %2601 = vmatprep.subr.mxu0 0.0
        %2602 = vmatpush2.msra.mxu0 0.0
        %2603 = vmatprep.subr.mxu0 0.0
        %2604 = vmatpush2.msra.mxu0 0.0
        %2605 = vmatprep.subr.mxu0 0.0
        %2606 = vmatpush2.msra.mxu0 0.0
        %2607 = vmatprep.subr.mxu0 0.0
        %2608 = vmatpush2.msra.mxu0 0.0
        %2609 = vmatprep.subr.mxu0 0.0
        %2610 = vmatpush2.msra.mxu0 0.0
        %2611 = vmatprep.subr.mxu0 0.0
        %2612 = vmatpush2.msra.mxu0 0.0
        %2613 = vmatprep.subr.mxu0 0.0
        %2614 = vmatpush2.msra.mxu0 0.0
        %2615 = vmatprep.subr.mxu0 0.0
        %2616 = vmatpush2.msra.mxu0 0.0
        %2617 = vmatprep.subr.mxu0 0.0
        %2618 = vmatpush2.msra.mxu0 0.0
        %2619 = vmatprep.subr.mxu0 0.0
        %2620 = vmatpush2.msra.mxu0 0.0
        %2621 = vmatprep.subr.mxu0 0.0
        %2622 = vmatpush2.msra.mxu0 0.0
        %2623 = vmatprep.subr.mxu0 0.0
        %2624 = vmatpush2.msra.mxu0 0.0
        %2625 = vmatprep.subr.mxu0 0.0
        %2626 = vmatpush2.msra.mxu0 0.0
        %2627 = vmatprep.subr.mxu0 0.0
        %2628 = vmatpush2.msra.mxu0 0.0
        %2629 = vmatprep.subr.mxu0 0.0
        %2630 = vmatpush2.msra.mxu0 0.0
        %2631 = vmatprep.subr.mxu0 0.0
        %2632 = vmatpush2.msra.mxu0 0.0
        %2633 = vmatprep.mubr.f32.mxu0 0.0
        %2634 = vmatmul.mubr.f32.gmra.mxu0 %v2567
        %v2635 = vpop.f32.mrf.mxu0
        %v2636 = vadd.f32 %v2564, %v2635
        %v2637 = vpop.f32.mrf.mxu0
        %2638 = vdwg.mxu0
        %2640 = vset.pattern.permute.xlu0 0
        %2641 = vperm.xlu0 %2640, %v2473
        %v2642 = vpop.permute.xlu0 %2641
        %2645 = vset.pattern.permute.xlu0 0
        %2646 = vperm.xlu0 %2645, %v2474
        %v2647 = vpop.permute.xlu0 %2646
        %v2650 = vsel %vm595, %v2470, 0
        %v2653 = vsel %vm595, %v2471, 0
        %2655 = vmatprep.subr.mxu0 0.0
        %2656 = vmatpush1.msra.mxu0 0.0
        %2657 = vmatprep.subr.mxu0 0.0
        %2658 = vmatpush1.msra.mxu0 0.0
        %2659 = vmatprep.subr.mxu0 0.0
        %2660 = vmatpush1.msra.mxu0 0.0
        %2661 = vmatprep.subr.mxu0 0.0
        %2662 = vmatpush1.msra.mxu0 0.0
        %2663 = vmatprep.subr.mxu0 0.0
        %2664 = vmatpush1.msra.mxu0 0.0
        %2665 = vmatprep.subr.mxu0 0.0
        %2666 = vmatpush1.msra.mxu0 0.0
        %2667 = vmatprep.subr.mxu0 0.0
        %2668 = vmatpush1.msra.mxu0 0.0
        %2669 = vmatprep.subr.mxu0 0.0
        %2670 = vmatpush1.msra.mxu0 0.0
        %2671 = vmatprep.subr.mxu0 0.0
        %2672 = vmatpush1.msra.mxu0 0.0
        %2673 = vmatprep.subr.mxu0 0.0
        %2674 = vmatpush1.msra.mxu0 0.0
        %2675 = vmatprep.subr.mxu0 0.0
        %2676 = vmatpush1.msra.mxu0 0.0
        %2677 = vmatprep.subr.mxu0 0.0
        %2678 = vmatpush1.msra.mxu0 0.0
        %2679 = vmatprep.subr.mxu0 0.0
        %2680 = vmatpush1.msra.mxu0 0.0
        %2681 = vmatprep.subr.mxu0 0.0
        %2682 = vmatpush1.msra.mxu0 0.0
        %2683 = vmatprep.subr.mxu0 0.0
        %2684 = vmatpush1.msra.mxu0 0.0
        %2685 = vmatprep.subr.mxu0 0.0
        %2686 = vmatpush1.msra.mxu0 %v768
        %2687 = vmatprep.subr.mxu0 0.0
        %2688 = vmatpush2.msra.mxu0 0.0
        %2689 = vmatprep.subr.mxu0 0.0
        %2690 = vmatpush2.msra.mxu0 0.0
        %2691 = vmatprep.subr.mxu0 0.0
        %2692 = vmatpush2.msra.mxu0 0.0
        %2693 = vmatprep.subr.mxu0 0.0
        %2694 = vmatpush2.msra.mxu0 0.0
        %2695 = vmatprep.subr.mxu0 0.0
        %2696 = vmatpush2.msra.mxu0 0.0
        %2697 = vmatprep.subr.mxu0 0.0
        %2698 = vmatpush2.msra.mxu0 0.0
        %2699 = vmatprep.subr.mxu0 0.0
        %2700 = vmatpush2.msra.mxu0 0.0
        %2701 = vmatprep.subr.mxu0 0.0
        %2702 = vmatpush2.msra.mxu0 0.0
        %2703 = vmatprep.subr.mxu0 0.0
        %2704 = vmatpush2.msra.mxu0 0.0
        %2705 = vmatprep.subr.mxu0 0.0
        %2706 = vmatpush2.msra.mxu0 0.0
        %2707 = vmatprep.subr.mxu0 0.0
        %2708 = vmatpush2.msra.mxu0 0.0
        %2709 = vmatprep.subr.mxu0 0.0
        %2710 = vmatpush2.msra.mxu0 0.0
        %2711 = vmatprep.subr.mxu0 0.0
        %2712 = vmatpush2.msra.mxu0 0.0
        %2713 = vmatprep.subr.mxu0 0.0
        %2714 = vmatpush2.msra.mxu0 0.0
        %2715 = vmatprep.subr.mxu0 0.0
        %2716 = vmatpush2.msra.mxu0 0.0
        %2717 = vmatprep.subr.mxu0 0.0
        %2718 = vmatpush2.msra.mxu0 0.0
        %2719 = vmatprep.mubr.f32.mxu0 0.0
        %2720 = vmatmul.mubr.f32.gmra.mxu0 %v2650
        %v2721 = vpop.f32.mrf.mxu0
        %v2722 = vadd.f32 %v2642, %v2721
        %v2723 = vpop.f32.mrf.mxu0
        %2724 = vmatprep.mubr.f32.mxu0 0.0
        %2725 = vmatmul.mubr.f32.gmra.mxu0 %v2653
        %v2726 = vpop.f32.mrf.mxu0
        %v2727 = vadd.f32 %v2647, %v2726
        %v2728 = vpop.f32.mrf.mxu0
        %2729 = vdwg.mxu0
        %2732 = vrot.lane.b32.xlu0 %v2722, 112
        %v2733 = vpop.permute.xlu0 %2732
        %2734 = vrot.lane.b32.xlu0 %v2727, 112
        %v2735 = vpop.permute.xlu0 %2734
        %2738 = vrot.lane.b32.xlu0 %v2722, 96
        %v2739 = vpop.permute.xlu0 %2738
        %2740 = vrot.lane.b32.xlu0 %v2727, 96
        %v2741 = vpop.permute.xlu0 %2740
        %2744 = vrot.lane.b32.xlu0 %v2722, 80
        %v2745 = vpop.permute.xlu0 %2744
        %2746 = vrot.lane.b32.xlu0 %v2727, 80
        %v2747 = vpop.permute.xlu0 %2746
        %2750 = vrot.lane.b32.xlu0 %v2722, 64
        %v2751 = vpop.permute.xlu0 %2750
        %2752 = vrot.lane.b32.xlu0 %v2727, 64
        %v2753 = vpop.permute.xlu0 %2752
        %2756 = vrot.lane.b32.xlu0 %v2722, 48
        %v2757 = vpop.permute.xlu0 %2756
        %2758 = vrot.lane.b32.xlu0 %v2727, 48
        %v2759 = vpop.permute.xlu0 %2758
        %2762 = vrot.lane.b32.xlu0 %v2722, 32
        %v2763 = vpop.permute.xlu0 %2762
        %2764 = vrot.lane.b32.xlu0 %v2727, 32
        %v2765 = vpop.permute.xlu0 %2764
        %2768 = vrot.lane.b32.xlu0 %v2722, 16
        %v2769 = vpop.permute.xlu0 %2768
        %2770 = vrot.lane.b32.xlu0 %v2727, 16
        %v2771 = vpop.permute.xlu0 %2770
        %v2774 = vcombine.low %v2722, %v2739
        %v2775 = vcombine.high %v2722, %v2739
        %v2777 = vunpack.c.l.s4 1983009808
        %v2778 = vunpack.c.0.s8 %v2777
        %v2779 = vlaneseq
        %v2780 = vshrl.u32 %v2779, 7
        %v2781 = vsub.s32 %v2778, %v2780
        %v2782 = vrot.slane %v2774, %v2781
        %v2784 = vunpack.c.l.s4 1983009808
        %v2785 = vunpack.c.0.s8 %v2784
        %v2786 = vlaneseq
        %v2787 = vshrl.u32 %v2786, 7
        %v2788 = vsub.s32 %v2785, %v2787
        %v2789 = vrot.slane %v2775, %v2788
        %v2790 = vcombine.low %v2733, %v2745
        %v2791 = vcombine.high %v2733, %v2745
        %v2793 = vunpack.c.l.s4 1983009808
        %v2794 = vunpack.c.0.s8 %v2793
        %v2795 = vlaneseq
        %v2796 = vshrl.u32 %v2795, 7
        %v2797 = vsub.s32 %v2794, %v2796
        %v2798 = vrot.slane %v2790, %v2797
        %v2800 = vunpack.c.l.s4 1983009808
        %v2801 = vunpack.c.0.s8 %v2800
        %v2802 = vlaneseq
        %v2803 = vshrl.u32 %v2802, 7
        %v2804 = vsub.s32 %v2801, %v2803
        %v2805 = vrot.slane %v2791, %v2804
        %v2806 = vcombine.low %v2751, %v2763
        %v2807 = vcombine.high %v2751, %v2763
        %v2809 = vunpack.c.l.s4 1983009808
        %v2810 = vunpack.c.0.s8 %v2809
        %v2811 = vlaneseq
        %v2812 = vshrl.u32 %v2811, 7
        %v2813 = vsub.s32 %v2810, %v2812
        %v2814 = vrot.slane %v2806, %v2813
        %v2816 = vunpack.c.l.s4 1983009808
        %v2817 = vunpack.c.0.s8 %v2816
        %v2818 = vlaneseq
        %v2819 = vshrl.u32 %v2818, 7
        %v2820 = vsub.s32 %v2817, %v2819
        %v2821 = vrot.slane %v2807, %v2820
        %v2822 = vcombine.low %v2757, %v2769
        %v2823 = vcombine.high %v2757, %v2769
        %v2825 = vunpack.c.l.s4 1983009808
        %v2826 = vunpack.c.0.s8 %v2825
        %v2827 = vlaneseq
        %v2828 = vshrl.u32 %v2827, 7
        %v2829 = vsub.s32 %v2826, %v2828
        %v2830 = vrot.slane %v2822, %v2829
        %v2832 = vunpack.c.l.s4 1983009808
        %v2833 = vunpack.c.0.s8 %v2832
        %v2834 = vlaneseq
        %v2835 = vshrl.u32 %v2834, 7
        %v2836 = vsub.s32 %v2833, %v2835
        %v2837 = vrot.slane %v2823, %v2836
        %v2838 = vcombine.low %v2782, %v2798
        %v2839 = vcombine.high %v2782, %v2798
        %v2841 = vunpack.c.l.s4 1934713408
        %v2842 = vunpack.c.0.s8 %v2841
        %v2843 = vlaneseq
        %v2844 = vshrl.u32 %v2843, 7
        %v2845 = vsub.s32 %v2842, %v2844
        %v2846 = vrot.slane %v2838, %v2845
        %v2848 = vunpack.c.l.s4 1934713408
        %v2849 = vunpack.c.0.s8 %v2848
        %v2850 = vlaneseq
        %v2851 = vshrl.u32 %v2850, 7
        %v2852 = vsub.s32 %v2849, %v2851
        %v2853 = vrot.slane %v2839, %v2852
        %v2854 = vcombine.low %v2789, %v2805
        %v2855 = vcombine.high %v2789, %v2805
        %v2857 = vunpack.c.l.s4 1934713408
        %v2858 = vunpack.c.0.s8 %v2857
        %v2859 = vlaneseq
        %v2860 = vshrl.u32 %v2859, 7
        %v2861 = vsub.s32 %v2858, %v2860
        %v2862 = vrot.slane %v2854, %v2861
        %v2864 = vunpack.c.l.s4 1934713408
        %v2865 = vunpack.c.0.s8 %v2864
        %v2866 = vlaneseq
        %v2867 = vshrl.u32 %v2866, 7
        %v2868 = vsub.s32 %v2865, %v2867
        %v2869 = vrot.slane %v2855, %v2868
        %v2870 = vcombine.low %v2814, %v2830
        %v2871 = vcombine.high %v2814, %v2830
        %v2873 = vunpack.c.l.s4 1934713408
        %v2874 = vunpack.c.0.s8 %v2873
        %v2875 = vlaneseq
        %v2876 = vshrl.u32 %v2875, 7
        %v2877 = vsub.s32 %v2874, %v2876
        %v2878 = vrot.slane %v2870, %v2877
        %v2880 = vunpack.c.l.s4 1934713408
        %v2881 = vunpack.c.0.s8 %v2880
        %v2882 = vlaneseq
        %v2883 = vshrl.u32 %v2882, 7
        %v2884 = vsub.s32 %v2881, %v2883
        %v2885 = vrot.slane %v2871, %v2884
        %v2886 = vcombine.low %v2821, %v2837
        %v2887 = vcombine.high %v2821, %v2837
        %v2889 = vunpack.c.l.s4 1934713408
        %v2890 = vunpack.c.0.s8 %v2889
        %v2891 = vlaneseq
        %v2892 = vshrl.u32 %v2891, 7
        %v2893 = vsub.s32 %v2890, %v2892
        %v2894 = vrot.slane %v2886, %v2893
        %v2896 = vunpack.c.l.s4 1934713408
        %v2897 = vunpack.c.0.s8 %v2896
        %v2898 = vlaneseq
        %v2899 = vshrl.u32 %v2898, 7
        %v2900 = vsub.s32 %v2897, %v2899
        %v2901 = vrot.slane %v2887, %v2900
        %v2902 = vcombine.low %v2846, %v2878
        %v2903 = vcombine.high %v2846, %v2878
        %v2904 = vcombine.low %v2853, %v2885
        %v2905 = vcombine.high %v2853, %v2885
        %v2906 = vcombine.low %v2862, %v2894
        %v2907 = vcombine.high %v2862, %v2894
        %v2908 = vcombine.low %v2869, %v2901
        %v2909 = vcombine.high %v2869, %v2901
        %v2910 = vcombine.low %v2727, %v2741
        %v2911 = vcombine.high %v2727, %v2741
        %v2913 = vunpack.c.l.s4 1983009808
        %v2914 = vunpack.c.0.s8 %v2913
        %v2915 = vlaneseq
        %v2916 = vshrl.u32 %v2915, 7
        %v2917 = vsub.s32 %v2914, %v2916
        %v2918 = vrot.slane %v2910, %v2917
        %v2920 = vunpack.c.l.s4 1983009808
        %v2921 = vunpack.c.0.s8 %v2920
        %v2922 = vlaneseq
        %v2923 = vshrl.u32 %v2922, 7
        %v2924 = vsub.s32 %v2921, %v2923
        %v2925 = vrot.slane %v2911, %v2924
        %v2926 = vcombine.low %v2735, %v2747
        %v2927 = vcombine.high %v2735, %v2747
        %v2929 = vunpack.c.l.s4 1983009808
        %v2930 = vunpack.c.0.s8 %v2929
        %v2931 = vlaneseq
        %v2932 = vshrl.u32 %v2931, 7
        %v2933 = vsub.s32 %v2930, %v2932
        %v2934 = vrot.slane %v2926, %v2933
        %v2936 = vunpack.c.l.s4 1983009808
        %v2937 = vunpack.c.0.s8 %v2936
        %v2938 = vlaneseq
        %v2939 = vshrl.u32 %v2938, 7
        %v2940 = vsub.s32 %v2937, %v2939
        %v2941 = vrot.slane %v2927, %v2940
        %v2942 = vcombine.low %v2753, %v2765
        %v2943 = vcombine.high %v2753, %v2765
        %v2945 = vunpack.c.l.s4 1983009808
        %v2946 = vunpack.c.0.s8 %v2945
        %v2947 = vlaneseq
        %v2948 = vshrl.u32 %v2947, 7
        %v2949 = vsub.s32 %v2946, %v2948
        %v2950 = vrot.slane %v2942, %v2949
        %v2952 = vunpack.c.l.s4 1983009808
        %v2953 = vunpack.c.0.s8 %v2952
        %v2954 = vlaneseq
        %v2955 = vshrl.u32 %v2954, 7
        %v2956 = vsub.s32 %v2953, %v2955
        %v2957 = vrot.slane %v2943, %v2956
        %v2958 = vcombine.low %v2759, %v2771
        %v2959 = vcombine.high %v2759, %v2771
        %v2961 = vunpack.c.l.s4 1983009808
        %v2962 = vunpack.c.0.s8 %v2961
        %v2963 = vlaneseq
        %v2964 = vshrl.u32 %v2963, 7
        %v2965 = vsub.s32 %v2962, %v2964
        %v2966 = vrot.slane %v2958, %v2965
        %v2968 = vunpack.c.l.s4 1983009808
        %v2969 = vunpack.c.0.s8 %v2968
        %v2970 = vlaneseq
        %v2971 = vshrl.u32 %v2970, 7
        %v2972 = vsub.s32 %v2969, %v2971
        %v2973 = vrot.slane %v2959, %v2972
        %v2974 = vcombine.low %v2918, %v2934
        %v2975 = vcombine.high %v2918, %v2934
        %v2977 = vunpack.c.l.s4 1934713408
        %v2978 = vunpack.c.0.s8 %v2977
        %v2979 = vlaneseq
        %v2980 = vshrl.u32 %v2979, 7
        %v2981 = vsub.s32 %v2978, %v2980
        %v2982 = vrot.slane %v2974, %v2981
        %v2984 = vunpack.c.l.s4 1934713408
        %v2985 = vunpack.c.0.s8 %v2984
        %v2986 = vlaneseq
        %v2987 = vshrl.u32 %v2986, 7
        %v2988 = vsub.s32 %v2985, %v2987
        %v2989 = vrot.slane %v2975, %v2988
        %v2990 = vcombine.low %v2925, %v2941
        %v2991 = vcombine.high %v2925, %v2941
        %v2993 = vunpack.c.l.s4 1934713408
        %v2994 = vunpack.c.0.s8 %v2993
        %v2995 = vlaneseq
        %v2996 = vshrl.u32 %v2995, 7
        %v2997 = vsub.s32 %v2994, %v2996
        %v2998 = vrot.slane %v2990, %v2997
        %v3000 = vunpack.c.l.s4 1934713408
        %v3001 = vunpack.c.0.s8 %v3000
        %v3002 = vlaneseq
        %v3003 = vshrl.u32 %v3002, 7
        %v3004 = vsub.s32 %v3001, %v3003
        %v3005 = vrot.slane %v2991, %v3004
        %v3006 = vcombine.low %v2950, %v2966
        %v3007 = vcombine.high %v2950, %v2966
        %v3009 = vunpack.c.l.s4 1934713408
        %v3010 = vunpack.c.0.s8 %v3009
        %v3011 = vlaneseq
        %v3012 = vshrl.u32 %v3011, 7
        %v3013 = vsub.s32 %v3010, %v3012
        %v3014 = vrot.slane %v3006, %v3013
        %v3016 = vunpack.c.l.s4 1934713408
        %v3017 = vunpack.c.0.s8 %v3016
        %v3018 = vlaneseq
        %v3019 = vshrl.u32 %v3018, 7
        %v3020 = vsub.s32 %v3017, %v3019
        %v3021 = vrot.slane %v3007, %v3020
        %v3022 = vcombine.low %v2957, %v2973
        %v3023 = vcombine.high %v2957, %v2973
        %v3025 = vunpack.c.l.s4 1934713408
        %v3026 = vunpack.c.0.s8 %v3025
        %v3027 = vlaneseq
        %v3028 = vshrl.u32 %v3027, 7
        %v3029 = vsub.s32 %v3026, %v3028
        %v3030 = vrot.slane %v3022, %v3029
        %v3032 = vunpack.c.l.s4 1934713408
        %v3033 = vunpack.c.0.s8 %v3032
        %v3034 = vlaneseq
        %v3035 = vshrl.u32 %v3034, 7
        %v3036 = vsub.s32 %v3033, %v3035
        %v3037 = vrot.slane %v3023, %v3036
        %v3038 = vcombine.low %v2982, %v3014
        %v3039 = vcombine.high %v2982, %v3014
        %v3040 = vcombine.low %v2989, %v3021
        %v3041 = vcombine.high %v2989, %v3021
        %v3042 = vcombine.low %v2998, %v3030
        %v3043 = vcombine.high %v2998, %v3030
        %v3044 = vcombine.low %v3005, %v3037
        %v3045 = vcombine.high %v3005, %v3037
        %v3047 = vcombine.high %v2558, %v2558
        %v3049 = vunpack.c.l.s4 1966171168
        %v3050 = vunpack.c.0.s8 %v3049
        %v3051 = vlaneseq
        %v3052 = vshrl.u32 %v3051, 7
        %v3053 = vsub.s32 %v3050, %v3052
        %v3054 = vrot.slane %v2558, %v3053
        %v3056 = vunpack.c.l.s4 1966171168
        %v3057 = vunpack.c.0.s8 %v3056
        %v3058 = vlaneseq
        %v3059 = vshrl.u32 %v3058, 7
        %v3060 = vsub.s32 %v3057, %v3059
        %v3061 = vrot.slane %v3047, %v3060
        %v3062 = vcombine.high %v3054, %v3054
        %v3063 = vcombine.high %v3061, %v3061
        %v3065 = vunpack.c.l.s4 1966171168
        %v3066 = vunpack.c.0.s8 %v3065
        %v3067 = vlaneseq
        %v3068 = vshrl.u32 %v3067, 7
        %v3069 = vsub.s32 %v3066, %v3068
        %v3070 = vrot.slane %v3054, %v3069
        %v3072 = vunpack.c.l.s4 1966171168
        %v3073 = vunpack.c.0.s8 %v3072
        %v3074 = vlaneseq
        %v3075 = vshrl.u32 %v3074, 7
        %v3076 = vsub.s32 %v3073, %v3075
        %v3077 = vrot.slane %v3061, %v3076
        %v3079 = vunpack.c.l.s4 1966171168
        %v3080 = vunpack.c.0.s8 %v3079
        %v3081 = vlaneseq
        %v3082 = vshrl.u32 %v3081, 7
        %v3083 = vsub.s32 %v3080, %v3082
        %v3084 = vrot.slane %v3062, %v3083
        %v3086 = vunpack.c.l.s4 1966171168
        %v3087 = vunpack.c.0.s8 %v3086
        %v3088 = vlaneseq
        %v3089 = vshrl.u32 %v3088, 7
        %v3090 = vsub.s32 %v3087, %v3089
        %v3091 = vrot.slane %v3063, %v3090
        %v3092 = vcombine.high %v3070, %v3070
        %v3093 = vcombine.high %v3077, %v3077
        %v3094 = vcombine.high %v3084, %v3084
        %v3095 = vcombine.high %v3091, %v3091
        %v3096 = vlaneseq
        %v3097 = vshrl.u32 %v3096, 7
        %v3098 = vsub.s32 0, %v3097
        %v3099 = vrot.slane %v2636, %v3098
        %3101 = vbcast.lane.b32.xlu0 %v3099, 256
        %v3102 = vpop.permute.xlu0 %3101
        %s3104 = sor.u32 256, 8
        %3105 = vbcast.lane.b32.xlu0 %v3099, %s3104
        %v3106 = vpop.permute.xlu0 %3105
        %v3107 = vlaneseq
        %v3108 = vshrl.u32 %v3107, 7
        %v3109 = vsub.s32 1, %v3108
        %v3110 = vrot.slane %v2636, %v3109
        %3112 = vbcast.lane.b32.xlu0 %v3110, 256
        %v3113 = vpop.permute.xlu0 %3112
        %s3115 = sor.u32 256, 8
        %3116 = vbcast.lane.b32.xlu0 %v3110, %s3115
        %v3117 = vpop.permute.xlu0 %3116
        %v3118 = vlaneseq
        %v3119 = vshrl.u32 %v3118, 7
        %v3120 = vsub.s32 2, %v3119
        %v3121 = vrot.slane %v2636, %v3120
        %3123 = vbcast.lane.b32.xlu0 %v3121, 256
        %v3124 = vpop.permute.xlu0 %3123
        %s3126 = sor.u32 256, 8
        %3127 = vbcast.lane.b32.xlu0 %v3121, %s3126
        %v3128 = vpop.permute.xlu0 %3127
        %v3129 = vlaneseq
        %v3130 = vshrl.u32 %v3129, 7
        %v3131 = vsub.s32 3, %v3130
        %v3132 = vrot.slane %v2636, %v3131
        %3134 = vbcast.lane.b32.xlu0 %v3132, 256
        %v3135 = vpop.permute.xlu0 %3134
        %s3137 = sor.u32 256, 8
        %3138 = vbcast.lane.b32.xlu0 %v3132, %s3137
        %v3139 = vpop.permute.xlu0 %3138
        %v3140 = vlaneseq
        %v3141 = vshrl.u32 %v3140, 7
        %v3142 = vsub.s32 4, %v3141
        %v3143 = vrot.slane %v2636, %v3142
        %3145 = vbcast.lane.b32.xlu0 %v3143, 256
        %v3146 = vpop.permute.xlu0 %3145
        %s3148 = sor.u32 256, 8
        %3149 = vbcast.lane.b32.xlu0 %v3143, %s3148
        %v3150 = vpop.permute.xlu0 %3149
        %v3151 = vlaneseq
        %v3152 = vshrl.u32 %v3151, 7
        %v3153 = vsub.s32 5, %v3152
        %v3154 = vrot.slane %v2636, %v3153
        %3156 = vbcast.lane.b32.xlu0 %v3154, 256
        %v3157 = vpop.permute.xlu0 %3156
        %s3159 = sor.u32 256, 8
        %3160 = vbcast.lane.b32.xlu0 %v3154, %s3159
        %v3161 = vpop.permute.xlu0 %3160
        %v3162 = vlaneseq
        %v3163 = vshrl.u32 %v3162, 7
        %v3164 = vsub.s32 6, %v3163
        %v3165 = vrot.slane %v2636, %v3164
        %3167 = vbcast.lane.b32.xlu0 %v3165, 256
        %v3168 = vpop.permute.xlu0 %3167
        %s3170 = sor.u32 256, 8
        %3171 = vbcast.lane.b32.xlu0 %v3165, %s3170
        %v3172 = vpop.permute.xlu0 %3171
        %v3173 = vlaneseq
        %v3174 = vshrl.u32 %v3173, 7
        %v3175 = vsub.s32 7, %v3174
        %v3176 = vrot.slane %v2636, %v3175
        %3178 = vbcast.lane.b32.xlu0 %v3176, 256
        %v3179 = vpop.permute.xlu0 %3178
        %s3181 = sor.u32 256, 8
        %3182 = vbcast.lane.b32.xlu0 %v3176, %s3181
        %v3183 = vpop.permute.xlu0 %3182
        %v3184 = vlaneseq
        %v3185 = vshrl.u32 %v3184, 7
        %v3186 = vsub.s32 0, %v3185
        %v3187 = vrot.slane %v3070, %v3186
        %v3188 = vlaneseq
        %v3189 = vshrl.u32 %v3188, 7
        %v3190 = vsub.s32 0, %v3189
        %v3191 = vrot.slane %v3084, %v3190
        %v3192 = vlaneseq
        %v3193 = vshrl.u32 %v3192, 7
        %v3194 = vsub.s32 0, %v3193
        %v3195 = vrot.slane %v3092, %v3194
        %v3196 = vlaneseq
        %v3197 = vshrl.u32 %v3196, 7
        %v3198 = vsub.s32 0, %v3197
        %v3199 = vrot.slane %v3094, %v3198
        %v3200 = vlaneseq
        %v3201 = vshrl.u32 %v3200, 7
        %v3202 = vsub.s32 0, %v3201
        %v3203 = vrot.slane %v3077, %v3202
        %v3204 = vlaneseq
        %v3205 = vshrl.u32 %v3204, 7
        %v3206 = vsub.s32 0, %v3205
        %v3207 = vrot.slane %v3091, %v3206
        %v3208 = vlaneseq
        %v3209 = vshrl.u32 %v3208, 7
        %v3210 = vsub.s32 0, %v3209
        %v3211 = vrot.slane %v3093, %v3210
        %v3212 = vlaneseq
        %v3213 = vshrl.u32 %v3212, 7
        %v3214 = vsub.s32 0, %v3213
        %v3215 = vrot.slane %v3095, %v3214
        %v3224 = vsub.f32 %v3187, %v3102
        %v3225 = vsub.f32 %v3187, %v3106
        %v3226 = vsub.f32 %v3191, %v3113
        %v3227 = vsub.f32 %v3191, %v3117
        %v3228 = vsub.f32 %v3195, %v3124
        %v3229 = vsub.f32 %v3195, %v3128
        %v3230 = vsub.f32 %v3199, %v3135
        %v3231 = vsub.f32 %v3199, %v3139
        %v3232 = vsub.f32 %v3203, %v3146
        %v3233 = vsub.f32 %v3203, %v3150
        %v3234 = vsub.f32 %v3207, %v3157
        %v3235 = vsub.f32 %v3207, %v3161
        %v3236 = vsub.f32 %v3211, %v3168
        %v3237 = vsub.f32 %v3211, %v3172
        %v3238 = vsub.f32 %v3215, %v3179
        %v3239 = vsub.f32 %v3215, %v3183
        %v3240 = vtanh.pop %v3224
        %v3241 = vtanh.pop %v3225
        %v3242 = vtanh.pop %v3226
        %v3243 = vtanh.pop %v3227
        %v3244 = vtanh.pop %v3228
        %v3245 = vtanh.pop %v3229
        %v3246 = vtanh.pop %v3230
        %v3247 = vtanh.pop %v3231
        %v3248 = vtanh.pop %v3232
        %v3249 = vtanh.pop %v3233
        %v3250 = vtanh.pop %v3234
        %v3251 = vtanh.pop %v3235
        %v3252 = vtanh.pop %v3236
        %v3253 = vtanh.pop %v3237
        %v3254 = vtanh.pop %v3238
        %v3255 = vtanh.pop %v3239
        %v3256 = vcombine.low %v3240, %v3244
        %v3257 = vcombine.high %v3240, %v3244
        %v3259 = vunpack.c.l.s4 1983009808
        %v3260 = vunpack.c.0.s8 %v3259
        %v3261 = vlaneseq
        %v3262 = vshrl.u32 %v3261, 7
        %v3263 = vsub.s32 %v3260, %v3262
        %v3264 = vrot.slane %v3256, %v3263
        %v3266 = vunpack.c.l.s4 1983009808
        %v3267 = vunpack.c.0.s8 %v3266
        %v3268 = vlaneseq
        %v3269 = vshrl.u32 %v3268, 7
        %v3270 = vsub.s32 %v3267, %v3269
        %v3271 = vrot.slane %v3257, %v3270
        %v3272 = vcombine.low %v3242, %v3246
        %v3273 = vcombine.high %v3242, %v3246
        %v3275 = vunpack.c.l.s4 1983009808
        %v3276 = vunpack.c.0.s8 %v3275
        %v3277 = vlaneseq
        %v3278 = vshrl.u32 %v3277, 7
        %v3279 = vsub.s32 %v3276, %v3278
        %v3280 = vrot.slane %v3272, %v3279
        %v3282 = vunpack.c.l.s4 1983009808
        %v3283 = vunpack.c.0.s8 %v3282
        %v3284 = vlaneseq
        %v3285 = vshrl.u32 %v3284, 7
        %v3286 = vsub.s32 %v3283, %v3285
        %v3287 = vrot.slane %v3273, %v3286
        %v3288 = vcombine.low %v3248, %v3252
        %v3289 = vcombine.high %v3248, %v3252
        %v3291 = vunpack.c.l.s4 1983009808
        %v3292 = vunpack.c.0.s8 %v3291
        %v3293 = vlaneseq
        %v3294 = vshrl.u32 %v3293, 7
        %v3295 = vsub.s32 %v3292, %v3294
        %v3296 = vrot.slane %v3288, %v3295
        %v3298 = vunpack.c.l.s4 1983009808
        %v3299 = vunpack.c.0.s8 %v3298
        %v3300 = vlaneseq
        %v3301 = vshrl.u32 %v3300, 7
        %v3302 = vsub.s32 %v3299, %v3301
        %v3303 = vrot.slane %v3289, %v3302
        %v3304 = vcombine.low %v3250, %v3254
        %v3305 = vcombine.high %v3250, %v3254
        %v3307 = vunpack.c.l.s4 1983009808
        %v3308 = vunpack.c.0.s8 %v3307
        %v3309 = vlaneseq
        %v3310 = vshrl.u32 %v3309, 7
        %v3311 = vsub.s32 %v3308, %v3310
        %v3312 = vrot.slane %v3304, %v3311
        %v3314 = vunpack.c.l.s4 1983009808
        %v3315 = vunpack.c.0.s8 %v3314
        %v3316 = vlaneseq
        %v3317 = vshrl.u32 %v3316, 7
        %v3318 = vsub.s32 %v3315, %v3317
        %v3319 = vrot.slane %v3305, %v3318
        %v3320 = vcombine.low %v3264, %v3280
        %v3321 = vcombine.high %v3264, %v3280
        %v3323 = vunpack.c.l.s4 1934713408
        %v3324 = vunpack.c.0.s8 %v3323
        %v3325 = vlaneseq
        %v3326 = vshrl.u32 %v3325, 7
        %v3327 = vsub.s32 %v3324, %v3326
        %v3328 = vrot.slane %v3320, %v3327
        %v3330 = vunpack.c.l.s4 1934713408
        %v3331 = vunpack.c.0.s8 %v3330
        %v3332 = vlaneseq
        %v3333 = vshrl.u32 %v3332, 7
        %v3334 = vsub.s32 %v3331, %v3333
        %v3335 = vrot.slane %v3321, %v3334
        %v3336 = vcombine.low %v3271, %v3287
        %v3337 = vcombine.high %v3271, %v3287
        %v3339 = vunpack.c.l.s4 1934713408
        %v3340 = vunpack.c.0.s8 %v3339
        %v3341 = vlaneseq
        %v3342 = vshrl.u32 %v3341, 7
        %v3343 = vsub.s32 %v3340, %v3342
        %v3344 = vrot.slane %v3336, %v3343
        %v3346 = vunpack.c.l.s4 1934713408
        %v3347 = vunpack.c.0.s8 %v3346
        %v3348 = vlaneseq
        %v3349 = vshrl.u32 %v3348, 7
        %v3350 = vsub.s32 %v3347, %v3349
        %v3351 = vrot.slane %v3337, %v3350
        %v3352 = vcombine.low %v3296, %v3312
        %v3353 = vcombine.high %v3296, %v3312
        %v3355 = vunpack.c.l.s4 1934713408
        %v3356 = vunpack.c.0.s8 %v3355
        %v3357 = vlaneseq
        %v3358 = vshrl.u32 %v3357, 7
        %v3359 = vsub.s32 %v3356, %v3358
        %v3360 = vrot.slane %v3352, %v3359
        %v3362 = vunpack.c.l.s4 1934713408
        %v3363 = vunpack.c.0.s8 %v3362
        %v3364 = vlaneseq
        %v3365 = vshrl.u32 %v3364, 7
        %v3366 = vsub.s32 %v3363, %v3365
        %v3367 = vrot.slane %v3353, %v3366
        %v3368 = vcombine.low %v3303, %v3319
        %v3369 = vcombine.high %v3303, %v3319
        %v3371 = vunpack.c.l.s4 1934713408
        %v3372 = vunpack.c.0.s8 %v3371
        %v3373 = vlaneseq
        %v3374 = vshrl.u32 %v3373, 7
        %v3375 = vsub.s32 %v3372, %v3374
        %v3376 = vrot.slane %v3368, %v3375
        %v3378 = vunpack.c.l.s4 1934713408
        %v3379 = vunpack.c.0.s8 %v3378
        %v3380 = vlaneseq
        %v3381 = vshrl.u32 %v3380, 7
        %v3382 = vsub.s32 %v3379, %v3381
        %v3383 = vrot.slane %v3369, %v3382
        %v3384 = vcombine.low %v3328, %v3360
        %v3385 = vcombine.high %v3328, %v3360
        %v3386 = vcombine.low %v3335, %v3367
        %v3387 = vcombine.high %v3335, %v3367
        %v3388 = vcombine.low %v3344, %v3376
        %v3389 = vcombine.high %v3344, %v3376
        %v3390 = vcombine.low %v3351, %v3383
        %v3391 = vcombine.high %v3351, %v3383
        %v3392 = vcombine.low %v3241, %v3245
        %v3393 = vcombine.high %v3241, %v3245
        %v3395 = vunpack.c.l.s4 1983009808
        %v3396 = vunpack.c.0.s8 %v3395
        %v3397 = vlaneseq
        %v3398 = vshrl.u32 %v3397, 7
        %v3399 = vsub.s32 %v3396, %v3398
        %v3400 = vrot.slane %v3392, %v3399
        %v3402 = vunpack.c.l.s4 1983009808
        %v3403 = vunpack.c.0.s8 %v3402
        %v3404 = vlaneseq
        %v3405 = vshrl.u32 %v3404, 7
        %v3406 = vsub.s32 %v3403, %v3405
        %v3407 = vrot.slane %v3393, %v3406
        %v3408 = vcombine.low %v3243, %v3247
        %v3409 = vcombine.high %v3243, %v3247
        %v3411 = vunpack.c.l.s4 1983009808
        %v3412 = vunpack.c.0.s8 %v3411
        %v3413 = vlaneseq
        %v3414 = vshrl.u32 %v3413, 7
        %v3415 = vsub.s32 %v3412, %v3414
        %v3416 = vrot.slane %v3408, %v3415
        %v3418 = vunpack.c.l.s4 1983009808
        %v3419 = vunpack.c.0.s8 %v3418
        %v3420 = vlaneseq
        %v3421 = vshrl.u32 %v3420, 7
        %v3422 = vsub.s32 %v3419, %v3421
        %v3423 = vrot.slane %v3409, %v3422
        %v3424 = vcombine.low %v3249, %v3253
        %v3425 = vcombine.high %v3249, %v3253
        %v3427 = vunpack.c.l.s4 1983009808
        %v3428 = vunpack.c.0.s8 %v3427
        %v3429 = vlaneseq
        %v3430 = vshrl.u32 %v3429, 7
        %v3431 = vsub.s32 %v3428, %v3430
        %v3432 = vrot.slane %v3424, %v3431
        %v3434 = vunpack.c.l.s4 1983009808
        %v3435 = vunpack.c.0.s8 %v3434
        %v3436 = vlaneseq
        %v3437 = vshrl.u32 %v3436, 7
        %v3438 = vsub.s32 %v3435, %v3437
        %v3439 = vrot.slane %v3425, %v3438
        %v3440 = vcombine.low %v3251, %v3255
        %v3441 = vcombine.high %v3251, %v3255
        %v3443 = vunpack.c.l.s4 1983009808
        %v3444 = vunpack.c.0.s8 %v3443
        %v3445 = vlaneseq
        %v3446 = vshrl.u32 %v3445, 7
        %v3447 = vsub.s32 %v3444, %v3446
        %v3448 = vrot.slane %v3440, %v3447
        %v3450 = vunpack.c.l.s4 1983009808
        %v3451 = vunpack.c.0.s8 %v3450
        %v3452 = vlaneseq
        %v3453 = vshrl.u32 %v3452, 7
        %v3454 = vsub.s32 %v3451, %v3453
        %v3455 = vrot.slane %v3441, %v3454
        %v3456 = vcombine.low %v3400, %v3416
        %v3457 = vcombine.high %v3400, %v3416
        %v3459 = vunpack.c.l.s4 1934713408
        %v3460 = vunpack.c.0.s8 %v3459
        %v3461 = vlaneseq
        %v3462 = vshrl.u32 %v3461, 7
        %v3463 = vsub.s32 %v3460, %v3462
        %v3464 = vrot.slane %v3456, %v3463
        %v3466 = vunpack.c.l.s4 1934713408
        %v3467 = vunpack.c.0.s8 %v3466
        %v3468 = vlaneseq
        %v3469 = vshrl.u32 %v3468, 7
        %v3470 = vsub.s32 %v3467, %v3469
        %v3471 = vrot.slane %v3457, %v3470
        %v3472 = vcombine.low %v3407, %v3423
        %v3473 = vcombine.high %v3407, %v3423
        %v3475 = vunpack.c.l.s4 1934713408
        %v3476 = vunpack.c.0.s8 %v3475
        %v3477 = vlaneseq
        %v3478 = vshrl.u32 %v3477, 7
        %v3479 = vsub.s32 %v3476, %v3478
        %v3480 = vrot.slane %v3472, %v3479
        %v3482 = vunpack.c.l.s4 1934713408
        %v3483 = vunpack.c.0.s8 %v3482
        %v3484 = vlaneseq
        %v3485 = vshrl.u32 %v3484, 7
        %v3486 = vsub.s32 %v3483, %v3485
        %v3487 = vrot.slane %v3473, %v3486
        %v3488 = vcombine.low %v3432, %v3448
        %v3489 = vcombine.high %v3432, %v3448
        %v3491 = vunpack.c.l.s4 1934713408
        %v3492 = vunpack.c.0.s8 %v3491
        %v3493 = vlaneseq
        %v3494 = vshrl.u32 %v3493, 7
        %v3495 = vsub.s32 %v3492, %v3494
        %v3496 = vrot.slane %v3488, %v3495
        %v3498 = vunpack.c.l.s4 1934713408
        %v3499 = vunpack.c.0.s8 %v3498
        %v3500 = vlaneseq
        %v3501 = vshrl.u32 %v3500, 7
        %v3502 = vsub.s32 %v3499, %v3501
        %v3503 = vrot.slane %v3489, %v3502
        %v3504 = vcombine.low %v3439, %v3455
        %v3505 = vcombine.high %v3439, %v3455
        %v3507 = vunpack.c.l.s4 1934713408
        %v3508 = vunpack.c.0.s8 %v3507
        %v3509 = vlaneseq
        %v3510 = vshrl.u32 %v3509, 7
        %v3511 = vsub.s32 %v3508, %v3510
        %v3512 = vrot.slane %v3504, %v3511
        %v3514 = vunpack.c.l.s4 1934713408
        %v3515 = vunpack.c.0.s8 %v3514
        %v3516 = vlaneseq
        %v3517 = vshrl.u32 %v3516, 7
        %v3518 = vsub.s32 %v3515, %v3517
        %v3519 = vrot.slane %v3505, %v3518
        %v3520 = vcombine.low %v3464, %v3496
        %v3521 = vcombine.high %v3464, %v3496
        %v3522 = vcombine.low %v3471, %v3503
        %v3523 = vcombine.high %v3471, %v3503
        %v3524 = vcombine.low %v3480, %v3512
        %v3525 = vcombine.high %v3480, %v3512
        %v3526 = vcombine.low %v3487, %v3519
        %v3527 = vcombine.high %v3487, %v3519
        %3529 = vrot.lane.b32.xlu0 %v3385, 16
        %v3530 = vpop.permute.xlu0 %3529
        %3533 = vrot.lane.b32.xlu0 %v3386, 32
        %v3534 = vpop.permute.xlu0 %3533
        %3537 = vrot.lane.b32.xlu0 %v3387, 48
        %v3538 = vpop.permute.xlu0 %3537
        %3541 = vrot.lane.b32.xlu0 %v3388, 64
        %v3542 = vpop.permute.xlu0 %3541
        %3545 = vrot.lane.b32.xlu0 %v3389, 80
        %v3546 = vpop.permute.xlu0 %3545
        %3549 = vrot.lane.b32.xlu0 %v3390, 96
        %v3550 = vpop.permute.xlu0 %3549
        %3553 = vrot.lane.b32.xlu0 %v3391, 112
        %v3554 = vpop.permute.xlu0 %3553
        %3557 = vrot.lane.b32.xlu0 %v3521, 16
        %v3558 = vpop.permute.xlu0 %3557
        %3561 = vrot.lane.b32.xlu0 %v3522, 32
        %v3562 = vpop.permute.xlu0 %3561
        %3565 = vrot.lane.b32.xlu0 %v3523, 48
        %v3566 = vpop.permute.xlu0 %3565
        %3569 = vrot.lane.b32.xlu0 %v3524, 64
        %v3570 = vpop.permute.xlu0 %3569
        %3573 = vrot.lane.b32.xlu0 %v3525, 80
        %v3574 = vpop.permute.xlu0 %3573
        %3577 = vrot.lane.b32.xlu0 %v3526, 96
        %v3578 = vpop.permute.xlu0 %3577
        %3581 = vrot.lane.b32.xlu0 %v3527, 112
        %v3582 = vpop.permute.xlu0 %3581
        %v3584 = vsel %vm1699, %v3384, %v3530
        %v3585 = vsel %vm1701, %v3584, %v3534
        %v3586 = vsel %vm1703, %v3585, %v3538
        %v3587 = vsel %vm1705, %v3586, %v3542
        %v3588 = vsel %vm1707, %v3587, %v3546
        %v3589 = vsel %vm1709, %v3588, %v3550
        %v3590 = vsel %vm1711, %v3589, %v3554
        %v3591 = vsel %vm1699, %v3520, %v3558
        %v3592 = vsel %vm1701, %v3591, %v3562
        %v3593 = vsel %vm1703, %v3592, %v3566
        %v3594 = vsel %vm1705, %v3593, %v3570
        %v3595 = vsel %vm1707, %v3594, %v3574
        %v3596 = vsel %vm1709, %v3595, %v3578
        %v3597 = vsel %vm1711, %v3596, %v3582
        %3599 = vset.pattern.permute.xlu0 0
        %3600 = vperm.xlu0 %3599, %v2479
        %v3601 = vpop.permute.xlu0 %3600
        %3604 = vset.pattern.permute.xlu0 0
        %3605 = vperm.xlu0 %3604, %v2480
        %v3606 = vpop.permute.xlu0 %3605
        %v3609 = vsel %vm1730, %v2476, 0
        %v3612 = vsel %vm1730, %v2477, 0
        %3614 = vmatprep.subr.mxu0 0.0
        %3615 = vmatpush1.msra.mxu0 0.0
        %3616 = vmatprep.subr.mxu0 0.0
        %3617 = vmatpush1.msra.mxu0 0.0
        %3618 = vmatprep.subr.mxu0 0.0
        %3619 = vmatpush1.msra.mxu0 0.0
        %3620 = vmatprep.subr.mxu0 0.0
        %3621 = vmatpush1.msra.mxu0 0.0
        %3622 = vmatprep.subr.mxu0 0.0
        %3623 = vmatpush1.msra.mxu0 0.0
        %3624 = vmatprep.subr.mxu0 0.0
        %3625 = vmatpush1.msra.mxu0 0.0
        %3626 = vmatprep.subr.mxu0 0.0
        %3627 = vmatpush1.msra.mxu0 0.0
        %3628 = vmatprep.subr.mxu0 0.0
        %3629 = vmatpush1.msra.mxu0 0.0
        %3630 = vmatprep.subr.mxu0 0.0
        %3631 = vmatpush1.msra.mxu0 0.0
        %3632 = vmatprep.subr.mxu0 0.0
        %3633 = vmatpush1.msra.mxu0 0.0
        %3634 = vmatprep.subr.mxu0 0.0
        %3635 = vmatpush1.msra.mxu0 0.0
        %3636 = vmatprep.subr.mxu0 0.0
        %3637 = vmatpush1.msra.mxu0 0.0
        %3638 = vmatprep.subr.mxu0 0.0
        %3639 = vmatpush1.msra.mxu0 0.0
        %3640 = vmatprep.subr.mxu0 0.0
        %3641 = vmatpush1.msra.mxu0 0.0
        %3642 = vmatprep.subr.mxu0 0.0
        %3643 = vmatpush1.msra.mxu0 0.0
        %3644 = vmatprep.subr.mxu0 %v3597
        %3645 = vmatpush1.msra.mxu0 %v3590
        %3646 = vmatprep.subr.mxu0 0.0
        %3647 = vmatpush2.msra.mxu0 0.0
        %3648 = vmatprep.subr.mxu0 0.0
        %3649 = vmatpush2.msra.mxu0 0.0
        %3650 = vmatprep.subr.mxu0 0.0
        %3651 = vmatpush2.msra.mxu0 0.0
        %3652 = vmatprep.subr.mxu0 0.0
        %3653 = vmatpush2.msra.mxu0 0.0
        %3654 = vmatprep.subr.mxu0 0.0
        %3655 = vmatpush2.msra.mxu0 0.0
        %3656 = vmatprep.subr.mxu0 0.0
        %3657 = vmatpush2.msra.mxu0 0.0
        %3658 = vmatprep.subr.mxu0 0.0
        %3659 = vmatpush2.msra.mxu0 0.0
        %3660 = vmatprep.subr.mxu0 0.0
        %3661 = vmatpush2.msra.mxu0 0.0
        %3662 = vmatprep.subr.mxu0 0.0
        %3663 = vmatpush2.msra.mxu0 0.0
        %3664 = vmatprep.subr.mxu0 0.0
        %3665 = vmatpush2.msra.mxu0 0.0
        %3666 = vmatprep.subr.mxu0 0.0
        %3667 = vmatpush2.msra.mxu0 0.0
        %3668 = vmatprep.subr.mxu0 0.0
        %3669 = vmatpush2.msra.mxu0 0.0
        %3670 = vmatprep.subr.mxu0 0.0
        %3671 = vmatpush2.msra.mxu0 0.0
        %3672 = vmatprep.subr.mxu0 0.0
        %3673 = vmatpush2.msra.mxu0 0.0
        %3674 = vmatprep.subr.mxu0 0.0
        %3675 = vmatpush2.msra.mxu0 0.0
        %3676 = vmatprep.subr.mxu0 0.0
        %3677 = vmatpush2.msra.mxu0 0.0
        %3678 = vmatprep.mubr.f32.mxu0 0.0
        %3679 = vmatmul.mubr.f32.gmra.mxu0 %v3609
        %v3680 = vpop.f32.mrf.mxu0
        %v3681 = vadd.f32 %v3601, %v3680
        %v3682 = vpop.f32.mrf.mxu0
        %v3683 = vadd.f32 %v3601, %v3682
        %3684 = vmatprep.mubr.f32.mxu0 0.0
        %3685 = vmatmul.mubr.f32.gmra.mxu0 %v3612
        %v3686 = vpop.f32.mrf.mxu0
        %v3687 = vadd.f32 %v3606, %v3686
        %v3688 = vpop.f32.mrf.mxu0
        %v3689 = vadd.f32 %v3606, %v3688
        %3690 = vdwg.mxu0
        %v3692 = vlaneseq
        %v3693 = vshrl.u32 %v3692, 7
        %v3694 = vsub.s32 0, %v3693
        %v3695 = vrot.slane %v2482, %v3694
        %v3696 = vlaneseq
        %v3697 = vshrl.u32 %v3696, 7
        %v3698 = vsub.s32 1, %v3697
        %v3699 = vrot.slane %v2482, %v3698
        %v3702 = vadd.f32 %v3681, %v3695
        %v3703 = vadd.f32 %v3683, %v3699
        %v3704 = vadd.f32 %v3687, %v3695
        %v3705 = vadd.f32 %v3689, %v3699
        %3708 = vrot.lane.b32.xlu0 %v3702, 112
        %v3709 = vpop.permute.xlu0 %3708
        %3710 = vrot.lane.b32.xlu0 %v3704, 112
        %v3711 = vpop.permute.xlu0 %3710
        %3714 = vrot.lane.b32.xlu0 %v3702, 96
        %v3715 = vpop.permute.xlu0 %3714
        %3716 = vrot.lane.b32.xlu0 %v3704, 96
        %v3717 = vpop.permute.xlu0 %3716
        %3720 = vrot.lane.b32.xlu0 %v3702, 80
        %v3721 = vpop.permute.xlu0 %3720
        %3722 = vrot.lane.b32.xlu0 %v3704, 80
        %v3723 = vpop.permute.xlu0 %3722
        %3726 = vrot.lane.b32.xlu0 %v3702, 64
        %v3727 = vpop.permute.xlu0 %3726
        %3728 = vrot.lane.b32.xlu0 %v3704, 64
        %v3729 = vpop.permute.xlu0 %3728
        %3732 = vrot.lane.b32.xlu0 %v3702, 48
        %v3733 = vpop.permute.xlu0 %3732
        %3734 = vrot.lane.b32.xlu0 %v3704, 48
        %v3735 = vpop.permute.xlu0 %3734
        %3738 = vrot.lane.b32.xlu0 %v3702, 32
        %v3739 = vpop.permute.xlu0 %3738
        %3740 = vrot.lane.b32.xlu0 %v3704, 32
        %v3741 = vpop.permute.xlu0 %3740
        %3744 = vrot.lane.b32.xlu0 %v3702, 16
        %v3745 = vpop.permute.xlu0 %3744
        %3746 = vrot.lane.b32.xlu0 %v3704, 16
        %v3747 = vpop.permute.xlu0 %3746
        %3752 = vrot.lane.b32.xlu0 %v3703, 112
        %v3753 = vpop.permute.xlu0 %3752
        %3754 = vrot.lane.b32.xlu0 %v3705, 112
        %v3755 = vpop.permute.xlu0 %3754
        %3758 = vrot.lane.b32.xlu0 %v3703, 96
        %v3759 = vpop.permute.xlu0 %3758
        %3760 = vrot.lane.b32.xlu0 %v3705, 96
        %v3761 = vpop.permute.xlu0 %3760
        %3764 = vrot.lane.b32.xlu0 %v3703, 80
        %v3765 = vpop.permute.xlu0 %3764
        %3766 = vrot.lane.b32.xlu0 %v3705, 80
        %v3767 = vpop.permute.xlu0 %3766
        %3770 = vrot.lane.b32.xlu0 %v3703, 64
        %v3771 = vpop.permute.xlu0 %3770
        %3772 = vrot.lane.b32.xlu0 %v3705, 64
        %v3773 = vpop.permute.xlu0 %3772
        %3776 = vrot.lane.b32.xlu0 %v3703, 48
        %v3777 = vpop.permute.xlu0 %3776
        %3778 = vrot.lane.b32.xlu0 %v3705, 48
        %v3779 = vpop.permute.xlu0 %3778
        %3782 = vrot.lane.b32.xlu0 %v3703, 32
        %v3783 = vpop.permute.xlu0 %3782
        %3784 = vrot.lane.b32.xlu0 %v3705, 32
        %v3785 = vpop.permute.xlu0 %3784
        %3788 = vrot.lane.b32.xlu0 %v3703, 16
        %v3789 = vpop.permute.xlu0 %3788
        %3790 = vrot.lane.b32.xlu0 %v3705, 16
        %v3791 = vpop.permute.xlu0 %3790
        %v3794 = vcombine.low %v3702, %v3715
        %v3795 = vcombine.high %v3702, %v3715
        %v3797 = vunpack.c.l.s4 1983009808
        %v3798 = vunpack.c.0.s8 %v3797
        %v3799 = vlaneseq
        %v3800 = vshrl.u32 %v3799, 7
        %v3801 = vsub.s32 %v3798, %v3800
        %v3802 = vrot.slane %v3794, %v3801
        %v3804 = vunpack.c.l.s4 1983009808
        %v3805 = vunpack.c.0.s8 %v3804
        %v3806 = vlaneseq
        %v3807 = vshrl.u32 %v3806, 7
        %v3808 = vsub.s32 %v3805, %v3807
        %v3809 = vrot.slane %v3795, %v3808
        %v3810 = vcombine.low %v3709, %v3721
        %v3811 = vcombine.high %v3709, %v3721
        %v3813 = vunpack.c.l.s4 1983009808
        %v3814 = vunpack.c.0.s8 %v3813
        %v3815 = vlaneseq
        %v3816 = vshrl.u32 %v3815, 7
        %v3817 = vsub.s32 %v3814, %v3816
        %v3818 = vrot.slane %v3810, %v3817
        %v3820 = vunpack.c.l.s4 1983009808
        %v3821 = vunpack.c.0.s8 %v3820
        %v3822 = vlaneseq
        %v3823 = vshrl.u32 %v3822, 7
        %v3824 = vsub.s32 %v3821, %v3823
        %v3825 = vrot.slane %v3811, %v3824
        %v3826 = vcombine.low %v3727, %v3739
        %v3827 = vcombine.high %v3727, %v3739
        %v3829 = vunpack.c.l.s4 1983009808
        %v3830 = vunpack.c.0.s8 %v3829
        %v3831 = vlaneseq
        %v3832 = vshrl.u32 %v3831, 7
        %v3833 = vsub.s32 %v3830, %v3832
        %v3834 = vrot.slane %v3826, %v3833
        %v3836 = vunpack.c.l.s4 1983009808
        %v3837 = vunpack.c.0.s8 %v3836
        %v3838 = vlaneseq
        %v3839 = vshrl.u32 %v3838, 7
        %v3840 = vsub.s32 %v3837, %v3839
        %v3841 = vrot.slane %v3827, %v3840
        %v3842 = vcombine.low %v3733, %v3745
        %v3843 = vcombine.high %v3733, %v3745
        %v3845 = vunpack.c.l.s4 1983009808
        %v3846 = vunpack.c.0.s8 %v3845
        %v3847 = vlaneseq
        %v3848 = vshrl.u32 %v3847, 7
        %v3849 = vsub.s32 %v3846, %v3848
        %v3850 = vrot.slane %v3842, %v3849
        %v3852 = vunpack.c.l.s4 1983009808
        %v3853 = vunpack.c.0.s8 %v3852
        %v3854 = vlaneseq
        %v3855 = vshrl.u32 %v3854, 7
        %v3856 = vsub.s32 %v3853, %v3855
        %v3857 = vrot.slane %v3843, %v3856
        %v3858 = vcombine.low %v3802, %v3818
        %v3859 = vcombine.high %v3802, %v3818
        %v3861 = vunpack.c.l.s4 1934713408
        %v3862 = vunpack.c.0.s8 %v3861
        %v3863 = vlaneseq
        %v3864 = vshrl.u32 %v3863, 7
        %v3865 = vsub.s32 %v3862, %v3864
        %v3866 = vrot.slane %v3858, %v3865
        %v3868 = vunpack.c.l.s4 1934713408
        %v3869 = vunpack.c.0.s8 %v3868
        %v3870 = vlaneseq
        %v3871 = vshrl.u32 %v3870, 7
        %v3872 = vsub.s32 %v3869, %v3871
        %v3873 = vrot.slane %v3859, %v3872
        %v3874 = vcombine.low %v3809, %v3825
        %v3875 = vcombine.high %v3809, %v3825
        %v3877 = vunpack.c.l.s4 1934713408
        %v3878 = vunpack.c.0.s8 %v3877
        %v3879 = vlaneseq
        %v3880 = vshrl.u32 %v3879, 7
        %v3881 = vsub.s32 %v3878, %v3880
        %v3882 = vrot.slane %v3874, %v3881
        %v3884 = vunpack.c.l.s4 1934713408
        %v3885 = vunpack.c.0.s8 %v3884
        %v3886 = vlaneseq
        %v3887 = vshrl.u32 %v3886, 7
        %v3888 = vsub.s32 %v3885, %v3887
        %v3889 = vrot.slane %v3875, %v3888
        %v3890 = vcombine.low %v3834, %v3850
        %v3891 = vcombine.high %v3834, %v3850
        %v3893 = vunpack.c.l.s4 1934713408
        %v3894 = vunpack.c.0.s8 %v3893
        %v3895 = vlaneseq
        %v3896 = vshrl.u32 %v3895, 7
        %v3897 = vsub.s32 %v3894, %v3896
        %v3898 = vrot.slane %v3890, %v3897
        %v3900 = vunpack.c.l.s4 1934713408
        %v3901 = vunpack.c.0.s8 %v3900
        %v3902 = vlaneseq
        %v3903 = vshrl.u32 %v3902, 7
        %v3904 = vsub.s32 %v3901, %v3903
        %v3905 = vrot.slane %v3891, %v3904
        %v3906 = vcombine.low %v3841, %v3857
        %v3907 = vcombine.high %v3841, %v3857
        %v3909 = vunpack.c.l.s4 1934713408
        %v3910 = vunpack.c.0.s8 %v3909
        %v3911 = vlaneseq
        %v3912 = vshrl.u32 %v3911, 7
        %v3913 = vsub.s32 %v3910, %v3912
        %v3914 = vrot.slane %v3906, %v3913
        %v3916 = vunpack.c.l.s4 1934713408
        %v3917 = vunpack.c.0.s8 %v3916
        %v3918 = vlaneseq
        %v3919 = vshrl.u32 %v3918, 7
        %v3920 = vsub.s32 %v3917, %v3919
        %v3921 = vrot.slane %v3907, %v3920
        %v3922 = vcombine.low %v3866, %v3898
        %v3923 = vcombine.high %v3866, %v3898
        %v3924 = vcombine.low %v3873, %v3905
        %v3925 = vcombine.high %v3873, %v3905
        %v3926 = vcombine.low %v3882, %v3914
        %v3927 = vcombine.high %v3882, %v3914
        %v3928 = vcombine.low %v3889, %v3921
        %v3929 = vcombine.high %v3889, %v3921
        %v3930 = vcombine.low %v3703, %v3759
        %v3931 = vcombine.high %v3703, %v3759
        %v3933 = vunpack.c.l.s4 1983009808
        %v3934 = vunpack.c.0.s8 %v3933
        %v3935 = vlaneseq
        %v3936 = vshrl.u32 %v3935, 7
        %v3937 = vsub.s32 %v3934, %v3936
        %v3938 = vrot.slane %v3930, %v3937
        %v3940 = vunpack.c.l.s4 1983009808
        %v3941 = vunpack.c.0.s8 %v3940
        %v3942 = vlaneseq
        %v3943 = vshrl.u32 %v3942, 7
        %v3944 = vsub.s32 %v3941, %v3943
        %v3945 = vrot.slane %v3931, %v3944
        %v3946 = vcombine.low %v3753, %v3765
        %v3947 = vcombine.high %v3753, %v3765
        %v3949 = vunpack.c.l.s4 1983009808
        %v3950 = vunpack.c.0.s8 %v3949
        %v3951 = vlaneseq
        %v3952 = vshrl.u32 %v3951, 7
        %v3953 = vsub.s32 %v3950, %v3952
        %v3954 = vrot.slane %v3946, %v3953
        %v3956 = vunpack.c.l.s4 1983009808
        %v3957 = vunpack.c.0.s8 %v3956
        %v3958 = vlaneseq
        %v3959 = vshrl.u32 %v3958, 7
        %v3960 = vsub.s32 %v3957, %v3959
        %v3961 = vrot.slane %v3947, %v3960
        %v3962 = vcombine.low %v3771, %v3783
        %v3963 = vcombine.high %v3771, %v3783
        %v3965 = vunpack.c.l.s4 1983009808
        %v3966 = vunpack.c.0.s8 %v3965
        %v3967 = vlaneseq
        %v3968 = vshrl.u32 %v3967, 7
        %v3969 = vsub.s32 %v3966, %v3968
        %v3970 = vrot.slane %v3962, %v3969
        %v3972 = vunpack.c.l.s4 1983009808
        %v3973 = vunpack.c.0.s8 %v3972
        %v3974 = vlaneseq
        %v3975 = vshrl.u32 %v3974, 7
        %v3976 = vsub.s32 %v3973, %v3975
        %v3977 = vrot.slane %v3963, %v3976
        %v3978 = vcombine.low %v3777, %v3789
        %v3979 = vcombine.high %v3777, %v3789
        %v3981 = vunpack.c.l.s4 1983009808
        %v3982 = vunpack.c.0.s8 %v3981
        %v3983 = vlaneseq
        %v3984 = vshrl.u32 %v3983, 7
        %v3985 = vsub.s32 %v3982, %v3984
        %v3986 = vrot.slane %v3978, %v3985
        %v3988 = vunpack.c.l.s4 1983009808
        %v3989 = vunpack.c.0.s8 %v3988
        %v3990 = vlaneseq
        %v3991 = vshrl.u32 %v3990, 7
        %v3992 = vsub.s32 %v3989, %v3991
        %v3993 = vrot.slane %v3979, %v3992
        %v3994 = vcombine.low %v3938, %v3954
        %v3995 = vcombine.high %v3938, %v3954
        %v3997 = vunpack.c.l.s4 1934713408
        %v3998 = vunpack.c.0.s8 %v3997
        %v3999 = vlaneseq
        %v4000 = vshrl.u32 %v3999, 7
        %v4001 = vsub.s32 %v3998, %v4000
        %v4002 = vrot.slane %v3994, %v4001
        %v4004 = vunpack.c.l.s4 1934713408
        %v4005 = vunpack.c.0.s8 %v4004
        %v4006 = vlaneseq
        %v4007 = vshrl.u32 %v4006, 7
        %v4008 = vsub.s32 %v4005, %v4007
        %v4009 = vrot.slane %v3995, %v4008
        %v4010 = vcombine.low %v3945, %v3961
        %v4011 = vcombine.high %v3945, %v3961
        %v4013 = vunpack.c.l.s4 1934713408
        %v4014 = vunpack.c.0.s8 %v4013
        %v4015 = vlaneseq
        %v4016 = vshrl.u32 %v4015, 7
        %v4017 = vsub.s32 %v4014, %v4016
        %v4018 = vrot.slane %v4010, %v4017
        %v4020 = vunpack.c.l.s4 1934713408
        %v4021 = vunpack.c.0.s8 %v4020
        %v4022 = vlaneseq
        %v4023 = vshrl.u32 %v4022, 7
        %v4024 = vsub.s32 %v4021, %v4023
        %v4025 = vrot.slane %v4011, %v4024
        %v4026 = vcombine.low %v3970, %v3986
        %v4027 = vcombine.high %v3970, %v3986
        %v4029 = vunpack.c.l.s4 1934713408
        %v4030 = vunpack.c.0.s8 %v4029
        %v4031 = vlaneseq
        %v4032 = vshrl.u32 %v4031, 7
        %v4033 = vsub.s32 %v4030, %v4032
        %v4034 = vrot.slane %v4026, %v4033
        %v4036 = vunpack.c.l.s4 1934713408
        %v4037 = vunpack.c.0.s8 %v4036
        %v4038 = vlaneseq
        %v4039 = vshrl.u32 %v4038, 7
        %v4040 = vsub.s32 %v4037, %v4039
        %v4041 = vrot.slane %v4027, %v4040
        %v4042 = vcombine.low %v3977, %v3993
        %v4043 = vcombine.high %v3977, %v3993
        %v4045 = vunpack.c.l.s4 1934713408
        %v4046 = vunpack.c.0.s8 %v4045
        %v4047 = vlaneseq
        %v4048 = vshrl.u32 %v4047, 7
        %v4049 = vsub.s32 %v4046, %v4048
        %v4050 = vrot.slane %v4042, %v4049
        %v4052 = vunpack.c.l.s4 1934713408
        %v4053 = vunpack.c.0.s8 %v4052
        %v4054 = vlaneseq
        %v4055 = vshrl.u32 %v4054, 7
        %v4056 = vsub.s32 %v4053, %v4055
        %v4057 = vrot.slane %v4043, %v4056
        %v4058 = vcombine.low %v4002, %v4034
        %v4059 = vcombine.high %v4002, %v4034
        %v4060 = vcombine.low %v4009, %v4041
        %v4061 = vcombine.high %v4009, %v4041
        %v4062 = vcombine.low %v4018, %v4050
        %v4063 = vcombine.high %v4018, %v4050
        %v4064 = vcombine.low %v4025, %v4057
        %v4065 = vcombine.high %v4025, %v4057
        %v4066 = vcombine.low %v3704, %v3717
        %v4067 = vcombine.high %v3704, %v3717
        %v4069 = vunpack.c.l.s4 1983009808
        %v4070 = vunpack.c.0.s8 %v4069
        %v4071 = vlaneseq
        %v4072 = vshrl.u32 %v4071, 7
        %v4073 = vsub.s32 %v4070, %v4072
        %v4074 = vrot.slane %v4066, %v4073
        %v4076 = vunpack.c.l.s4 1983009808
        %v4077 = vunpack.c.0.s8 %v4076
        %v4078 = vlaneseq
        %v4079 = vshrl.u32 %v4078, 7
        %v4080 = vsub.s32 %v4077, %v4079
        %v4081 = vrot.slane %v4067, %v4080
        %v4082 = vcombine.low %v3711, %v3723
        %v4083 = vcombine.high %v3711, %v3723
        %v4085 = vunpack.c.l.s4 1983009808
        %v4086 = vunpack.c.0.s8 %v4085
        %v4087 = vlaneseq
        %v4088 = vshrl.u32 %v4087, 7
        %v4089 = vsub.s32 %v4086, %v4088
        %v4090 = vrot.slane %v4082, %v4089
        %v4092 = vunpack.c.l.s4 1983009808
        %v4093 = vunpack.c.0.s8 %v4092
        %v4094 = vlaneseq
        %v4095 = vshrl.u32 %v4094, 7
        %v4096 = vsub.s32 %v4093, %v4095
        %v4097 = vrot.slane %v4083, %v4096
        %v4098 = vcombine.low %v3729, %v3741
        %v4099 = vcombine.high %v3729, %v3741
        %v4101 = vunpack.c.l.s4 1983009808
        %v4102 = vunpack.c.0.s8 %v4101
        %v4103 = vlaneseq
        %v4104 = vshrl.u32 %v4103, 7
        %v4105 = vsub.s32 %v4102, %v4104
        %v4106 = vrot.slane %v4098, %v4105
        %v4108 = vunpack.c.l.s4 1983009808
        %v4109 = vunpack.c.0.s8 %v4108
        %v4110 = vlaneseq
        %v4111 = vshrl.u32 %v4110, 7
        %v4112 = vsub.s32 %v4109, %v4111
        %v4113 = vrot.slane %v4099, %v4112
        %v4114 = vcombine.low %v3735, %v3747
        %v4115 = vcombine.high %v3735, %v3747
        %v4117 = vunpack.c.l.s4 1983009808
        %v4118 = vunpack.c.0.s8 %v4117
        %v4119 = vlaneseq
        %v4120 = vshrl.u32 %v4119, 7
        %v4121 = vsub.s32 %v4118, %v4120
        %v4122 = vrot.slane %v4114, %v4121
        %v4124 = vunpack.c.l.s4 1983009808
        %v4125 = vunpack.c.0.s8 %v4124
        %v4126 = vlaneseq
        %v4127 = vshrl.u32 %v4126, 7
        %v4128 = vsub.s32 %v4125, %v4127
        %v4129 = vrot.slane %v4115, %v4128
        %v4130 = vcombine.low %v4074, %v4090
        %v4131 = vcombine.high %v4074, %v4090
        %v4133 = vunpack.c.l.s4 1934713408
        %v4134 = vunpack.c.0.s8 %v4133
        %v4135 = vlaneseq
        %v4136 = vshrl.u32 %v4135, 7
        %v4137 = vsub.s32 %v4134, %v4136
        %v4138 = vrot.slane %v4130, %v4137
        %v4140 = vunpack.c.l.s4 1934713408
        %v4141 = vunpack.c.0.s8 %v4140
        %v4142 = vlaneseq
        %v4143 = vshrl.u32 %v4142, 7
        %v4144 = vsub.s32 %v4141, %v4143
        %v4145 = vrot.slane %v4131, %v4144
        %v4146 = vcombine.low %v4081, %v4097
        %v4147 = vcombine.high %v4081, %v4097
        %v4149 = vunpack.c.l.s4 1934713408
        %v4150 = vunpack.c.0.s8 %v4149
        %v4151 = vlaneseq
        %v4152 = vshrl.u32 %v4151, 7
        %v4153 = vsub.s32 %v4150, %v4152
        %v4154 = vrot.slane %v4146, %v4153
        %v4156 = vunpack.c.l.s4 1934713408
        %v4157 = vunpack.c.0.s8 %v4156
        %v4158 = vlaneseq
        %v4159 = vshrl.u32 %v4158, 7
        %v4160 = vsub.s32 %v4157, %v4159
        %v4161 = vrot.slane %v4147, %v4160
        %v4162 = vcombine.low %v4106, %v4122
        %v4163 = vcombine.high %v4106, %v4122
        %v4165 = vunpack.c.l.s4 1934713408
        %v4166 = vunpack.c.0.s8 %v4165
        %v4167 = vlaneseq
        %v4168 = vshrl.u32 %v4167, 7
        %v4169 = vsub.s32 %v4166, %v4168
        %v4170 = vrot.slane %v4162, %v4169
        %v4172 = vunpack.c.l.s4 1934713408
        %v4173 = vunpack.c.0.s8 %v4172
        %v4174 = vlaneseq
        %v4175 = vshrl.u32 %v4174, 7
        %v4176 = vsub.s32 %v4173, %v4175
        %v4177 = vrot.slane %v4163, %v4176
        %v4178 = vcombine.low %v4113, %v4129
        %v4179 = vcombine.high %v4113, %v4129
        %v4181 = vunpack.c.l.s4 1934713408
        %v4182 = vunpack.c.0.s8 %v4181
        %v4183 = vlaneseq
        %v4184 = vshrl.u32 %v4183, 7
        %v4185 = vsub.s32 %v4182, %v4184
        %v4186 = vrot.slane %v4178, %v4185
        %v4188 = vunpack.c.l.s4 1934713408
        %v4189 = vunpack.c.0.s8 %v4188
        %v4190 = vlaneseq
        %v4191 = vshrl.u32 %v4190, 7
        %v4192 = vsub.s32 %v4189, %v4191
        %v4193 = vrot.slane %v4179, %v4192
        %v4194 = vcombine.low %v4138, %v4170
        %v4195 = vcombine.high %v4138, %v4170
        %v4196 = vcombine.low %v4145, %v4177
        %v4197 = vcombine.high %v4145, %v4177
        %v4198 = vcombine.low %v4154, %v4186
        %v4199 = vcombine.high %v4154, %v4186
        %v4200 = vcombine.low %v4161, %v4193
        %v4201 = vcombine.high %v4161, %v4193
        %v4202 = vcombine.low %v3705, %v3761
        %v4203 = vcombine.high %v3705, %v3761
        %v4205 = vunpack.c.l.s4 1983009808
        %v4206 = vunpack.c.0.s8 %v4205
        %v4207 = vlaneseq
        %v4208 = vshrl.u32 %v4207, 7
        %v4209 = vsub.s32 %v4206, %v4208
        %v4210 = vrot.slane %v4202, %v4209
        %v4212 = vunpack.c.l.s4 1983009808
        %v4213 = vunpack.c.0.s8 %v4212
        %v4214 = vlaneseq
        %v4215 = vshrl.u32 %v4214, 7
        %v4216 = vsub.s32 %v4213, %v4215
        %v4217 = vrot.slane %v4203, %v4216
        %v4218 = vcombine.low %v3755, %v3767
        %v4219 = vcombine.high %v3755, %v3767
        %v4221 = vunpack.c.l.s4 1983009808
        %v4222 = vunpack.c.0.s8 %v4221
        %v4223 = vlaneseq
        %v4224 = vshrl.u32 %v4223, 7
        %v4225 = vsub.s32 %v4222, %v4224
        %v4226 = vrot.slane %v4218, %v4225
        %v4228 = vunpack.c.l.s4 1983009808
        %v4229 = vunpack.c.0.s8 %v4228
        %v4230 = vlaneseq
        %v4231 = vshrl.u32 %v4230, 7
        %v4232 = vsub.s32 %v4229, %v4231
        %v4233 = vrot.slane %v4219, %v4232
        %v4234 = vcombine.low %v3773, %v3785
        %v4235 = vcombine.high %v3773, %v3785
        %v4237 = vunpack.c.l.s4 1983009808
        %v4238 = vunpack.c.0.s8 %v4237
        %v4239 = vlaneseq
        %v4240 = vshrl.u32 %v4239, 7
        %v4241 = vsub.s32 %v4238, %v4240
        %v4242 = vrot.slane %v4234, %v4241
        %v4244 = vunpack.c.l.s4 1983009808
        %v4245 = vunpack.c.0.s8 %v4244
        %v4246 = vlaneseq
        %v4247 = vshrl.u32 %v4246, 7
        %v4248 = vsub.s32 %v4245, %v4247
        %v4249 = vrot.slane %v4235, %v4248
        %v4250 = vcombine.low %v3779, %v3791
        %v4251 = vcombine.high %v3779, %v3791
        %v4253 = vunpack.c.l.s4 1983009808
        %v4254 = vunpack.c.0.s8 %v4253
        %v4255 = vlaneseq
        %v4256 = vshrl.u32 %v4255, 7
        %v4257 = vsub.s32 %v4254, %v4256
        %v4258 = vrot.slane %v4250, %v4257
        %v4260 = vunpack.c.l.s4 1983009808
        %v4261 = vunpack.c.0.s8 %v4260
        %v4262 = vlaneseq
        %v4263 = vshrl.u32 %v4262, 7
        %v4264 = vsub.s32 %v4261, %v4263
        %v4265 = vrot.slane %v4251, %v4264
        %v4266 = vcombine.low %v4210, %v4226
        %v4267 = vcombine.high %v4210, %v4226
        %v4269 = vunpack.c.l.s4 1934713408
        %v4270 = vunpack.c.0.s8 %v4269
        %v4271 = vlaneseq
        %v4272 = vshrl.u32 %v4271, 7
        %v4273 = vsub.s32 %v4270, %v4272
        %v4274 = vrot.slane %v4266, %v4273
        %v4276 = vunpack.c.l.s4 1934713408
        %v4277 = vunpack.c.0.s8 %v4276
        %v4278 = vlaneseq
        %v4279 = vshrl.u32 %v4278, 7
        %v4280 = vsub.s32 %v4277, %v4279
        %v4281 = vrot.slane %v4267, %v4280
        %v4282 = vcombine.low %v4217, %v4233
        %v4283 = vcombine.high %v4217, %v4233
        %v4285 = vunpack.c.l.s4 1934713408
        %v4286 = vunpack.c.0.s8 %v4285
        %v4287 = vlaneseq
        %v4288 = vshrl.u32 %v4287, 7
        %v4289 = vsub.s32 %v4286, %v4288
        %v4290 = vrot.slane %v4282, %v4289
        %v4292 = vunpack.c.l.s4 1934713408
        %v4293 = vunpack.c.0.s8 %v4292
        %v4294 = vlaneseq
        %v4295 = vshrl.u32 %v4294, 7
        %v4296 = vsub.s32 %v4293, %v4295
        %v4297 = vrot.slane %v4283, %v4296
        %v4298 = vcombine.low %v4242, %v4258
        %v4299 = vcombine.high %v4242, %v4258
        %v4301 = vunpack.c.l.s4 1934713408
        %v4302 = vunpack.c.0.s8 %v4301
        %v4303 = vlaneseq
        %v4304 = vshrl.u32 %v4303, 7
        %v4305 = vsub.s32 %v4302, %v4304
        %v4306 = vrot.slane %v4298, %v4305
        %v4308 = vunpack.c.l.s4 1934713408
        %v4309 = vunpack.c.0.s8 %v4308
        %v4310 = vlaneseq
        %v4311 = vshrl.u32 %v4310, 7
        %v4312 = vsub.s32 %v4309, %v4311
        %v4313 = vrot.slane %v4299, %v4312
        %v4314 = vcombine.low %v4249, %v4265
        %v4315 = vcombine.high %v4249, %v4265
        %v4317 = vunpack.c.l.s4 1934713408
        %v4318 = vunpack.c.0.s8 %v4317
        %v4319 = vlaneseq
        %v4320 = vshrl.u32 %v4319, 7
        %v4321 = vsub.s32 %v4318, %v4320
        %v4322 = vrot.slane %v4314, %v4321
        %v4324 = vunpack.c.l.s4 1934713408
        %v4325 = vunpack.c.0.s8 %v4324
        %v4326 = vlaneseq
        %v4327 = vshrl.u32 %v4326, 7
        %v4328 = vsub.s32 %v4325, %v4327
        %v4329 = vrot.slane %v4315, %v4328
        %v4330 = vcombine.low %v4274, %v4306
        %v4331 = vcombine.high %v4274, %v4306
        %v4332 = vcombine.low %v4281, %v4313
        %v4333 = vcombine.high %v4281, %v4313
        %v4334 = vcombine.low %v4290, %v4322
        %v4335 = vcombine.high %v4290, %v4322
        %v4336 = vcombine.low %v4297, %v4329
        %v4337 = vcombine.high %v4297, %v4329
        %v4339 = vsel %vm1699, %v2902, 0
        %4341 = vmatprep.subr.mxu0 0.0
        %4342 = vmatpush1.msra.mxu0 0.0
        %4343 = vmatprep.subr.mxu0 0.0
        %4344 = vmatpush1.msra.mxu0 0.0
        %4345 = vmatprep.subr.mxu0 0.0
        %4346 = vmatpush1.msra.mxu0 0.0
        %4347 = vmatprep.subr.mxu0 0.0
        %4348 = vmatpush1.msra.mxu0 0.0
        %4349 = vmatprep.subr.mxu0 0.0
        %4350 = vmatpush1.msra.mxu0 0.0
        %4351 = vmatprep.subr.mxu0 0.0
        %4352 = vmatpush1.msra.mxu0 0.0
        %4353 = vmatprep.subr.mxu0 0.0
        %4354 = vmatpush1.msra.mxu0 0.0
        %4355 = vmatprep.subr.mxu0 0.0
        %4356 = vmatpush1.msra.mxu0 0.0
        %4357 = vmatprep.subr.mxu0 0.0
        %4358 = vmatpush1.msra.mxu0 0.0
        %4359 = vmatprep.subr.mxu0 0.0
        %4360 = vmatpush1.msra.mxu0 0.0
        %4361 = vmatprep.subr.mxu0 0.0
        %4362 = vmatpush1.msra.mxu0 0.0
        %4363 = vmatprep.subr.mxu0 0.0
        %4364 = vmatpush1.msra.mxu0 0.0
        %4365 = vmatprep.subr.mxu0 0.0
        %4366 = vmatpush1.msra.mxu0 0.0
        %4367 = vmatprep.subr.mxu0 0.0
        %4368 = vmatpush1.msra.mxu0 0.0
        %4369 = vmatprep.subr.mxu0 0.0
        %4370 = vmatpush1.msra.mxu0 %v4058
        %4371 = vmatprep.subr.mxu0 0.0
        %4372 = vmatpush1.msra.mxu0 %v3922
        %4373 = vmatprep.subr.mxu0 0.0
        %4374 = vmatpush2.msra.mxu0 0.0
        %4375 = vmatprep.subr.mxu0 0.0
        %4376 = vmatpush2.msra.mxu0 0.0
        %4377 = vmatprep.subr.mxu0 0.0
        %4378 = vmatpush2.msra.mxu0 0.0
        %4379 = vmatprep.subr.mxu0 0.0
        %4380 = vmatpush2.msra.mxu0 0.0
        %4381 = vmatprep.subr.mxu0 0.0
        %4382 = vmatpush2.msra.mxu0 0.0
        %4383 = vmatprep.subr.mxu0 0.0
        %4384 = vmatpush2.msra.mxu0 0.0
        %4385 = vmatprep.subr.mxu0 0.0
        %4386 = vmatpush2.msra.mxu0 0.0
        %4387 = vmatprep.subr.mxu0 0.0
        %4388 = vmatpush2.msra.mxu0 0.0
        %4389 = vmatprep.subr.mxu0 0.0
        %4390 = vmatpush2.msra.mxu0 0.0
        %4391 = vmatprep.subr.mxu0 0.0
        %4392 = vmatpush2.msra.mxu0 0.0
        %4393 = vmatprep.subr.mxu0 0.0
        %4394 = vmatpush2.msra.mxu0 0.0
        %4395 = vmatprep.subr.mxu0 0.0
        %4396 = vmatpush2.msra.mxu0 0.0
        %4397 = vmatprep.subr.mxu0 0.0
        %4398 = vmatpush2.msra.mxu0 0.0
        %4399 = vmatprep.subr.mxu0 0.0
        %4400 = vmatpush2.msra.mxu0 0.0
        %4401 = vmatprep.subr.mxu0 0.0
        %4402 = vmatpush2.msra.mxu0 0.0
        %4403 = vmatprep.subr.mxu0 0.0
        %4404 = vmatpush2.msra.mxu0 0.0
        %4405 = vmatprep.mubr.f32.mxu0 0.0
        %4406 = vmatmul.mubr.f32.gmra.mxu0 %v4339
        %v4407 = vpop.f32.mrf.mxu0
        %v4408 = vadd.f32 0.0, %v4407
        %v4409 = vpop.f32.mrf.mxu0
        %4410 = vdwg.mxu0
        %v4412 = vsel %vm1699, %v2903, 0
        %4414 = vmatprep.subr.mxu0 0.0
        %4415 = vmatpush1.msra.mxu0 0.0
        %4416 = vmatprep.subr.mxu0 0.0
        %4417 = vmatpush1.msra.mxu0 0.0
        %4418 = vmatprep.subr.mxu0 0.0
        %4419 = vmatpush1.msra.mxu0 0.0
        %4420 = vmatprep.subr.mxu0 0.0
        %4421 = vmatpush1.msra.mxu0 0.0
        %4422 = vmatprep.subr.mxu0 0.0
        %4423 = vmatpush1.msra.mxu0 0.0
        %4424 = vmatprep.subr.mxu0 0.0
        %4425 = vmatpush1.msra.mxu0 0.0
        %4426 = vmatprep.subr.mxu0 0.0
        %4427 = vmatpush1.msra.mxu0 0.0
        %4428 = vmatprep.subr.mxu0 0.0
        %4429 = vmatpush1.msra.mxu0 0.0
        %4430 = vmatprep.subr.mxu0 0.0
        %4431 = vmatpush1.msra.mxu0 0.0
        %4432 = vmatprep.subr.mxu0 0.0
        %4433 = vmatpush1.msra.mxu0 0.0
        %4434 = vmatprep.subr.mxu0 0.0
        %4435 = vmatpush1.msra.mxu0 0.0
        %4436 = vmatprep.subr.mxu0 0.0
        %4437 = vmatpush1.msra.mxu0 0.0
        %4438 = vmatprep.subr.mxu0 0.0
        %4439 = vmatpush1.msra.mxu0 0.0
        %4440 = vmatprep.subr.mxu0 0.0
        %4441 = vmatpush1.msra.mxu0 0.0
        %4442 = vmatprep.subr.mxu0 0.0
        %4443 = vmatpush1.msra.mxu0 %v4059
        %4444 = vmatprep.subr.mxu0 0.0
        %4445 = vmatpush1.msra.mxu0 %v3923
        %4446 = vmatprep.subr.mxu0 0.0
        %4447 = vmatpush2.msra.mxu0 0.0
        %4448 = vmatprep.subr.mxu0 0.0
        %4449 = vmatpush2.msra.mxu0 0.0
        %4450 = vmatprep.subr.mxu0 0.0
        %4451 = vmatpush2.msra.mxu0 0.0
        %4452 = vmatprep.subr.mxu0 0.0
        %4453 = vmatpush2.msra.mxu0 0.0
        %4454 = vmatprep.subr.mxu0 0.0
        %4455 = vmatpush2.msra.mxu0 0.0
        %4456 = vmatprep.subr.mxu0 0.0
        %4457 = vmatpush2.msra.mxu0 0.0
        %4458 = vmatprep.subr.mxu0 0.0
        %4459 = vmatpush2.msra.mxu0 0.0
        %4460 = vmatprep.subr.mxu0 0.0
        %4461 = vmatpush2.msra.mxu0 0.0
        %4462 = vmatprep.subr.mxu0 0.0
        %4463 = vmatpush2.msra.mxu0 0.0
        %4464 = vmatprep.subr.mxu0 0.0
        %4465 = vmatpush2.msra.mxu0 0.0
        %4466 = vmatprep.subr.mxu0 0.0
        %4467 = vmatpush2.msra.mxu0 0.0
        %4468 = vmatprep.subr.mxu0 0.0
        %4469 = vmatpush2.msra.mxu0 0.0
        %4470 = vmatprep.subr.mxu0 0.0
        %4471 = vmatpush2.msra.mxu0 0.0
        %4472 = vmatprep.subr.mxu0 0.0
        %4473 = vmatpush2.msra.mxu0 0.0
        %4474 = vmatprep.subr.mxu0 0.0
        %4475 = vmatpush2.msra.mxu0 0.0
        %4476 = vmatprep.subr.mxu0 0.0
        %4477 = vmatpush2.msra.mxu0 0.0
        %4478 = vmatprep.mubr.f32.mxu0 0.0
        %4479 = vmatmul.mubr.f32.gmra.mxu0 %v4412
        %v4480 = vpop.f32.mrf.mxu0
        %v4481 = vadd.f32 0.0, %v4480
        %v4482 = vpop.f32.mrf.mxu0
        %4483 = vdwg.mxu0
        %v4485 = vsel %vm1699, %v2904, 0
        %4487 = vmatprep.subr.mxu0 0.0
        %4488 = vmatpush1.msra.mxu0 0.0
        %4489 = vmatprep.subr.mxu0 0.0
        %4490 = vmatpush1.msra.mxu0 0.0
        %4491 = vmatprep.subr.mxu0 0.0
        %4492 = vmatpush1.msra.mxu0 0.0
        %4493 = vmatprep.subr.mxu0 0.0
        %4494 = vmatpush1.msra.mxu0 0.0
        %4495 = vmatprep.subr.mxu0 0.0
        %4496 = vmatpush1.msra.mxu0 0.0
        %4497 = vmatprep.subr.mxu0 0.0
        %4498 = vmatpush1.msra.mxu0 0.0
        %4499 = vmatprep.subr.mxu0 0.0
        %4500 = vmatpush1.msra.mxu0 0.0
        %4501 = vmatprep.subr.mxu0 0.0
        %4502 = vmatpush1.msra.mxu0 0.0
        %4503 = vmatprep.subr.mxu0 0.0
        %4504 = vmatpush1.msra.mxu0 0.0
        %4505 = vmatprep.subr.mxu0 0.0
        %4506 = vmatpush1.msra.mxu0 0.0
        %4507 = vmatprep.subr.mxu0 0.0
        %4508 = vmatpush1.msra.mxu0 0.0
        %4509 = vmatprep.subr.mxu0 0.0
        %4510 = vmatpush1.msra.mxu0 0.0
        %4511 = vmatprep.subr.mxu0 0.0
        %4512 = vmatpush1.msra.mxu0 0.0
        %4513 = vmatprep.subr.mxu0 0.0
        %4514 = vmatpush1.msra.mxu0 0.0
        %4515 = vmatprep.subr.mxu0 0.0
        %4516 = vmatpush1.msra.mxu0 %v4060
        %4517 = vmatprep.subr.mxu0 0.0
        %4518 = vmatpush1.msra.mxu0 %v3924
        %4519 = vmatprep.subr.mxu0 0.0
        %4520 = vmatpush2.msra.mxu0 0.0
        %4521 = vmatprep.subr.mxu0 0.0
        %4522 = vmatpush2.msra.mxu0 0.0
        %4523 = vmatprep.subr.mxu0 0.0
        %4524 = vmatpush2.msra.mxu0 0.0
        %4525 = vmatprep.subr.mxu0 0.0
        %4526 = vmatpush2.msra.mxu0 0.0
        %4527 = vmatprep.subr.mxu0 0.0
        %4528 = vmatpush2.msra.mxu0 0.0
        %4529 = vmatprep.subr.mxu0 0.0
        %4530 = vmatpush2.msra.mxu0 0.0
        %4531 = vmatprep.subr.mxu0 0.0
        %4532 = vmatpush2.msra.mxu0 0.0
        %4533 = vmatprep.subr.mxu0 0.0
        %4534 = vmatpush2.msra.mxu0 0.0
        %4535 = vmatprep.subr.mxu0 0.0
        %4536 = vmatpush2.msra.mxu0 0.0
        %4537 = vmatprep.subr.mxu0 0.0
        %4538 = vmatpush2.msra.mxu0 0.0
        %4539 = vmatprep.subr.mxu0 0.0
        %4540 = vmatpush2.msra.mxu0 0.0
        %4541 = vmatprep.subr.mxu0 0.0
        %4542 = vmatpush2.msra.mxu0 0.0
        %4543 = vmatprep.subr.mxu0 0.0
        %4544 = vmatpush2.msra.mxu0 0.0
        %4545 = vmatprep.subr.mxu0 0.0
        %4546 = vmatpush2.msra.mxu0 0.0
        %4547 = vmatprep.subr.mxu0 0.0
        %4548 = vmatpush2.msra.mxu0 0.0
        %4549 = vmatprep.subr.mxu0 0.0
        %4550 = vmatpush2.msra.mxu0 0.0
        %4551 = vmatprep.mubr.f32.mxu0 0.0
        %4552 = vmatmul.mubr.f32.gmra.mxu0 %v4485
        %v4553 = vpop.f32.mrf.mxu0
        %v4554 = vadd.f32 0.0, %v4553
        %v4555 = vpop.f32.mrf.mxu0
        %4556 = vdwg.mxu0
        %v4558 = vsel %vm1699, %v2905, 0
        %4560 = vmatprep.subr.mxu0 0.0
        %4561 = vmatpush1.msra.mxu0 0.0
        %4562 = vmatprep.subr.mxu0 0.0
        %4563 = vmatpush1.msra.mxu0 0.0
        %4564 = vmatprep.subr.mxu0 0.0
        %4565 = vmatpush1.msra.mxu0 0.0
        %4566 = vmatprep.subr.mxu0 0.0
        %4567 = vmatpush1.msra.mxu0 0.0
        %4568 = vmatprep.subr.mxu0 0.0
        %4569 = vmatpush1.msra.mxu0 0.0
        %4570 = vmatprep.subr.mxu0 0.0
        %4571 = vmatpush1.msra.mxu0 0.0
        %4572 = vmatprep.subr.mxu0 0.0
        %4573 = vmatpush1.msra.mxu0 0.0
        %4574 = vmatprep.subr.mxu0 0.0
        %4575 = vmatpush1.msra.mxu0 0.0
        %4576 = vmatprep.subr.mxu0 0.0
        %4577 = vmatpush1.msra.mxu0 0.0
        %4578 = vmatprep.subr.mxu0 0.0
        %4579 = vmatpush1.msra.mxu0 0.0
        %4580 = vmatprep.subr.mxu0 0.0
        %4581 = vmatpush1.msra.mxu0 0.0
        %4582 = vmatprep.subr.mxu0 0.0
        %4583 = vmatpush1.msra.mxu0 0.0
        %4584 = vmatprep.subr.mxu0 0.0
        %4585 = vmatpush1.msra.mxu0 0.0
        %4586 = vmatprep.subr.mxu0 0.0
        %4587 = vmatpush1.msra.mxu0 0.0
        %4588 = vmatprep.subr.mxu0 0.0
        %4589 = vmatpush1.msra.mxu0 %v4061
        %4590 = vmatprep.subr.mxu0 0.0
        %4591 = vmatpush1.msra.mxu0 %v3925
        %4592 = vmatprep.subr.mxu0 0.0
        %4593 = vmatpush2.msra.mxu0 0.0
        %4594 = vmatprep.subr.mxu0 0.0
        %4595 = vmatpush2.msra.mxu0 0.0
        %4596 = vmatprep.subr.mxu0 0.0
        %4597 = vmatpush2.msra.mxu0 0.0
        %4598 = vmatprep.subr.mxu0 0.0
        %4599 = vmatpush2.msra.mxu0 0.0
        %4600 = vmatprep.subr.mxu0 0.0
        %4601 = vmatpush2.msra.mxu0 0.0
        %4602 = vmatprep.subr.mxu0 0.0
        %4603 = vmatpush2.msra.mxu0 0.0
        %4604 = vmatprep.subr.mxu0 0.0
        %4605 = vmatpush2.msra.mxu0 0.0
        %4606 = vmatprep.subr.mxu0 0.0
        %4607 = vmatpush2.msra.mxu0 0.0
        %4608 = vmatprep.subr.mxu0 0.0
        %4609 = vmatpush2.msra.mxu0 0.0
        %4610 = vmatprep.subr.mxu0 0.0
        %4611 = vmatpush2.msra.mxu0 0.0
        %4612 = vmatprep.subr.mxu0 0.0
        %4613 = vmatpush2.msra.mxu0 0.0
        %4614 = vmatprep.subr.mxu0 0.0
        %4615 = vmatpush2.msra.mxu0 0.0
        %4616 = vmatprep.subr.mxu0 0.0
        %4617 = vmatpush2.msra.mxu0 0.0
        %4618 = vmatprep.subr.mxu0 0.0
        %4619 = vmatpush2.msra.mxu0 0.0
        %4620 = vmatprep.subr.mxu0 0.0
        %4621 = vmatpush2.msra.mxu0 0.0
        %4622 = vmatprep.subr.mxu0 0.0
        %4623 = vmatpush2.msra.mxu0 0.0
        %4624 = vmatprep.mubr.f32.mxu0 0.0
        %4625 = vmatmul.mubr.f32.gmra.mxu0 %v4558
        %v4626 = vpop.f32.mrf.mxu0
        %v4627 = vadd.f32 0.0, %v4626
        %v4628 = vpop.f32.mrf.mxu0
        %4629 = vdwg.mxu0
        %v4631 = vsel %vm1699, %v2906, 0
        %4633 = vmatprep.subr.mxu0 0.0
        %4634 = vmatpush1.msra.mxu0 0.0
        %4635 = vmatprep.subr.mxu0 0.0
        %4636 = vmatpush1.msra.mxu0 0.0
        %4637 = vmatprep.subr.mxu0 0.0
        %4638 = vmatpush1.msra.mxu0 0.0
        %4639 = vmatprep.subr.mxu0 0.0
        %4640 = vmatpush1.msra.mxu0 0.0
        %4641 = vmatprep.subr.mxu0 0.0
        %4642 = vmatpush1.msra.mxu0 0.0
        %4643 = vmatprep.subr.mxu0 0.0
        %4644 = vmatpush1.msra.mxu0 0.0
        %4645 = vmatprep.subr.mxu0 0.0
        %4646 = vmatpush1.msra.mxu0 0.0
        %4647 = vmatprep.subr.mxu0 0.0
        %4648 = vmatpush1.msra.mxu0 0.0
        %4649 = vmatprep.subr.mxu0 0.0
        %4650 = vmatpush1.msra.mxu0 0.0
        %4651 = vmatprep.subr.mxu0 0.0
        %4652 = vmatpush1.msra.mxu0 0.0
        %4653 = vmatprep.subr.mxu0 0.0
        %4654 = vmatpush1.msra.mxu0 0.0
        %4655 = vmatprep.subr.mxu0 0.0
        %4656 = vmatpush1.msra.mxu0 0.0
        %4657 = vmatprep.subr.mxu0 0.0
        %4658 = vmatpush1.msra.mxu0 0.0
        %4659 = vmatprep.subr.mxu0 0.0
        %4660 = vmatpush1.msra.mxu0 0.0
        %4661 = vmatprep.subr.mxu0 0.0
        %4662 = vmatpush1.msra.mxu0 %v4062
        %4663 = vmatprep.subr.mxu0 0.0
        %4664 = vmatpush1.msra.mxu0 %v3926
        %4665 = vmatprep.subr.mxu0 0.0
        %4666 = vmatpush2.msra.mxu0 0.0
        %4667 = vmatprep.subr.mxu0 0.0
        %4668 = vmatpush2.msra.mxu0 0.0
        %4669 = vmatprep.subr.mxu0 0.0
        %4670 = vmatpush2.msra.mxu0 0.0
        %4671 = vmatprep.subr.mxu0 0.0
        %4672 = vmatpush2.msra.mxu0 0.0
        %4673 = vmatprep.subr.mxu0 0.0
        %4674 = vmatpush2.msra.mxu0 0.0
        %4675 = vmatprep.subr.mxu0 0.0
        %4676 = vmatpush2.msra.mxu0 0.0
        %4677 = vmatprep.subr.mxu0 0.0
        %4678 = vmatpush2.msra.mxu0 0.0
        %4679 = vmatprep.subr.mxu0 0.0
        %4680 = vmatpush2.msra.mxu0 0.0
        %4681 = vmatprep.subr.mxu0 0.0
        %4682 = vmatpush2.msra.mxu0 0.0
        %4683 = vmatprep.subr.mxu0 0.0
        %4684 = vmatpush2.msra.mxu0 0.0
        %4685 = vmatprep.subr.mxu0 0.0
        %4686 = vmatpush2.msra.mxu0 0.0
        %4687 = vmatprep.subr.mxu0 0.0
        %4688 = vmatpush2.msra.mxu0 0.0
        %4689 = vmatprep.subr.mxu0 0.0
        %4690 = vmatpush2.msra.mxu0 0.0
        %4691 = vmatprep.subr.mxu0 0.0
        %4692 = vmatpush2.msra.mxu0 0.0
        %4693 = vmatprep.subr.mxu0 0.0
        %4694 = vmatpush2.msra.mxu0 0.0
        %4695 = vmatprep.subr.mxu0 0.0
        %4696 = vmatpush2.msra.mxu0 0.0
        %4697 = vmatprep.mubr.f32.mxu0 0.0
        %4698 = vmatmul.mubr.f32.gmra.mxu0 %v4631
        %v4699 = vpop.f32.mrf.mxu0
        %v4700 = vadd.f32 0.0, %v4699
        %v4701 = vpop.f32.mrf.mxu0
        %4702 = vdwg.mxu0
        %v4704 = vsel %vm1699, %v2907, 0
        %4706 = vmatprep.subr.mxu0 0.0
        %4707 = vmatpush1.msra.mxu0 0.0
        %4708 = vmatprep.subr.mxu0 0.0
        %4709 = vmatpush1.msra.mxu0 0.0
        %4710 = vmatprep.subr.mxu0 0.0
        %4711 = vmatpush1.msra.mxu0 0.0
        %4712 = vmatprep.subr.mxu0 0.0
        %4713 = vmatpush1.msra.mxu0 0.0
        %4714 = vmatprep.subr.mxu0 0.0
        %4715 = vmatpush1.msra.mxu0 0.0
        %4716 = vmatprep.subr.mxu0 0.0
        %4717 = vmatpush1.msra.mxu0 0.0
        %4718 = vmatprep.subr.mxu0 0.0
        %4719 = vmatpush1.msra.mxu0 0.0
        %4720 = vmatprep.subr.mxu0 0.0
        %4721 = vmatpush1.msra.mxu0 0.0
        %4722 = vmatprep.subr.mxu0 0.0
        %4723 = vmatpush1.msra.mxu0 0.0
        %4724 = vmatprep.subr.mxu0 0.0
        %4725 = vmatpush1.msra.mxu0 0.0
        %4726 = vmatprep.subr.mxu0 0.0
        %4727 = vmatpush1.msra.mxu0 0.0
        %4728 = vmatprep.subr.mxu0 0.0
        %4729 = vmatpush1.msra.mxu0 0.0
        %4730 = vmatprep.subr.mxu0 0.0
        %4731 = vmatpush1.msra.mxu0 0.0
        %4732 = vmatprep.subr.mxu0 0.0
        %4733 = vmatpush1.msra.mxu0 0.0
        %4734 = vmatprep.subr.mxu0 0.0
        %4735 = vmatpush1.msra.mxu0 %v4063
        %4736 = vmatprep.subr.mxu0 0.0
        %4737 = vmatpush1.msra.mxu0 %v3927
        %4738 = vmatprep.subr.mxu0 0.0
        %4739 = vmatpush2.msra.mxu0 0.0
        %4740 = vmatprep.subr.mxu0 0.0
        %4741 = vmatpush2.msra.mxu0 0.0
        %4742 = vmatprep.subr.mxu0 0.0
        %4743 = vmatpush2.msra.mxu0 0.0
        %4744 = vmatprep.subr.mxu0 0.0
        %4745 = vmatpush2.msra.mxu0 0.0
        %4746 = vmatprep.subr.mxu0 0.0
        %4747 = vmatpush2.msra.mxu0 0.0
        %4748 = vmatprep.subr.mxu0 0.0
        %4749 = vmatpush2.msra.mxu0 0.0
        %4750 = vmatprep.subr.mxu0 0.0
        %4751 = vmatpush2.msra.mxu0 0.0
        %4752 = vmatprep.subr.mxu0 0.0
        %4753 = vmatpush2.msra.mxu0 0.0
        %4754 = vmatprep.subr.mxu0 0.0
        %4755 = vmatpush2.msra.mxu0 0.0
        %4756 = vmatprep.subr.mxu0 0.0
        %4757 = vmatpush2.msra.mxu0 0.0
        %4758 = vmatprep.subr.mxu0 0.0
        %4759 = vmatpush2.msra.mxu0 0.0
        %4760 = vmatprep.subr.mxu0 0.0
        %4761 = vmatpush2.msra.mxu0 0.0
        %4762 = vmatprep.subr.mxu0 0.0
        %4763 = vmatpush2.msra.mxu0 0.0
        %4764 = vmatprep.subr.mxu0 0.0
        %4765 = vmatpush2.msra.mxu0 0.0
        %4766 = vmatprep.subr.mxu0 0.0
        %4767 = vmatpush2.msra.mxu0 0.0
        %4768 = vmatprep.subr.mxu0 0.0
        %4769 = vmatpush2.msra.mxu0 0.0
        %4770 = vmatprep.mubr.f32.mxu0 0.0
        %4771 = vmatmul.mubr.f32.gmra.mxu0 %v4704
        %v4772 = vpop.f32.mrf.mxu0
        %v4773 = vadd.f32 0.0, %v4772
        %v4774 = vpop.f32.mrf.mxu0
        %4775 = vdwg.mxu0
        %v4777 = vsel %vm1699, %v2908, 0
        %4779 = vmatprep.subr.mxu0 0.0
        %4780 = vmatpush1.msra.mxu0 0.0
        %4781 = vmatprep.subr.mxu0 0.0
        %4782 = vmatpush1.msra.mxu0 0.0
        %4783 = vmatprep.subr.mxu0 0.0
        %4784 = vmatpush1.msra.mxu0 0.0
        %4785 = vmatprep.subr.mxu0 0.0
        %4786 = vmatpush1.msra.mxu0 0.0
        %4787 = vmatprep.subr.mxu0 0.0
        %4788 = vmatpush1.msra.mxu0 0.0
        %4789 = vmatprep.subr.mxu0 0.0
        %4790 = vmatpush1.msra.mxu0 0.0
        %4791 = vmatprep.subr.mxu0 0.0
        %4792 = vmatpush1.msra.mxu0 0.0
        %4793 = vmatprep.subr.mxu0 0.0
        %4794 = vmatpush1.msra.mxu0 0.0
        %4795 = vmatprep.subr.mxu0 0.0
        %4796 = vmatpush1.msra.mxu0 0.0
        %4797 = vmatprep.subr.mxu0 0.0
        %4798 = vmatpush1.msra.mxu0 0.0
        %4799 = vmatprep.subr.mxu0 0.0
        %4800 = vmatpush1.msra.mxu0 0.0
        %4801 = vmatprep.subr.mxu0 0.0
        %4802 = vmatpush1.msra.mxu0 0.0
        %4803 = vmatprep.subr.mxu0 0.0
        %4804 = vmatpush1.msra.mxu0 0.0
        %4805 = vmatprep.subr.mxu0 0.0
        %4806 = vmatpush1.msra.mxu0 0.0
        %4807 = vmatprep.subr.mxu0 0.0
        %4808 = vmatpush1.msra.mxu0 %v4064
        %4809 = vmatprep.subr.mxu0 0.0
        %4810 = vmatpush1.msra.mxu0 %v3928
        %4811 = vmatprep.subr.mxu0 0.0
        %4812 = vmatpush2.msra.mxu0 0.0
        %4813 = vmatprep.subr.mxu0 0.0
        %4814 = vmatpush2.msra.mxu0 0.0
        %4815 = vmatprep.subr.mxu0 0.0
        %4816 = vmatpush2.msra.mxu0 0.0
        %4817 = vmatprep.subr.mxu0 0.0
        %4818 = vmatpush2.msra.mxu0 0.0
        %4819 = vmatprep.subr.mxu0 0.0
        %4820 = vmatpush2.msra.mxu0 0.0
        %4821 = vmatprep.subr.mxu0 0.0
        %4822 = vmatpush2.msra.mxu0 0.0
        %4823 = vmatprep.subr.mxu0 0.0
        %4824 = vmatpush2.msra.mxu0 0.0
        %4825 = vmatprep.subr.mxu0 0.0
        %4826 = vmatpush2.msra.mxu0 0.0
        %4827 = vmatprep.subr.mxu0 0.0
        %4828 = vmatpush2.msra.mxu0 0.0
        %4829 = vmatprep.subr.mxu0 0.0
        %4830 = vmatpush2.msra.mxu0 0.0
        %4831 = vmatprep.subr.mxu0 0.0
        %4832 = vmatpush2.msra.mxu0 0.0
        %4833 = vmatprep.subr.mxu0 0.0
        %4834 = vmatpush2.msra.mxu0 0.0
        %4835 = vmatprep.subr.mxu0 0.0
        %4836 = vmatpush2.msra.mxu0 0.0
        %4837 = vmatprep.subr.mxu0 0.0
        %4838 = vmatpush2.msra.mxu0 0.0
        %4839 = vmatprep.subr.mxu0 0.0
        %4840 = vmatpush2.msra.mxu0 0.0
        %4841 = vmatprep.subr.mxu0 0.0
        %4842 = vmatpush2.msra.mxu0 0.0
        %4843 = vmatprep.mubr.f32.mxu0 0.0
        %4844 = vmatmul.mubr.f32.gmra.mxu0 %v4777
        %v4845 = vpop.f32.mrf.mxu0
        %v4846 = vadd.f32 0.0, %v4845
        %v4847 = vpop.f32.mrf.mxu0
        %4848 = vdwg.mxu0
        %v4850 = vsel %vm1699, %v2909, 0
        %4852 = vmatprep.subr.mxu0 0.0
        %4853 = vmatpush1.msra.mxu0 0.0
        %4854 = vmatprep.subr.mxu0 0.0
        %4855 = vmatpush1.msra.mxu0 0.0
        %4856 = vmatprep.subr.mxu0 0.0
        %4857 = vmatpush1.msra.mxu0 0.0
        %4858 = vmatprep.subr.mxu0 0.0
        %4859 = vmatpush1.msra.mxu0 0.0
        %4860 = vmatprep.subr.mxu0 0.0
        %4861 = vmatpush1.msra.mxu0 0.0
        %4862 = vmatprep.subr.mxu0 0.0
        %4863 = vmatpush1.msra.mxu0 0.0
        %4864 = vmatprep.subr.mxu0 0.0
        %4865 = vmatpush1.msra.mxu0 0.0
        %4866 = vmatprep.subr.mxu0 0.0
        %4867 = vmatpush1.msra.mxu0 0.0
        %4868 = vmatprep.subr.mxu0 0.0
        %4869 = vmatpush1.msra.mxu0 0.0
        %4870 = vmatprep.subr.mxu0 0.0
        %4871 = vmatpush1.msra.mxu0 0.0
        %4872 = vmatprep.subr.mxu0 0.0
        %4873 = vmatpush1.msra.mxu0 0.0
        %4874 = vmatprep.subr.mxu0 0.0
        %4875 = vmatpush1.msra.mxu0 0.0
        %4876 = vmatprep.subr.mxu0 0.0
        %4877 = vmatpush1.msra.mxu0 0.0
        %4878 = vmatprep.subr.mxu0 0.0
        %4879 = vmatpush1.msra.mxu0 0.0
        %4880 = vmatprep.subr.mxu0 0.0
        %4881 = vmatpush1.msra.mxu0 %v4065
        %4882 = vmatprep.subr.mxu0 0.0
        %4883 = vmatpush1.msra.mxu0 %v3929
        %4884 = vmatprep.subr.mxu0 0.0
        %4885 = vmatpush2.msra.mxu0 0.0
        %4886 = vmatprep.subr.mxu0 0.0
        %4887 = vmatpush2.msra.mxu0 0.0
        %4888 = vmatprep.subr.mxu0 0.0
        %4889 = vmatpush2.msra.mxu0 0.0
        %4890 = vmatprep.subr.mxu0 0.0
        %4891 = vmatpush2.msra.mxu0 0.0
        %4892 = vmatprep.subr.mxu0 0.0
        %4893 = vmatpush2.msra.mxu0 0.0
        %4894 = vmatprep.subr.mxu0 0.0
        %4895 = vmatpush2.msra.mxu0 0.0
        %4896 = vmatprep.subr.mxu0 0.0
        %4897 = vmatpush2.msra.mxu0 0.0
        %4898 = vmatprep.subr.mxu0 0.0
        %4899 = vmatpush2.msra.mxu0 0.0
        %4900 = vmatprep.subr.mxu0 0.0
        %4901 = vmatpush2.msra.mxu0 0.0
        %4902 = vmatprep.subr.mxu0 0.0
        %4903 = vmatpush2.msra.mxu0 0.0
        %4904 = vmatprep.subr.mxu0 0.0
        %4905 = vmatpush2.msra.mxu0 0.0
        %4906 = vmatprep.subr.mxu0 0.0
        %4907 = vmatpush2.msra.mxu0 0.0
        %4908 = vmatprep.subr.mxu0 0.0
        %4909 = vmatpush2.msra.mxu0 0.0
        %4910 = vmatprep.subr.mxu0 0.0
        %4911 = vmatpush2.msra.mxu0 0.0
        %4912 = vmatprep.subr.mxu0 0.0
        %4913 = vmatpush2.msra.mxu0 0.0
        %4914 = vmatprep.subr.mxu0 0.0
        %4915 = vmatpush2.msra.mxu0 0.0
        %4916 = vmatprep.mubr.f32.mxu0 0.0
        %4917 = vmatmul.mubr.f32.gmra.mxu0 %v4850
        %v4918 = vpop.f32.mrf.mxu0
        %v4919 = vadd.f32 0.0, %v4918
        %v4920 = vpop.f32.mrf.mxu0
        %4921 = vdwg.mxu0
        %v4923 = vsel %vm1699, %v3038, 0
        %4925 = vmatprep.subr.mxu0 0.0
        %4926 = vmatpush1.msra.mxu0 0.0
        %4927 = vmatprep.subr.mxu0 0.0
        %4928 = vmatpush1.msra.mxu0 0.0
        %4929 = vmatprep.subr.mxu0 0.0
        %4930 = vmatpush1.msra.mxu0 0.0
        %4931 = vmatprep.subr.mxu0 0.0
        %4932 = vmatpush1.msra.mxu0 0.0
        %4933 = vmatprep.subr.mxu0 0.0
        %4934 = vmatpush1.msra.mxu0 0.0
        %4935 = vmatprep.subr.mxu0 0.0
        %4936 = vmatpush1.msra.mxu0 0.0
        %4937 = vmatprep.subr.mxu0 0.0
        %4938 = vmatpush1.msra.mxu0 0.0
        %4939 = vmatprep.subr.mxu0 0.0
        %4940 = vmatpush1.msra.mxu0 0.0
        %4941 = vmatprep.subr.mxu0 0.0
        %4942 = vmatpush1.msra.mxu0 0.0
        %4943 = vmatprep.subr.mxu0 0.0
        %4944 = vmatpush1.msra.mxu0 0.0
        %4945 = vmatprep.subr.mxu0 0.0
        %4946 = vmatpush1.msra.mxu0 0.0
        %4947 = vmatprep.subr.mxu0 0.0
        %4948 = vmatpush1.msra.mxu0 0.0
        %4949 = vmatprep.subr.mxu0 0.0
        %4950 = vmatpush1.msra.mxu0 0.0
        %4951 = vmatprep.subr.mxu0 0.0
        %4952 = vmatpush1.msra.mxu0 0.0
        %4953 = vmatprep.subr.mxu0 0.0
        %4954 = vmatpush1.msra.mxu0 %v4330
        %4955 = vmatprep.subr.mxu0 0.0
        %4956 = vmatpush1.msra.mxu0 %v4194
        %4957 = vmatprep.subr.mxu0 0.0
        %4958 = vmatpush2.msra.mxu0 0.0
        %4959 = vmatprep.subr.mxu0 0.0
        %4960 = vmatpush2.msra.mxu0 0.0
        %4961 = vmatprep.subr.mxu0 0.0
        %4962 = vmatpush2.msra.mxu0 0.0
        %4963 = vmatprep.subr.mxu0 0.0
        %4964 = vmatpush2.msra.mxu0 0.0
        %4965 = vmatprep.subr.mxu0 0.0
        %4966 = vmatpush2.msra.mxu0 0.0
        %4967 = vmatprep.subr.mxu0 0.0
        %4968 = vmatpush2.msra.mxu0 0.0
        %4969 = vmatprep.subr.mxu0 0.0
        %4970 = vmatpush2.msra.mxu0 0.0
        %4971 = vmatprep.subr.mxu0 0.0
        %4972 = vmatpush2.msra.mxu0 0.0
        %4973 = vmatprep.subr.mxu0 0.0
        %4974 = vmatpush2.msra.mxu0 0.0
        %4975 = vmatprep.subr.mxu0 0.0
        %4976 = vmatpush2.msra.mxu0 0.0
        %4977 = vmatprep.subr.mxu0 0.0
        %4978 = vmatpush2.msra.mxu0 0.0
        %4979 = vmatprep.subr.mxu0 0.0
        %4980 = vmatpush2.msra.mxu0 0.0
        %4981 = vmatprep.subr.mxu0 0.0
        %4982 = vmatpush2.msra.mxu0 0.0
        %4983 = vmatprep.subr.mxu0 0.0
        %4984 = vmatpush2.msra.mxu0 0.0
        %4985 = vmatprep.subr.mxu0 0.0
        %4986 = vmatpush2.msra.mxu0 0.0
        %4987 = vmatprep.subr.mxu0 0.0
        %4988 = vmatpush2.msra.mxu0 0.0
        %4989 = vmatprep.mubr.f32.mxu0 0.0
        %4990 = vmatmul.mubr.f32.gmra.mxu0 %v4923
        %v4991 = vpop.f32.mrf.mxu0
        %v4992 = vadd.f32 0.0, %v4991
        %v4993 = vpop.f32.mrf.mxu0
        %4994 = vdwg.mxu0
        %v4996 = vsel %vm1699, %v3039, 0
        %4998 = vmatprep.subr.mxu0 0.0
        %4999 = vmatpush1.msra.mxu0 0.0
        %5000 = vmatprep.subr.mxu0 0.0
        %5001 = vmatpush1.msra.mxu0 0.0
        %5002 = vmatprep.subr.mxu0 0.0
        %5003 = vmatpush1.msra.mxu0 0.0
        %5004 = vmatprep.subr.mxu0 0.0
        %5005 = vmatpush1.msra.mxu0 0.0
        %5006 = vmatprep.subr.mxu0 0.0
        %5007 = vmatpush1.msra.mxu0 0.0
        %5008 = vmatprep.subr.mxu0 0.0
        %5009 = vmatpush1.msra.mxu0 0.0
        %5010 = vmatprep.subr.mxu0 0.0
        %5011 = vmatpush1.msra.mxu0 0.0
        %5012 = vmatprep.subr.mxu0 0.0
        %5013 = vmatpush1.msra.mxu0 0.0
        %5014 = vmatprep.subr.mxu0 0.0
        %5015 = vmatpush1.msra.mxu0 0.0
        %5016 = vmatprep.subr.mxu0 0.0
        %5017 = vmatpush1.msra.mxu0 0.0
        %5018 = vmatprep.subr.mxu0 0.0
        %5019 = vmatpush1.msra.mxu0 0.0
        %5020 = vmatprep.subr.mxu0 0.0
        %5021 = vmatpush1.msra.mxu0 0.0
        %5022 = vmatprep.subr.mxu0 0.0
        %5023 = vmatpush1.msra.mxu0 0.0
        %5024 = vmatprep.subr.mxu0 0.0
        %5025 = vmatpush1.msra.mxu0 0.0
        %5026 = vmatprep.subr.mxu0 0.0
        %5027 = vmatpush1.msra.mxu0 %v4331
        %5028 = vmatprep.subr.mxu0 0.0
        %5029 = vmatpush1.msra.mxu0 %v4195
        %5030 = vmatprep.subr.mxu0 0.0
        %5031 = vmatpush2.msra.mxu0 0.0
        %5032 = vmatprep.subr.mxu0 0.0
        %5033 = vmatpush2.msra.mxu0 0.0
        %5034 = vmatprep.subr.mxu0 0.0
        %5035 = vmatpush2.msra.mxu0 0.0
        %5036 = vmatprep.subr.mxu0 0.0
        %5037 = vmatpush2.msra.mxu0 0.0
        %5038 = vmatprep.subr.mxu0 0.0
        %5039 = vmatpush2.msra.mxu0 0.0
        %5040 = vmatprep.subr.mxu0 0.0
        %5041 = vmatpush2.msra.mxu0 0.0
        %5042 = vmatprep.subr.mxu0 0.0
        %5043 = vmatpush2.msra.mxu0 0.0
        %5044 = vmatprep.subr.mxu0 0.0
        %5045 = vmatpush2.msra.mxu0 0.0
        %5046 = vmatprep.subr.mxu0 0.0
        %5047 = vmatpush2.msra.mxu0 0.0
        %5048 = vmatprep.subr.mxu0 0.0
        %5049 = vmatpush2.msra.mxu0 0.0
        %5050 = vmatprep.subr.mxu0 0.0
        %5051 = vmatpush2.msra.mxu0 0.0
        %5052 = vmatprep.subr.mxu0 0.0
        %5053 = vmatpush2.msra.mxu0 0.0
        %5054 = vmatprep.subr.mxu0 0.0
        %5055 = vmatpush2.msra.mxu0 0.0
        %5056 = vmatprep.subr.mxu0 0.0
        %5057 = vmatpush2.msra.mxu0 0.0
        %5058 = vmatprep.subr.mxu0 0.0
        %5059 = vmatpush2.msra.mxu0 0.0
        %5060 = vmatprep.subr.mxu0 0.0
        %5061 = vmatpush2.msra.mxu0 0.0
        %5062 = vmatprep.mubr.f32.mxu0 0.0
        %5063 = vmatmul.mubr.f32.gmra.mxu0 %v4996
        %v5064 = vpop.f32.mrf.mxu0
        %v5065 = vadd.f32 0.0, %v5064
        %v5066 = vpop.f32.mrf.mxu0
        %5067 = vdwg.mxu0
        %v5069 = vsel %vm1699, %v3040, 0
        %5071 = vmatprep.subr.mxu0 0.0
        %5072 = vmatpush1.msra.mxu0 0.0
        %5073 = vmatprep.subr.mxu0 0.0
        %5074 = vmatpush1.msra.mxu0 0.0
        %5075 = vmatprep.subr.mxu0 0.0
        %5076 = vmatpush1.msra.mxu0 0.0
        %5077 = vmatprep.subr.mxu0 0.0
        %5078 = vmatpush1.msra.mxu0 0.0
        %5079 = vmatprep.subr.mxu0 0.0
        %5080 = vmatpush1.msra.mxu0 0.0
        %5081 = vmatprep.subr.mxu0 0.0
        %5082 = vmatpush1.msra.mxu0 0.0
        %5083 = vmatprep.subr.mxu0 0.0
        %5084 = vmatpush1.msra.mxu0 0.0
        %5085 = vmatprep.subr.mxu0 0.0
        %5086 = vmatpush1.msra.mxu0 0.0
        %5087 = vmatprep.subr.mxu0 0.0
        %5088 = vmatpush1.msra.mxu0 0.0
        %5089 = vmatprep.subr.mxu0 0.0
        %5090 = vmatpush1.msra.mxu0 0.0
        %5091 = vmatprep.subr.mxu0 0.0
        %5092 = vmatpush1.msra.mxu0 0.0
        %5093 = vmatprep.subr.mxu0 0.0
        %5094 = vmatpush1.msra.mxu0 0.0
        %5095 = vmatprep.subr.mxu0 0.0
        %5096 = vmatpush1.msra.mxu0 0.0
        %5097 = vmatprep.subr.mxu0 0.0
        %5098 = vmatpush1.msra.mxu0 0.0
        %5099 = vmatprep.subr.mxu0 0.0
        %5100 = vmatpush1.msra.mxu0 %v4332
        %5101 = vmatprep.subr.mxu0 0.0
        %5102 = vmatpush1.msra.mxu0 %v4196
        %5103 = vmatprep.subr.mxu0 0.0
        %5104 = vmatpush2.msra.mxu0 0.0
        %5105 = vmatprep.subr.mxu0 0.0
        %5106 = vmatpush2.msra.mxu0 0.0
        %5107 = vmatprep.subr.mxu0 0.0
        %5108 = vmatpush2.msra.mxu0 0.0
        %5109 = vmatprep.subr.mxu0 0.0
        %5110 = vmatpush2.msra.mxu0 0.0
        %5111 = vmatprep.subr.mxu0 0.0
        %5112 = vmatpush2.msra.mxu0 0.0
        %5113 = vmatprep.subr.mxu0 0.0
        %5114 = vmatpush2.msra.mxu0 0.0
        %5115 = vmatprep.subr.mxu0 0.0
        %5116 = vmatpush2.msra.mxu0 0.0
        %5117 = vmatprep.subr.mxu0 0.0
        %5118 = vmatpush2.msra.mxu0 0.0
        %5119 = vmatprep.subr.mxu0 0.0
        %5120 = vmatpush2.msra.mxu0 0.0
        %5121 = vmatprep.subr.mxu0 0.0
        %5122 = vmatpush2.msra.mxu0 0.0
        %5123 = vmatprep.subr.mxu0 0.0
        %5124 = vmatpush2.msra.mxu0 0.0
        %5125 = vmatprep.subr.mxu0 0.0
        %5126 = vmatpush2.msra.mxu0 0.0
        %5127 = vmatprep.subr.mxu0 0.0
        %5128 = vmatpush2.msra.mxu0 0.0
        %5129 = vmatprep.subr.mxu0 0.0
        %5130 = vmatpush2.msra.mxu0 0.0
        %5131 = vmatprep.subr.mxu0 0.0
        %5132 = vmatpush2.msra.mxu0 0.0
        %5133 = vmatprep.subr.mxu0 0.0
        %5134 = vmatpush2.msra.mxu0 0.0
        %5135 = vmatprep.mubr.f32.mxu0 0.0
        %5136 = vmatmul.mubr.f32.gmra.mxu0 %v5069
        %v5137 = vpop.f32.mrf.mxu0
        %v5138 = vadd.f32 0.0, %v5137
        %v5139 = vpop.f32.mrf.mxu0
        %5140 = vdwg.mxu0
        %v5142 = vsel %vm1699, %v3041, 0
        %5144 = vmatprep.subr.mxu0 0.0
        %5145 = vmatpush1.msra.mxu0 0.0
        %5146 = vmatprep.subr.mxu0 0.0
        %5147 = vmatpush1.msra.mxu0 0.0
        %5148 = vmatprep.subr.mxu0 0.0
        %5149 = vmatpush1.msra.mxu0 0.0
        %5150 = vmatprep.subr.mxu0 0.0
        %5151 = vmatpush1.msra.mxu0 0.0
        %5152 = vmatprep.subr.mxu0 0.0
        %5153 = vmatpush1.msra.mxu0 0.0
        %5154 = vmatprep.subr.mxu0 0.0
        %5155 = vmatpush1.msra.mxu0 0.0
        %5156 = vmatprep.subr.mxu0 0.0
        %5157 = vmatpush1.msra.mxu0 0.0
        %5158 = vmatprep.subr.mxu0 0.0
        %5159 = vmatpush1.msra.mxu0 0.0
        %5160 = vmatprep.subr.mxu0 0.0
        %5161 = vmatpush1.msra.mxu0 0.0
        %5162 = vmatprep.subr.mxu0 0.0
        %5163 = vmatpush1.msra.mxu0 0.0
        %5164 = vmatprep.subr.mxu0 0.0
        %5165 = vmatpush1.msra.mxu0 0.0
        %5166 = vmatprep.subr.mxu0 0.0
        %5167 = vmatpush1.msra.mxu0 0.0
        %5168 = vmatprep.subr.mxu0 0.0
        %5169 = vmatpush1.msra.mxu0 0.0
        %5170 = vmatprep.subr.mxu0 0.0
        %5171 = vmatpush1.msra.mxu0 0.0
        %5172 = vmatprep.subr.mxu0 0.0
        %5173 = vmatpush1.msra.mxu0 %v4333
        %5174 = vmatprep.subr.mxu0 0.0
        %5175 = vmatpush1.msra.mxu0 %v4197
        %5176 = vmatprep.subr.mxu0 0.0
        %5177 = vmatpush2.msra.mxu0 0.0
        %5178 = vmatprep.subr.mxu0 0.0
        %5179 = vmatpush2.msra.mxu0 0.0
        %5180 = vmatprep.subr.mxu0 0.0
        %5181 = vmatpush2.msra.mxu0 0.0
        %5182 = vmatprep.subr.mxu0 0.0
        %5183 = vmatpush2.msra.mxu0 0.0
        %5184 = vmatprep.subr.mxu0 0.0
        %5185 = vmatpush2.msra.mxu0 0.0
        %5186 = vmatprep.subr.mxu0 0.0
        %5187 = vmatpush2.msra.mxu0 0.0
        %5188 = vmatprep.subr.mxu0 0.0
        %5189 = vmatpush2.msra.mxu0 0.0
        %5190 = vmatprep.subr.mxu0 0.0
        %5191 = vmatpush2.msra.mxu0 0.0
        %5192 = vmatprep.subr.mxu0 0.0
        %5193 = vmatpush2.msra.mxu0 0.0
        %5194 = vmatprep.subr.mxu0 0.0
        %5195 = vmatpush2.msra.mxu0 0.0
        %5196 = vmatprep.subr.mxu0 0.0
        %5197 = vmatpush2.msra.mxu0 0.0
        %5198 = vmatprep.subr.mxu0 0.0
        %5199 = vmatpush2.msra.mxu0 0.0
        %5200 = vmatprep.subr.mxu0 0.0
        %5201 = vmatpush2.msra.mxu0 0.0
        %5202 = vmatprep.subr.mxu0 0.0
        %5203 = vmatpush2.msra.mxu0 0.0
        %5204 = vmatprep.subr.mxu0 0.0
        %5205 = vmatpush2.msra.mxu0 0.0
        %5206 = vmatprep.subr.mxu0 0.0
        %5207 = vmatpush2.msra.mxu0 0.0
        %5208 = vmatprep.mubr.f32.mxu0 0.0
        %5209 = vmatmul.mubr.f32.gmra.mxu0 %v5142
        %v5210 = vpop.f32.mrf.mxu0
        %v5211 = vadd.f32 0.0, %v5210
        %v5212 = vpop.f32.mrf.mxu0
        %5213 = vdwg.mxu0
        %v5215 = vsel %vm1699, %v3042, 0
        %5217 = vmatprep.subr.mxu0 0.0
        %5218 = vmatpush1.msra.mxu0 0.0
        %5219 = vmatprep.subr.mxu0 0.0
        %5220 = vmatpush1.msra.mxu0 0.0
        %5221 = vmatprep.subr.mxu0 0.0
        %5222 = vmatpush1.msra.mxu0 0.0
        %5223 = vmatprep.subr.mxu0 0.0
        %5224 = vmatpush1.msra.mxu0 0.0
        %5225 = vmatprep.subr.mxu0 0.0
        %5226 = vmatpush1.msra.mxu0 0.0
        %5227 = vmatprep.subr.mxu0 0.0
        %5228 = vmatpush1.msra.mxu0 0.0
        %5229 = vmatprep.subr.mxu0 0.0
        %5230 = vmatpush1.msra.mxu0 0.0
        %5231 = vmatprep.subr.mxu0 0.0
        %5232 = vmatpush1.msra.mxu0 0.0
        %5233 = vmatprep.subr.mxu0 0.0
        %5234 = vmatpush1.msra.mxu0 0.0
        %5235 = vmatprep.subr.mxu0 0.0
        %5236 = vmatpush1.msra.mxu0 0.0
        %5237 = vmatprep.subr.mxu0 0.0
        %5238 = vmatpush1.msra.mxu0 0.0
        %5239 = vmatprep.subr.mxu0 0.0
        %5240 = vmatpush1.msra.mxu0 0.0
        %5241 = vmatprep.subr.mxu0 0.0
        %5242 = vmatpush1.msra.mxu0 0.0
        %5243 = vmatprep.subr.mxu0 0.0
        %5244 = vmatpush1.msra.mxu0 0.0
        %5245 = vmatprep.subr.mxu0 0.0
        %5246 = vmatpush1.msra.mxu0 %v4334
        %5247 = vmatprep.subr.mxu0 0.0
        %5248 = vmatpush1.msra.mxu0 %v4198
        %5249 = vmatprep.subr.mxu0 0.0
        %5250 = vmatpush2.msra.mxu0 0.0
        %5251 = vmatprep.subr.mxu0 0.0
        %5252 = vmatpush2.msra.mxu0 0.0
        %5253 = vmatprep.subr.mxu0 0.0
        %5254 = vmatpush2.msra.mxu0 0.0
        %5255 = vmatprep.subr.mxu0 0.0
        %5256 = vmatpush2.msra.mxu0 0.0
        %5257 = vmatprep.subr.mxu0 0.0
        %5258 = vmatpush2.msra.mxu0 0.0
        %5259 = vmatprep.subr.mxu0 0.0
        %5260 = vmatpush2.msra.mxu0 0.0
        %5261 = vmatprep.subr.mxu0 0.0
        %5262 = vmatpush2.msra.mxu0 0.0
        %5263 = vmatprep.subr.mxu0 0.0
        %5264 = vmatpush2.msra.mxu0 0.0
        %5265 = vmatprep.subr.mxu0 0.0
        %5266 = vmatpush2.msra.mxu0 0.0
        %5267 = vmatprep.subr.mxu0 0.0
        %5268 = vmatpush2.msra.mxu0 0.0
        %5269 = vmatprep.subr.mxu0 0.0
        %5270 = vmatpush2.msra.mxu0 0.0
        %5271 = vmatprep.subr.mxu0 0.0
        %5272 = vmatpush2.msra.mxu0 0.0
        %5273 = vmatprep.subr.mxu0 0.0
        %5274 = vmatpush2.msra.mxu0 0.0
        %5275 = vmatprep.subr.mxu0 0.0
        %5276 = vmatpush2.msra.mxu0 0.0
        %5277 = vmatprep.subr.mxu0 0.0
        %5278 = vmatpush2.msra.mxu0 0.0
        %5279 = vmatprep.subr.mxu0 0.0
        %5280 = vmatpush2.msra.mxu0 0.0
        %5281 = vmatprep.mubr.f32.mxu0 0.0
        %5282 = vmatmul.mubr.f32.gmra.mxu0 %v5215
        %v5283 = vpop.f32.mrf.mxu0
        %v5284 = vadd.f32 0.0, %v5283
        %v5285 = vpop.f32.mrf.mxu0
        %5286 = vdwg.mxu0
        %v5288 = vsel %vm1699, %v3043, 0
        %5290 = vmatprep.subr.mxu0 0.0
        %5291 = vmatpush1.msra.mxu0 0.0
        %5292 = vmatprep.subr.mxu0 0.0
        %5293 = vmatpush1.msra.mxu0 0.0
        %5294 = vmatprep.subr.mxu0 0.0
        %5295 = vmatpush1.msra.mxu0 0.0
        %5296 = vmatprep.subr.mxu0 0.0
        %5297 = vmatpush1.msra.mxu0 0.0
        %5298 = vmatprep.subr.mxu0 0.0
        %5299 = vmatpush1.msra.mxu0 0.0
        %5300 = vmatprep.subr.mxu0 0.0
        %5301 = vmatpush1.msra.mxu0 0.0
        %5302 = vmatprep.subr.mxu0 0.0
        %5303 = vmatpush1.msra.mxu0 0.0
        %5304 = vmatprep.subr.mxu0 0.0
        %5305 = vmatpush1.msra.mxu0 0.0
        %5306 = vmatprep.subr.mxu0 0.0
        %5307 = vmatpush1.msra.mxu0 0.0
        %5308 = vmatprep.subr.mxu0 0.0
        %5309 = vmatpush1.msra.mxu0 0.0
        %5310 = vmatprep.subr.mxu0 0.0
        %5311 = vmatpush1.msra.mxu0 0.0
        %5312 = vmatprep.subr.mxu0 0.0
        %5313 = vmatpush1.msra.mxu0 0.0
        %5314 = vmatprep.subr.mxu0 0.0
        %5315 = vmatpush1.msra.mxu0 0.0
        %5316 = vmatprep.subr.mxu0 0.0
        %5317 = vmatpush1.msra.mxu0 0.0
        %5318 = vmatprep.subr.mxu0 0.0
        %5319 = vmatpush1.msra.mxu0 %v4335
        %5320 = vmatprep.subr.mxu0 0.0
        %5321 = vmatpush1.msra.mxu0 %v4199
        %5322 = vmatprep.subr.mxu0 0.0
        %5323 = vmatpush2.msra.mxu0 0.0
        %5324 = vmatprep.subr.mxu0 0.0
        %5325 = vmatpush2.msra.mxu0 0.0
        %5326 = vmatprep.subr.mxu0 0.0
        %5327 = vmatpush2.msra.mxu0 0.0
        %5328 = vmatprep.subr.mxu0 0.0
        %5329 = vmatpush2.msra.mxu0 0.0
        %5330 = vmatprep.subr.mxu0 0.0
        %5331 = vmatpush2.msra.mxu0 0.0
        %5332 = vmatprep.subr.mxu0 0.0
        %5333 = vmatpush2.msra.mxu0 0.0
        %5334 = vmatprep.subr.mxu0 0.0
        %5335 = vmatpush2.msra.mxu0 0.0
        %5336 = vmatprep.subr.mxu0 0.0
        %5337 = vmatpush2.msra.mxu0 0.0
        %5338 = vmatprep.subr.mxu0 0.0
        %5339 = vmatpush2.msra.mxu0 0.0
        %5340 = vmatprep.subr.mxu0 0.0
        %5341 = vmatpush2.msra.mxu0 0.0
        %5342 = vmatprep.subr.mxu0 0.0
        %5343 = vmatpush2.msra.mxu0 0.0
        %5344 = vmatprep.subr.mxu0 0.0
        %5345 = vmatpush2.msra.mxu0 0.0
        %5346 = vmatprep.subr.mxu0 0.0
        %5347 = vmatpush2.msra.mxu0 0.0
        %5348 = vmatprep.subr.mxu0 0.0
        %5349 = vmatpush2.msra.mxu0 0.0
        %5350 = vmatprep.subr.mxu0 0.0
        %5351 = vmatpush2.msra.mxu0 0.0
        %5352 = vmatprep.subr.mxu0 0.0
        %5353 = vmatpush2.msra.mxu0 0.0
        %5354 = vmatprep.mubr.f32.mxu0 0.0
        %5355 = vmatmul.mubr.f32.gmra.mxu0 %v5288
        %v5356 = vpop.f32.mrf.mxu0
        %v5357 = vadd.f32 0.0, %v5356
        %v5358 = vpop.f32.mrf.mxu0
        %5359 = vdwg.mxu0
        %v5361 = vsel %vm1699, %v3044, 0
        %5363 = vmatprep.subr.mxu0 0.0
        %5364 = vmatpush1.msra.mxu0 0.0
        %5365 = vmatprep.subr.mxu0 0.0
        %5366 = vmatpush1.msra.mxu0 0.0
        %5367 = vmatprep.subr.mxu0 0.0
        %5368 = vmatpush1.msra.mxu0 0.0
        %5369 = vmatprep.subr.mxu0 0.0
        %5370 = vmatpush1.msra.mxu0 0.0
        %5371 = vmatprep.subr.mxu0 0.0
        %5372 = vmatpush1.msra.mxu0 0.0
        %5373 = vmatprep.subr.mxu0 0.0
        %5374 = vmatpush1.msra.mxu0 0.0
        %5375 = vmatprep.subr.mxu0 0.0
        %5376 = vmatpush1.msra.mxu0 0.0
        %5377 = vmatprep.subr.mxu0 0.0
        %5378 = vmatpush1.msra.mxu0 0.0
        %5379 = vmatprep.subr.mxu0 0.0
        %5380 = vmatpush1.msra.mxu0 0.0
        %5381 = vmatprep.subr.mxu0 0.0
        %5382 = vmatpush1.msra.mxu0 0.0
        %5383 = vmatprep.subr.mxu0 0.0
        %5384 = vmatpush1.msra.mxu0 0.0
        %5385 = vmatprep.subr.mxu0 0.0
        %5386 = vmatpush1.msra.mxu0 0.0
        %5387 = vmatprep.subr.mxu0 0.0
        %5388 = vmatpush1.msra.mxu0 0.0
        %5389 = vmatprep.subr.mxu0 0.0
        %5390 = vmatpush1.msra.mxu0 0.0
        %5391 = vmatprep.subr.mxu0 0.0
        %5392 = vmatpush1.msra.mxu0 %v4336
        %5393 = vmatprep.subr.mxu0 0.0
        %5394 = vmatpush1.msra.mxu0 %v4200
        %5395 = vmatprep.subr.mxu0 0.0
        %5396 = vmatpush2.msra.mxu0 0.0
        %5397 = vmatprep.subr.mxu0 0.0
        %5398 = vmatpush2.msra.mxu0 0.0
        %5399 = vmatprep.subr.mxu0 0.0
        %5400 = vmatpush2.msra.mxu0 0.0
        %5401 = vmatprep.subr.mxu0 0.0
        %5402 = vmatpush2.msra.mxu0 0.0
        %5403 = vmatprep.subr.mxu0 0.0
        %5404 = vmatpush2.msra.mxu0 0.0
        %5405 = vmatprep.subr.mxu0 0.0
        %5406 = vmatpush2.msra.mxu0 0.0
        %5407 = vmatprep.subr.mxu0 0.0
        %5408 = vmatpush2.msra.mxu0 0.0
        %5409 = vmatprep.subr.mxu0 0.0
        %5410 = vmatpush2.msra.mxu0 0.0
        %5411 = vmatprep.subr.mxu0 0.0
        %5412 = vmatpush2.msra.mxu0 0.0
        %5413 = vmatprep.subr.mxu0 0.0
        %5414 = vmatpush2.msra.mxu0 0.0
        %5415 = vmatprep.subr.mxu0 0.0
        %5416 = vmatpush2.msra.mxu0 0.0
        %5417 = vmatprep.subr.mxu0 0.0
        %5418 = vmatpush2.msra.mxu0 0.0
        %5419 = vmatprep.subr.mxu0 0.0
        %5420 = vmatpush2.msra.mxu0 0.0
        %5421 = vmatprep.subr.mxu0 0.0
        %5422 = vmatpush2.msra.mxu0 0.0
        %5423 = vmatprep.subr.mxu0 0.0
        %5424 = vmatpush2.msra.mxu0 0.0
        %5425 = vmatprep.subr.mxu0 0.0
        %5426 = vmatpush2.msra.mxu0 0.0
        %5427 = vmatprep.mubr.f32.mxu0 0.0
        %5428 = vmatmul.mubr.f32.gmra.mxu0 %v5361
        %v5429 = vpop.f32.mrf.mxu0
        %v5430 = vadd.f32 0.0, %v5429
        %v5431 = vpop.f32.mrf.mxu0
        %5432 = vdwg.mxu0
        %v5434 = vsel %vm1699, %v3045, 0
        %5436 = vmatprep.subr.mxu0 0.0
        %5437 = vmatpush1.msra.mxu0 0.0
        %5438 = vmatprep.subr.mxu0 0.0
        %5439 = vmatpush1.msra.mxu0 0.0
        %5440 = vmatprep.subr.mxu0 0.0
        %5441 = vmatpush1.msra.mxu0 0.0
        %5442 = vmatprep.subr.mxu0 0.0
        %5443 = vmatpush1.msra.mxu0 0.0
        %5444 = vmatprep.subr.mxu0 0.0
        %5445 = vmatpush1.msra.mxu0 0.0
        %5446 = vmatprep.subr.mxu0 0.0
        %5447 = vmatpush1.msra.mxu0 0.0
        %5448 = vmatprep.subr.mxu0 0.0
        %5449 = vmatpush1.msra.mxu0 0.0
        %5450 = vmatprep.subr.mxu0 0.0
        %5451 = vmatpush1.msra.mxu0 0.0
        %5452 = vmatprep.subr.mxu0 0.0
        %5453 = vmatpush1.msra.mxu0 0.0
        %5454 = vmatprep.subr.mxu0 0.0
        %5455 = vmatpush1.msra.mxu0 0.0
        %5456 = vmatprep.subr.mxu0 0.0
        %5457 = vmatpush1.msra.mxu0 0.0
        %5458 = vmatprep.subr.mxu0 0.0
        %5459 = vmatpush1.msra.mxu0 0.0
        %5460 = vmatprep.subr.mxu0 0.0
        %5461 = vmatpush1.msra.mxu0 0.0
        %5462 = vmatprep.subr.mxu0 0.0
        %5463 = vmatpush1.msra.mxu0 0.0
        %5464 = vmatprep.subr.mxu0 0.0
        %5465 = vmatpush1.msra.mxu0 %v4337
        %5466 = vmatprep.subr.mxu0 0.0
        %5467 = vmatpush1.msra.mxu0 %v4201
        %5468 = vmatprep.subr.mxu0 0.0
        %5469 = vmatpush2.msra.mxu0 0.0
        %5470 = vmatprep.subr.mxu0 0.0
        %5471 = vmatpush2.msra.mxu0 0.0
        %5472 = vmatprep.subr.mxu0 0.0
        %5473 = vmatpush2.msra.mxu0 0.0
        %5474 = vmatprep.subr.mxu0 0.0
        %5475 = vmatpush2.msra.mxu0 0.0
        %5476 = vmatprep.subr.mxu0 0.0
        %5477 = vmatpush2.msra.mxu0 0.0
        %5478 = vmatprep.subr.mxu0 0.0
        %5479 = vmatpush2.msra.mxu0 0.0
        %5480 = vmatprep.subr.mxu0 0.0
        %5481 = vmatpush2.msra.mxu0 0.0
        %5482 = vmatprep.subr.mxu0 0.0
        %5483 = vmatpush2.msra.mxu0 0.0
        %5484 = vmatprep.subr.mxu0 0.0
        %5485 = vmatpush2.msra.mxu0 0.0
        %5486 = vmatprep.subr.mxu0 0.0
        %5487 = vmatpush2.msra.mxu0 0.0
        %5488 = vmatprep.subr.mxu0 0.0
        %5489 = vmatpush2.msra.mxu0 0.0
        %5490 = vmatprep.subr.mxu0 0.0
        %5491 = vmatpush2.msra.mxu0 0.0
        %5492 = vmatprep.subr.mxu0 0.0
        %5493 = vmatpush2.msra.mxu0 0.0
        %5494 = vmatprep.subr.mxu0 0.0
        %5495 = vmatpush2.msra.mxu0 0.0
        %5496 = vmatprep.subr.mxu0 0.0
        %5497 = vmatpush2.msra.mxu0 0.0
        %5498 = vmatprep.subr.mxu0 0.0
        %5499 = vmatpush2.msra.mxu0 0.0
        %5500 = vmatprep.mubr.f32.mxu0 0.0
        %5501 = vmatmul.mubr.f32.gmra.mxu0 %v5434
        %v5502 = vpop.f32.mrf.mxu0
        %v5503 = vadd.f32 0.0, %v5502
        %v5504 = vpop.f32.mrf.mxu0
        %5505 = vdwg.mxu0
        %v5507 = vsel %vm1699, %v1017, 0
        %5509 = vmatprep.subr.mxu0 0.0
        %5510 = vmatpush1.msra.mxu0 0.0
        %5511 = vmatprep.subr.mxu0 0.0
        %5512 = vmatpush1.msra.mxu0 0.0
        %5513 = vmatprep.subr.mxu0 0.0
        %5514 = vmatpush1.msra.mxu0 0.0
        %5515 = vmatprep.subr.mxu0 0.0
        %5516 = vmatpush1.msra.mxu0 0.0
        %5517 = vmatprep.subr.mxu0 0.0
        %5518 = vmatpush1.msra.mxu0 0.0
        %5519 = vmatprep.subr.mxu0 0.0
        %5520 = vmatpush1.msra.mxu0 0.0
        %5521 = vmatprep.subr.mxu0 0.0
        %5522 = vmatpush1.msra.mxu0 0.0
        %5523 = vmatprep.subr.mxu0 0.0
        %5524 = vmatpush1.msra.mxu0 0.0
        %5525 = vmatprep.subr.mxu0 0.0
        %5526 = vmatpush1.msra.mxu0 0.0
        %5527 = vmatprep.subr.mxu0 0.0
        %5528 = vmatpush1.msra.mxu0 0.0
        %5529 = vmatprep.subr.mxu0 0.0
        %5530 = vmatpush1.msra.mxu0 0.0
        %5531 = vmatprep.subr.mxu0 0.0
        %5532 = vmatpush1.msra.mxu0 0.0
        %5533 = vmatprep.subr.mxu0 0.0
        %5534 = vmatpush1.msra.mxu0 0.0
        %5535 = vmatprep.subr.mxu0 0.0
        %5536 = vmatpush1.msra.mxu0 0.0
        %5537 = vmatprep.subr.mxu0 0.0
        %5538 = vmatpush1.msra.mxu0 %v2181
        %5539 = vmatprep.subr.mxu0 0.0
        %5540 = vmatpush1.msra.mxu0 %v2045
        %5541 = vmatprep.subr.mxu0 0.0
        %5542 = vmatpush2.msra.mxu0 0.0
        %5543 = vmatprep.subr.mxu0 0.0
        %5544 = vmatpush2.msra.mxu0 0.0
        %5545 = vmatprep.subr.mxu0 0.0
        %5546 = vmatpush2.msra.mxu0 0.0
        %5547 = vmatprep.subr.mxu0 0.0
        %5548 = vmatpush2.msra.mxu0 0.0
        %5549 = vmatprep.subr.mxu0 0.0
        %5550 = vmatpush2.msra.mxu0 0.0
        %5551 = vmatprep.subr.mxu0 0.0
        %5552 = vmatpush2.msra.mxu0 0.0
        %5553 = vmatprep.subr.mxu0 0.0
        %5554 = vmatpush2.msra.mxu0 0.0
        %5555 = vmatprep.subr.mxu0 0.0
        %5556 = vmatpush2.msra.mxu0 0.0
        %5557 = vmatprep.subr.mxu0 0.0
        %5558 = vmatpush2.msra.mxu0 0.0
        %5559 = vmatprep.subr.mxu0 0.0
        %5560 = vmatpush2.msra.mxu0 0.0
        %5561 = vmatprep.subr.mxu0 0.0
        %5562 = vmatpush2.msra.mxu0 0.0
        %5563 = vmatprep.subr.mxu0 0.0
        %5564 = vmatpush2.msra.mxu0 0.0
        %5565 = vmatprep.subr.mxu0 0.0
        %5566 = vmatpush2.msra.mxu0 0.0
        %5567 = vmatprep.subr.mxu0 0.0
        %5568 = vmatpush2.msra.mxu0 0.0
        %5569 = vmatprep.subr.mxu0 0.0
        %5570 = vmatpush2.msra.mxu0 0.0
        %5571 = vmatprep.subr.mxu0 0.0
        %5572 = vmatpush2.msra.mxu0 0.0
        %5573 = vmatprep.mubr.f32.mxu0 0.0
        %5574 = vmatmul.mubr.f32.gmra.mxu0 %v5507
        %v5575 = vpop.f32.mrf.mxu0
        %v5576 = vadd.f32 %v4408, %v5575
        %v5577 = vpop.f32.mrf.mxu0
        %5578 = vdwg.mxu0
        %v5580 = vsel %vm1699, %v1018, 0
        %5582 = vmatprep.subr.mxu0 0.0
        %5583 = vmatpush1.msra.mxu0 0.0
        %5584 = vmatprep.subr.mxu0 0.0
        %5585 = vmatpush1.msra.mxu0 0.0
        %5586 = vmatprep.subr.mxu0 0.0
        %5587 = vmatpush1.msra.mxu0 0.0
        %5588 = vmatprep.subr.mxu0 0.0
        %5589 = vmatpush1.msra.mxu0 0.0
        %5590 = vmatprep.subr.mxu0 0.0
        %5591 = vmatpush1.msra.mxu0 0.0
        %5592 = vmatprep.subr.mxu0 0.0
        %5593 = vmatpush1.msra.mxu0 0.0
        %5594 = vmatprep.subr.mxu0 0.0
        %5595 = vmatpush1.msra.mxu0 0.0
        %5596 = vmatprep.subr.mxu0 0.0
        %5597 = vmatpush1.msra.mxu0 0.0
        %5598 = vmatprep.subr.mxu0 0.0
        %5599 = vmatpush1.msra.mxu0 0.0
        %5600 = vmatprep.subr.mxu0 0.0
        %5601 = vmatpush1.msra.mxu0 0.0
        %5602 = vmatprep.subr.mxu0 0.0
        %5603 = vmatpush1.msra.mxu0 0.0
        %5604 = vmatprep.subr.mxu0 0.0
        %5605 = vmatpush1.msra.mxu0 0.0
        %5606 = vmatprep.subr.mxu0 0.0
        %5607 = vmatpush1.msra.mxu0 0.0
        %5608 = vmatprep.subr.mxu0 0.0
        %5609 = vmatpush1.msra.mxu0 0.0
        %5610 = vmatprep.subr.mxu0 0.0
        %5611 = vmatpush1.msra.mxu0 %v2182
        %5612 = vmatprep.subr.mxu0 0.0
        %5613 = vmatpush1.msra.mxu0 %v2046
        %5614 = vmatprep.subr.mxu0 0.0
        %5615 = vmatpush2.msra.mxu0 0.0
        %5616 = vmatprep.subr.mxu0 0.0
        %5617 = vmatpush2.msra.mxu0 0.0
        %5618 = vmatprep.subr.mxu0 0.0
        %5619 = vmatpush2.msra.mxu0 0.0
        %5620 = vmatprep.subr.mxu0 0.0
        %5621 = vmatpush2.msra.mxu0 0.0
        %5622 = vmatprep.subr.mxu0 0.0
        %5623 = vmatpush2.msra.mxu0 0.0
        %5624 = vmatprep.subr.mxu0 0.0
        %5625 = vmatpush2.msra.mxu0 0.0
        %5626 = vmatprep.subr.mxu0 0.0
        %5627 = vmatpush2.msra.mxu0 0.0
        %5628 = vmatprep.subr.mxu0 0.0
        %5629 = vmatpush2.msra.mxu0 0.0
        %5630 = vmatprep.subr.mxu0 0.0
        %5631 = vmatpush2.msra.mxu0 0.0
        %5632 = vmatprep.subr.mxu0 0.0
        %5633 = vmatpush2.msra.mxu0 0.0
        %5634 = vmatprep.subr.mxu0 0.0
        %5635 = vmatpush2.msra.mxu0 0.0
        %5636 = vmatprep.subr.mxu0 0.0
        %5637 = vmatpush2.msra.mxu0 0.0
        %5638 = vmatprep.subr.mxu0 0.0
        %5639 = vmatpush2.msra.mxu0 0.0
        %5640 = vmatprep.subr.mxu0 0.0
        %5641 = vmatpush2.msra.mxu0 0.0
        %5642 = vmatprep.subr.mxu0 0.0
        %5643 = vmatpush2.msra.mxu0 0.0
        %5644 = vmatprep.subr.mxu0 0.0
        %5645 = vmatpush2.msra.mxu0 0.0
        %5646 = vmatprep.mubr.f32.mxu0 0.0
        %5647 = vmatmul.mubr.f32.gmra.mxu0 %v5580
        %v5648 = vpop.f32.mrf.mxu0
        %v5649 = vadd.f32 %v4481, %v5648
        %v5650 = vpop.f32.mrf.mxu0
        %5651 = vdwg.mxu0
        %v5653 = vsel %vm1699, %v1019, 0
        %5655 = vmatprep.subr.mxu0 0.0
        %5656 = vmatpush1.msra.mxu0 0.0
        %5657 = vmatprep.subr.mxu0 0.0
        %5658 = vmatpush1.msra.mxu0 0.0
        %5659 = vmatprep.subr.mxu0 0.0
        %5660 = vmatpush1.msra.mxu0 0.0
        %5661 = vmatprep.subr.mxu0 0.0
        %5662 = vmatpush1.msra.mxu0 0.0
        %5663 = vmatprep.subr.mxu0 0.0
        %5664 = vmatpush1.msra.mxu0 0.0
        %5665 = vmatprep.subr.mxu0 0.0
        %5666 = vmatpush1.msra.mxu0 0.0
        %5667 = vmatprep.subr.mxu0 0.0
        %5668 = vmatpush1.msra.mxu0 0.0
        %5669 = vmatprep.subr.mxu0 0.0
        %5670 = vmatpush1.msra.mxu0 0.0
        %5671 = vmatprep.subr.mxu0 0.0
        %5672 = vmatpush1.msra.mxu0 0.0
        %5673 = vmatprep.subr.mxu0 0.0
        %5674 = vmatpush1.msra.mxu0 0.0
        %5675 = vmatprep.subr.mxu0 0.0
        %5676 = vmatpush1.msra.mxu0 0.0
        %5677 = vmatprep.subr.mxu0 0.0
        %5678 = vmatpush1.msra.mxu0 0.0
        %5679 = vmatprep.subr.mxu0 0.0
        %5680 = vmatpush1.msra.mxu0 0.0
        %5681 = vmatprep.subr.mxu0 0.0
        %5682 = vmatpush1.msra.mxu0 0.0
        %5683 = vmatprep.subr.mxu0 0.0
        %5684 = vmatpush1.msra.mxu0 %v2183
        %5685 = vmatprep.subr.mxu0 0.0
        %5686 = vmatpush1.msra.mxu0 %v2047
        %5687 = vmatprep.subr.mxu0 0.0
        %5688 = vmatpush2.msra.mxu0 0.0
        %5689 = vmatprep.subr.mxu0 0.0
        %5690 = vmatpush2.msra.mxu0 0.0
        %5691 = vmatprep.subr.mxu0 0.0
        %5692 = vmatpush2.msra.mxu0 0.0
        %5693 = vmatprep.subr.mxu0 0.0
        %5694 = vmatpush2.msra.mxu0 0.0
        %5695 = vmatprep.subr.mxu0 0.0
        %5696 = vmatpush2.msra.mxu0 0.0
        %5697 = vmatprep.subr.mxu0 0.0
        %5698 = vmatpush2.msra.mxu0 0.0
        %5699 = vmatprep.subr.mxu0 0.0
        %5700 = vmatpush2.msra.mxu0 0.0
        %5701 = vmatprep.subr.mxu0 0.0
        %5702 = vmatpush2.msra.mxu0 0.0
        %5703 = vmatprep.subr.mxu0 0.0
        %5704 = vmatpush2.msra.mxu0 0.0
        %5705 = vmatprep.subr.mxu0 0.0
        %5706 = vmatpush2.msra.mxu0 0.0
        %5707 = vmatprep.subr.mxu0 0.0
        %5708 = vmatpush2.msra.mxu0 0.0
        %5709 = vmatprep.subr.mxu0 0.0
        %5710 = vmatpush2.msra.mxu0 0.0
        %5711 = vmatprep.subr.mxu0 0.0
        %5712 = vmatpush2.msra.mxu0 0.0
        %5713 = vmatprep.subr.mxu0 0.0
        %5714 = vmatpush2.msra.mxu0 0.0
        %5715 = vmatprep.subr.mxu0 0.0
        %5716 = vmatpush2.msra.mxu0 0.0
        %5717 = vmatprep.subr.mxu0 0.0
        %5718 = vmatpush2.msra.mxu0 0.0
        %5719 = vmatprep.mubr.f32.mxu0 0.0
        %5720 = vmatmul.mubr.f32.gmra.mxu0 %v5653
        %v5721 = vpop.f32.mrf.mxu0
        %v5722 = vadd.f32 %v4554, %v5721
        %v5723 = vpop.f32.mrf.mxu0
        %5724 = vdwg.mxu0
        %v5726 = vsel %vm1699, %v1020, 0
        %5728 = vmatprep.subr.mxu0 0.0
        %5729 = vmatpush1.msra.mxu0 0.0
        %5730 = vmatprep.subr.mxu0 0.0
        %5731 = vmatpush1.msra.mxu0 0.0
        %5732 = vmatprep.subr.mxu0 0.0
        %5733 = vmatpush1.msra.mxu0 0.0
        %5734 = vmatprep.subr.mxu0 0.0
        %5735 = vmatpush1.msra.mxu0 0.0
        %5736 = vmatprep.subr.mxu0 0.0
        %5737 = vmatpush1.msra.mxu0 0.0
        %5738 = vmatprep.subr.mxu0 0.0
        %5739 = vmatpush1.msra.mxu0 0.0
        %5740 = vmatprep.subr.mxu0 0.0
        %5741 = vmatpush1.msra.mxu0 0.0
        %5742 = vmatprep.subr.mxu0 0.0
        %5743 = vmatpush1.msra.mxu0 0.0
        %5744 = vmatprep.subr.mxu0 0.0
        %5745 = vmatpush1.msra.mxu0 0.0
        %5746 = vmatprep.subr.mxu0 0.0
        %5747 = vmatpush1.msra.mxu0 0.0
        %5748 = vmatprep.subr.mxu0 0.0
        %5749 = vmatpush1.msra.mxu0 0.0
        %5750 = vmatprep.subr.mxu0 0.0
        %5751 = vmatpush1.msra.mxu0 0.0
        %5752 = vmatprep.subr.mxu0 0.0
        %5753 = vmatpush1.msra.mxu0 0.0
        %5754 = vmatprep.subr.mxu0 0.0
        %5755 = vmatpush1.msra.mxu0 0.0
        %5756 = vmatprep.subr.mxu0 0.0
        %5757 = vmatpush1.msra.mxu0 %v2184
        %5758 = vmatprep.subr.mxu0 0.0
        %5759 = vmatpush1.msra.mxu0 %v2048
        %5760 = vmatprep.subr.mxu0 0.0
        %5761 = vmatpush2.msra.mxu0 0.0
        %5762 = vmatprep.subr.mxu0 0.0
        %5763 = vmatpush2.msra.mxu0 0.0
        %5764 = vmatprep.subr.mxu0 0.0
        %5765 = vmatpush2.msra.mxu0 0.0
        %5766 = vmatprep.subr.mxu0 0.0
        %5767 = vmatpush2.msra.mxu0 0.0
        %5768 = vmatprep.subr.mxu0 0.0
        %5769 = vmatpush2.msra.mxu0 0.0
        %5770 = vmatprep.subr.mxu0 0.0
        %5771 = vmatpush2.msra.mxu0 0.0
        %5772 = vmatprep.subr.mxu0 0.0
        %5773 = vmatpush2.msra.mxu0 0.0
        %5774 = vmatprep.subr.mxu0 0.0
        %5775 = vmatpush2.msra.mxu0 0.0
        %5776 = vmatprep.subr.mxu0 0.0
        %5777 = vmatpush2.msra.mxu0 0.0
        %5778 = vmatprep.subr.mxu0 0.0
        %5779 = vmatpush2.msra.mxu0 0.0
        %5780 = vmatprep.subr.mxu0 0.0
        %5781 = vmatpush2.msra.mxu0 0.0
        %5782 = vmatprep.subr.mxu0 0.0
        %5783 = vmatpush2.msra.mxu0 0.0
        %5784 = vmatprep.subr.mxu0 0.0
        %5785 = vmatpush2.msra.mxu0 0.0
        %5786 = vmatprep.subr.mxu0 0.0
        %5787 = vmatpush2.msra.mxu0 0.0
        %5788 = vmatprep.subr.mxu0 0.0
        %5789 = vmatpush2.msra.mxu0 0.0
        %5790 = vmatprep.subr.mxu0 0.0
        %5791 = vmatpush2.msra.mxu0 0.0
        %5792 = vmatprep.mubr.f32.mxu0 0.0
        %5793 = vmatmul.mubr.f32.gmra.mxu0 %v5726
        %v5794 = vpop.f32.mrf.mxu0
        %v5795 = vadd.f32 %v4627, %v5794
        %v5796 = vpop.f32.mrf.mxu0
        %5797 = vdwg.mxu0
        %v5799 = vsel %vm1699, %v1021, 0
        %5801 = vmatprep.subr.mxu0 0.0
        %5802 = vmatpush1.msra.mxu0 0.0
        %5803 = vmatprep.subr.mxu0 0.0
        %5804 = vmatpush1.msra.mxu0 0.0
        %5805 = vmatprep.subr.mxu0 0.0
        %5806 = vmatpush1.msra.mxu0 0.0
        %5807 = vmatprep.subr.mxu0 0.0
        %5808 = vmatpush1.msra.mxu0 0.0
        %5809 = vmatprep.subr.mxu0 0.0
        %5810 = vmatpush1.msra.mxu0 0.0
        %5811 = vmatprep.subr.mxu0 0.0
        %5812 = vmatpush1.msra.mxu0 0.0
        %5813 = vmatprep.subr.mxu0 0.0
        %5814 = vmatpush1.msra.mxu0 0.0
        %5815 = vmatprep.subr.mxu0 0.0
        %5816 = vmatpush1.msra.mxu0 0.0
        %5817 = vmatprep.subr.mxu0 0.0
        %5818 = vmatpush1.msra.mxu0 0.0
        %5819 = vmatprep.subr.mxu0 0.0
        %5820 = vmatpush1.msra.mxu0 0.0
        %5821 = vmatprep.subr.mxu0 0.0
        %5822 = vmatpush1.msra.mxu0 0.0
        %5823 = vmatprep.subr.mxu0 0.0
        %5824 = vmatpush1.msra.mxu0 0.0
        %5825 = vmatprep.subr.mxu0 0.0
        %5826 = vmatpush1.msra.mxu0 0.0
        %5827 = vmatprep.subr.mxu0 0.0
        %5828 = vmatpush1.msra.mxu0 0.0
        %5829 = vmatprep.subr.mxu0 0.0
        %5830 = vmatpush1.msra.mxu0 %v2185
        %5831 = vmatprep.subr.mxu0 0.0
        %5832 = vmatpush1.msra.mxu0 %v2049
        %5833 = vmatprep.subr.mxu0 0.0
        %5834 = vmatpush2.msra.mxu0 0.0
        %5835 = vmatprep.subr.mxu0 0.0
        %5836 = vmatpush2.msra.mxu0 0.0
        %5837 = vmatprep.subr.mxu0 0.0
        %5838 = vmatpush2.msra.mxu0 0.0
        %5839 = vmatprep.subr.mxu0 0.0
        %5840 = vmatpush2.msra.mxu0 0.0
        %5841 = vmatprep.subr.mxu0 0.0
        %5842 = vmatpush2.msra.mxu0 0.0
        %5843 = vmatprep.subr.mxu0 0.0
        %5844 = vmatpush2.msra.mxu0 0.0
        %5845 = vmatprep.subr.mxu0 0.0
        %5846 = vmatpush2.msra.mxu0 0.0
        %5847 = vmatprep.subr.mxu0 0.0
        %5848 = vmatpush2.msra.mxu0 0.0
        %5849 = vmatprep.subr.mxu0 0.0
        %5850 = vmatpush2.msra.mxu0 0.0
        %5851 = vmatprep.subr.mxu0 0.0
        %5852 = vmatpush2.msra.mxu0 0.0
        %5853 = vmatprep.subr.mxu0 0.0
        %5854 = vmatpush2.msra.mxu0 0.0
        %5855 = vmatprep.subr.mxu0 0.0
        %5856 = vmatpush2.msra.mxu0 0.0
        %5857 = vmatprep.subr.mxu0 0.0
        %5858 = vmatpush2.msra.mxu0 0.0
        %5859 = vmatprep.subr.mxu0 0.0
        %5860 = vmatpush2.msra.mxu0 0.0
        %5861 = vmatprep.subr.mxu0 0.0
        %5862 = vmatpush2.msra.mxu0 0.0
        %5863 = vmatprep.subr.mxu0 0.0
        %5864 = vmatpush2.msra.mxu0 0.0
        %5865 = vmatprep.mubr.f32.mxu0 0.0
        %5866 = vmatmul.mubr.f32.gmra.mxu0 %v5799
        %v5867 = vpop.f32.mrf.mxu0
        %v5868 = vadd.f32 %v4700, %v5867
        %v5869 = vpop.f32.mrf.mxu0
        %5870 = vdwg.mxu0
        %v5872 = vsel %vm1699, %v1022, 0
        %5874 = vmatprep.subr.mxu0 0.0
        %5875 = vmatpush1.msra.mxu0 0.0
        %5876 = vmatprep.subr.mxu0 0.0
        %5877 = vmatpush1.msra.mxu0 0.0
        %5878 = vmatprep.subr.mxu0 0.0
        %5879 = vmatpush1.msra.mxu0 0.0
        %5880 = vmatprep.subr.mxu0 0.0
        %5881 = vmatpush1.msra.mxu0 0.0
        %5882 = vmatprep.subr.mxu0 0.0
        %5883 = vmatpush1.msra.mxu0 0.0
        %5884 = vmatprep.subr.mxu0 0.0
        %5885 = vmatpush1.msra.mxu0 0.0
        %5886 = vmatprep.subr.mxu0 0.0
        %5887 = vmatpush1.msra.mxu0 0.0
        %5888 = vmatprep.subr.mxu0 0.0
        %5889 = vmatpush1.msra.mxu0 0.0
        %5890 = vmatprep.subr.mxu0 0.0
        %5891 = vmatpush1.msra.mxu0 0.0
        %5892 = vmatprep.subr.mxu0 0.0
        %5893 = vmatpush1.msra.mxu0 0.0
        %5894 = vmatprep.subr.mxu0 0.0
        %5895 = vmatpush1.msra.mxu0 0.0
        %5896 = vmatprep.subr.mxu0 0.0
        %5897 = vmatpush1.msra.mxu0 0.0
        %5898 = vmatprep.subr.mxu0 0.0
        %5899 = vmatpush1.msra.mxu0 0.0
        %5900 = vmatprep.subr.mxu0 0.0
        %5901 = vmatpush1.msra.mxu0 0.0
        %5902 = vmatprep.subr.mxu0 0.0
        %5903 = vmatpush1.msra.mxu0 %v2186
        %5904 = vmatprep.subr.mxu0 0.0
        %5905 = vmatpush1.msra.mxu0 %v2050
        %5906 = vmatprep.subr.mxu0 0.0
        %5907 = vmatpush2.msra.mxu0 0.0
        %5908 = vmatprep.subr.mxu0 0.0
        %5909 = vmatpush2.msra.mxu0 0.0
        %5910 = vmatprep.subr.mxu0 0.0
        %5911 = vmatpush2.msra.mxu0 0.0
        %5912 = vmatprep.subr.mxu0 0.0
        %5913 = vmatpush2.msra.mxu0 0.0
        %5914 = vmatprep.subr.mxu0 0.0
        %5915 = vmatpush2.msra.mxu0 0.0
        %5916 = vmatprep.subr.mxu0 0.0
        %5917 = vmatpush2.msra.mxu0 0.0
        %5918 = vmatprep.subr.mxu0 0.0
        %5919 = vmatpush2.msra.mxu0 0.0
        %5920 = vmatprep.subr.mxu0 0.0
        %5921 = vmatpush2.msra.mxu0 0.0
        %5922 = vmatprep.subr.mxu0 0.0
        %5923 = vmatpush2.msra.mxu0 0.0
        %5924 = vmatprep.subr.mxu0 0.0
        %5925 = vmatpush2.msra.mxu0 0.0
        %5926 = vmatprep.subr.mxu0 0.0
        %5927 = vmatpush2.msra.mxu0 0.0
        %5928 = vmatprep.subr.mxu0 0.0
        %5929 = vmatpush2.msra.mxu0 0.0
        %5930 = vmatprep.subr.mxu0 0.0
        %5931 = vmatpush2.msra.mxu0 0.0
        %5932 = vmatprep.subr.mxu0 0.0
        %5933 = vmatpush2.msra.mxu0 0.0
        %5934 = vmatprep.subr.mxu0 0.0
        %5935 = vmatpush2.msra.mxu0 0.0
        %5936 = vmatprep.subr.mxu0 0.0
        %5937 = vmatpush2.msra.mxu0 0.0
        %5938 = vmatprep.mubr.f32.mxu0 0.0
        %5939 = vmatmul.mubr.f32.gmra.mxu0 %v5872
        %v5940 = vpop.f32.mrf.mxu0
        %v5941 = vadd.f32 %v4773, %v5940
        %v5942 = vpop.f32.mrf.mxu0
        %5943 = vdwg.mxu0
        %v5945 = vsel %vm1699, %v1023, 0
        %5947 = vmatprep.subr.mxu0 0.0
        %5948 = vmatpush1.msra.mxu0 0.0
        %5949 = vmatprep.subr.mxu0 0.0
        %5950 = vmatpush1.msra.mxu0 0.0
        %5951 = vmatprep.subr.mxu0 0.0
        %5952 = vmatpush1.msra.mxu0 0.0
        %5953 = vmatprep.subr.mxu0 0.0
        %5954 = vmatpush1.msra.mxu0 0.0
        %5955 = vmatprep.subr.mxu0 0.0
        %5956 = vmatpush1.msra.mxu0 0.0
        %5957 = vmatprep.subr.mxu0 0.0
        %5958 = vmatpush1.msra.mxu0 0.0
        %5959 = vmatprep.subr.mxu0 0.0
        %5960 = vmatpush1.msra.mxu0 0.0
        %5961 = vmatprep.subr.mxu0 0.0
        %5962 = vmatpush1.msra.mxu0 0.0
        %5963 = vmatprep.subr.mxu0 0.0
        %5964 = vmatpush1.msra.mxu0 0.0
        %5965 = vmatprep.subr.mxu0 0.0
        %5966 = vmatpush1.msra.mxu0 0.0
        %5967 = vmatprep.subr.mxu0 0.0
        %5968 = vmatpush1.msra.mxu0 0.0
        %5969 = vmatprep.subr.mxu0 0.0
        %5970 = vmatpush1.msra.mxu0 0.0
        %5971 = vmatprep.subr.mxu0 0.0
        %5972 = vmatpush1.msra.mxu0 0.0
        %5973 = vmatprep.subr.mxu0 0.0
        %5974 = vmatpush1.msra.mxu0 0.0
        %5975 = vmatprep.subr.mxu0 0.0
        %5976 = vmatpush1.msra.mxu0 %v2187
        %5977 = vmatprep.subr.mxu0 0.0
        %5978 = vmatpush1.msra.mxu0 %v2051
        %5979 = vmatprep.subr.mxu0 0.0
        %5980 = vmatpush2.msra.mxu0 0.0
        %5981 = vmatprep.subr.mxu0 0.0
        %5982 = vmatpush2.msra.mxu0 0.0
        %5983 = vmatprep.subr.mxu0 0.0
        %5984 = vmatpush2.msra.mxu0 0.0
        %5985 = vmatprep.subr.mxu0 0.0
        %5986 = vmatpush2.msra.mxu0 0.0
        %5987 = vmatprep.subr.mxu0 0.0
        %5988 = vmatpush2.msra.mxu0 0.0
        %5989 = vmatprep.subr.mxu0 0.0
        %5990 = vmatpush2.msra.mxu0 0.0
        %5991 = vmatprep.subr.mxu0 0.0
        %5992 = vmatpush2.msra.mxu0 0.0
        %5993 = vmatprep.subr.mxu0 0.0
        %5994 = vmatpush2.msra.mxu0 0.0
        %5995 = vmatprep.subr.mxu0 0.0
        %5996 = vmatpush2.msra.mxu0 0.0
        %5997 = vmatprep.subr.mxu0 0.0
        %5998 = vmatpush2.msra.mxu0 0.0
        %5999 = vmatprep.subr.mxu0 0.0
        %6000 = vmatpush2.msra.mxu0 0.0
        %6001 = vmatprep.subr.mxu0 0.0
        %6002 = vmatpush2.msra.mxu0 0.0
        %6003 = vmatprep.subr.mxu0 0.0
        %6004 = vmatpush2.msra.mxu0 0.0
        %6005 = vmatprep.subr.mxu0 0.0
        %6006 = vmatpush2.msra.mxu0 0.0
        %6007 = vmatprep.subr.mxu0 0.0
        %6008 = vmatpush2.msra.mxu0 0.0
        %6009 = vmatprep.subr.mxu0 0.0
        %6010 = vmatpush2.msra.mxu0 0.0
        %6011 = vmatprep.mubr.f32.mxu0 0.0
        %6012 = vmatmul.mubr.f32.gmra.mxu0 %v5945
        %v6013 = vpop.f32.mrf.mxu0
        %v6014 = vadd.f32 %v4846, %v6013
        %v6015 = vpop.f32.mrf.mxu0
        %6016 = vdwg.mxu0
        %v6018 = vsel %vm1699, %v1024, 0
        %6020 = vmatprep.subr.mxu0 0.0
        %6021 = vmatpush1.msra.mxu0 0.0
        %6022 = vmatprep.subr.mxu0 0.0
        %6023 = vmatpush1.msra.mxu0 0.0
        %6024 = vmatprep.subr.mxu0 0.0
        %6025 = vmatpush1.msra.mxu0 0.0
        %6026 = vmatprep.subr.mxu0 0.0
        %6027 = vmatpush1.msra.mxu0 0.0
        %6028 = vmatprep.subr.mxu0 0.0
        %6029 = vmatpush1.msra.mxu0 0.0
        %6030 = vmatprep.subr.mxu0 0.0
        %6031 = vmatpush1.msra.mxu0 0.0
        %6032 = vmatprep.subr.mxu0 0.0
        %6033 = vmatpush1.msra.mxu0 0.0
        %6034 = vmatprep.subr.mxu0 0.0
        %6035 = vmatpush1.msra.mxu0 0.0
        %6036 = vmatprep.subr.mxu0 0.0
        %6037 = vmatpush1.msra.mxu0 0.0
        %6038 = vmatprep.subr.mxu0 0.0
        %6039 = vmatpush1.msra.mxu0 0.0
        %6040 = vmatprep.subr.mxu0 0.0
        %6041 = vmatpush1.msra.mxu0 0.0
        %6042 = vmatprep.subr.mxu0 0.0
        %6043 = vmatpush1.msra.mxu0 0.0
        %6044 = vmatprep.subr.mxu0 0.0
        %6045 = vmatpush1.msra.mxu0 0.0
        %6046 = vmatprep.subr.mxu0 0.0
        %6047 = vmatpush1.msra.mxu0 0.0
        %6048 = vmatprep.subr.mxu0 0.0
        %6049 = vmatpush1.msra.mxu0 %v2188
        %6050 = vmatprep.subr.mxu0 0.0
        %6051 = vmatpush1.msra.mxu0 %v2052
        %6052 = vmatprep.subr.mxu0 0.0
        %6053 = vmatpush2.msra.mxu0 0.0
        %6054 = vmatprep.subr.mxu0 0.0
        %6055 = vmatpush2.msra.mxu0 0.0
        %6056 = vmatprep.subr.mxu0 0.0
        %6057 = vmatpush2.msra.mxu0 0.0
        %6058 = vmatprep.subr.mxu0 0.0
        %6059 = vmatpush2.msra.mxu0 0.0
        %6060 = vmatprep.subr.mxu0 0.0
        %6061 = vmatpush2.msra.mxu0 0.0
        %6062 = vmatprep.subr.mxu0 0.0
        %6063 = vmatpush2.msra.mxu0 0.0
        %6064 = vmatprep.subr.mxu0 0.0
        %6065 = vmatpush2.msra.mxu0 0.0
        %6066 = vmatprep.subr.mxu0 0.0
        %6067 = vmatpush2.msra.mxu0 0.0
        %6068 = vmatprep.subr.mxu0 0.0
        %6069 = vmatpush2.msra.mxu0 0.0
        %6070 = vmatprep.subr.mxu0 0.0
        %6071 = vmatpush2.msra.mxu0 0.0
        %6072 = vmatprep.subr.mxu0 0.0
        %6073 = vmatpush2.msra.mxu0 0.0
        %6074 = vmatprep.subr.mxu0 0.0
        %6075 = vmatpush2.msra.mxu0 0.0
        %6076 = vmatprep.subr.mxu0 0.0
        %6077 = vmatpush2.msra.mxu0 0.0
        %6078 = vmatprep.subr.mxu0 0.0
        %6079 = vmatpush2.msra.mxu0 0.0
        %6080 = vmatprep.subr.mxu0 0.0
        %6081 = vmatpush2.msra.mxu0 0.0
        %6082 = vmatprep.subr.mxu0 0.0
        %6083 = vmatpush2.msra.mxu0 0.0
        %6084 = vmatprep.mubr.f32.mxu0 0.0
        %6085 = vmatmul.mubr.f32.gmra.mxu0 %v6018
        %v6086 = vpop.f32.mrf.mxu0
        %v6087 = vadd.f32 %v4919, %v6086
        %v6088 = vpop.f32.mrf.mxu0
        %6089 = vdwg.mxu0
        %v6091 = vsel %vm1699, %v1153, 0
        %6093 = vmatprep.subr.mxu0 0.0
        %6094 = vmatpush1.msra.mxu0 0.0
        %6095 = vmatprep.subr.mxu0 0.0
        %6096 = vmatpush1.msra.mxu0 0.0
        %6097 = vmatprep.subr.mxu0 0.0
        %6098 = vmatpush1.msra.mxu0 0.0
        %6099 = vmatprep.subr.mxu0 0.0
        %6100 = vmatpush1.msra.mxu0 0.0
        %6101 = vmatprep.subr.mxu0 0.0
        %6102 = vmatpush1.msra.mxu0 0.0
        %6103 = vmatprep.subr.mxu0 0.0
        %6104 = vmatpush1.msra.mxu0 0.0
        %6105 = vmatprep.subr.mxu0 0.0
        %6106 = vmatpush1.msra.mxu0 0.0
        %6107 = vmatprep.subr.mxu0 0.0
        %6108 = vmatpush1.msra.mxu0 0.0
        %6109 = vmatprep.subr.mxu0 0.0
        %6110 = vmatpush1.msra.mxu0 0.0
        %6111 = vmatprep.subr.mxu0 0.0
        %6112 = vmatpush1.msra.mxu0 0.0
        %6113 = vmatprep.subr.mxu0 0.0
        %6114 = vmatpush1.msra.mxu0 0.0
        %6115 = vmatprep.subr.mxu0 0.0
        %6116 = vmatpush1.msra.mxu0 0.0
        %6117 = vmatprep.subr.mxu0 0.0
        %6118 = vmatpush1.msra.mxu0 0.0
        %6119 = vmatprep.subr.mxu0 0.0
        %6120 = vmatpush1.msra.mxu0 0.0
        %6121 = vmatprep.subr.mxu0 0.0
        %6122 = vmatpush1.msra.mxu0 %v2453
        %6123 = vmatprep.subr.mxu0 0.0
        %6124 = vmatpush1.msra.mxu0 %v2317
        %6125 = vmatprep.subr.mxu0 0.0
        %6126 = vmatpush2.msra.mxu0 0.0
        %6127 = vmatprep.subr.mxu0 0.0
        %6128 = vmatpush2.msra.mxu0 0.0
        %6129 = vmatprep.subr.mxu0 0.0
        %6130 = vmatpush2.msra.mxu0 0.0
        %6131 = vmatprep.subr.mxu0 0.0
        %6132 = vmatpush2.msra.mxu0 0.0
        %6133 = vmatprep.subr.mxu0 0.0
        %6134 = vmatpush2.msra.mxu0 0.0
        %6135 = vmatprep.subr.mxu0 0.0
        %6136 = vmatpush2.msra.mxu0 0.0
        %6137 = vmatprep.subr.mxu0 0.0
        %6138 = vmatpush2.msra.mxu0 0.0
        %6139 = vmatprep.subr.mxu0 0.0
        %6140 = vmatpush2.msra.mxu0 0.0
        %6141 = vmatprep.subr.mxu0 0.0
        %6142 = vmatpush2.msra.mxu0 0.0
        %6143 = vmatprep.subr.mxu0 0.0
        %6144 = vmatpush2.msra.mxu0 0.0
        %6145 = vmatprep.subr.mxu0 0.0
        %6146 = vmatpush2.msra.mxu0 0.0
        %6147 = vmatprep.subr.mxu0 0.0
        %6148 = vmatpush2.msra.mxu0 0.0
        %6149 = vmatprep.subr.mxu0 0.0
        %6150 = vmatpush2.msra.mxu0 0.0
        %6151 = vmatprep.subr.mxu0 0.0
        %6152 = vmatpush2.msra.mxu0 0.0
        %6153 = vmatprep.subr.mxu0 0.0
        %6154 = vmatpush2.msra.mxu0 0.0
        %6155 = vmatprep.subr.mxu0 0.0
        %6156 = vmatpush2.msra.mxu0 0.0
        %6157 = vmatprep.mubr.f32.mxu0 0.0
        %6158 = vmatmul.mubr.f32.gmra.mxu0 %v6091
        %v6159 = vpop.f32.mrf.mxu0
        %v6160 = vadd.f32 %v4992, %v6159
        %v6161 = vpop.f32.mrf.mxu0
        %6162 = vdwg.mxu0
        %v6164 = vsel %vm1699, %v1154, 0
        %6166 = vmatprep.subr.mxu0 0.0
        %6167 = vmatpush1.msra.mxu0 0.0
        %6168 = vmatprep.subr.mxu0 0.0
        %6169 = vmatpush1.msra.mxu0 0.0
        %6170 = vmatprep.subr.mxu0 0.0
        %6171 = vmatpush1.msra.mxu0 0.0
        %6172 = vmatprep.subr.mxu0 0.0
        %6173 = vmatpush1.msra.mxu0 0.0
        %6174 = vmatprep.subr.mxu0 0.0
        %6175 = vmatpush1.msra.mxu0 0.0
        %6176 = vmatprep.subr.mxu0 0.0
        %6177 = vmatpush1.msra.mxu0 0.0
        %6178 = vmatprep.subr.mxu0 0.0
        %6179 = vmatpush1.msra.mxu0 0.0
        %6180 = vmatprep.subr.mxu0 0.0
        %6181 = vmatpush1.msra.mxu0 0.0
        %6182 = vmatprep.subr.mxu0 0.0
        %6183 = vmatpush1.msra.mxu0 0.0
        %6184 = vmatprep.subr.mxu0 0.0
        %6185 = vmatpush1.msra.mxu0 0.0
        %6186 = vmatprep.subr.mxu0 0.0
        %6187 = vmatpush1.msra.mxu0 0.0
        %6188 = vmatprep.subr.mxu0 0.0
        %6189 = vmatpush1.msra.mxu0 0.0
        %6190 = vmatprep.subr.mxu0 0.0
        %6191 = vmatpush1.msra.mxu0 0.0
        %6192 = vmatprep.subr.mxu0 0.0
        %6193 = vmatpush1.msra.mxu0 0.0
        %6194 = vmatprep.subr.mxu0 0.0
        %6195 = vmatpush1.msra.mxu0 %v2454
        %6196 = vmatprep.subr.mxu0 0.0
        %6197 = vmatpush1.msra.mxu0 %v2318
        %6198 = vmatprep.subr.mxu0 0.0
        %6199 = vmatpush2.msra.mxu0 0.0
        %6200 = vmatprep.subr.mxu0 0.0
        %6201 = vmatpush2.msra.mxu0 0.0
        %6202 = vmatprep.subr.mxu0 0.0
        %6203 = vmatpush2.msra.mxu0 0.0
        %6204 = vmatprep.subr.mxu0 0.0
        %6205 = vmatpush2.msra.mxu0 0.0
        %6206 = vmatprep.subr.mxu0 0.0
        %6207 = vmatpush2.msra.mxu0 0.0
        %6208 = vmatprep.subr.mxu0 0.0
        %6209 = vmatpush2.msra.mxu0 0.0
        %6210 = vmatprep.subr.mxu0 0.0
        %6211 = vmatpush2.msra.mxu0 0.0
        %6212 = vmatprep.subr.mxu0 0.0
        %6213 = vmatpush2.msra.mxu0 0.0
        %6214 = vmatprep.subr.mxu0 0.0
        %6215 = vmatpush2.msra.mxu0 0.0
        %6216 = vmatprep.subr.mxu0 0.0
        %6217 = vmatpush2.msra.mxu0 0.0
        %6218 = vmatprep.subr.mxu0 0.0
        %6219 = vmatpush2.msra.mxu0 0.0
        %6220 = vmatprep.subr.mxu0 0.0
        %6221 = vmatpush2.msra.mxu0 0.0
        %6222 = vmatprep.subr.mxu0 0.0
        %6223 = vmatpush2.msra.mxu0 0.0
        %6224 = vmatprep.subr.mxu0 0.0
        %6225 = vmatpush2.msra.mxu0 0.0
        %6226 = vmatprep.subr.mxu0 0.0
        %6227 = vmatpush2.msra.mxu0 0.0
        %6228 = vmatprep.subr.mxu0 0.0
        %6229 = vmatpush2.msra.mxu0 0.0
        %6230 = vmatprep.mubr.f32.mxu0 0.0
        %6231 = vmatmul.mubr.f32.gmra.mxu0 %v6164
        %v6232 = vpop.f32.mrf.mxu0
        %v6233 = vadd.f32 %v5065, %v6232
        %v6234 = vpop.f32.mrf.mxu0
        %6235 = vdwg.mxu0
        %v6237 = vsel %vm1699, %v1155, 0
        %6239 = vmatprep.subr.mxu0 0.0
        %6240 = vmatpush1.msra.mxu0 0.0
        %6241 = vmatprep.subr.mxu0 0.0
        %6242 = vmatpush1.msra.mxu0 0.0
        %6243 = vmatprep.subr.mxu0 0.0
        %6244 = vmatpush1.msra.mxu0 0.0
        %6245 = vmatprep.subr.mxu0 0.0
        %6246 = vmatpush1.msra.mxu0 0.0
        %6247 = vmatprep.subr.mxu0 0.0
        %6248 = vmatpush1.msra.mxu0 0.0
        %6249 = vmatprep.subr.mxu0 0.0
        %6250 = vmatpush1.msra.mxu0 0.0
        %6251 = vmatprep.subr.mxu0 0.0
        %6252 = vmatpush1.msra.mxu0 0.0
        %6253 = vmatprep.subr.mxu0 0.0
        %6254 = vmatpush1.msra.mxu0 0.0
        %6255 = vmatprep.subr.mxu0 0.0
        %6256 = vmatpush1.msra.mxu0 0.0
        %6257 = vmatprep.subr.mxu0 0.0
        %6258 = vmatpush1.msra.mxu0 0.0
        %6259 = vmatprep.subr.mxu0 0.0
        %6260 = vmatpush1.msra.mxu0 0.0
        %6261 = vmatprep.subr.mxu0 0.0
        %6262 = vmatpush1.msra.mxu0 0.0
        %6263 = vmatprep.subr.mxu0 0.0
        %6264 = vmatpush1.msra.mxu0 0.0
        %6265 = vmatprep.subr.mxu0 0.0
        %6266 = vmatpush1.msra.mxu0 0.0
        %6267 = vmatprep.subr.mxu0 0.0
        %6268 = vmatpush1.msra.mxu0 %v2455
        %6269 = vmatprep.subr.mxu0 0.0
        %6270 = vmatpush1.msra.mxu0 %v2319
        %6271 = vmatprep.subr.mxu0 0.0
        %6272 = vmatpush2.msra.mxu0 0.0
        %6273 = vmatprep.subr.mxu0 0.0
        %6274 = vmatpush2.msra.mxu0 0.0
        %6275 = vmatprep.subr.mxu0 0.0
        %6276 = vmatpush2.msra.mxu0 0.0
        %6277 = vmatprep.subr.mxu0 0.0
        %6278 = vmatpush2.msra.mxu0 0.0
        %6279 = vmatprep.subr.mxu0 0.0
        %6280 = vmatpush2.msra.mxu0 0.0
        %6281 = vmatprep.subr.mxu0 0.0
        %6282 = vmatpush2.msra.mxu0 0.0
        %6283 = vmatprep.subr.mxu0 0.0
        %6284 = vmatpush2.msra.mxu0 0.0
        %6285 = vmatprep.subr.mxu0 0.0
        %6286 = vmatpush2.msra.mxu0 0.0
        %6287 = vmatprep.subr.mxu0 0.0
        %6288 = vmatpush2.msra.mxu0 0.0
        %6289 = vmatprep.subr.mxu0 0.0
        %6290 = vmatpush2.msra.mxu0 0.0
        %6291 = vmatprep.subr.mxu0 0.0
        %6292 = vmatpush2.msra.mxu0 0.0
        %6293 = vmatprep.subr.mxu0 0.0
        %6294 = vmatpush2.msra.mxu0 0.0
        %6295 = vmatprep.subr.mxu0 0.0
        %6296 = vmatpush2.msra.mxu0 0.0
        %6297 = vmatprep.subr.mxu0 0.0
        %6298 = vmatpush2.msra.mxu0 0.0
        %6299 = vmatprep.subr.mxu0 0.0
        %6300 = vmatpush2.msra.mxu0 0.0
        %6301 = vmatprep.subr.mxu0 0.0
        %6302 = vmatpush2.msra.mxu0 0.0
        %6303 = vmatprep.mubr.f32.mxu0 0.0
        %6304 = vmatmul.mubr.f32.gmra.mxu0 %v6237
        %v6305 = vpop.f32.mrf.mxu0
        %v6306 = vadd.f32 %v5138, %v6305
        %v6307 = vpop.f32.mrf.mxu0
        %6308 = vdwg.mxu0
        %v6310 = vsel %vm1699, %v1156, 0
        %6312 = vmatprep.subr.mxu0 0.0
        %6313 = vmatpush1.msra.mxu0 0.0
        %6314 = vmatprep.subr.mxu0 0.0
        %6315 = vmatpush1.msra.mxu0 0.0
        %6316 = vmatprep.subr.mxu0 0.0
        %6317 = vmatpush1.msra.mxu0 0.0
        %6318 = vmatprep.subr.mxu0 0.0
        %6319 = vmatpush1.msra.mxu0 0.0
        %6320 = vmatprep.subr.mxu0 0.0
        %6321 = vmatpush1.msra.mxu0 0.0
        %6322 = vmatprep.subr.mxu0 0.0
        %6323 = vmatpush1.msra.mxu0 0.0
        %6324 = vmatprep.subr.mxu0 0.0
        %6325 = vmatpush1.msra.mxu0 0.0
        %6326 = vmatprep.subr.mxu0 0.0
        %6327 = vmatpush1.msra.mxu0 0.0
        %6328 = vmatprep.subr.mxu0 0.0
        %6329 = vmatpush1.msra.mxu0 0.0
        %6330 = vmatprep.subr.mxu0 0.0
        %6331 = vmatpush1.msra.mxu0 0.0
        %6332 = vmatprep.subr.mxu0 0.0
        %6333 = vmatpush1.msra.mxu0 0.0
        %6334 = vmatprep.subr.mxu0 0.0
        %6335 = vmatpush1.msra.mxu0 0.0
        %6336 = vmatprep.subr.mxu0 0.0
        %6337 = vmatpush1.msra.mxu0 0.0
        %6338 = vmatprep.subr.mxu0 0.0
        %6339 = vmatpush1.msra.mxu0 0.0
        %6340 = vmatprep.subr.mxu0 0.0
        %6341 = vmatpush1.msra.mxu0 %v2456
        %6342 = vmatprep.subr.mxu0 0.0
        %6343 = vmatpush1.msra.mxu0 %v2320
        %6344 = vmatprep.subr.mxu0 0.0
        %6345 = vmatpush2.msra.mxu0 0.0
        %6346 = vmatprep.subr.mxu0 0.0
        %6347 = vmatpush2.msra.mxu0 0.0
        %6348 = vmatprep.subr.mxu0 0.0
        %6349 = vmatpush2.msra.mxu0 0.0
        %6350 = vmatprep.subr.mxu0 0.0
        %6351 = vmatpush2.msra.mxu0 0.0
        %6352 = vmatprep.subr.mxu0 0.0
        %6353 = vmatpush2.msra.mxu0 0.0
        %6354 = vmatprep.subr.mxu0 0.0
        %6355 = vmatpush2.msra.mxu0 0.0
        %6356 = vmatprep.subr.mxu0 0.0
        %6357 = vmatpush2.msra.mxu0 0.0
        %6358 = vmatprep.subr.mxu0 0.0
        %6359 = vmatpush2.msra.mxu0 0.0
        %6360 = vmatprep.subr.mxu0 0.0
        %6361 = vmatpush2.msra.mxu0 0.0
        %6362 = vmatprep.subr.mxu0 0.0
        %6363 = vmatpush2.msra.mxu0 0.0
        %6364 = vmatprep.subr.mxu0 0.0
        %6365 = vmatpush2.msra.mxu0 0.0
        %6366 = vmatprep.subr.mxu0 0.0
        %6367 = vmatpush2.msra.mxu0 0.0
        %6368 = vmatprep.subr.mxu0 0.0
        %6369 = vmatpush2.msra.mxu0 0.0
        %6370 = vmatprep.subr.mxu0 0.0
        %6371 = vmatpush2.msra.mxu0 0.0
        %6372 = vmatprep.subr.mxu0 0.0
        %6373 = vmatpush2.msra.mxu0 0.0
        %6374 = vmatprep.subr.mxu0 0.0
        %6375 = vmatpush2.msra.mxu0 0.0
        %6376 = vmatprep.mubr.f32.mxu0 0.0
        %6377 = vmatmul.mubr.f32.gmra.mxu0 %v6310
        %v6378 = vpop.f32.mrf.mxu0
        %v6379 = vadd.f32 %v5211, %v6378
        %v6380 = vpop.f32.mrf.mxu0
        %6381 = vdwg.mxu0
        %v6383 = vsel %vm1699, %v1157, 0
        %6385 = vmatprep.subr.mxu0 0.0
        %6386 = vmatpush1.msra.mxu0 0.0
        %6387 = vmatprep.subr.mxu0 0.0
        %6388 = vmatpush1.msra.mxu0 0.0
        %6389 = vmatprep.subr.mxu0 0.0
        %6390 = vmatpush1.msra.mxu0 0.0
        %6391 = vmatprep.subr.mxu0 0.0
        %6392 = vmatpush1.msra.mxu0 0.0
        %6393 = vmatprep.subr.mxu0 0.0
        %6394 = vmatpush1.msra.mxu0 0.0
        %6395 = vmatprep.subr.mxu0 0.0
        %6396 = vmatpush1.msra.mxu0 0.0
        %6397 = vmatprep.subr.mxu0 0.0
        %6398 = vmatpush1.msra.mxu0 0.0
        %6399 = vmatprep.subr.mxu0 0.0
        %6400 = vmatpush1.msra.mxu0 0.0
        %6401 = vmatprep.subr.mxu0 0.0
        %6402 = vmatpush1.msra.mxu0 0.0
        %6403 = vmatprep.subr.mxu0 0.0
        %6404 = vmatpush1.msra.mxu0 0.0
        %6405 = vmatprep.subr.mxu0 0.0
        %6406 = vmatpush1.msra.mxu0 0.0
        %6407 = vmatprep.subr.mxu0 0.0
        %6408 = vmatpush1.msra.mxu0 0.0
        %6409 = vmatprep.subr.mxu0 0.0
        %6410 = vmatpush1.msra.mxu0 0.0
        %6411 = vmatprep.subr.mxu0 0.0
        %6412 = vmatpush1.msra.mxu0 0.0
        %6413 = vmatprep.subr.mxu0 0.0
        %6414 = vmatpush1.msra.mxu0 %v2457
        %6415 = vmatprep.subr.mxu0 0.0
        %6416 = vmatpush1.msra.mxu0 %v2321
        %6417 = vmatprep.subr.mxu0 0.0
        %6418 = vmatpush2.msra.mxu0 0.0
        %6419 = vmatprep.subr.mxu0 0.0
        %6420 = vmatpush2.msra.mxu0 0.0
        %6421 = vmatprep.subr.mxu0 0.0
        %6422 = vmatpush2.msra.mxu0 0.0
        %6423 = vmatprep.subr.mxu0 0.0
        %6424 = vmatpush2.msra.mxu0 0.0
        %6425 = vmatprep.subr.mxu0 0.0
        %6426 = vmatpush2.msra.mxu0 0.0
        %6427 = vmatprep.subr.mxu0 0.0
        %6428 = vmatpush2.msra.mxu0 0.0
        %6429 = vmatprep.subr.mxu0 0.0
        %6430 = vmatpush2.msra.mxu0 0.0
        %6431 = vmatprep.subr.mxu0 0.0
        %6432 = vmatpush2.msra.mxu0 0.0
        %6433 = vmatprep.subr.mxu0 0.0
        %6434 = vmatpush2.msra.mxu0 0.0
        %6435 = vmatprep.subr.mxu0 0.0
        %6436 = vmatpush2.msra.mxu0 0.0
        %6437 = vmatprep.subr.mxu0 0.0
        %6438 = vmatpush2.msra.mxu0 0.0
        %6439 = vmatprep.subr.mxu0 0.0
        %6440 = vmatpush2.msra.mxu0 0.0
        %6441 = vmatprep.subr.mxu0 0.0
        %6442 = vmatpush2.msra.mxu0 0.0
        %6443 = vmatprep.subr.mxu0 0.0
        %6444 = vmatpush2.msra.mxu0 0.0
        %6445 = vmatprep.subr.mxu0 0.0
        %6446 = vmatpush2.msra.mxu0 0.0
        %6447 = vmatprep.subr.mxu0 0.0
        %6448 = vmatpush2.msra.mxu0 0.0
        %6449 = vmatprep.mubr.f32.mxu0 0.0
        %6450 = vmatmul.mubr.f32.gmra.mxu0 %v6383
        %v6451 = vpop.f32.mrf.mxu0
        %v6452 = vadd.f32 %v5284, %v6451
        %v6453 = vpop.f32.mrf.mxu0
        %6454 = vdwg.mxu0
        %v6456 = vsel %vm1699, %v1158, 0
        %6458 = vmatprep.subr.mxu0 0.0
        %6459 = vmatpush1.msra.mxu0 0.0
        %6460 = vmatprep.subr.mxu0 0.0
        %6461 = vmatpush1.msra.mxu0 0.0
        %6462 = vmatprep.subr.mxu0 0.0
        %6463 = vmatpush1.msra.mxu0 0.0
        %6464 = vmatprep.subr.mxu0 0.0
        %6465 = vmatpush1.msra.mxu0 0.0
        %6466 = vmatprep.subr.mxu0 0.0
        %6467 = vmatpush1.msra.mxu0 0.0
        %6468 = vmatprep.subr.mxu0 0.0
        %6469 = vmatpush1.msra.mxu0 0.0
        %6470 = vmatprep.subr.mxu0 0.0
        %6471 = vmatpush1.msra.mxu0 0.0
        %6472 = vmatprep.subr.mxu0 0.0
        %6473 = vmatpush1.msra.mxu0 0.0
        %6474 = vmatprep.subr.mxu0 0.0
        %6475 = vmatpush1.msra.mxu0 0.0
        %6476 = vmatprep.subr.mxu0 0.0
        %6477 = vmatpush1.msra.mxu0 0.0
        %6478 = vmatprep.subr.mxu0 0.0
        %6479 = vmatpush1.msra.mxu0 0.0
        %6480 = vmatprep.subr.mxu0 0.0
        %6481 = vmatpush1.msra.mxu0 0.0
        %6482 = vmatprep.subr.mxu0 0.0
        %6483 = vmatpush1.msra.mxu0 0.0
        %6484 = vmatprep.subr.mxu0 0.0
        %6485 = vmatpush1.msra.mxu0 0.0
        %6486 = vmatprep.subr.mxu0 0.0
        %6487 = vmatpush1.msra.mxu0 %v2458
        %6488 = vmatprep.subr.mxu0 0.0
        %6489 = vmatpush1.msra.mxu0 %v2322
        %6490 = vmatprep.subr.mxu0 0.0
        %6491 = vmatpush2.msra.mxu0 0.0
        %6492 = vmatprep.subr.mxu0 0.0
        %6493 = vmatpush2.msra.mxu0 0.0
        %6494 = vmatprep.subr.mxu0 0.0
        %6495 = vmatpush2.msra.mxu0 0.0
        %6496 = vmatprep.subr.mxu0 0.0
        %6497 = vmatpush2.msra.mxu0 0.0
        %6498 = vmatprep.subr.mxu0 0.0
        %6499 = vmatpush2.msra.mxu0 0.0
        %6500 = vmatprep.subr.mxu0 0.0
        %6501 = vmatpush2.msra.mxu0 0.0
        %6502 = vmatprep.subr.mxu0 0.0
        %6503 = vmatpush2.msra.mxu0 0.0
        %6504 = vmatprep.subr.mxu0 0.0
        %6505 = vmatpush2.msra.mxu0 0.0
        %6506 = vmatprep.subr.mxu0 0.0
        %6507 = vmatpush2.msra.mxu0 0.0
        %6508 = vmatprep.subr.mxu0 0.0
        %6509 = vmatpush2.msra.mxu0 0.0
        %6510 = vmatprep.subr.mxu0 0.0
        %6511 = vmatpush2.msra.mxu0 0.0
        %6512 = vmatprep.subr.mxu0 0.0
        %6513 = vmatpush2.msra.mxu0 0.0
        %6514 = vmatprep.subr.mxu0 0.0
        %6515 = vmatpush2.msra.mxu0 0.0
        %6516 = vmatprep.subr.mxu0 0.0
        %6517 = vmatpush2.msra.mxu0 0.0
        %6518 = vmatprep.subr.mxu0 0.0
        %6519 = vmatpush2.msra.mxu0 0.0
        %6520 = vmatprep.subr.mxu0 0.0
        %6521 = vmatpush2.msra.mxu0 0.0
        %6522 = vmatprep.mubr.f32.mxu0 0.0
        %6523 = vmatmul.mubr.f32.gmra.mxu0 %v6456
        %v6524 = vpop.f32.mrf.mxu0
        %v6525 = vadd.f32 %v5357, %v6524
        %v6526 = vpop.f32.mrf.mxu0
        %6527 = vdwg.mxu0
        %v6529 = vsel %vm1699, %v1159, 0
        %6531 = vmatprep.subr.mxu0 0.0
        %6532 = vmatpush1.msra.mxu0 0.0
        %6533 = vmatprep.subr.mxu0 0.0
        %6534 = vmatpush1.msra.mxu0 0.0
        %6535 = vmatprep.subr.mxu0 0.0
        %6536 = vmatpush1.msra.mxu0 0.0
        %6537 = vmatprep.subr.mxu0 0.0
        %6538 = vmatpush1.msra.mxu0 0.0
        %6539 = vmatprep.subr.mxu0 0.0
        %6540 = vmatpush1.msra.mxu0 0.0
        %6541 = vmatprep.subr.mxu0 0.0
        %6542 = vmatpush1.msra.mxu0 0.0
        %6543 = vmatprep.subr.mxu0 0.0
        %6544 = vmatpush1.msra.mxu0 0.0
        %6545 = vmatprep.subr.mxu0 0.0
        %6546 = vmatpush1.msra.mxu0 0.0
        %6547 = vmatprep.subr.mxu0 0.0
        %6548 = vmatpush1.msra.mxu0 0.0
        %6549 = vmatprep.subr.mxu0 0.0
        %6550 = vmatpush1.msra.mxu0 0.0
        %6551 = vmatprep.subr.mxu0 0.0
        %6552 = vmatpush1.msra.mxu0 0.0
        %6553 = vmatprep.subr.mxu0 0.0
        %6554 = vmatpush1.msra.mxu0 0.0
        %6555 = vmatprep.subr.mxu0 0.0
        %6556 = vmatpush1.msra.mxu0 0.0
        %6557 = vmatprep.subr.mxu0 0.0
        %6558 = vmatpush1.msra.mxu0 0.0
        %6559 = vmatprep.subr.mxu0 0.0
        %6560 = vmatpush1.msra.mxu0 %v2459
        %6561 = vmatprep.subr.mxu0 0.0
        %6562 = vmatpush1.msra.mxu0 %v2323
        %6563 = vmatprep.subr.mxu0 0.0
        %6564 = vmatpush2.msra.mxu0 0.0
        %6565 = vmatprep.subr.mxu0 0.0
        %6566 = vmatpush2.msra.mxu0 0.0
        %6567 = vmatprep.subr.mxu0 0.0
        %6568 = vmatpush2.msra.mxu0 0.0
        %6569 = vmatprep.subr.mxu0 0.0
        %6570 = vmatpush2.msra.mxu0 0.0
        %6571 = vmatprep.subr.mxu0 0.0
        %6572 = vmatpush2.msra.mxu0 0.0
        %6573 = vmatprep.subr.mxu0 0.0
        %6574 = vmatpush2.msra.mxu0 0.0
        %6575 = vmatprep.subr.mxu0 0.0
        %6576 = vmatpush2.msra.mxu0 0.0
        %6577 = vmatprep.subr.mxu0 0.0
        %6578 = vmatpush2.msra.mxu0 0.0
        %6579 = vmatprep.subr.mxu0 0.0
        %6580 = vmatpush2.msra.mxu0 0.0
        %6581 = vmatprep.subr.mxu0 0.0
        %6582 = vmatpush2.msra.mxu0 0.0
        %6583 = vmatprep.subr.mxu0 0.0
        %6584 = vmatpush2.msra.mxu0 0.0
        %6585 = vmatprep.subr.mxu0 0.0
        %6586 = vmatpush2.msra.mxu0 0.0
        %6587 = vmatprep.subr.mxu0 0.0
        %6588 = vmatpush2.msra.mxu0 0.0
        %6589 = vmatprep.subr.mxu0 0.0
        %6590 = vmatpush2.msra.mxu0 0.0
        %6591 = vmatprep.subr.mxu0 0.0
        %6592 = vmatpush2.msra.mxu0 0.0
        %6593 = vmatprep.subr.mxu0 0.0
        %6594 = vmatpush2.msra.mxu0 0.0
        %6595 = vmatprep.mubr.f32.mxu0 0.0
        %6596 = vmatmul.mubr.f32.gmra.mxu0 %v6529
        %v6597 = vpop.f32.mrf.mxu0
        %v6598 = vadd.f32 %v5430, %v6597
        %v6599 = vpop.f32.mrf.mxu0
        %6600 = vdwg.mxu0
        %v6602 = vsel %vm1699, %v1160, 0
        %6604 = vmatprep.subr.mxu0 0.0
        %6605 = vmatpush1.msra.mxu0 0.0
        %6606 = vmatprep.subr.mxu0 0.0
        %6607 = vmatpush1.msra.mxu0 0.0
        %6608 = vmatprep.subr.mxu0 0.0
        %6609 = vmatpush1.msra.mxu0 0.0
        %6610 = vmatprep.subr.mxu0 0.0
        %6611 = vmatpush1.msra.mxu0 0.0
        %6612 = vmatprep.subr.mxu0 0.0
        %6613 = vmatpush1.msra.mxu0 0.0
        %6614 = vmatprep.subr.mxu0 0.0
        %6615 = vmatpush1.msra.mxu0 0.0
        %6616 = vmatprep.subr.mxu0 0.0
        %6617 = vmatpush1.msra.mxu0 0.0
        %6618 = vmatprep.subr.mxu0 0.0
        %6619 = vmatpush1.msra.mxu0 0.0
        %6620 = vmatprep.subr.mxu0 0.0
        %6621 = vmatpush1.msra.mxu0 0.0
        %6622 = vmatprep.subr.mxu0 0.0
        %6623 = vmatpush1.msra.mxu0 0.0
        %6624 = vmatprep.subr.mxu0 0.0
        %6625 = vmatpush1.msra.mxu0 0.0
        %6626 = vmatprep.subr.mxu0 0.0
        %6627 = vmatpush1.msra.mxu0 0.0
        %6628 = vmatprep.subr.mxu0 0.0
        %6629 = vmatpush1.msra.mxu0 0.0
        %6630 = vmatprep.subr.mxu0 0.0
        %6631 = vmatpush1.msra.mxu0 0.0
        %6632 = vmatprep.subr.mxu0 0.0
        %6633 = vmatpush1.msra.mxu0 %v2460
        %6634 = vmatprep.subr.mxu0 0.0
        %6635 = vmatpush1.msra.mxu0 %v2324
        %6636 = vmatprep.subr.mxu0 0.0
        %6637 = vmatpush2.msra.mxu0 0.0
        %6638 = vmatprep.subr.mxu0 0.0
        %6639 = vmatpush2.msra.mxu0 0.0
        %6640 = vmatprep.subr.mxu0 0.0
        %6641 = vmatpush2.msra.mxu0 0.0
        %6642 = vmatprep.subr.mxu0 0.0
        %6643 = vmatpush2.msra.mxu0 0.0
        %6644 = vmatprep.subr.mxu0 0.0
        %6645 = vmatpush2.msra.mxu0 0.0
        %6646 = vmatprep.subr.mxu0 0.0
        %6647 = vmatpush2.msra.mxu0 0.0
        %6648 = vmatprep.subr.mxu0 0.0
        %6649 = vmatpush2.msra.mxu0 0.0
        %6650 = vmatprep.subr.mxu0 0.0
        %6651 = vmatpush2.msra.mxu0 0.0
        %6652 = vmatprep.subr.mxu0 0.0
        %6653 = vmatpush2.msra.mxu0 0.0
        %6654 = vmatprep.subr.mxu0 0.0
        %6655 = vmatpush2.msra.mxu0 0.0
        %6656 = vmatprep.subr.mxu0 0.0
        %6657 = vmatpush2.msra.mxu0 0.0
        %6658 = vmatprep.subr.mxu0 0.0
        %6659 = vmatpush2.msra.mxu0 0.0
        %6660 = vmatprep.subr.mxu0 0.0
        %6661 = vmatpush2.msra.mxu0 0.0
        %6662 = vmatprep.subr.mxu0 0.0
        %6663 = vmatpush2.msra.mxu0 0.0
        %6664 = vmatprep.subr.mxu0 0.0
        %6665 = vmatpush2.msra.mxu0 0.0
        %6666 = vmatprep.subr.mxu0 0.0
        %6667 = vmatpush2.msra.mxu0 0.0
        %6668 = vmatprep.mubr.f32.mxu0 0.0
        %6669 = vmatmul.mubr.f32.gmra.mxu0 %v6602
        %v6670 = vpop.f32.mrf.mxu0
        %v6671 = vadd.f32 %v5503, %v6670
        %v6672 = vpop.f32.mrf.mxu0
        %6673 = vdwg.mxu0
        %s6674 = scalar_lea.vmem %s3, 16
        %v6675 = vld [vmem:[%s6674] sm:$0xff]
        %s6676 = scalar_lea.vmem %s4, 16
        %v6677 = vld [vmem:[%s6676] sm:$0xff]
        %s6678 = scalar_lea.vmem %s5, 16
        %v6679 = vld [vmem:[%s6678] sm:$0xff]
        %s6680 = scalar_lea.vmem %s6, 16
        %v6681 = vld [vmem:[%s6680] sm:$0xff]
        %s6682 = scalar_lea.vmem %s7, 32
        %v6683 = vld [vmem:[%s6682] sm:$0xff]
        %v6684 = vld [vmem:[%s6682 + $0x8] sm:$0xff]
        %s6685 = scalar_lea.vmem %s8, 32
        %v6686 = vld [vmem:[%s6685] sm:$0xff]
        %v6687 = vld [vmem:[%s6685 + $0x8] sm:$0xff]
        %s6688 = scalar_lea.vmem %s9, 32
        %v6689 = vld [vmem:[%s6688] sm:$0xff]
        %v6690 = vld [vmem:[%s6688 + $0x8] sm:$0xff]
        %s6691 = scalar_lea.vmem %s10, 32
        %v6692 = vld [vmem:[%s6691] sm:$0xff]
        %v6693 = vld [vmem:[%s6691 + $0x8] sm:$0xff]
        %s6694 = scalar_lea.vmem %s2, 4
        %v6695 = vld [vmem:[%s6694] sm:$0x3]
        %6697 = vset.pattern.permute.xlu0 0
        %6698 = vperm.xlu0 %6697, %v6677
        %v6699 = vpop.permute.xlu0 %6698
        %v6702 = vsel %vm595, %v6675, 0
        %6704 = vmatprep.subr.mxu0 0.0
        %6705 = vmatpush1.msra.mxu0 0.0
        %6706 = vmatprep.subr.mxu0 0.0
        %6707 = vmatpush1.msra.mxu0 0.0
        %6708 = vmatprep.subr.mxu0 0.0
        %6709 = vmatpush1.msra.mxu0 0.0
        %6710 = vmatprep.subr.mxu0 0.0
        %6711 = vmatpush1.msra.mxu0 0.0
        %6712 = vmatprep.subr.mxu0 0.0
        %6713 = vmatpush1.msra.mxu0 0.0
        %6714 = vmatprep.subr.mxu0 0.0
        %6715 = vmatpush1.msra.mxu0 0.0
        %6716 = vmatprep.subr.mxu0 0.0
        %6717 = vmatpush1.msra.mxu0 0.0
        %6718 = vmatprep.subr.mxu0 0.0
        %6719 = vmatpush1.msra.mxu0 0.0
        %6720 = vmatprep.subr.mxu0 0.0
        %6721 = vmatpush1.msra.mxu0 0.0
        %6722 = vmatprep.subr.mxu0 0.0
        %6723 = vmatpush1.msra.mxu0 0.0
        %6724 = vmatprep.subr.mxu0 0.0
        %6725 = vmatpush1.msra.mxu0 0.0
        %6726 = vmatprep.subr.mxu0 0.0
        %6727 = vmatpush1.msra.mxu0 0.0
        %6728 = vmatprep.subr.mxu0 0.0
        %6729 = vmatpush1.msra.mxu0 0.0
        %6730 = vmatprep.subr.mxu0 0.0
        %6731 = vmatpush1.msra.mxu0 0.0
        %6732 = vmatprep.subr.mxu0 0.0
        %6733 = vmatpush1.msra.mxu0 0.0
        %6734 = vmatprep.subr.mxu0 0.0
        %6735 = vmatpush1.msra.mxu0 %v601
        %6736 = vmatprep.subr.mxu0 0.0
        %6737 = vmatpush2.msra.mxu0 0.0
        %6738 = vmatprep.subr.mxu0 0.0
        %6739 = vmatpush2.msra.mxu0 0.0
        %6740 = vmatprep.subr.mxu0 0.0
        %6741 = vmatpush2.msra.mxu0 0.0
        %6742 = vmatprep.subr.mxu0 0.0
        %6743 = vmatpush2.msra.mxu0 0.0
        %6744 = vmatprep.subr.mxu0 0.0
        %6745 = vmatpush2.msra.mxu0 0.0
        %6746 = vmatprep.subr.mxu0 0.0
        %6747 = vmatpush2.msra.mxu0 0.0
        %6748 = vmatprep.subr.mxu0 0.0
        %6749 = vmatpush2.msra.mxu0 0.0
        %6750 = vmatprep.subr.mxu0 0.0
        %6751 = vmatpush2.msra.mxu0 0.0
        %6752 = vmatprep.subr.mxu0 0.0
        %6753 = vmatpush2.msra.mxu0 0.0
        %6754 = vmatprep.subr.mxu0 0.0
        %6755 = vmatpush2.msra.mxu0 0.0
        %6756 = vmatprep.subr.mxu0 0.0
        %6757 = vmatpush2.msra.mxu0 0.0
        %6758 = vmatprep.subr.mxu0 0.0
        %6759 = vmatpush2.msra.mxu0 0.0
        %6760 = vmatprep.subr.mxu0 0.0
        %6761 = vmatpush2.msra.mxu0 0.0
        %6762 = vmatprep.subr.mxu0 0.0
        %6763 = vmatpush2.msra.mxu0 0.0
        %6764 = vmatprep.subr.mxu0 0.0
        %6765 = vmatpush2.msra.mxu0 0.0
        %6766 = vmatprep.subr.mxu0 0.0
        %6767 = vmatpush2.msra.mxu0 0.0
        %6768 = vmatprep.mubr.f32.mxu0 0.0
        %6769 = vmatmul.mubr.f32.gmra.mxu0 %v6702
        %v6770 = vpop.f32.mrf.mxu0
        %v6771 = vadd.f32 %v6699, %v6770
        %v6772 = vpop.f32.mrf.mxu0
        %6773 = vdwg.mxu0
        %6775 = vset.pattern.permute.xlu0 0
        %6776 = vperm.xlu0 %6775, %v6681
        %v6777 = vpop.permute.xlu0 %6776
        %v6780 = vsel %vm595, %v6679, 0
        %6782 = vmatprep.subr.mxu0 0.0
        %6783 = vmatpush1.msra.mxu0 0.0
        %6784 = vmatprep.subr.mxu0 0.0
        %6785 = vmatpush1.msra.mxu0 0.0
        %6786 = vmatprep.subr.mxu0 0.0
        %6787 = vmatpush1.msra.mxu0 0.0
        %6788 = vmatprep.subr.mxu0 0.0
        %6789 = vmatpush1.msra.mxu0 0.0
        %6790 = vmatprep.subr.mxu0 0.0
        %6791 = vmatpush1.msra.mxu0 0.0
        %6792 = vmatprep.subr.mxu0 0.0
        %6793 = vmatpush1.msra.mxu0 0.0
        %6794 = vmatprep.subr.mxu0 0.0
        %6795 = vmatpush1.msra.mxu0 0.0
        %6796 = vmatprep.subr.mxu0 0.0
        %6797 = vmatpush1.msra.mxu0 0.0
        %6798 = vmatprep.subr.mxu0 0.0
        %6799 = vmatpush1.msra.mxu0 0.0
        %6800 = vmatprep.subr.mxu0 0.0
        %6801 = vmatpush1.msra.mxu0 0.0
        %6802 = vmatprep.subr.mxu0 0.0
        %6803 = vmatpush1.msra.mxu0 0.0
        %6804 = vmatprep.subr.mxu0 0.0
        %6805 = vmatpush1.msra.mxu0 0.0
        %6806 = vmatprep.subr.mxu0 0.0
        %6807 = vmatpush1.msra.mxu0 0.0
        %6808 = vmatprep.subr.mxu0 0.0
        %6809 = vmatpush1.msra.mxu0 0.0
        %6810 = vmatprep.subr.mxu0 0.0
        %6811 = vmatpush1.msra.mxu0 0.0
        %6812 = vmatprep.subr.mxu0 0.0
        %6813 = vmatpush1.msra.mxu0 %v601
        %6814 = vmatprep.subr.mxu0 0.0
        %6815 = vmatpush2.msra.mxu0 0.0
        %6816 = vmatprep.subr.mxu0 0.0
        %6817 = vmatpush2.msra.mxu0 0.0
        %6818 = vmatprep.subr.mxu0 0.0
        %6819 = vmatpush2.msra.mxu0 0.0
        %6820 = vmatprep.subr.mxu0 0.0
        %6821 = vmatpush2.msra.mxu0 0.0
        %6822 = vmatprep.subr.mxu0 0.0
        %6823 = vmatpush2.msra.mxu0 0.0
        %6824 = vmatprep.subr.mxu0 0.0
        %6825 = vmatpush2.msra.mxu0 0.0
        %6826 = vmatprep.subr.mxu0 0.0
        %6827 = vmatpush2.msra.mxu0 0.0
        %6828 = vmatprep.subr.mxu0 0.0
        %6829 = vmatpush2.msra.mxu0 0.0
        %6830 = vmatprep.subr.mxu0 0.0
        %6831 = vmatpush2.msra.mxu0 0.0
        %6832 = vmatprep.subr.mxu0 0.0
        %6833 = vmatpush2.msra.mxu0 0.0
        %6834 = vmatprep.subr.mxu0 0.0
        %6835 = vmatpush2.msra.mxu0 0.0
        %6836 = vmatprep.subr.mxu0 0.0
        %6837 = vmatpush2.msra.mxu0 0.0
        %6838 = vmatprep.subr.mxu0 0.0
        %6839 = vmatpush2.msra.mxu0 0.0
        %6840 = vmatprep.subr.mxu0 0.0
        %6841 = vmatpush2.msra.mxu0 0.0
        %6842 = vmatprep.subr.mxu0 0.0
        %6843 = vmatpush2.msra.mxu0 0.0
        %6844 = vmatprep.subr.mxu0 0.0
        %6845 = vmatpush2.msra.mxu0 0.0
        %6846 = vmatprep.mubr.f32.mxu0 0.0
        %6847 = vmatmul.mubr.f32.gmra.mxu0 %v6780
        %v6848 = vpop.f32.mrf.mxu0
        %v6849 = vadd.f32 %v6777, %v6848
        %v6850 = vpop.f32.mrf.mxu0
        %6851 = vdwg.mxu0
        %6853 = vset.pattern.permute.xlu0 0
        %6854 = vperm.xlu0 %6853, %v6686
        %v6855 = vpop.permute.xlu0 %6854
        %6858 = vset.pattern.permute.xlu0 0
        %6859 = vperm.xlu0 %6858, %v6687
        %v6860 = vpop.permute.xlu0 %6859
        %v6863 = vsel %vm595, %v6683, 0
        %v6866 = vsel %vm595, %v6684, 0
        %6868 = vmatprep.subr.mxu0 0.0
        %6869 = vmatpush1.msra.mxu0 0.0
        %6870 = vmatprep.subr.mxu0 0.0
        %6871 = vmatpush1.msra.mxu0 0.0
        %6872 = vmatprep.subr.mxu0 0.0
        %6873 = vmatpush1.msra.mxu0 0.0
        %6874 = vmatprep.subr.mxu0 0.0
        %6875 = vmatpush1.msra.mxu0 0.0
        %6876 = vmatprep.subr.mxu0 0.0
        %6877 = vmatpush1.msra.mxu0 0.0
        %6878 = vmatprep.subr.mxu0 0.0
        %6879 = vmatpush1.msra.mxu0 0.0
        %6880 = vmatprep.subr.mxu0 0.0
        %6881 = vmatpush1.msra.mxu0 0.0
        %6882 = vmatprep.subr.mxu0 0.0
        %6883 = vmatpush1.msra.mxu0 0.0
        %6884 = vmatprep.subr.mxu0 0.0
        %6885 = vmatpush1.msra.mxu0 0.0
        %6886 = vmatprep.subr.mxu0 0.0
        %6887 = vmatpush1.msra.mxu0 0.0
        %6888 = vmatprep.subr.mxu0 0.0
        %6889 = vmatpush1.msra.mxu0 0.0
        %6890 = vmatprep.subr.mxu0 0.0
        %6891 = vmatpush1.msra.mxu0 0.0
        %6892 = vmatprep.subr.mxu0 0.0
        %6893 = vmatpush1.msra.mxu0 0.0
        %6894 = vmatprep.subr.mxu0 0.0
        %6895 = vmatpush1.msra.mxu0 0.0
        %6896 = vmatprep.subr.mxu0 0.0
        %6897 = vmatpush1.msra.mxu0 0.0
        %6898 = vmatprep.subr.mxu0 0.0
        %6899 = vmatpush1.msra.mxu0 %v768
        %6900 = vmatprep.subr.mxu0 0.0
        %6901 = vmatpush2.msra.mxu0 0.0
        %6902 = vmatprep.subr.mxu0 0.0
        %6903 = vmatpush2.msra.mxu0 0.0
        %6904 = vmatprep.subr.mxu0 0.0
        %6905 = vmatpush2.msra.mxu0 0.0
        %6906 = vmatprep.subr.mxu0 0.0
        %6907 = vmatpush2.msra.mxu0 0.0
        %6908 = vmatprep.subr.mxu0 0.0
        %6909 = vmatpush2.msra.mxu0 0.0
        %6910 = vmatprep.subr.mxu0 0.0
        %6911 = vmatpush2.msra.mxu0 0.0
        %6912 = vmatprep.subr.mxu0 0.0
        %6913 = vmatpush2.msra.mxu0 0.0
        %6914 = vmatprep.subr.mxu0 0.0
        %6915 = vmatpush2.msra.mxu0 0.0
        %6916 = vmatprep.subr.mxu0 0.0
        %6917 = vmatpush2.msra.mxu0 0.0
        %6918 = vmatprep.subr.mxu0 0.0
        %6919 = vmatpush2.msra.mxu0 0.0
        %6920 = vmatprep.subr.mxu0 0.0
        %6921 = vmatpush2.msra.mxu0 0.0
        %6922 = vmatprep.subr.mxu0 0.0
        %6923 = vmatpush2.msra.mxu0 0.0
        %6924 = vmatprep.subr.mxu0 0.0
        %6925 = vmatpush2.msra.mxu0 0.0
        %6926 = vmatprep.subr.mxu0 0.0
        %6927 = vmatpush2.msra.mxu0 0.0
        %6928 = vmatprep.subr.mxu0 0.0
        %6929 = vmatpush2.msra.mxu0 0.0
        %6930 = vmatprep.subr.mxu0 0.0
        %6931 = vmatpush2.msra.mxu0 0.0
        %6932 = vmatprep.mubr.f32.mxu0 0.0
        %6933 = vmatmul.mubr.f32.gmra.mxu0 %v6863
        %v6934 = vpop.f32.mrf.mxu0
        %v6935 = vadd.f32 %v6855, %v6934
        %v6936 = vpop.f32.mrf.mxu0
        %6937 = vmatprep.mubr.f32.mxu0 0.0
        %6938 = vmatmul.mubr.f32.gmra.mxu0 %v6866
        %v6939 = vpop.f32.mrf.mxu0
        %v6940 = vadd.f32 %v6860, %v6939
        %v6941 = vpop.f32.mrf.mxu0
        %6942 = vdwg.mxu0
        %6945 = vrot.lane.b32.xlu0 %v6935, 112
        %v6946 = vpop.permute.xlu0 %6945
        %6947 = vrot.lane.b32.xlu0 %v6940, 112
        %v6948 = vpop.permute.xlu0 %6947
        %6951 = vrot.lane.b32.xlu0 %v6935, 96
        %v6952 = vpop.permute.xlu0 %6951
        %6953 = vrot.lane.b32.xlu0 %v6940, 96
        %v6954 = vpop.permute.xlu0 %6953
        %6957 = vrot.lane.b32.xlu0 %v6935, 80
        %v6958 = vpop.permute.xlu0 %6957
        %6959 = vrot.lane.b32.xlu0 %v6940, 80
        %v6960 = vpop.permute.xlu0 %6959
        %6963 = vrot.lane.b32.xlu0 %v6935, 64
        %v6964 = vpop.permute.xlu0 %6963
        %6965 = vrot.lane.b32.xlu0 %v6940, 64
        %v6966 = vpop.permute.xlu0 %6965
        %6969 = vrot.lane.b32.xlu0 %v6935, 48
        %v6970 = vpop.permute.xlu0 %6969
        %6971 = vrot.lane.b32.xlu0 %v6940, 48
        %v6972 = vpop.permute.xlu0 %6971
        %6975 = vrot.lane.b32.xlu0 %v6935, 32
        %v6976 = vpop.permute.xlu0 %6975
        %6977 = vrot.lane.b32.xlu0 %v6940, 32
        %v6978 = vpop.permute.xlu0 %6977
        %6981 = vrot.lane.b32.xlu0 %v6935, 16
        %v6982 = vpop.permute.xlu0 %6981
        %6983 = vrot.lane.b32.xlu0 %v6940, 16
        %v6984 = vpop.permute.xlu0 %6983
        %v6987 = vcombine.low %v6935, %v6952
        %v6988 = vcombine.high %v6935, %v6952
        %v6990 = vunpack.c.l.s4 1983009808
        %v6991 = vunpack.c.0.s8 %v6990
        %v6992 = vlaneseq
        %v6993 = vshrl.u32 %v6992, 7
        %v6994 = vsub.s32 %v6991, %v6993
        %v6995 = vrot.slane %v6987, %v6994
        %v6997 = vunpack.c.l.s4 1983009808
        %v6998 = vunpack.c.0.s8 %v6997
        %v6999 = vlaneseq
        %v7000 = vshrl.u32 %v6999, 7
        %v7001 = vsub.s32 %v6998, %v7000
        %v7002 = vrot.slane %v6988, %v7001
        %v7003 = vcombine.low %v6946, %v6958
        %v7004 = vcombine.high %v6946, %v6958
        %v7006 = vunpack.c.l.s4 1983009808
        %v7007 = vunpack.c.0.s8 %v7006
        %v7008 = vlaneseq
        %v7009 = vshrl.u32 %v7008, 7
        %v7010 = vsub.s32 %v7007, %v7009
        %v7011 = vrot.slane %v7003, %v7010
        %v7013 = vunpack.c.l.s4 1983009808
        %v7014 = vunpack.c.0.s8 %v7013
        %v7015 = vlaneseq
        %v7016 = vshrl.u32 %v7015, 7
        %v7017 = vsub.s32 %v7014, %v7016
        %v7018 = vrot.slane %v7004, %v7017
        %v7019 = vcombine.low %v6964, %v6976
        %v7020 = vcombine.high %v6964, %v6976
        %v7022 = vunpack.c.l.s4 1983009808
        %v7023 = vunpack.c.0.s8 %v7022
        %v7024 = vlaneseq
        %v7025 = vshrl.u32 %v7024, 7
        %v7026 = vsub.s32 %v7023, %v7025
        %v7027 = vrot.slane %v7019, %v7026
        %v7029 = vunpack.c.l.s4 1983009808
        %v7030 = vunpack.c.0.s8 %v7029
        %v7031 = vlaneseq
        %v7032 = vshrl.u32 %v7031, 7
        %v7033 = vsub.s32 %v7030, %v7032
        %v7034 = vrot.slane %v7020, %v7033
        %v7035 = vcombine.low %v6970, %v6982
        %v7036 = vcombine.high %v6970, %v6982
        %v7038 = vunpack.c.l.s4 1983009808
        %v7039 = vunpack.c.0.s8 %v7038
        %v7040 = vlaneseq
        %v7041 = vshrl.u32 %v7040, 7
        %v7042 = vsub.s32 %v7039, %v7041
        %v7043 = vrot.slane %v7035, %v7042
        %v7045 = vunpack.c.l.s4 1983009808
        %v7046 = vunpack.c.0.s8 %v7045
        %v7047 = vlaneseq
        %v7048 = vshrl.u32 %v7047, 7
        %v7049 = vsub.s32 %v7046, %v7048
        %v7050 = vrot.slane %v7036, %v7049
        %v7051 = vcombine.low %v6995, %v7011
        %v7052 = vcombine.high %v6995, %v7011
        %v7054 = vunpack.c.l.s4 1934713408
        %v7055 = vunpack.c.0.s8 %v7054
        %v7056 = vlaneseq
        %v7057 = vshrl.u32 %v7056, 7
        %v7058 = vsub.s32 %v7055, %v7057
        %v7059 = vrot.slane %v7051, %v7058
        %v7061 = vunpack.c.l.s4 1934713408
        %v7062 = vunpack.c.0.s8 %v7061
        %v7063 = vlaneseq
        %v7064 = vshrl.u32 %v7063, 7
        %v7065 = vsub.s32 %v7062, %v7064
        %v7066 = vrot.slane %v7052, %v7065
        %v7067 = vcombine.low %v7002, %v7018
        %v7068 = vcombine.high %v7002, %v7018
        %v7070 = vunpack.c.l.s4 1934713408
        %v7071 = vunpack.c.0.s8 %v7070
        %v7072 = vlaneseq
        %v7073 = vshrl.u32 %v7072, 7
        %v7074 = vsub.s32 %v7071, %v7073
        %v7075 = vrot.slane %v7067, %v7074
        %v7077 = vunpack.c.l.s4 1934713408
        %v7078 = vunpack.c.0.s8 %v7077
        %v7079 = vlaneseq
        %v7080 = vshrl.u32 %v7079, 7
        %v7081 = vsub.s32 %v7078, %v7080
        %v7082 = vrot.slane %v7068, %v7081
        %v7083 = vcombine.low %v7027, %v7043
        %v7084 = vcombine.high %v7027, %v7043
        %v7086 = vunpack.c.l.s4 1934713408
        %v7087 = vunpack.c.0.s8 %v7086
        %v7088 = vlaneseq
        %v7089 = vshrl.u32 %v7088, 7
        %v7090 = vsub.s32 %v7087, %v7089
        %v7091 = vrot.slane %v7083, %v7090
        %v7093 = vunpack.c.l.s4 1934713408
        %v7094 = vunpack.c.0.s8 %v7093
        %v7095 = vlaneseq
        %v7096 = vshrl.u32 %v7095, 7
        %v7097 = vsub.s32 %v7094, %v7096
        %v7098 = vrot.slane %v7084, %v7097
        %v7099 = vcombine.low %v7034, %v7050
        %v7100 = vcombine.high %v7034, %v7050
        %v7102 = vunpack.c.l.s4 1934713408
        %v7103 = vunpack.c.0.s8 %v7102
        %v7104 = vlaneseq
        %v7105 = vshrl.u32 %v7104, 7
        %v7106 = vsub.s32 %v7103, %v7105
        %v7107 = vrot.slane %v7099, %v7106
        %v7109 = vunpack.c.l.s4 1934713408
        %v7110 = vunpack.c.0.s8 %v7109
        %v7111 = vlaneseq
        %v7112 = vshrl.u32 %v7111, 7
        %v7113 = vsub.s32 %v7110, %v7112
        %v7114 = vrot.slane %v7100, %v7113
        %v7115 = vcombine.low %v7059, %v7091
        %v7116 = vcombine.high %v7059, %v7091
        %v7117 = vcombine.low %v7066, %v7098
        %v7118 = vcombine.high %v7066, %v7098
        %v7119 = vcombine.low %v7075, %v7107
        %v7120 = vcombine.high %v7075, %v7107
        %v7121 = vcombine.low %v7082, %v7114
        %v7122 = vcombine.high %v7082, %v7114
        %v7123 = vcombine.low %v6940, %v6954
        %v7124 = vcombine.high %v6940, %v6954
        %v7126 = vunpack.c.l.s4 1983009808
        %v7127 = vunpack.c.0.s8 %v7126
        %v7128 = vlaneseq
        %v7129 = vshrl.u32 %v7128, 7
        %v7130 = vsub.s32 %v7127, %v7129
        %v7131 = vrot.slane %v7123, %v7130
        %v7133 = vunpack.c.l.s4 1983009808
        %v7134 = vunpack.c.0.s8 %v7133
        %v7135 = vlaneseq
        %v7136 = vshrl.u32 %v7135, 7
        %v7137 = vsub.s32 %v7134, %v7136
        %v7138 = vrot.slane %v7124, %v7137
        %v7139 = vcombine.low %v6948, %v6960
        %v7140 = vcombine.high %v6948, %v6960
        %v7142 = vunpack.c.l.s4 1983009808
        %v7143 = vunpack.c.0.s8 %v7142
        %v7144 = vlaneseq
        %v7145 = vshrl.u32 %v7144, 7
        %v7146 = vsub.s32 %v7143, %v7145
        %v7147 = vrot.slane %v7139, %v7146
        %v7149 = vunpack.c.l.s4 1983009808
        %v7150 = vunpack.c.0.s8 %v7149
        %v7151 = vlaneseq
        %v7152 = vshrl.u32 %v7151, 7
        %v7153 = vsub.s32 %v7150, %v7152
        %v7154 = vrot.slane %v7140, %v7153
        %v7155 = vcombine.low %v6966, %v6978
        %v7156 = vcombine.high %v6966, %v6978
        %v7158 = vunpack.c.l.s4 1983009808
        %v7159 = vunpack.c.0.s8 %v7158
        %v7160 = vlaneseq
        %v7161 = vshrl.u32 %v7160, 7
        %v7162 = vsub.s32 %v7159, %v7161
        %v7163 = vrot.slane %v7155, %v7162
        %v7165 = vunpack.c.l.s4 1983009808
        %v7166 = vunpack.c.0.s8 %v7165
        %v7167 = vlaneseq
        %v7168 = vshrl.u32 %v7167, 7
        %v7169 = vsub.s32 %v7166, %v7168
        %v7170 = vrot.slane %v7156, %v7169
        %v7171 = vcombine.low %v6972, %v6984
        %v7172 = vcombine.high %v6972, %v6984
        %v7174 = vunpack.c.l.s4 1983009808
        %v7175 = vunpack.c.0.s8 %v7174
        %v7176 = vlaneseq
        %v7177 = vshrl.u32 %v7176, 7
        %v7178 = vsub.s32 %v7175, %v7177
        %v7179 = vrot.slane %v7171, %v7178
        %v7181 = vunpack.c.l.s4 1983009808
        %v7182 = vunpack.c.0.s8 %v7181
        %v7183 = vlaneseq
        %v7184 = vshrl.u32 %v7183, 7
        %v7185 = vsub.s32 %v7182, %v7184
        %v7186 = vrot.slane %v7172, %v7185
        %v7187 = vcombine.low %v7131, %v7147
        %v7188 = vcombine.high %v7131, %v7147
        %v7190 = vunpack.c.l.s4 1934713408
        %v7191 = vunpack.c.0.s8 %v7190
        %v7192 = vlaneseq
        %v7193 = vshrl.u32 %v7192, 7
        %v7194 = vsub.s32 %v7191, %v7193
        %v7195 = vrot.slane %v7187, %v7194
        %v7197 = vunpack.c.l.s4 1934713408
        %v7198 = vunpack.c.0.s8 %v7197
        %v7199 = vlaneseq
        %v7200 = vshrl.u32 %v7199, 7
        %v7201 = vsub.s32 %v7198, %v7200
        %v7202 = vrot.slane %v7188, %v7201
        %v7203 = vcombine.low %v7138, %v7154
        %v7204 = vcombine.high %v7138, %v7154
        %v7206 = vunpack.c.l.s4 1934713408
        %v7207 = vunpack.c.0.s8 %v7206
        %v7208 = vlaneseq
        %v7209 = vshrl.u32 %v7208, 7
        %v7210 = vsub.s32 %v7207, %v7209
        %v7211 = vrot.slane %v7203, %v7210
        %v7213 = vunpack.c.l.s4 1934713408
        %v7214 = vunpack.c.0.s8 %v7213
        %v7215 = vlaneseq
        %v7216 = vshrl.u32 %v7215, 7
        %v7217 = vsub.s32 %v7214, %v7216
        %v7218 = vrot.slane %v7204, %v7217
        %v7219 = vcombine.low %v7163, %v7179
        %v7220 = vcombine.high %v7163, %v7179
        %v7222 = vunpack.c.l.s4 1934713408
        %v7223 = vunpack.c.0.s8 %v7222
        %v7224 = vlaneseq
        %v7225 = vshrl.u32 %v7224, 7
        %v7226 = vsub.s32 %v7223, %v7225
        %v7227 = vrot.slane %v7219, %v7226
        %v7229 = vunpack.c.l.s4 1934713408
        %v7230 = vunpack.c.0.s8 %v7229
        %v7231 = vlaneseq
        %v7232 = vshrl.u32 %v7231, 7
        %v7233 = vsub.s32 %v7230, %v7232
        %v7234 = vrot.slane %v7220, %v7233
        %v7235 = vcombine.low %v7170, %v7186
        %v7236 = vcombine.high %v7170, %v7186
        %v7238 = vunpack.c.l.s4 1934713408
        %v7239 = vunpack.c.0.s8 %v7238
        %v7240 = vlaneseq
        %v7241 = vshrl.u32 %v7240, 7
        %v7242 = vsub.s32 %v7239, %v7241
        %v7243 = vrot.slane %v7235, %v7242
        %v7245 = vunpack.c.l.s4 1934713408
        %v7246 = vunpack.c.0.s8 %v7245
        %v7247 = vlaneseq
        %v7248 = vshrl.u32 %v7247, 7
        %v7249 = vsub.s32 %v7246, %v7248
        %v7250 = vrot.slane %v7236, %v7249
        %v7251 = vcombine.low %v7195, %v7227
        %v7252 = vcombine.high %v7195, %v7227
        %v7253 = vcombine.low %v7202, %v7234
        %v7254 = vcombine.high %v7202, %v7234
        %v7255 = vcombine.low %v7211, %v7243
        %v7256 = vcombine.high %v7211, %v7243
        %v7257 = vcombine.low %v7218, %v7250
        %v7258 = vcombine.high %v7218, %v7250
        %v7260 = vcombine.high %v6771, %v6771
        %v7262 = vunpack.c.l.s4 1966171168
        %v7263 = vunpack.c.0.s8 %v7262
        %v7264 = vlaneseq
        %v7265 = vshrl.u32 %v7264, 7
        %v7266 = vsub.s32 %v7263, %v7265
        %v7267 = vrot.slane %v6771, %v7266
        %v7269 = vunpack.c.l.s4 1966171168
        %v7270 = vunpack.c.0.s8 %v7269
        %v7271 = vlaneseq
        %v7272 = vshrl.u32 %v7271, 7
        %v7273 = vsub.s32 %v7270, %v7272
        %v7274 = vrot.slane %v7260, %v7273
        %v7275 = vcombine.high %v7267, %v7267
        %v7276 = vcombine.high %v7274, %v7274
        %v7278 = vunpack.c.l.s4 1966171168
        %v7279 = vunpack.c.0.s8 %v7278
        %v7280 = vlaneseq
        %v7281 = vshrl.u32 %v7280, 7
        %v7282 = vsub.s32 %v7279, %v7281
        %v7283 = vrot.slane %v7267, %v7282
        %v7285 = vunpack.c.l.s4 1966171168
        %v7286 = vunpack.c.0.s8 %v7285
        %v7287 = vlaneseq
        %v7288 = vshrl.u32 %v7287, 7
        %v7289 = vsub.s32 %v7286, %v7288
        %v7290 = vrot.slane %v7274, %v7289
        %v7292 = vunpack.c.l.s4 1966171168
        %v7293 = vunpack.c.0.s8 %v7292
        %v7294 = vlaneseq
        %v7295 = vshrl.u32 %v7294, 7
        %v7296 = vsub.s32 %v7293, %v7295
        %v7297 = vrot.slane %v7275, %v7296
        %v7299 = vunpack.c.l.s4 1966171168
        %v7300 = vunpack.c.0.s8 %v7299
        %v7301 = vlaneseq
        %v7302 = vshrl.u32 %v7301, 7
        %v7303 = vsub.s32 %v7300, %v7302
        %v7304 = vrot.slane %v7276, %v7303
        %v7305 = vcombine.high %v7283, %v7283
        %v7306 = vcombine.high %v7290, %v7290
        %v7307 = vcombine.high %v7297, %v7297
        %v7308 = vcombine.high %v7304, %v7304
        %v7309 = vlaneseq
        %v7310 = vshrl.u32 %v7309, 7
        %v7311 = vsub.s32 0, %v7310
        %v7312 = vrot.slane %v6849, %v7311
        %7314 = vbcast.lane.b32.xlu0 %v7312, 256
        %v7315 = vpop.permute.xlu0 %7314
        %s7317 = sor.u32 256, 8
        %7318 = vbcast.lane.b32.xlu0 %v7312, %s7317
        %v7319 = vpop.permute.xlu0 %7318
        %v7320 = vlaneseq
        %v7321 = vshrl.u32 %v7320, 7
        %v7322 = vsub.s32 1, %v7321
        %v7323 = vrot.slane %v6849, %v7322
        %7325 = vbcast.lane.b32.xlu0 %v7323, 256
        %v7326 = vpop.permute.xlu0 %7325
        %s7328 = sor.u32 256, 8
        %7329 = vbcast.lane.b32.xlu0 %v7323, %s7328
        %v7330 = vpop.permute.xlu0 %7329
        %v7331 = vlaneseq
        %v7332 = vshrl.u32 %v7331, 7
        %v7333 = vsub.s32 2, %v7332
        %v7334 = vrot.slane %v6849, %v7333
        %7336 = vbcast.lane.b32.xlu0 %v7334, 256
        %v7337 = vpop.permute.xlu0 %7336
        %s7339 = sor.u32 256, 8
        %7340 = vbcast.lane.b32.xlu0 %v7334, %s7339
        %v7341 = vpop.permute.xlu0 %7340
        %v7342 = vlaneseq
        %v7343 = vshrl.u32 %v7342, 7
        %v7344 = vsub.s32 3, %v7343
        %v7345 = vrot.slane %v6849, %v7344
        %7347 = vbcast.lane.b32.xlu0 %v7345, 256
        %v7348 = vpop.permute.xlu0 %7347
        %s7350 = sor.u32 256, 8
        %7351 = vbcast.lane.b32.xlu0 %v7345, %s7350
        %v7352 = vpop.permute.xlu0 %7351
        %v7353 = vlaneseq
        %v7354 = vshrl.u32 %v7353, 7
        %v7355 = vsub.s32 4, %v7354
        %v7356 = vrot.slane %v6849, %v7355
        %7358 = vbcast.lane.b32.xlu0 %v7356, 256
        %v7359 = vpop.permute.xlu0 %7358
        %s7361 = sor.u32 256, 8
        %7362 = vbcast.lane.b32.xlu0 %v7356, %s7361
        %v7363 = vpop.permute.xlu0 %7362
        %v7364 = vlaneseq
        %v7365 = vshrl.u32 %v7364, 7
        %v7366 = vsub.s32 5, %v7365
        %v7367 = vrot.slane %v6849, %v7366
        %7369 = vbcast.lane.b32.xlu0 %v7367, 256
        %v7370 = vpop.permute.xlu0 %7369
        %s7372 = sor.u32 256, 8
        %7373 = vbcast.lane.b32.xlu0 %v7367, %s7372
        %v7374 = vpop.permute.xlu0 %7373
        %v7375 = vlaneseq
        %v7376 = vshrl.u32 %v7375, 7
        %v7377 = vsub.s32 6, %v7376
        %v7378 = vrot.slane %v6849, %v7377
        %7380 = vbcast.lane.b32.xlu0 %v7378, 256
        %v7381 = vpop.permute.xlu0 %7380
        %s7383 = sor.u32 256, 8
        %7384 = vbcast.lane.b32.xlu0 %v7378, %s7383
        %v7385 = vpop.permute.xlu0 %7384
        %v7386 = vlaneseq
        %v7387 = vshrl.u32 %v7386, 7
        %v7388 = vsub.s32 7, %v7387
        %v7389 = vrot.slane %v6849, %v7388
        %7391 = vbcast.lane.b32.xlu0 %v7389, 256
        %v7392 = vpop.permute.xlu0 %7391
        %s7394 = sor.u32 256, 8
        %7395 = vbcast.lane.b32.xlu0 %v7389, %s7394
        %v7396 = vpop.permute.xlu0 %7395
        %v7397 = vlaneseq
        %v7398 = vshrl.u32 %v7397, 7
        %v7399 = vsub.s32 0, %v7398
        %v7400 = vrot.slane %v7283, %v7399
        %v7401 = vlaneseq
        %v7402 = vshrl.u32 %v7401, 7
        %v7403 = vsub.s32 0, %v7402
        %v7404 = vrot.slane %v7297, %v7403
        %v7405 = vlaneseq
        %v7406 = vshrl.u32 %v7405, 7
        %v7407 = vsub.s32 0, %v7406
        %v7408 = vrot.slane %v7305, %v7407
        %v7409 = vlaneseq
        %v7410 = vshrl.u32 %v7409, 7
        %v7411 = vsub.s32 0, %v7410
        %v7412 = vrot.slane %v7307, %v7411
        %v7413 = vlaneseq
        %v7414 = vshrl.u32 %v7413, 7
        %v7415 = vsub.s32 0, %v7414
        %v7416 = vrot.slane %v7290, %v7415
        %v7417 = vlaneseq
        %v7418 = vshrl.u32 %v7417, 7
        %v7419 = vsub.s32 0, %v7418
        %v7420 = vrot.slane %v7304, %v7419
        %v7421 = vlaneseq
        %v7422 = vshrl.u32 %v7421, 7
        %v7423 = vsub.s32 0, %v7422
        %v7424 = vrot.slane %v7306, %v7423
        %v7425 = vlaneseq
        %v7426 = vshrl.u32 %v7425, 7
        %v7427 = vsub.s32 0, %v7426
        %v7428 = vrot.slane %v7308, %v7427
        %v7437 = vsub.f32 %v7400, %v7315
        %v7438 = vsub.f32 %v7400, %v7319
        %v7439 = vsub.f32 %v7404, %v7326
        %v7440 = vsub.f32 %v7404, %v7330
        %v7441 = vsub.f32 %v7408, %v7337
        %v7442 = vsub.f32 %v7408, %v7341
        %v7443 = vsub.f32 %v7412, %v7348
        %v7444 = vsub.f32 %v7412, %v7352
        %v7445 = vsub.f32 %v7416, %v7359
        %v7446 = vsub.f32 %v7416, %v7363
        %v7447 = vsub.f32 %v7420, %v7370
        %v7448 = vsub.f32 %v7420, %v7374
        %v7449 = vsub.f32 %v7424, %v7381
        %v7450 = vsub.f32 %v7424, %v7385
        %v7451 = vsub.f32 %v7428, %v7392
        %v7452 = vsub.f32 %v7428, %v7396
        %v7453 = vtanh.pop %v7437
        %v7454 = vtanh.pop %v7438
        %v7455 = vtanh.pop %v7439
        %v7456 = vtanh.pop %v7440
        %v7457 = vtanh.pop %v7441
        %v7458 = vtanh.pop %v7442
        %v7459 = vtanh.pop %v7443
        %v7460 = vtanh.pop %v7444
        %v7461 = vtanh.pop %v7445
        %v7462 = vtanh.pop %v7446
        %v7463 = vtanh.pop %v7447
        %v7464 = vtanh.pop %v7448
        %v7465 = vtanh.pop %v7449
        %v7466 = vtanh.pop %v7450
        %v7467 = vtanh.pop %v7451
        %v7468 = vtanh.pop %v7452
        %v7469 = vcombine.low %v7453, %v7457
        %v7470 = vcombine.high %v7453, %v7457
        %v7472 = vunpack.c.l.s4 1983009808
        %v7473 = vunpack.c.0.s8 %v7472
        %v7474 = vlaneseq
        %v7475 = vshrl.u32 %v7474, 7
        %v7476 = vsub.s32 %v7473, %v7475
        %v7477 = vrot.slane %v7469, %v7476
        %v7479 = vunpack.c.l.s4 1983009808
        %v7480 = vunpack.c.0.s8 %v7479
        %v7481 = vlaneseq
        %v7482 = vshrl.u32 %v7481, 7
        %v7483 = vsub.s32 %v7480, %v7482
        %v7484 = vrot.slane %v7470, %v7483
        %v7485 = vcombine.low %v7455, %v7459
        %v7486 = vcombine.high %v7455, %v7459
        %v7488 = vunpack.c.l.s4 1983009808
        %v7489 = vunpack.c.0.s8 %v7488
        %v7490 = vlaneseq
        %v7491 = vshrl.u32 %v7490, 7
        %v7492 = vsub.s32 %v7489, %v7491
        %v7493 = vrot.slane %v7485, %v7492
        %v7495 = vunpack.c.l.s4 1983009808
        %v7496 = vunpack.c.0.s8 %v7495
        %v7497 = vlaneseq
        %v7498 = vshrl.u32 %v7497, 7
        %v7499 = vsub.s32 %v7496, %v7498
        %v7500 = vrot.slane %v7486, %v7499
        %v7501 = vcombine.low %v7461, %v7465
        %v7502 = vcombine.high %v7461, %v7465
        %v7504 = vunpack.c.l.s4 1983009808
        %v7505 = vunpack.c.0.s8 %v7504
        %v7506 = vlaneseq
        %v7507 = vshrl.u32 %v7506, 7
        %v7508 = vsub.s32 %v7505, %v7507
        %v7509 = vrot.slane %v7501, %v7508
        %v7511 = vunpack.c.l.s4 1983009808
        %v7512 = vunpack.c.0.s8 %v7511
        %v7513 = vlaneseq
        %v7514 = vshrl.u32 %v7513, 7
        %v7515 = vsub.s32 %v7512, %v7514
        %v7516 = vrot.slane %v7502, %v7515
        %v7517 = vcombine.low %v7463, %v7467
        %v7518 = vcombine.high %v7463, %v7467
        %v7520 = vunpack.c.l.s4 1983009808
        %v7521 = vunpack.c.0.s8 %v7520
        %v7522 = vlaneseq
        %v7523 = vshrl.u32 %v7522, 7
        %v7524 = vsub.s32 %v7521, %v7523
        %v7525 = vrot.slane %v7517, %v7524
        %v7527 = vunpack.c.l.s4 1983009808
        %v7528 = vunpack.c.0.s8 %v7527
        %v7529 = vlaneseq
        %v7530 = vshrl.u32 %v7529, 7
        %v7531 = vsub.s32 %v7528, %v7530
        %v7532 = vrot.slane %v7518, %v7531
        %v7533 = vcombine.low %v7477, %v7493
        %v7534 = vcombine.high %v7477, %v7493
        %v7536 = vunpack.c.l.s4 1934713408
        %v7537 = vunpack.c.0.s8 %v7536
        %v7538 = vlaneseq
        %v7539 = vshrl.u32 %v7538, 7
        %v7540 = vsub.s32 %v7537, %v7539
        %v7541 = vrot.slane %v7533, %v7540
        %v7543 = vunpack.c.l.s4 1934713408
        %v7544 = vunpack.c.0.s8 %v7543
        %v7545 = vlaneseq
        %v7546 = vshrl.u32 %v7545, 7
        %v7547 = vsub.s32 %v7544, %v7546
        %v7548 = vrot.slane %v7534, %v7547
        %v7549 = vcombine.low %v7484, %v7500
        %v7550 = vcombine.high %v7484, %v7500
        %v7552 = vunpack.c.l.s4 1934713408
        %v7553 = vunpack.c.0.s8 %v7552
        %v7554 = vlaneseq
        %v7555 = vshrl.u32 %v7554, 7
        %v7556 = vsub.s32 %v7553, %v7555
        %v7557 = vrot.slane %v7549, %v7556
        %v7559 = vunpack.c.l.s4 1934713408
        %v7560 = vunpack.c.0.s8 %v7559
        %v7561 = vlaneseq
        %v7562 = vshrl.u32 %v7561, 7
        %v7563 = vsub.s32 %v7560, %v7562
        %v7564 = vrot.slane %v7550, %v7563
        %v7565 = vcombine.low %v7509, %v7525
        %v7566 = vcombine.high %v7509, %v7525
        %v7568 = vunpack.c.l.s4 1934713408
        %v7569 = vunpack.c.0.s8 %v7568
        %v7570 = vlaneseq
        %v7571 = vshrl.u32 %v7570, 7
        %v7572 = vsub.s32 %v7569, %v7571
        %v7573 = vrot.slane %v7565, %v7572
        %v7575 = vunpack.c.l.s4 1934713408
        %v7576 = vunpack.c.0.s8 %v7575
        %v7577 = vlaneseq
        %v7578 = vshrl.u32 %v7577, 7
        %v7579 = vsub.s32 %v7576, %v7578
        %v7580 = vrot.slane %v7566, %v7579
        %v7581 = vcombine.low %v7516, %v7532
        %v7582 = vcombine.high %v7516, %v7532
        %v7584 = vunpack.c.l.s4 1934713408
        %v7585 = vunpack.c.0.s8 %v7584
        %v7586 = vlaneseq
        %v7587 = vshrl.u32 %v7586, 7
        %v7588 = vsub.s32 %v7585, %v7587
        %v7589 = vrot.slane %v7581, %v7588
        %v7591 = vunpack.c.l.s4 1934713408
        %v7592 = vunpack.c.0.s8 %v7591
        %v7593 = vlaneseq
        %v7594 = vshrl.u32 %v7593, 7
        %v7595 = vsub.s32 %v7592, %v7594
        %v7596 = vrot.slane %v7582, %v7595
        %v7597 = vcombine.low %v7541, %v7573
        %v7598 = vcombine.high %v7541, %v7573
        %v7599 = vcombine.low %v7548, %v7580
        %v7600 = vcombine.high %v7548, %v7580
        %v7601 = vcombine.low %v7557, %v7589
        %v7602 = vcombine.high %v7557, %v7589
        %v7603 = vcombine.low %v7564, %v7596
        %v7604 = vcombine.high %v7564, %v7596
        %v7605 = vcombine.low %v7454, %v7458
        %v7606 = vcombine.high %v7454, %v7458
        %v7608 = vunpack.c.l.s4 1983009808
        %v7609 = vunpack.c.0.s8 %v7608
        %v7610 = vlaneseq
        %v7611 = vshrl.u32 %v7610, 7
        %v7612 = vsub.s32 %v7609, %v7611
        %v7613 = vrot.slane %v7605, %v7612
        %v7615 = vunpack.c.l.s4 1983009808
        %v7616 = vunpack.c.0.s8 %v7615
        %v7617 = vlaneseq
        %v7618 = vshrl.u32 %v7617, 7
        %v7619 = vsub.s32 %v7616, %v7618
        %v7620 = vrot.slane %v7606, %v7619
        %v7621 = vcombine.low %v7456, %v7460
        %v7622 = vcombine.high %v7456, %v7460
        %v7624 = vunpack.c.l.s4 1983009808
        %v7625 = vunpack.c.0.s8 %v7624
        %v7626 = vlaneseq
        %v7627 = vshrl.u32 %v7626, 7
        %v7628 = vsub.s32 %v7625, %v7627
        %v7629 = vrot.slane %v7621, %v7628
        %v7631 = vunpack.c.l.s4 1983009808
        %v7632 = vunpack.c.0.s8 %v7631
        %v7633 = vlaneseq
        %v7634 = vshrl.u32 %v7633, 7
        %v7635 = vsub.s32 %v7632, %v7634
        %v7636 = vrot.slane %v7622, %v7635
        %v7637 = vcombine.low %v7462, %v7466
        %v7638 = vcombine.high %v7462, %v7466
        %v7640 = vunpack.c.l.s4 1983009808
        %v7641 = vunpack.c.0.s8 %v7640
        %v7642 = vlaneseq
        %v7643 = vshrl.u32 %v7642, 7
        %v7644 = vsub.s32 %v7641, %v7643
        %v7645 = vrot.slane %v7637, %v7644
        %v7647 = vunpack.c.l.s4 1983009808
        %v7648 = vunpack.c.0.s8 %v7647
        %v7649 = vlaneseq
        %v7650 = vshrl.u32 %v7649, 7
        %v7651 = vsub.s32 %v7648, %v7650
        %v7652 = vrot.slane %v7638, %v7651
        %v7653 = vcombine.low %v7464, %v7468
        %v7654 = vcombine.high %v7464, %v7468
        %v7656 = vunpack.c.l.s4 1983009808
        %v7657 = vunpack.c.0.s8 %v7656
        %v7658 = vlaneseq
        %v7659 = vshrl.u32 %v7658, 7
        %v7660 = vsub.s32 %v7657, %v7659
        %v7661 = vrot.slane %v7653, %v7660
        %v7663 = vunpack.c.l.s4 1983009808
        %v7664 = vunpack.c.0.s8 %v7663
        %v7665 = vlaneseq
        %v7666 = vshrl.u32 %v7665, 7
        %v7667 = vsub.s32 %v7664, %v7666
        %v7668 = vrot.slane %v7654, %v7667
        %v7669 = vcombine.low %v7613, %v7629
        %v7670 = vcombine.high %v7613, %v7629
        %v7672 = vunpack.c.l.s4 1934713408
        %v7673 = vunpack.c.0.s8 %v7672
        %v7674 = vlaneseq
        %v7675 = vshrl.u32 %v7674, 7
        %v7676 = vsub.s32 %v7673, %v7675
        %v7677 = vrot.slane %v7669, %v7676
        %v7679 = vunpack.c.l.s4 1934713408
        %v7680 = vunpack.c.0.s8 %v7679
        %v7681 = vlaneseq
        %v7682 = vshrl.u32 %v7681, 7
        %v7683 = vsub.s32 %v7680, %v7682
        %v7684 = vrot.slane %v7670, %v7683
        %v7685 = vcombine.low %v7620, %v7636
        %v7686 = vcombine.high %v7620, %v7636
        %v7688 = vunpack.c.l.s4 1934713408
        %v7689 = vunpack.c.0.s8 %v7688
        %v7690 = vlaneseq
        %v7691 = vshrl.u32 %v7690, 7
        %v7692 = vsub.s32 %v7689, %v7691
        %v7693 = vrot.slane %v7685, %v7692
        %v7695 = vunpack.c.l.s4 1934713408
        %v7696 = vunpack.c.0.s8 %v7695
        %v7697 = vlaneseq
        %v7698 = vshrl.u32 %v7697, 7
        %v7699 = vsub.s32 %v7696, %v7698
        %v7700 = vrot.slane %v7686, %v7699
        %v7701 = vcombine.low %v7645, %v7661
        %v7702 = vcombine.high %v7645, %v7661
        %v7704 = vunpack.c.l.s4 1934713408
        %v7705 = vunpack.c.0.s8 %v7704
        %v7706 = vlaneseq
        %v7707 = vshrl.u32 %v7706, 7
        %v7708 = vsub.s32 %v7705, %v7707
        %v7709 = vrot.slane %v7701, %v7708
        %v7711 = vunpack.c.l.s4 1934713408
        %v7712 = vunpack.c.0.s8 %v7711
        %v7713 = vlaneseq
        %v7714 = vshrl.u32 %v7713, 7
        %v7715 = vsub.s32 %v7712, %v7714
        %v7716 = vrot.slane %v7702, %v7715
        %v7717 = vcombine.low %v7652, %v7668
        %v7718 = vcombine.high %v7652, %v7668
        %v7720 = vunpack.c.l.s4 1934713408
        %v7721 = vunpack.c.0.s8 %v7720
        %v7722 = vlaneseq
        %v7723 = vshrl.u32 %v7722, 7
        %v7724 = vsub.s32 %v7721, %v7723
        %v7725 = vrot.slane %v7717, %v7724
        %v7727 = vunpack.c.l.s4 1934713408
        %v7728 = vunpack.c.0.s8 %v7727
        %v7729 = vlaneseq
        %v7730 = vshrl.u32 %v7729, 7
        %v7731 = vsub.s32 %v7728, %v7730
        %v7732 = vrot.slane %v7718, %v7731
        %v7733 = vcombine.low %v7677, %v7709
        %v7734 = vcombine.high %v7677, %v7709
        %v7735 = vcombine.low %v7684, %v7716
        %v7736 = vcombine.high %v7684, %v7716
        %v7737 = vcombine.low %v7693, %v7725
        %v7738 = vcombine.high %v7693, %v7725
        %v7739 = vcombine.low %v7700, %v7732
        %v7740 = vcombine.high %v7700, %v7732
        %7742 = vrot.lane.b32.xlu0 %v7598, 16
        %v7743 = vpop.permute.xlu0 %7742
        %7746 = vrot.lane.b32.xlu0 %v7599, 32
        %v7747 = vpop.permute.xlu0 %7746
        %7750 = vrot.lane.b32.xlu0 %v7600, 48
        %v7751 = vpop.permute.xlu0 %7750
        %7754 = vrot.lane.b32.xlu0 %v7601, 64
        %v7755 = vpop.permute.xlu0 %7754
        %7758 = vrot.lane.b32.xlu0 %v7602, 80
        %v7759 = vpop.permute.xlu0 %7758
        %7762 = vrot.lane.b32.xlu0 %v7603, 96
        %v7763 = vpop.permute.xlu0 %7762
        %7766 = vrot.lane.b32.xlu0 %v7604, 112
        %v7767 = vpop.permute.xlu0 %7766
        %7770 = vrot.lane.b32.xlu0 %v7734, 16
        %v7771 = vpop.permute.xlu0 %7770
        %7774 = vrot.lane.b32.xlu0 %v7735, 32
        %v7775 = vpop.permute.xlu0 %7774
        %7778 = vrot.lane.b32.xlu0 %v7736, 48
        %v7779 = vpop.permute.xlu0 %7778
        %7782 = vrot.lane.b32.xlu0 %v7737, 64
        %v7783 = vpop.permute.xlu0 %7782
        %7786 = vrot.lane.b32.xlu0 %v7738, 80
        %v7787 = vpop.permute.xlu0 %7786
        %7790 = vrot.lane.b32.xlu0 %v7739, 96
        %v7791 = vpop.permute.xlu0 %7790
        %7794 = vrot.lane.b32.xlu0 %v7740, 112
        %v7795 = vpop.permute.xlu0 %7794
        %v7797 = vsel %vm1699, %v7597, %v7743
        %v7798 = vsel %vm1701, %v7797, %v7747
        %v7799 = vsel %vm1703, %v7798, %v7751
        %v7800 = vsel %vm1705, %v7799, %v7755
        %v7801 = vsel %vm1707, %v7800, %v7759
        %v7802 = vsel %vm1709, %v7801, %v7763
        %v7803 = vsel %vm1711, %v7802, %v7767
        %v7804 = vsel %vm1699, %v7733, %v7771
        %v7805 = vsel %vm1701, %v7804, %v7775
        %v7806 = vsel %vm1703, %v7805, %v7779
        %v7807 = vsel %vm1705, %v7806, %v7783
        %v7808 = vsel %vm1707, %v7807, %v7787
        %v7809 = vsel %vm1709, %v7808, %v7791
        %v7810 = vsel %vm1711, %v7809, %v7795
        %7812 = vset.pattern.permute.xlu0 0
        %7813 = vperm.xlu0 %7812, %v6692
        %v7814 = vpop.permute.xlu0 %7813
        %7817 = vset.pattern.permute.xlu0 0
        %7818 = vperm.xlu0 %7817, %v6693
        %v7819 = vpop.permute.xlu0 %7818
        %v7822 = vsel %vm1730, %v6689, 0
        %v7825 = vsel %vm1730, %v6690, 0
        %7827 = vmatprep.subr.mxu0 0.0
        %7828 = vmatpush1.msra.mxu0 0.0
        %7829 = vmatprep.subr.mxu0 0.0
        %7830 = vmatpush1.msra.mxu0 0.0
        %7831 = vmatprep.subr.mxu0 0.0
        %7832 = vmatpush1.msra.mxu0 0.0
        %7833 = vmatprep.subr.mxu0 0.0
        %7834 = vmatpush1.msra.mxu0 0.0
        %7835 = vmatprep.subr.mxu0 0.0
        %7836 = vmatpush1.msra.mxu0 0.0
        %7837 = vmatprep.subr.mxu0 0.0
        %7838 = vmatpush1.msra.mxu0 0.0
        %7839 = vmatprep.subr.mxu0 0.0
        %7840 = vmatpush1.msra.mxu0 0.0
        %7841 = vmatprep.subr.mxu0 0.0
        %7842 = vmatpush1.msra.mxu0 0.0
        %7843 = vmatprep.subr.mxu0 0.0
        %7844 = vmatpush1.msra.mxu0 0.0
        %7845 = vmatprep.subr.mxu0 0.0
        %7846 = vmatpush1.msra.mxu0 0.0
        %7847 = vmatprep.subr.mxu0 0.0
        %7848 = vmatpush1.msra.mxu0 0.0
        %7849 = vmatprep.subr.mxu0 0.0
        %7850 = vmatpush1.msra.mxu0 0.0
        %7851 = vmatprep.subr.mxu0 0.0
        %7852 = vmatpush1.msra.mxu0 0.0
        %7853 = vmatprep.subr.mxu0 0.0
        %7854 = vmatpush1.msra.mxu0 0.0
        %7855 = vmatprep.subr.mxu0 0.0
        %7856 = vmatpush1.msra.mxu0 0.0
        %7857 = vmatprep.subr.mxu0 %v7810
        %7858 = vmatpush1.msra.mxu0 %v7803
        %7859 = vmatprep.subr.mxu0 0.0
        %7860 = vmatpush2.msra.mxu0 0.0
        %7861 = vmatprep.subr.mxu0 0.0
        %7862 = vmatpush2.msra.mxu0 0.0
        %7863 = vmatprep.subr.mxu0 0.0
        %7864 = vmatpush2.msra.mxu0 0.0
        %7865 = vmatprep.subr.mxu0 0.0
        %7866 = vmatpush2.msra.mxu0 0.0
        %7867 = vmatprep.subr.mxu0 0.0
        %7868 = vmatpush2.msra.mxu0 0.0
        %7869 = vmatprep.subr.mxu0 0.0
        %7870 = vmatpush2.msra.mxu0 0.0
        %7871 = vmatprep.subr.mxu0 0.0
        %7872 = vmatpush2.msra.mxu0 0.0
        %7873 = vmatprep.subr.mxu0 0.0
        %7874 = vmatpush2.msra.mxu0 0.0
        %7875 = vmatprep.subr.mxu0 0.0
        %7876 = vmatpush2.msra.mxu0 0.0
        %7877 = vmatprep.subr.mxu0 0.0
        %7878 = vmatpush2.msra.mxu0 0.0
        %7879 = vmatprep.subr.mxu0 0.0
        %7880 = vmatpush2.msra.mxu0 0.0
        %7881 = vmatprep.subr.mxu0 0.0
        %7882 = vmatpush2.msra.mxu0 0.0
        %7883 = vmatprep.subr.mxu0 0.0
        %7884 = vmatpush2.msra.mxu0 0.0
        %7885 = vmatprep.subr.mxu0 0.0
        %7886 = vmatpush2.msra.mxu0 0.0
        %7887 = vmatprep.subr.mxu0 0.0
        %7888 = vmatpush2.msra.mxu0 0.0
        %7889 = vmatprep.subr.mxu0 0.0
        %7890 = vmatpush2.msra.mxu0 0.0
        %7891 = vmatprep.mubr.f32.mxu0 0.0
        %7892 = vmatmul.mubr.f32.gmra.mxu0 %v7822
        %v7893 = vpop.f32.mrf.mxu0
        %v7894 = vadd.f32 %v7814, %v7893
        %v7895 = vpop.f32.mrf.mxu0
        %v7896 = vadd.f32 %v7814, %v7895
        %7897 = vmatprep.mubr.f32.mxu0 0.0
        %7898 = vmatmul.mubr.f32.gmra.mxu0 %v7825
        %v7899 = vpop.f32.mrf.mxu0
        %v7900 = vadd.f32 %v7819, %v7899
        %v7901 = vpop.f32.mrf.mxu0
        %v7902 = vadd.f32 %v7819, %v7901
        %7903 = vdwg.mxu0
        %v7905 = vlaneseq
        %v7906 = vshrl.u32 %v7905, 7
        %v7907 = vsub.s32 0, %v7906
        %v7908 = vrot.slane %v6695, %v7907
        %v7909 = vlaneseq
        %v7910 = vshrl.u32 %v7909, 7
        %v7911 = vsub.s32 1, %v7910
        %v7912 = vrot.slane %v6695, %v7911
        %v7915 = vadd.f32 %v7894, %v7908
        %v7916 = vadd.f32 %v7896, %v7912
        %v7917 = vadd.f32 %v7900, %v7908
        %v7918 = vadd.f32 %v7902, %v7912
        %7921 = vrot.lane.b32.xlu0 %v7915, 112
        %v7922 = vpop.permute.xlu0 %7921
        %7923 = vrot.lane.b32.xlu0 %v7917, 112
        %v7924 = vpop.permute.xlu0 %7923
        %7927 = vrot.lane.b32.xlu0 %v7915, 96
        %v7928 = vpop.permute.xlu0 %7927
        %7929 = vrot.lane.b32.xlu0 %v7917, 96
        %v7930 = vpop.permute.xlu0 %7929
        %7933 = vrot.lane.b32.xlu0 %v7915, 80
        %v7934 = vpop.permute.xlu0 %7933
        %7935 = vrot.lane.b32.xlu0 %v7917, 80
        %v7936 = vpop.permute.xlu0 %7935
        %7939 = vrot.lane.b32.xlu0 %v7915, 64
        %v7940 = vpop.permute.xlu0 %7939
        %7941 = vrot.lane.b32.xlu0 %v7917, 64
        %v7942 = vpop.permute.xlu0 %7941
        %7945 = vrot.lane.b32.xlu0 %v7915, 48
        %v7946 = vpop.permute.xlu0 %7945
        %7947 = vrot.lane.b32.xlu0 %v7917, 48
        %v7948 = vpop.permute.xlu0 %7947
        %7951 = vrot.lane.b32.xlu0 %v7915, 32
        %v7952 = vpop.permute.xlu0 %7951
        %7953 = vrot.lane.b32.xlu0 %v7917, 32
        %v7954 = vpop.permute.xlu0 %7953
        %7957 = vrot.lane.b32.xlu0 %v7915, 16
        %v7958 = vpop.permute.xlu0 %7957
        %7959 = vrot.lane.b32.xlu0 %v7917, 16
        %v7960 = vpop.permute.xlu0 %7959
        %7965 = vrot.lane.b32.xlu0 %v7916, 112
        %v7966 = vpop.permute.xlu0 %7965
        %7967 = vrot.lane.b32.xlu0 %v7918, 112
        %v7968 = vpop.permute.xlu0 %7967
        %7971 = vrot.lane.b32.xlu0 %v7916, 96
        %v7972 = vpop.permute.xlu0 %7971
        %7973 = vrot.lane.b32.xlu0 %v7918, 96
        %v7974 = vpop.permute.xlu0 %7973
        %7977 = vrot.lane.b32.xlu0 %v7916, 80
        %v7978 = vpop.permute.xlu0 %7977
        %7979 = vrot.lane.b32.xlu0 %v7918, 80
        %v7980 = vpop.permute.xlu0 %7979
        %7983 = vrot.lane.b32.xlu0 %v7916, 64
        %v7984 = vpop.permute.xlu0 %7983
        %7985 = vrot.lane.b32.xlu0 %v7918, 64
        %v7986 = vpop.permute.xlu0 %7985
        %7989 = vrot.lane.b32.xlu0 %v7916, 48
        %v7990 = vpop.permute.xlu0 %7989
        %7991 = vrot.lane.b32.xlu0 %v7918, 48
        %v7992 = vpop.permute.xlu0 %7991
        %7995 = vrot.lane.b32.xlu0 %v7916, 32
        %v7996 = vpop.permute.xlu0 %7995
        %7997 = vrot.lane.b32.xlu0 %v7918, 32
        %v7998 = vpop.permute.xlu0 %7997
        %8001 = vrot.lane.b32.xlu0 %v7916, 16
        %v8002 = vpop.permute.xlu0 %8001
        %8003 = vrot.lane.b32.xlu0 %v7918, 16
        %v8004 = vpop.permute.xlu0 %8003
        %v8007 = vcombine.low %v7915, %v7928
        %v8008 = vcombine.high %v7915, %v7928
        %v8010 = vunpack.c.l.s4 1983009808
        %v8011 = vunpack.c.0.s8 %v8010
        %v8012 = vlaneseq
        %v8013 = vshrl.u32 %v8012, 7
        %v8014 = vsub.s32 %v8011, %v8013
        %v8015 = vrot.slane %v8007, %v8014
        %v8017 = vunpack.c.l.s4 1983009808
        %v8018 = vunpack.c.0.s8 %v8017
        %v8019 = vlaneseq
        %v8020 = vshrl.u32 %v8019, 7
        %v8021 = vsub.s32 %v8018, %v8020
        %v8022 = vrot.slane %v8008, %v8021
        %v8023 = vcombine.low %v7922, %v7934
        %v8024 = vcombine.high %v7922, %v7934
        %v8026 = vunpack.c.l.s4 1983009808
        %v8027 = vunpack.c.0.s8 %v8026
        %v8028 = vlaneseq
        %v8029 = vshrl.u32 %v8028, 7
        %v8030 = vsub.s32 %v8027, %v8029
        %v8031 = vrot.slane %v8023, %v8030
        %v8033 = vunpack.c.l.s4 1983009808
        %v8034 = vunpack.c.0.s8 %v8033
        %v8035 = vlaneseq
        %v8036 = vshrl.u32 %v8035, 7
        %v8037 = vsub.s32 %v8034, %v8036
        %v8038 = vrot.slane %v8024, %v8037
        %v8039 = vcombine.low %v7940, %v7952
        %v8040 = vcombine.high %v7940, %v7952
        %v8042 = vunpack.c.l.s4 1983009808
        %v8043 = vunpack.c.0.s8 %v8042
        %v8044 = vlaneseq
        %v8045 = vshrl.u32 %v8044, 7
        %v8046 = vsub.s32 %v8043, %v8045
        %v8047 = vrot.slane %v8039, %v8046
        %v8049 = vunpack.c.l.s4 1983009808
        %v8050 = vunpack.c.0.s8 %v8049
        %v8051 = vlaneseq
        %v8052 = vshrl.u32 %v8051, 7
        %v8053 = vsub.s32 %v8050, %v8052
        %v8054 = vrot.slane %v8040, %v8053
        %v8055 = vcombine.low %v7946, %v7958
        %v8056 = vcombine.high %v7946, %v7958
        %v8058 = vunpack.c.l.s4 1983009808
        %v8059 = vunpack.c.0.s8 %v8058
        %v8060 = vlaneseq
        %v8061 = vshrl.u32 %v8060, 7
        %v8062 = vsub.s32 %v8059, %v8061
        %v8063 = vrot.slane %v8055, %v8062
        %v8065 = vunpack.c.l.s4 1983009808
        %v8066 = vunpack.c.0.s8 %v8065
        %v8067 = vlaneseq
        %v8068 = vshrl.u32 %v8067, 7
        %v8069 = vsub.s32 %v8066, %v8068
        %v8070 = vrot.slane %v8056, %v8069
        %v8071 = vcombine.low %v8015, %v8031
        %v8072 = vcombine.high %v8015, %v8031
        %v8074 = vunpack.c.l.s4 1934713408
        %v8075 = vunpack.c.0.s8 %v8074
        %v8076 = vlaneseq
        %v8077 = vshrl.u32 %v8076, 7
        %v8078 = vsub.s32 %v8075, %v8077
        %v8079 = vrot.slane %v8071, %v8078
        %v8081 = vunpack.c.l.s4 1934713408
        %v8082 = vunpack.c.0.s8 %v8081
        %v8083 = vlaneseq
        %v8084 = vshrl.u32 %v8083, 7
        %v8085 = vsub.s32 %v8082, %v8084
        %v8086 = vrot.slane %v8072, %v8085
        %v8087 = vcombine.low %v8022, %v8038
        %v8088 = vcombine.high %v8022, %v8038
        %v8090 = vunpack.c.l.s4 1934713408
        %v8091 = vunpack.c.0.s8 %v8090
        %v8092 = vlaneseq
        %v8093 = vshrl.u32 %v8092, 7
        %v8094 = vsub.s32 %v8091, %v8093
        %v8095 = vrot.slane %v8087, %v8094
        %v8097 = vunpack.c.l.s4 1934713408
        %v8098 = vunpack.c.0.s8 %v8097
        %v8099 = vlaneseq
        %v8100 = vshrl.u32 %v8099, 7
        %v8101 = vsub.s32 %v8098, %v8100
        %v8102 = vrot.slane %v8088, %v8101
        %v8103 = vcombine.low %v8047, %v8063
        %v8104 = vcombine.high %v8047, %v8063
        %v8106 = vunpack.c.l.s4 1934713408
        %v8107 = vunpack.c.0.s8 %v8106
        %v8108 = vlaneseq
        %v8109 = vshrl.u32 %v8108, 7
        %v8110 = vsub.s32 %v8107, %v8109
        %v8111 = vrot.slane %v8103, %v8110
        %v8113 = vunpack.c.l.s4 1934713408
        %v8114 = vunpack.c.0.s8 %v8113
        %v8115 = vlaneseq
        %v8116 = vshrl.u32 %v8115, 7
        %v8117 = vsub.s32 %v8114, %v8116
        %v8118 = vrot.slane %v8104, %v8117
        %v8119 = vcombine.low %v8054, %v8070
        %v8120 = vcombine.high %v8054, %v8070
        %v8122 = vunpack.c.l.s4 1934713408
        %v8123 = vunpack.c.0.s8 %v8122
        %v8124 = vlaneseq
        %v8125 = vshrl.u32 %v8124, 7
        %v8126 = vsub.s32 %v8123, %v8125
        %v8127 = vrot.slane %v8119, %v8126
        %v8129 = vunpack.c.l.s4 1934713408
        %v8130 = vunpack.c.0.s8 %v8129
        %v8131 = vlaneseq
        %v8132 = vshrl.u32 %v8131, 7
        %v8133 = vsub.s32 %v8130, %v8132
        %v8134 = vrot.slane %v8120, %v8133
        %v8135 = vcombine.low %v8079, %v8111
        %v8136 = vcombine.high %v8079, %v8111
        %v8137 = vcombine.low %v8086, %v8118
        %v8138 = vcombine.high %v8086, %v8118
        %v8139 = vcombine.low %v8095, %v8127
        %v8140 = vcombine.high %v8095, %v8127
        %v8141 = vcombine.low %v8102, %v8134
        %v8142 = vcombine.high %v8102, %v8134
        %v8143 = vcombine.low %v7916, %v7972
        %v8144 = vcombine.high %v7916, %v7972
        %v8146 = vunpack.c.l.s4 1983009808
        %v8147 = vunpack.c.0.s8 %v8146
        %v8148 = vlaneseq
        %v8149 = vshrl.u32 %v8148, 7
        %v8150 = vsub.s32 %v8147, %v8149
        %v8151 = vrot.slane %v8143, %v8150
        %v8153 = vunpack.c.l.s4 1983009808
        %v8154 = vunpack.c.0.s8 %v8153
        %v8155 = vlaneseq
        %v8156 = vshrl.u32 %v8155, 7
        %v8157 = vsub.s32 %v8154, %v8156
        %v8158 = vrot.slane %v8144, %v8157
        %v8159 = vcombine.low %v7966, %v7978
        %v8160 = vcombine.high %v7966, %v7978
        %v8162 = vunpack.c.l.s4 1983009808
        %v8163 = vunpack.c.0.s8 %v8162
        %v8164 = vlaneseq
        %v8165 = vshrl.u32 %v8164, 7
        %v8166 = vsub.s32 %v8163, %v8165
        %v8167 = vrot.slane %v8159, %v8166
        %v8169 = vunpack.c.l.s4 1983009808
        %v8170 = vunpack.c.0.s8 %v8169
        %v8171 = vlaneseq
        %v8172 = vshrl.u32 %v8171, 7
        %v8173 = vsub.s32 %v8170, %v8172
        %v8174 = vrot.slane %v8160, %v8173
        %v8175 = vcombine.low %v7984, %v7996
        %v8176 = vcombine.high %v7984, %v7996
        %v8178 = vunpack.c.l.s4 1983009808
        %v8179 = vunpack.c.0.s8 %v8178
        %v8180 = vlaneseq
        %v8181 = vshrl.u32 %v8180, 7
        %v8182 = vsub.s32 %v8179, %v8181
        %v8183 = vrot.slane %v8175, %v8182
        %v8185 = vunpack.c.l.s4 1983009808
        %v8186 = vunpack.c.0.s8 %v8185
        %v8187 = vlaneseq
        %v8188 = vshrl.u32 %v8187, 7
        %v8189 = vsub.s32 %v8186, %v8188
        %v8190 = vrot.slane %v8176, %v8189
        %v8191 = vcombine.low %v7990, %v8002
        %v8192 = vcombine.high %v7990, %v8002
        %v8194 = vunpack.c.l.s4 1983009808
        %v8195 = vunpack.c.0.s8 %v8194
        %v8196 = vlaneseq
        %v8197 = vshrl.u32 %v8196, 7
        %v8198 = vsub.s32 %v8195, %v8197
        %v8199 = vrot.slane %v8191, %v8198
        %v8201 = vunpack.c.l.s4 1983009808
        %v8202 = vunpack.c.0.s8 %v8201
        %v8203 = vlaneseq
        %v8204 = vshrl.u32 %v8203, 7
        %v8205 = vsub.s32 %v8202, %v8204
        %v8206 = vrot.slane %v8192, %v8205
        %v8207 = vcombine.low %v8151, %v8167
        %v8208 = vcombine.high %v8151, %v8167
        %v8210 = vunpack.c.l.s4 1934713408
        %v8211 = vunpack.c.0.s8 %v8210
        %v8212 = vlaneseq
        %v8213 = vshrl.u32 %v8212, 7
        %v8214 = vsub.s32 %v8211, %v8213
        %v8215 = vrot.slane %v8207, %v8214
        %v8217 = vunpack.c.l.s4 1934713408
        %v8218 = vunpack.c.0.s8 %v8217
        %v8219 = vlaneseq
        %v8220 = vshrl.u32 %v8219, 7
        %v8221 = vsub.s32 %v8218, %v8220
        %v8222 = vrot.slane %v8208, %v8221
        %v8223 = vcombine.low %v8158, %v8174
        %v8224 = vcombine.high %v8158, %v8174
        %v8226 = vunpack.c.l.s4 1934713408
        %v8227 = vunpack.c.0.s8 %v8226
        %v8228 = vlaneseq
        %v8229 = vshrl.u32 %v8228, 7
        %v8230 = vsub.s32 %v8227, %v8229
        %v8231 = vrot.slane %v8223, %v8230
        %v8233 = vunpack.c.l.s4 1934713408
        %v8234 = vunpack.c.0.s8 %v8233
        %v8235 = vlaneseq
        %v8236 = vshrl.u32 %v8235, 7
        %v8237 = vsub.s32 %v8234, %v8236
        %v8238 = vrot.slane %v8224, %v8237
        %v8239 = vcombine.low %v8183, %v8199
        %v8240 = vcombine.high %v8183, %v8199
        %v8242 = vunpack.c.l.s4 1934713408
        %v8243 = vunpack.c.0.s8 %v8242
        %v8244 = vlaneseq
        %v8245 = vshrl.u32 %v8244, 7
        %v8246 = vsub.s32 %v8243, %v8245
        %v8247 = vrot.slane %v8239, %v8246
        %v8249 = vunpack.c.l.s4 1934713408
        %v8250 = vunpack.c.0.s8 %v8249
        %v8251 = vlaneseq
        %v8252 = vshrl.u32 %v8251, 7
        %v8253 = vsub.s32 %v8250, %v8252
        %v8254 = vrot.slane %v8240, %v8253
        %v8255 = vcombine.low %v8190, %v8206
        %v8256 = vcombine.high %v8190, %v8206
        %v8258 = vunpack.c.l.s4 1934713408
        %v8259 = vunpack.c.0.s8 %v8258
        %v8260 = vlaneseq
        %v8261 = vshrl.u32 %v8260, 7
        %v8262 = vsub.s32 %v8259, %v8261
        %v8263 = vrot.slane %v8255, %v8262
        %v8265 = vunpack.c.l.s4 1934713408
        %v8266 = vunpack.c.0.s8 %v8265
        %v8267 = vlaneseq
        %v8268 = vshrl.u32 %v8267, 7
        %v8269 = vsub.s32 %v8266, %v8268
        %v8270 = vrot.slane %v8256, %v8269
        %v8271 = vcombine.low %v8215, %v8247
        %v8272 = vcombine.high %v8215, %v8247
        %v8273 = vcombine.low %v8222, %v8254
        %v8274 = vcombine.high %v8222, %v8254
        %v8275 = vcombine.low %v8231, %v8263
        %v8276 = vcombine.high %v8231, %v8263
        %v8277 = vcombine.low %v8238, %v8270
        %v8278 = vcombine.high %v8238, %v8270
        %v8279 = vcombine.low %v7917, %v7930
        %v8280 = vcombine.high %v7917, %v7930
        %v8282 = vunpack.c.l.s4 1983009808
        %v8283 = vunpack.c.0.s8 %v8282
        %v8284 = vlaneseq
        %v8285 = vshrl.u32 %v8284, 7
        %v8286 = vsub.s32 %v8283, %v8285
        %v8287 = vrot.slane %v8279, %v8286
        %v8289 = vunpack.c.l.s4 1983009808
        %v8290 = vunpack.c.0.s8 %v8289
        %v8291 = vlaneseq
        %v8292 = vshrl.u32 %v8291, 7
        %v8293 = vsub.s32 %v8290, %v8292
        %v8294 = vrot.slane %v8280, %v8293
        %v8295 = vcombine.low %v7924, %v7936
        %v8296 = vcombine.high %v7924, %v7936
        %v8298 = vunpack.c.l.s4 1983009808
        %v8299 = vunpack.c.0.s8 %v8298
        %v8300 = vlaneseq
        %v8301 = vshrl.u32 %v8300, 7
        %v8302 = vsub.s32 %v8299, %v8301
        %v8303 = vrot.slane %v8295, %v8302
        %v8305 = vunpack.c.l.s4 1983009808
        %v8306 = vunpack.c.0.s8 %v8305
        %v8307 = vlaneseq
        %v8308 = vshrl.u32 %v8307, 7
        %v8309 = vsub.s32 %v8306, %v8308
        %v8310 = vrot.slane %v8296, %v8309
        %v8311 = vcombine.low %v7942, %v7954
        %v8312 = vcombine.high %v7942, %v7954
        %v8314 = vunpack.c.l.s4 1983009808
        %v8315 = vunpack.c.0.s8 %v8314
        %v8316 = vlaneseq
        %v8317 = vshrl.u32 %v8316, 7
        %v8318 = vsub.s32 %v8315, %v8317
        %v8319 = vrot.slane %v8311, %v8318
        %v8321 = vunpack.c.l.s4 1983009808
        %v8322 = vunpack.c.0.s8 %v8321
        %v8323 = vlaneseq
        %v8324 = vshrl.u32 %v8323, 7
        %v8325 = vsub.s32 %v8322, %v8324
        %v8326 = vrot.slane %v8312, %v8325
        %v8327 = vcombine.low %v7948, %v7960
        %v8328 = vcombine.high %v7948, %v7960
        %v8330 = vunpack.c.l.s4 1983009808
        %v8331 = vunpack.c.0.s8 %v8330
        %v8332 = vlaneseq
        %v8333 = vshrl.u32 %v8332, 7
        %v8334 = vsub.s32 %v8331, %v8333
        %v8335 = vrot.slane %v8327, %v8334
        %v8337 = vunpack.c.l.s4 1983009808
        %v8338 = vunpack.c.0.s8 %v8337
        %v8339 = vlaneseq
        %v8340 = vshrl.u32 %v8339, 7
        %v8341 = vsub.s32 %v8338, %v8340
        %v8342 = vrot.slane %v8328, %v8341
        %v8343 = vcombine.low %v8287, %v8303
        %v8344 = vcombine.high %v8287, %v8303
        %v8346 = vunpack.c.l.s4 1934713408
        %v8347 = vunpack.c.0.s8 %v8346
        %v8348 = vlaneseq
        %v8349 = vshrl.u32 %v8348, 7
        %v8350 = vsub.s32 %v8347, %v8349
        %v8351 = vrot.slane %v8343, %v8350
        %v8353 = vunpack.c.l.s4 1934713408
        %v8354 = vunpack.c.0.s8 %v8353
        %v8355 = vlaneseq
        %v8356 = vshrl.u32 %v8355, 7
        %v8357 = vsub.s32 %v8354, %v8356
        %v8358 = vrot.slane %v8344, %v8357
        %v8359 = vcombine.low %v8294, %v8310
        %v8360 = vcombine.high %v8294, %v8310
        %v8362 = vunpack.c.l.s4 1934713408
        %v8363 = vunpack.c.0.s8 %v8362
        %v8364 = vlaneseq
        %v8365 = vshrl.u32 %v8364, 7
        %v8366 = vsub.s32 %v8363, %v8365
        %v8367 = vrot.slane %v8359, %v8366
        %v8369 = vunpack.c.l.s4 1934713408
        %v8370 = vunpack.c.0.s8 %v8369
        %v8371 = vlaneseq
        %v8372 = vshrl.u32 %v8371, 7
        %v8373 = vsub.s32 %v8370, %v8372
        %v8374 = vrot.slane %v8360, %v8373
        %v8375 = vcombine.low %v8319, %v8335
        %v8376 = vcombine.high %v8319, %v8335
        %v8378 = vunpack.c.l.s4 1934713408
        %v8379 = vunpack.c.0.s8 %v8378
        %v8380 = vlaneseq
        %v8381 = vshrl.u32 %v8380, 7
        %v8382 = vsub.s32 %v8379, %v8381
        %v8383 = vrot.slane %v8375, %v8382
        %v8385 = vunpack.c.l.s4 1934713408
        %v8386 = vunpack.c.0.s8 %v8385
        %v8387 = vlaneseq
        %v8388 = vshrl.u32 %v8387, 7
        %v8389 = vsub.s32 %v8386, %v8388
        %v8390 = vrot.slane %v8376, %v8389
        %v8391 = vcombine.low %v8326, %v8342
        %v8392 = vcombine.high %v8326, %v8342
        %v8394 = vunpack.c.l.s4 1934713408
        %v8395 = vunpack.c.0.s8 %v8394
        %v8396 = vlaneseq
        %v8397 = vshrl.u32 %v8396, 7
        %v8398 = vsub.s32 %v8395, %v8397
        %v8399 = vrot.slane %v8391, %v8398
        %v8401 = vunpack.c.l.s4 1934713408
        %v8402 = vunpack.c.0.s8 %v8401
        %v8403 = vlaneseq
        %v8404 = vshrl.u32 %v8403, 7
        %v8405 = vsub.s32 %v8402, %v8404
        %v8406 = vrot.slane %v8392, %v8405
        %v8407 = vcombine.low %v8351, %v8383
        %v8408 = vcombine.high %v8351, %v8383
        %v8409 = vcombine.low %v8358, %v8390
        %v8410 = vcombine.high %v8358, %v8390
        %v8411 = vcombine.low %v8367, %v8399
        %v8412 = vcombine.high %v8367, %v8399
        %v8413 = vcombine.low %v8374, %v8406
        %v8414 = vcombine.high %v8374, %v8406
        %v8415 = vcombine.low %v7918, %v7974
        %v8416 = vcombine.high %v7918, %v7974
        %v8418 = vunpack.c.l.s4 1983009808
        %v8419 = vunpack.c.0.s8 %v8418
        %v8420 = vlaneseq
        %v8421 = vshrl.u32 %v8420, 7
        %v8422 = vsub.s32 %v8419, %v8421
        %v8423 = vrot.slane %v8415, %v8422
        %v8425 = vunpack.c.l.s4 1983009808
        %v8426 = vunpack.c.0.s8 %v8425
        %v8427 = vlaneseq
        %v8428 = vshrl.u32 %v8427, 7
        %v8429 = vsub.s32 %v8426, %v8428
        %v8430 = vrot.slane %v8416, %v8429
        %v8431 = vcombine.low %v7968, %v7980
        %v8432 = vcombine.high %v7968, %v7980
        %v8434 = vunpack.c.l.s4 1983009808
        %v8435 = vunpack.c.0.s8 %v8434
        %v8436 = vlaneseq
        %v8437 = vshrl.u32 %v8436, 7
        %v8438 = vsub.s32 %v8435, %v8437
        %v8439 = vrot.slane %v8431, %v8438
        %v8441 = vunpack.c.l.s4 1983009808
        %v8442 = vunpack.c.0.s8 %v8441
        %v8443 = vlaneseq
        %v8444 = vshrl.u32 %v8443, 7
        %v8445 = vsub.s32 %v8442, %v8444
        %v8446 = vrot.slane %v8432, %v8445
        %v8447 = vcombine.low %v7986, %v7998
        %v8448 = vcombine.high %v7986, %v7998
        %v8450 = vunpack.c.l.s4 1983009808
        %v8451 = vunpack.c.0.s8 %v8450
        %v8452 = vlaneseq
        %v8453 = vshrl.u32 %v8452, 7
        %v8454 = vsub.s32 %v8451, %v8453
        %v8455 = vrot.slane %v8447, %v8454
        %v8457 = vunpack.c.l.s4 1983009808
        %v8458 = vunpack.c.0.s8 %v8457
        %v8459 = vlaneseq
        %v8460 = vshrl.u32 %v8459, 7
        %v8461 = vsub.s32 %v8458, %v8460
        %v8462 = vrot.slane %v8448, %v8461
        %v8463 = vcombine.low %v7992, %v8004
        %v8464 = vcombine.high %v7992, %v8004
        %v8466 = vunpack.c.l.s4 1983009808
        %v8467 = vunpack.c.0.s8 %v8466
        %v8468 = vlaneseq
        %v8469 = vshrl.u32 %v8468, 7
        %v8470 = vsub.s32 %v8467, %v8469
        %v8471 = vrot.slane %v8463, %v8470
        %v8473 = vunpack.c.l.s4 1983009808
        %v8474 = vunpack.c.0.s8 %v8473
        %v8475 = vlaneseq
        %v8476 = vshrl.u32 %v8475, 7
        %v8477 = vsub.s32 %v8474, %v8476
        %v8478 = vrot.slane %v8464, %v8477
        %v8479 = vcombine.low %v8423, %v8439
        %v8480 = vcombine.high %v8423, %v8439
        %v8482 = vunpack.c.l.s4 1934713408
        %v8483 = vunpack.c.0.s8 %v8482
        %v8484 = vlaneseq
        %v8485 = vshrl.u32 %v8484, 7
        %v8486 = vsub.s32 %v8483, %v8485
        %v8487 = vrot.slane %v8479, %v8486
        %v8489 = vunpack.c.l.s4 1934713408
        %v8490 = vunpack.c.0.s8 %v8489
        %v8491 = vlaneseq
        %v8492 = vshrl.u32 %v8491, 7
        %v8493 = vsub.s32 %v8490, %v8492
        %v8494 = vrot.slane %v8480, %v8493
        %v8495 = vcombine.low %v8430, %v8446
        %v8496 = vcombine.high %v8430, %v8446
        %v8498 = vunpack.c.l.s4 1934713408
        %v8499 = vunpack.c.0.s8 %v8498
        %v8500 = vlaneseq
        %v8501 = vshrl.u32 %v8500, 7
        %v8502 = vsub.s32 %v8499, %v8501
        %v8503 = vrot.slane %v8495, %v8502
        %v8505 = vunpack.c.l.s4 1934713408
        %v8506 = vunpack.c.0.s8 %v8505
        %v8507 = vlaneseq
        %v8508 = vshrl.u32 %v8507, 7
        %v8509 = vsub.s32 %v8506, %v8508
        %v8510 = vrot.slane %v8496, %v8509
        %v8511 = vcombine.low %v8455, %v8471
        %v8512 = vcombine.high %v8455, %v8471
        %v8514 = vunpack.c.l.s4 1934713408
        %v8515 = vunpack.c.0.s8 %v8514
        %v8516 = vlaneseq
        %v8517 = vshrl.u32 %v8516, 7
        %v8518 = vsub.s32 %v8515, %v8517
        %v8519 = vrot.slane %v8511, %v8518
        %v8521 = vunpack.c.l.s4 1934713408
        %v8522 = vunpack.c.0.s8 %v8521
        %v8523 = vlaneseq
        %v8524 = vshrl.u32 %v8523, 7
        %v8525 = vsub.s32 %v8522, %v8524
        %v8526 = vrot.slane %v8512, %v8525
        %v8527 = vcombine.low %v8462, %v8478
        %v8528 = vcombine.high %v8462, %v8478
        %v8530 = vunpack.c.l.s4 1934713408
        %v8531 = vunpack.c.0.s8 %v8530
        %v8532 = vlaneseq
        %v8533 = vshrl.u32 %v8532, 7
        %v8534 = vsub.s32 %v8531, %v8533
        %v8535 = vrot.slane %v8527, %v8534
        %v8537 = vunpack.c.l.s4 1934713408
        %v8538 = vunpack.c.0.s8 %v8537
        %v8539 = vlaneseq
        %v8540 = vshrl.u32 %v8539, 7
        %v8541 = vsub.s32 %v8538, %v8540
        %v8542 = vrot.slane %v8528, %v8541
        %v8543 = vcombine.low %v8487, %v8519
        %v8544 = vcombine.high %v8487, %v8519
        %v8545 = vcombine.low %v8494, %v8526
        %v8546 = vcombine.high %v8494, %v8526
        %v8547 = vcombine.low %v8503, %v8535
        %v8548 = vcombine.high %v8503, %v8535
        %v8549 = vcombine.low %v8510, %v8542
        %v8550 = vcombine.high %v8510, %v8542
        %v8552 = vsel %vm1699, %v7115, 0
        %8554 = vmatprep.subr.mxu0 0.0
        %8555 = vmatpush1.msra.mxu0 0.0
        %8556 = vmatprep.subr.mxu0 0.0
        %8557 = vmatpush1.msra.mxu0 0.0
        %8558 = vmatprep.subr.mxu0 0.0
        %8559 = vmatpush1.msra.mxu0 0.0
        %8560 = vmatprep.subr.mxu0 0.0
        %8561 = vmatpush1.msra.mxu0 0.0
        %8562 = vmatprep.subr.mxu0 0.0
        %8563 = vmatpush1.msra.mxu0 0.0
        %8564 = vmatprep.subr.mxu0 0.0
        %8565 = vmatpush1.msra.mxu0 0.0
        %8566 = vmatprep.subr.mxu0 0.0
        %8567 = vmatpush1.msra.mxu0 0.0
        %8568 = vmatprep.subr.mxu0 0.0
        %8569 = vmatpush1.msra.mxu0 0.0
        %8570 = vmatprep.subr.mxu0 0.0
        %8571 = vmatpush1.msra.mxu0 0.0
        %8572 = vmatprep.subr.mxu0 0.0
        %8573 = vmatpush1.msra.mxu0 0.0
        %8574 = vmatprep.subr.mxu0 0.0
        %8575 = vmatpush1.msra.mxu0 0.0
        %8576 = vmatprep.subr.mxu0 0.0
        %8577 = vmatpush1.msra.mxu0 0.0
        %8578 = vmatprep.subr.mxu0 0.0
        %8579 = vmatpush1.msra.mxu0 0.0
        %8580 = vmatprep.subr.mxu0 0.0
        %8581 = vmatpush1.msra.mxu0 0.0
        %8582 = vmatprep.subr.mxu0 0.0
        %8583 = vmatpush1.msra.mxu0 %v8271
        %8584 = vmatprep.subr.mxu0 0.0
        %8585 = vmatpush1.msra.mxu0 %v8135
        %8586 = vmatprep.subr.mxu0 0.0
        %8587 = vmatpush2.msra.mxu0 0.0
        %8588 = vmatprep.subr.mxu0 0.0
        %8589 = vmatpush2.msra.mxu0 0.0
        %8590 = vmatprep.subr.mxu0 0.0
        %8591 = vmatpush2.msra.mxu0 0.0
        %8592 = vmatprep.subr.mxu0 0.0
        %8593 = vmatpush2.msra.mxu0 0.0
        %8594 = vmatprep.subr.mxu0 0.0
        %8595 = vmatpush2.msra.mxu0 0.0
        %8596 = vmatprep.subr.mxu0 0.0
        %8597 = vmatpush2.msra.mxu0 0.0
        %8598 = vmatprep.subr.mxu0 0.0
        %8599 = vmatpush2.msra.mxu0 0.0
        %8600 = vmatprep.subr.mxu0 0.0
        %8601 = vmatpush2.msra.mxu0 0.0
        %8602 = vmatprep.subr.mxu0 0.0
        %8603 = vmatpush2.msra.mxu0 0.0
        %8604 = vmatprep.subr.mxu0 0.0
        %8605 = vmatpush2.msra.mxu0 0.0
        %8606 = vmatprep.subr.mxu0 0.0
        %8607 = vmatpush2.msra.mxu0 0.0
        %8608 = vmatprep.subr.mxu0 0.0
        %8609 = vmatpush2.msra.mxu0 0.0
        %8610 = vmatprep.subr.mxu0 0.0
        %8611 = vmatpush2.msra.mxu0 0.0
        %8612 = vmatprep.subr.mxu0 0.0
        %8613 = vmatpush2.msra.mxu0 0.0
        %8614 = vmatprep.subr.mxu0 0.0
        %8615 = vmatpush2.msra.mxu0 0.0
        %8616 = vmatprep.subr.mxu0 0.0
        %8617 = vmatpush2.msra.mxu0 0.0
        %8618 = vmatprep.mubr.f32.mxu0 0.0
        %8619 = vmatmul.mubr.f32.gmra.mxu0 %v8552
        %v8620 = vpop.f32.mrf.mxu0
        %v8621 = vadd.f32 0.0, %v8620
        %v8622 = vpop.f32.mrf.mxu0
        %8623 = vdwg.mxu0
        %v8625 = vsel %vm1699, %v7116, 0
        %8627 = vmatprep.subr.mxu0 0.0
        %8628 = vmatpush1.msra.mxu0 0.0
        %8629 = vmatprep.subr.mxu0 0.0
        %8630 = vmatpush1.msra.mxu0 0.0
        %8631 = vmatprep.subr.mxu0 0.0
        %8632 = vmatpush1.msra.mxu0 0.0
        %8633 = vmatprep.subr.mxu0 0.0
        %8634 = vmatpush1.msra.mxu0 0.0
        %8635 = vmatprep.subr.mxu0 0.0
        %8636 = vmatpush1.msra.mxu0 0.0
        %8637 = vmatprep.subr.mxu0 0.0
        %8638 = vmatpush1.msra.mxu0 0.0
        %8639 = vmatprep.subr.mxu0 0.0
        %8640 = vmatpush1.msra.mxu0 0.0
        %8641 = vmatprep.subr.mxu0 0.0
        %8642 = vmatpush1.msra.mxu0 0.0
        %8643 = vmatprep.subr.mxu0 0.0
        %8644 = vmatpush1.msra.mxu0 0.0
        %8645 = vmatprep.subr.mxu0 0.0
        %8646 = vmatpush1.msra.mxu0 0.0
        %8647 = vmatprep.subr.mxu0 0.0
        %8648 = vmatpush1.msra.mxu0 0.0
        %8649 = vmatprep.subr.mxu0 0.0
        %8650 = vmatpush1.msra.mxu0 0.0
        %8651 = vmatprep.subr.mxu0 0.0
        %8652 = vmatpush1.msra.mxu0 0.0
        %8653 = vmatprep.subr.mxu0 0.0
        %8654 = vmatpush1.msra.mxu0 0.0
        %8655 = vmatprep.subr.mxu0 0.0
        %8656 = vmatpush1.msra.mxu0 %v8272
        %8657 = vmatprep.subr.mxu0 0.0
        %8658 = vmatpush1.msra.mxu0 %v8136
        %8659 = vmatprep.subr.mxu0 0.0
        %8660 = vmatpush2.msra.mxu0 0.0
        %8661 = vmatprep.subr.mxu0 0.0
        %8662 = vmatpush2.msra.mxu0 0.0
        %8663 = vmatprep.subr.mxu0 0.0
        %8664 = vmatpush2.msra.mxu0 0.0
        %8665 = vmatprep.subr.mxu0 0.0
        %8666 = vmatpush2.msra.mxu0 0.0
        %8667 = vmatprep.subr.mxu0 0.0
        %8668 = vmatpush2.msra.mxu0 0.0
        %8669 = vmatprep.subr.mxu0 0.0
        %8670 = vmatpush2.msra.mxu0 0.0
        %8671 = vmatprep.subr.mxu0 0.0
        %8672 = vmatpush2.msra.mxu0 0.0
        %8673 = vmatprep.subr.mxu0 0.0
        %8674 = vmatpush2.msra.mxu0 0.0
        %8675 = vmatprep.subr.mxu0 0.0
        %8676 = vmatpush2.msra.mxu0 0.0
        %8677 = vmatprep.subr.mxu0 0.0
        %8678 = vmatpush2.msra.mxu0 0.0
        %8679 = vmatprep.subr.mxu0 0.0
        %8680 = vmatpush2.msra.mxu0 0.0
        %8681 = vmatprep.subr.mxu0 0.0
        %8682 = vmatpush2.msra.mxu0 0.0
        %8683 = vmatprep.subr.mxu0 0.0
        %8684 = vmatpush2.msra.mxu0 0.0
        %8685 = vmatprep.subr.mxu0 0.0
        %8686 = vmatpush2.msra.mxu0 0.0
        %8687 = vmatprep.subr.mxu0 0.0
        %8688 = vmatpush2.msra.mxu0 0.0
        %8689 = vmatprep.subr.mxu0 0.0
        %8690 = vmatpush2.msra.mxu0 0.0
        %8691 = vmatprep.mubr.f32.mxu0 0.0
        %8692 = vmatmul.mubr.f32.gmra.mxu0 %v8625
        %v8693 = vpop.f32.mrf.mxu0
        %v8694 = vadd.f32 0.0, %v8693
        %v8695 = vpop.f32.mrf.mxu0
        %8696 = vdwg.mxu0
        %v8698 = vsel %vm1699, %v7117, 0
        %8700 = vmatprep.subr.mxu0 0.0
        %8701 = vmatpush1.msra.mxu0 0.0
        %8702 = vmatprep.subr.mxu0 0.0
        %8703 = vmatpush1.msra.mxu0 0.0
        %8704 = vmatprep.subr.mxu0 0.0
        %8705 = vmatpush1.msra.mxu0 0.0
        %8706 = vmatprep.subr.mxu0 0.0
        %8707 = vmatpush1.msra.mxu0 0.0
        %8708 = vmatprep.subr.mxu0 0.0
        %8709 = vmatpush1.msra.mxu0 0.0
        %8710 = vmatprep.subr.mxu0 0.0
        %8711 = vmatpush1.msra.mxu0 0.0
        %8712 = vmatprep.subr.mxu0 0.0
        %8713 = vmatpush1.msra.mxu0 0.0
        %8714 = vmatprep.subr.mxu0 0.0
        %8715 = vmatpush1.msra.mxu0 0.0
        %8716 = vmatprep.subr.mxu0 0.0
        %8717 = vmatpush1.msra.mxu0 0.0
        %8718 = vmatprep.subr.mxu0 0.0
        %8719 = vmatpush1.msra.mxu0 0.0
        %8720 = vmatprep.subr.mxu0 0.0
        %8721 = vmatpush1.msra.mxu0 0.0
        %8722 = vmatprep.subr.mxu0 0.0
        %8723 = vmatpush1.msra.mxu0 0.0
        %8724 = vmatprep.subr.mxu0 0.0
        %8725 = vmatpush1.msra.mxu0 0.0
        %8726 = vmatprep.subr.mxu0 0.0
        %8727 = vmatpush1.msra.mxu0 0.0
        %8728 = vmatprep.subr.mxu0 0.0
        %8729 = vmatpush1.msra.mxu0 %v8273
        %8730 = vmatprep.subr.mxu0 0.0
        %8731 = vmatpush1.msra.mxu0 %v8137
        %8732 = vmatprep.subr.mxu0 0.0
        %8733 = vmatpush2.msra.mxu0 0.0
        %8734 = vmatprep.subr.mxu0 0.0
        %8735 = vmatpush2.msra.mxu0 0.0
        %8736 = vmatprep.subr.mxu0 0.0
        %8737 = vmatpush2.msra.mxu0 0.0
        %8738 = vmatprep.subr.mxu0 0.0
        %8739 = vmatpush2.msra.mxu0 0.0
        %8740 = vmatprep.subr.mxu0 0.0
        %8741 = vmatpush2.msra.mxu0 0.0
        %8742 = vmatprep.subr.mxu0 0.0
        %8743 = vmatpush2.msra.mxu0 0.0
        %8744 = vmatprep.subr.mxu0 0.0
        %8745 = vmatpush2.msra.mxu0 0.0
        %8746 = vmatprep.subr.mxu0 0.0
        %8747 = vmatpush2.msra.mxu0 0.0
        %8748 = vmatprep.subr.mxu0 0.0
        %8749 = vmatpush2.msra.mxu0 0.0
        %8750 = vmatprep.subr.mxu0 0.0
        %8751 = vmatpush2.msra.mxu0 0.0
        %8752 = vmatprep.subr.mxu0 0.0
        %8753 = vmatpush2.msra.mxu0 0.0
        %8754 = vmatprep.subr.mxu0 0.0
        %8755 = vmatpush2.msra.mxu0 0.0
        %8756 = vmatprep.subr.mxu0 0.0
        %8757 = vmatpush2.msra.mxu0 0.0
        %8758 = vmatprep.subr.mxu0 0.0
        %8759 = vmatpush2.msra.mxu0 0.0
        %8760 = vmatprep.subr.mxu0 0.0
        %8761 = vmatpush2.msra.mxu0 0.0
        %8762 = vmatprep.subr.mxu0 0.0
        %8763 = vmatpush2.msra.mxu0 0.0
        %8764 = vmatprep.mubr.f32.mxu0 0.0
        %8765 = vmatmul.mubr.f32.gmra.mxu0 %v8698
        %v8766 = vpop.f32.mrf.mxu0
        %v8767 = vadd.f32 0.0, %v8766
        %v8768 = vpop.f32.mrf.mxu0
        %8769 = vdwg.mxu0
        %v8771 = vsel %vm1699, %v7118, 0
        %8773 = vmatprep.subr.mxu0 0.0
        %8774 = vmatpush1.msra.mxu0 0.0
        %8775 = vmatprep.subr.mxu0 0.0
        %8776 = vmatpush1.msra.mxu0 0.0
        %8777 = vmatprep.subr.mxu0 0.0
        %8778 = vmatpush1.msra.mxu0 0.0
        %8779 = vmatprep.subr.mxu0 0.0
        %8780 = vmatpush1.msra.mxu0 0.0
        %8781 = vmatprep.subr.mxu0 0.0
        %8782 = vmatpush1.msra.mxu0 0.0
        %8783 = vmatprep.subr.mxu0 0.0
        %8784 = vmatpush1.msra.mxu0 0.0
        %8785 = vmatprep.subr.mxu0 0.0
        %8786 = vmatpush1.msra.mxu0 0.0
        %8787 = vmatprep.subr.mxu0 0.0
        %8788 = vmatpush1.msra.mxu0 0.0
        %8789 = vmatprep.subr.mxu0 0.0
        %8790 = vmatpush1.msra.mxu0 0.0
        %8791 = vmatprep.subr.mxu0 0.0
        %8792 = vmatpush1.msra.mxu0 0.0
        %8793 = vmatprep.subr.mxu0 0.0
        %8794 = vmatpush1.msra.mxu0 0.0
        %8795 = vmatprep.subr.mxu0 0.0
        %8796 = vmatpush1.msra.mxu0 0.0
        %8797 = vmatprep.subr.mxu0 0.0
        %8798 = vmatpush1.msra.mxu0 0.0
        %8799 = vmatprep.subr.mxu0 0.0
        %8800 = vmatpush1.msra.mxu0 0.0
        %8801 = vmatprep.subr.mxu0 0.0
        %8802 = vmatpush1.msra.mxu0 %v8274
        %8803 = vmatprep.subr.mxu0 0.0
        %8804 = vmatpush1.msra.mxu0 %v8138
        %8805 = vmatprep.subr.mxu0 0.0
        %8806 = vmatpush2.msra.mxu0 0.0
        %8807 = vmatprep.subr.mxu0 0.0
        %8808 = vmatpush2.msra.mxu0 0.0
        %8809 = vmatprep.subr.mxu0 0.0
        %8810 = vmatpush2.msra.mxu0 0.0
        %8811 = vmatprep.subr.mxu0 0.0
        %8812 = vmatpush2.msra.mxu0 0.0
        %8813 = vmatprep.subr.mxu0 0.0
        %8814 = vmatpush2.msra.mxu0 0.0
        %8815 = vmatprep.subr.mxu0 0.0
        %8816 = vmatpush2.msra.mxu0 0.0
        %8817 = vmatprep.subr.mxu0 0.0
        %8818 = vmatpush2.msra.mxu0 0.0
        %8819 = vmatprep.subr.mxu0 0.0
        %8820 = vmatpush2.msra.mxu0 0.0
        %8821 = vmatprep.subr.mxu0 0.0
        %8822 = vmatpush2.msra.mxu0 0.0
        %8823 = vmatprep.subr.mxu0 0.0
        %8824 = vmatpush2.msra.mxu0 0.0
        %8825 = vmatprep.subr.mxu0 0.0
        %8826 = vmatpush2.msra.mxu0 0.0
        %8827 = vmatprep.subr.mxu0 0.0
        %8828 = vmatpush2.msra.mxu0 0.0
        %8829 = vmatprep.subr.mxu0 0.0
        %8830 = vmatpush2.msra.mxu0 0.0
        %8831 = vmatprep.subr.mxu0 0.0
        %8832 = vmatpush2.msra.mxu0 0.0
        %8833 = vmatprep.subr.mxu0 0.0
        %8834 = vmatpush2.msra.mxu0 0.0
        %8835 = vmatprep.subr.mxu0 0.0
        %8836 = vmatpush2.msra.mxu0 0.0
        %8837 = vmatprep.mubr.f32.mxu0 0.0
        %8838 = vmatmul.mubr.f32.gmra.mxu0 %v8771
        %v8839 = vpop.f32.mrf.mxu0
        %v8840 = vadd.f32 0.0, %v8839
        %v8841 = vpop.f32.mrf.mxu0
        %8842 = vdwg.mxu0
        %v8844 = vsel %vm1699, %v7119, 0
        %8846 = vmatprep.subr.mxu0 0.0
        %8847 = vmatpush1.msra.mxu0 0.0
        %8848 = vmatprep.subr.mxu0 0.0
        %8849 = vmatpush1.msra.mxu0 0.0
        %8850 = vmatprep.subr.mxu0 0.0
        %8851 = vmatpush1.msra.mxu0 0.0
        %8852 = vmatprep.subr.mxu0 0.0
        %8853 = vmatpush1.msra.mxu0 0.0
        %8854 = vmatprep.subr.mxu0 0.0
        %8855 = vmatpush1.msra.mxu0 0.0
        %8856 = vmatprep.subr.mxu0 0.0
        %8857 = vmatpush1.msra.mxu0 0.0
        %8858 = vmatprep.subr.mxu0 0.0
        %8859 = vmatpush1.msra.mxu0 0.0
        %8860 = vmatprep.subr.mxu0 0.0
        %8861 = vmatpush1.msra.mxu0 0.0
        %8862 = vmatprep.subr.mxu0 0.0
        %8863 = vmatpush1.msra.mxu0 0.0
        %8864 = vmatprep.subr.mxu0 0.0
        %8865 = vmatpush1.msra.mxu0 0.0
        %8866 = vmatprep.subr.mxu0 0.0
        %8867 = vmatpush1.msra.mxu0 0.0
        %8868 = vmatprep.subr.mxu0 0.0
        %8869 = vmatpush1.msra.mxu0 0.0
        %8870 = vmatprep.subr.mxu0 0.0
        %8871 = vmatpush1.msra.mxu0 0.0
        %8872 = vmatprep.subr.mxu0 0.0
        %8873 = vmatpush1.msra.mxu0 0.0
        %8874 = vmatprep.subr.mxu0 0.0
        %8875 = vmatpush1.msra.mxu0 %v8275
        %8876 = vmatprep.subr.mxu0 0.0
        %8877 = vmatpush1.msra.mxu0 %v8139
        %8878 = vmatprep.subr.mxu0 0.0
        %8879 = vmatpush2.msra.mxu0 0.0
        %8880 = vmatprep.subr.mxu0 0.0
        %8881 = vmatpush2.msra.mxu0 0.0
        %8882 = vmatprep.subr.mxu0 0.0
        %8883 = vmatpush2.msra.mxu0 0.0
        %8884 = vmatprep.subr.mxu0 0.0
        %8885 = vmatpush2.msra.mxu0 0.0
        %8886 = vmatprep.subr.mxu0 0.0
        %8887 = vmatpush2.msra.mxu0 0.0
        %8888 = vmatprep.subr.mxu0 0.0
        %8889 = vmatpush2.msra.mxu0 0.0
        %8890 = vmatprep.subr.mxu0 0.0
        %8891 = vmatpush2.msra.mxu0 0.0
        %8892 = vmatprep.subr.mxu0 0.0
        %8893 = vmatpush2.msra.mxu0 0.0
        %8894 = vmatprep.subr.mxu0 0.0
        %8895 = vmatpush2.msra.mxu0 0.0
        %8896 = vmatprep.subr.mxu0 0.0
        %8897 = vmatpush2.msra.mxu0 0.0
        %8898 = vmatprep.subr.mxu0 0.0
        %8899 = vmatpush2.msra.mxu0 0.0
        %8900 = vmatprep.subr.mxu0 0.0
        %8901 = vmatpush2.msra.mxu0 0.0
        %8902 = vmatprep.subr.mxu0 0.0
        %8903 = vmatpush2.msra.mxu0 0.0
        %8904 = vmatprep.subr.mxu0 0.0
        %8905 = vmatpush2.msra.mxu0 0.0
        %8906 = vmatprep.subr.mxu0 0.0
        %8907 = vmatpush2.msra.mxu0 0.0
        %8908 = vmatprep.subr.mxu0 0.0
        %8909 = vmatpush2.msra.mxu0 0.0
        %8910 = vmatprep.mubr.f32.mxu0 0.0
        %8911 = vmatmul.mubr.f32.gmra.mxu0 %v8844
        %v8912 = vpop.f32.mrf.mxu0
        %v8913 = vadd.f32 0.0, %v8912
        %v8914 = vpop.f32.mrf.mxu0
        %8915 = vdwg.mxu0
        %v8917 = vsel %vm1699, %v7120, 0
        %8919 = vmatprep.subr.mxu0 0.0
        %8920 = vmatpush1.msra.mxu0 0.0
        %8921 = vmatprep.subr.mxu0 0.0
        %8922 = vmatpush1.msra.mxu0 0.0
        %8923 = vmatprep.subr.mxu0 0.0
        %8924 = vmatpush1.msra.mxu0 0.0
        %8925 = vmatprep.subr.mxu0 0.0
        %8926 = vmatpush1.msra.mxu0 0.0
        %8927 = vmatprep.subr.mxu0 0.0
        %8928 = vmatpush1.msra.mxu0 0.0
        %8929 = vmatprep.subr.mxu0 0.0
        %8930 = vmatpush1.msra.mxu0 0.0
        %8931 = vmatprep.subr.mxu0 0.0
        %8932 = vmatpush1.msra.mxu0 0.0
        %8933 = vmatprep.subr.mxu0 0.0
        %8934 = vmatpush1.msra.mxu0 0.0
        %8935 = vmatprep.subr.mxu0 0.0
        %8936 = vmatpush1.msra.mxu0 0.0
        %8937 = vmatprep.subr.mxu0 0.0
        %8938 = vmatpush1.msra.mxu0 0.0
        %8939 = vmatprep.subr.mxu0 0.0
        %8940 = vmatpush1.msra.mxu0 0.0
        %8941 = vmatprep.subr.mxu0 0.0
        %8942 = vmatpush1.msra.mxu0 0.0
        %8943 = vmatprep.subr.mxu0 0.0
        %8944 = vmatpush1.msra.mxu0 0.0
        %8945 = vmatprep.subr.mxu0 0.0
        %8946 = vmatpush1.msra.mxu0 0.0
        %8947 = vmatprep.subr.mxu0 0.0
        %8948 = vmatpush1.msra.mxu0 %v8276
        %8949 = vmatprep.subr.mxu0 0.0
        %8950 = vmatpush1.msra.mxu0 %v8140
        %8951 = vmatprep.subr.mxu0 0.0
        %8952 = vmatpush2.msra.mxu0 0.0
        %8953 = vmatprep.subr.mxu0 0.0
        %8954 = vmatpush2.msra.mxu0 0.0
        %8955 = vmatprep.subr.mxu0 0.0
        %8956 = vmatpush2.msra.mxu0 0.0
        %8957 = vmatprep.subr.mxu0 0.0
        %8958 = vmatpush2.msra.mxu0 0.0
        %8959 = vmatprep.subr.mxu0 0.0
        %8960 = vmatpush2.msra.mxu0 0.0
        %8961 = vmatprep.subr.mxu0 0.0
        %8962 = vmatpush2.msra.mxu0 0.0
        %8963 = vmatprep.subr.mxu0 0.0
        %8964 = vmatpush2.msra.mxu0 0.0
        %8965 = vmatprep.subr.mxu0 0.0
        %8966 = vmatpush2.msra.mxu0 0.0
        %8967 = vmatprep.subr.mxu0 0.0
        %8968 = vmatpush2.msra.mxu0 0.0
        %8969 = vmatprep.subr.mxu0 0.0
        %8970 = vmatpush2.msra.mxu0 0.0
        %8971 = vmatprep.subr.mxu0 0.0
        %8972 = vmatpush2.msra.mxu0 0.0
        %8973 = vmatprep.subr.mxu0 0.0
        %8974 = vmatpush2.msra.mxu0 0.0
        %8975 = vmatprep.subr.mxu0 0.0
        %8976 = vmatpush2.msra.mxu0 0.0
        %8977 = vmatprep.subr.mxu0 0.0
        %8978 = vmatpush2.msra.mxu0 0.0
        %8979 = vmatprep.subr.mxu0 0.0
        %8980 = vmatpush2.msra.mxu0 0.0
        %8981 = vmatprep.subr.mxu0 0.0
        %8982 = vmatpush2.msra.mxu0 0.0
        %8983 = vmatprep.mubr.f32.mxu0 0.0
        %8984 = vmatmul.mubr.f32.gmra.mxu0 %v8917
        %v8985 = vpop.f32.mrf.mxu0
        %v8986 = vadd.f32 0.0, %v8985
        %v8987 = vpop.f32.mrf.mxu0
        %8988 = vdwg.mxu0
        %v8990 = vsel %vm1699, %v7121, 0
        %8992 = vmatprep.subr.mxu0 0.0
        %8993 = vmatpush1.msra.mxu0 0.0
        %8994 = vmatprep.subr.mxu0 0.0
        %8995 = vmatpush1.msra.mxu0 0.0
        %8996 = vmatprep.subr.mxu0 0.0
        %8997 = vmatpush1.msra.mxu0 0.0
        %8998 = vmatprep.subr.mxu0 0.0
        %8999 = vmatpush1.msra.mxu0 0.0
        %9000 = vmatprep.subr.mxu0 0.0
        %9001 = vmatpush1.msra.mxu0 0.0
        %9002 = vmatprep.subr.mxu0 0.0
        %9003 = vmatpush1.msra.mxu0 0.0
        %9004 = vmatprep.subr.mxu0 0.0
        %9005 = vmatpush1.msra.mxu0 0.0
        %9006 = vmatprep.subr.mxu0 0.0
        %9007 = vmatpush1.msra.mxu0 0.0
        %9008 = vmatprep.subr.mxu0 0.0
        %9009 = vmatpush1.msra.mxu0 0.0
        %9010 = vmatprep.subr.mxu0 0.0
        %9011 = vmatpush1.msra.mxu0 0.0
        %9012 = vmatprep.subr.mxu0 0.0
        %9013 = vmatpush1.msra.mxu0 0.0
        %9014 = vmatprep.subr.mxu0 0.0
        %9015 = vmatpush1.msra.mxu0 0.0
        %9016 = vmatprep.subr.mxu0 0.0
        %9017 = vmatpush1.msra.mxu0 0.0
        %9018 = vmatprep.subr.mxu0 0.0
        %9019 = vmatpush1.msra.mxu0 0.0
        %9020 = vmatprep.subr.mxu0 0.0
        %9021 = vmatpush1.msra.mxu0 %v8277
        %9022 = vmatprep.subr.mxu0 0.0
        %9023 = vmatpush1.msra.mxu0 %v8141
        %9024 = vmatprep.subr.mxu0 0.0
        %9025 = vmatpush2.msra.mxu0 0.0
        %9026 = vmatprep.subr.mxu0 0.0
        %9027 = vmatpush2.msra.mxu0 0.0
        %9028 = vmatprep.subr.mxu0 0.0
        %9029 = vmatpush2.msra.mxu0 0.0
        %9030 = vmatprep.subr.mxu0 0.0
        %9031 = vmatpush2.msra.mxu0 0.0
        %9032 = vmatprep.subr.mxu0 0.0
        %9033 = vmatpush2.msra.mxu0 0.0
        %9034 = vmatprep.subr.mxu0 0.0
        %9035 = vmatpush2.msra.mxu0 0.0
        %9036 = vmatprep.subr.mxu0 0.0
        %9037 = vmatpush2.msra.mxu0 0.0
        %9038 = vmatprep.subr.mxu0 0.0
        %9039 = vmatpush2.msra.mxu0 0.0
        %9040 = vmatprep.subr.mxu0 0.0
        %9041 = vmatpush2.msra.mxu0 0.0
        %9042 = vmatprep.subr.mxu0 0.0
        %9043 = vmatpush2.msra.mxu0 0.0
        %9044 = vmatprep.subr.mxu0 0.0
        %9045 = vmatpush2.msra.mxu0 0.0
        %9046 = vmatprep.subr.mxu0 0.0
        %9047 = vmatpush2.msra.mxu0 0.0
        %9048 = vmatprep.subr.mxu0 0.0
        %9049 = vmatpush2.msra.mxu0 0.0
        %9050 = vmatprep.subr.mxu0 0.0
        %9051 = vmatpush2.msra.mxu0 0.0
        %9052 = vmatprep.subr.mxu0 0.0
        %9053 = vmatpush2.msra.mxu0 0.0
        %9054 = vmatprep.subr.mxu0 0.0
        %9055 = vmatpush2.msra.mxu0 0.0
        %9056 = vmatprep.mubr.f32.mxu0 0.0
        %9057 = vmatmul.mubr.f32.gmra.mxu0 %v8990
        %v9058 = vpop.f32.mrf.mxu0
        %v9059 = vadd.f32 0.0, %v9058
        %v9060 = vpop.f32.mrf.mxu0
        %9061 = vdwg.mxu0
        %v9063 = vsel %vm1699, %v7122, 0
        %9065 = vmatprep.subr.mxu0 0.0
        %9066 = vmatpush1.msra.mxu0 0.0
        %9067 = vmatprep.subr.mxu0 0.0
        %9068 = vmatpush1.msra.mxu0 0.0
        %9069 = vmatprep.subr.mxu0 0.0
        %9070 = vmatpush1.msra.mxu0 0.0
        %9071 = vmatprep.subr.mxu0 0.0
        %9072 = vmatpush1.msra.mxu0 0.0
        %9073 = vmatprep.subr.mxu0 0.0
        %9074 = vmatpush1.msra.mxu0 0.0
        %9075 = vmatprep.subr.mxu0 0.0
        %9076 = vmatpush1.msra.mxu0 0.0
        %9077 = vmatprep.subr.mxu0 0.0
        %9078 = vmatpush1.msra.mxu0 0.0
        %9079 = vmatprep.subr.mxu0 0.0
        %9080 = vmatpush1.msra.mxu0 0.0
        %9081 = vmatprep.subr.mxu0 0.0
        %9082 = vmatpush1.msra.mxu0 0.0
        %9083 = vmatprep.subr.mxu0 0.0
        %9084 = vmatpush1.msra.mxu0 0.0
        %9085 = vmatprep.subr.mxu0 0.0
        %9086 = vmatpush1.msra.mxu0 0.0
        %9087 = vmatprep.subr.mxu0 0.0
        %9088 = vmatpush1.msra.mxu0 0.0
        %9089 = vmatprep.subr.mxu0 0.0
        %9090 = vmatpush1.msra.mxu0 0.0
        %9091 = vmatprep.subr.mxu0 0.0
        %9092 = vmatpush1.msra.mxu0 0.0
        %9093 = vmatprep.subr.mxu0 0.0
        %9094 = vmatpush1.msra.mxu0 %v8278
        %9095 = vmatprep.subr.mxu0 0.0
        %9096 = vmatpush1.msra.mxu0 %v8142
        %9097 = vmatprep.subr.mxu0 0.0
        %9098 = vmatpush2.msra.mxu0 0.0
        %9099 = vmatprep.subr.mxu0 0.0
        %9100 = vmatpush2.msra.mxu0 0.0
        %9101 = vmatprep.subr.mxu0 0.0
        %9102 = vmatpush2.msra.mxu0 0.0
        %9103 = vmatprep.subr.mxu0 0.0
        %9104 = vmatpush2.msra.mxu0 0.0
        %9105 = vmatprep.subr.mxu0 0.0
        %9106 = vmatpush2.msra.mxu0 0.0
        %9107 = vmatprep.subr.mxu0 0.0
        %9108 = vmatpush2.msra.mxu0 0.0
        %9109 = vmatprep.subr.mxu0 0.0
        %9110 = vmatpush2.msra.mxu0 0.0
        %9111 = vmatprep.subr.mxu0 0.0
        %9112 = vmatpush2.msra.mxu0 0.0
        %9113 = vmatprep.subr.mxu0 0.0
        %9114 = vmatpush2.msra.mxu0 0.0
        %9115 = vmatprep.subr.mxu0 0.0
        %9116 = vmatpush2.msra.mxu0 0.0
        %9117 = vmatprep.subr.mxu0 0.0
        %9118 = vmatpush2.msra.mxu0 0.0
        %9119 = vmatprep.subr.mxu0 0.0
        %9120 = vmatpush2.msra.mxu0 0.0
        %9121 = vmatprep.subr.mxu0 0.0
        %9122 = vmatpush2.msra.mxu0 0.0
        %9123 = vmatprep.subr.mxu0 0.0
        %9124 = vmatpush2.msra.mxu0 0.0
        %9125 = vmatprep.subr.mxu0 0.0
        %9126 = vmatpush2.msra.mxu0 0.0
        %9127 = vmatprep.subr.mxu0 0.0
        %9128 = vmatpush2.msra.mxu0 0.0
        %9129 = vmatprep.mubr.f32.mxu0 0.0
        %9130 = vmatmul.mubr.f32.gmra.mxu0 %v9063
        %v9131 = vpop.f32.mrf.mxu0
        %v9132 = vadd.f32 0.0, %v9131
        %v9133 = vpop.f32.mrf.mxu0
        %9134 = vdwg.mxu0
        %v9136 = vsel %vm1699, %v7251, 0
        %9138 = vmatprep.subr.mxu0 0.0
        %9139 = vmatpush1.msra.mxu0 0.0
        %9140 = vmatprep.subr.mxu0 0.0
        %9141 = vmatpush1.msra.mxu0 0.0
        %9142 = vmatprep.subr.mxu0 0.0
        %9143 = vmatpush1.msra.mxu0 0.0
        %9144 = vmatprep.subr.mxu0 0.0
        %9145 = vmatpush1.msra.mxu0 0.0
        %9146 = vmatprep.subr.mxu0 0.0
        %9147 = vmatpush1.msra.mxu0 0.0
        %9148 = vmatprep.subr.mxu0 0.0
        %9149 = vmatpush1.msra.mxu0 0.0
        %9150 = vmatprep.subr.mxu0 0.0
        %9151 = vmatpush1.msra.mxu0 0.0
        %9152 = vmatprep.subr.mxu0 0.0
        %9153 = vmatpush1.msra.mxu0 0.0
        %9154 = vmatprep.subr.mxu0 0.0
        %9155 = vmatpush1.msra.mxu0 0.0
        %9156 = vmatprep.subr.mxu0 0.0
        %9157 = vmatpush1.msra.mxu0 0.0
        %9158 = vmatprep.subr.mxu0 0.0
        %9159 = vmatpush1.msra.mxu0 0.0
        %9160 = vmatprep.subr.mxu0 0.0
        %9161 = vmatpush1.msra.mxu0 0.0
        %9162 = vmatprep.subr.mxu0 0.0
        %9163 = vmatpush1.msra.mxu0 0.0
        %9164 = vmatprep.subr.mxu0 0.0
        %9165 = vmatpush1.msra.mxu0 0.0
        %9166 = vmatprep.subr.mxu0 0.0
        %9167 = vmatpush1.msra.mxu0 %v8543
        %9168 = vmatprep.subr.mxu0 0.0
        %9169 = vmatpush1.msra.mxu0 %v8407
        %9170 = vmatprep.subr.mxu0 0.0
        %9171 = vmatpush2.msra.mxu0 0.0
        %9172 = vmatprep.subr.mxu0 0.0
        %9173 = vmatpush2.msra.mxu0 0.0
        %9174 = vmatprep.subr.mxu0 0.0
        %9175 = vmatpush2.msra.mxu0 0.0
        %9176 = vmatprep.subr.mxu0 0.0
        %9177 = vmatpush2.msra.mxu0 0.0
        %9178 = vmatprep.subr.mxu0 0.0
        %9179 = vmatpush2.msra.mxu0 0.0
        %9180 = vmatprep.subr.mxu0 0.0
        %9181 = vmatpush2.msra.mxu0 0.0
        %9182 = vmatprep.subr.mxu0 0.0
        %9183 = vmatpush2.msra.mxu0 0.0
        %9184 = vmatprep.subr.mxu0 0.0
        %9185 = vmatpush2.msra.mxu0 0.0
        %9186 = vmatprep.subr.mxu0 0.0
        %9187 = vmatpush2.msra.mxu0 0.0
        %9188 = vmatprep.subr.mxu0 0.0
        %9189 = vmatpush2.msra.mxu0 0.0
        %9190 = vmatprep.subr.mxu0 0.0
        %9191 = vmatpush2.msra.mxu0 0.0
        %9192 = vmatprep.subr.mxu0 0.0
        %9193 = vmatpush2.msra.mxu0 0.0
        %9194 = vmatprep.subr.mxu0 0.0
        %9195 = vmatpush2.msra.mxu0 0.0
        %9196 = vmatprep.subr.mxu0 0.0
        %9197 = vmatpush2.msra.mxu0 0.0
        %9198 = vmatprep.subr.mxu0 0.0
        %9199 = vmatpush2.msra.mxu0 0.0
        %9200 = vmatprep.subr.mxu0 0.0
        %9201 = vmatpush2.msra.mxu0 0.0
        %9202 = vmatprep.mubr.f32.mxu0 0.0
        %9203 = vmatmul.mubr.f32.gmra.mxu0 %v9136
        %v9204 = vpop.f32.mrf.mxu0
        %v9205 = vadd.f32 0.0, %v9204
        %v9206 = vpop.f32.mrf.mxu0
        %9207 = vdwg.mxu0
        %v9209 = vsel %vm1699, %v7252, 0
        %9211 = vmatprep.subr.mxu0 0.0
        %9212 = vmatpush1.msra.mxu0 0.0
        %9213 = vmatprep.subr.mxu0 0.0
        %9214 = vmatpush1.msra.mxu0 0.0
        %9215 = vmatprep.subr.mxu0 0.0
        %9216 = vmatpush1.msra.mxu0 0.0
        %9217 = vmatprep.subr.mxu0 0.0
        %9218 = vmatpush1.msra.mxu0 0.0
        %9219 = vmatprep.subr.mxu0 0.0
        %9220 = vmatpush1.msra.mxu0 0.0
        %9221 = vmatprep.subr.mxu0 0.0
        %9222 = vmatpush1.msra.mxu0 0.0
        %9223 = vmatprep.subr.mxu0 0.0
        %9224 = vmatpush1.msra.mxu0 0.0
        %9225 = vmatprep.subr.mxu0 0.0
        %9226 = vmatpush1.msra.mxu0 0.0
        %9227 = vmatprep.subr.mxu0 0.0
        %9228 = vmatpush1.msra.mxu0 0.0
        %9229 = vmatprep.subr.mxu0 0.0
        %9230 = vmatpush1.msra.mxu0 0.0
        %9231 = vmatprep.subr.mxu0 0.0
        %9232 = vmatpush1.msra.mxu0 0.0
        %9233 = vmatprep.subr.mxu0 0.0
        %9234 = vmatpush1.msra.mxu0 0.0
        %9235 = vmatprep.subr.mxu0 0.0
        %9236 = vmatpush1.msra.mxu0 0.0
        %9237 = vmatprep.subr.mxu0 0.0
        %9238 = vmatpush1.msra.mxu0 0.0
        %9239 = vmatprep.subr.mxu0 0.0
        %9240 = vmatpush1.msra.mxu0 %v8544
        %9241 = vmatprep.subr.mxu0 0.0
        %9242 = vmatpush1.msra.mxu0 %v8408
        %9243 = vmatprep.subr.mxu0 0.0
        %9244 = vmatpush2.msra.mxu0 0.0
        %9245 = vmatprep.subr.mxu0 0.0
        %9246 = vmatpush2.msra.mxu0 0.0
        %9247 = vmatprep.subr.mxu0 0.0
        %9248 = vmatpush2.msra.mxu0 0.0
        %9249 = vmatprep.subr.mxu0 0.0
        %9250 = vmatpush2.msra.mxu0 0.0
        %9251 = vmatprep.subr.mxu0 0.0
        %9252 = vmatpush2.msra.mxu0 0.0
        %9253 = vmatprep.subr.mxu0 0.0
        %9254 = vmatpush2.msra.mxu0 0.0
        %9255 = vmatprep.subr.mxu0 0.0
        %9256 = vmatpush2.msra.mxu0 0.0
        %9257 = vmatprep.subr.mxu0 0.0
        %9258 = vmatpush2.msra.mxu0 0.0
        %9259 = vmatprep.subr.mxu0 0.0
        %9260 = vmatpush2.msra.mxu0 0.0
        %9261 = vmatprep.subr.mxu0 0.0
        %9262 = vmatpush2.msra.mxu0 0.0
        %9263 = vmatprep.subr.mxu0 0.0
        %9264 = vmatpush2.msra.mxu0 0.0
        %9265 = vmatprep.subr.mxu0 0.0
        %9266 = vmatpush2.msra.mxu0 0.0
        %9267 = vmatprep.subr.mxu0 0.0
        %9268 = vmatpush2.msra.mxu0 0.0
        %9269 = vmatprep.subr.mxu0 0.0
        %9270 = vmatpush2.msra.mxu0 0.0
        %9271 = vmatprep.subr.mxu0 0.0
        %9272 = vmatpush2.msra.mxu0 0.0
        %9273 = vmatprep.subr.mxu0 0.0
        %9274 = vmatpush2.msra.mxu0 0.0
        %9275 = vmatprep.mubr.f32.mxu0 0.0
        %9276 = vmatmul.mubr.f32.gmra.mxu0 %v9209
        %v9277 = vpop.f32.mrf.mxu0
        %v9278 = vadd.f32 0.0, %v9277
        %v9279 = vpop.f32.mrf.mxu0
        %9280 = vdwg.mxu0
        %v9282 = vsel %vm1699, %v7253, 0
        %9284 = vmatprep.subr.mxu0 0.0
        %9285 = vmatpush1.msra.mxu0 0.0
        %9286 = vmatprep.subr.mxu0 0.0
        %9287 = vmatpush1.msra.mxu0 0.0
        %9288 = vmatprep.subr.mxu0 0.0
        %9289 = vmatpush1.msra.mxu0 0.0
        %9290 = vmatprep.subr.mxu0 0.0
        %9291 = vmatpush1.msra.mxu0 0.0
        %9292 = vmatprep.subr.mxu0 0.0
        %9293 = vmatpush1.msra.mxu0 0.0
        %9294 = vmatprep.subr.mxu0 0.0
        %9295 = vmatpush1.msra.mxu0 0.0
        %9296 = vmatprep.subr.mxu0 0.0
        %9297 = vmatpush1.msra.mxu0 0.0
        %9298 = vmatprep.subr.mxu0 0.0
        %9299 = vmatpush1.msra.mxu0 0.0
        %9300 = vmatprep.subr.mxu0 0.0
        %9301 = vmatpush1.msra.mxu0 0.0
        %9302 = vmatprep.subr.mxu0 0.0
        %9303 = vmatpush1.msra.mxu0 0.0
        %9304 = vmatprep.subr.mxu0 0.0
        %9305 = vmatpush1.msra.mxu0 0.0
        %9306 = vmatprep.subr.mxu0 0.0
        %9307 = vmatpush1.msra.mxu0 0.0
        %9308 = vmatprep.subr.mxu0 0.0
        %9309 = vmatpush1.msra.mxu0 0.0
        %9310 = vmatprep.subr.mxu0 0.0
        %9311 = vmatpush1.msra.mxu0 0.0
        %9312 = vmatprep.subr.mxu0 0.0
        %9313 = vmatpush1.msra.mxu0 %v8545
        %9314 = vmatprep.subr.mxu0 0.0
        %9315 = vmatpush1.msra.mxu0 %v8409
        %9316 = vmatprep.subr.mxu0 0.0
        %9317 = vmatpush2.msra.mxu0 0.0
        %9318 = vmatprep.subr.mxu0 0.0
        %9319 = vmatpush2.msra.mxu0 0.0
        %9320 = vmatprep.subr.mxu0 0.0
        %9321 = vmatpush2.msra.mxu0 0.0
        %9322 = vmatprep.subr.mxu0 0.0
        %9323 = vmatpush2.msra.mxu0 0.0
        %9324 = vmatprep.subr.mxu0 0.0
        %9325 = vmatpush2.msra.mxu0 0.0
        %9326 = vmatprep.subr.mxu0 0.0
        %9327 = vmatpush2.msra.mxu0 0.0
        %9328 = vmatprep.subr.mxu0 0.0
        %9329 = vmatpush2.msra.mxu0 0.0
        %9330 = vmatprep.subr.mxu0 0.0
        %9331 = vmatpush2.msra.mxu0 0.0
        %9332 = vmatprep.subr.mxu0 0.0
        %9333 = vmatpush2.msra.mxu0 0.0
        %9334 = vmatprep.subr.mxu0 0.0
        %9335 = vmatpush2.msra.mxu0 0.0
        %9336 = vmatprep.subr.mxu0 0.0
        %9337 = vmatpush2.msra.mxu0 0.0
        %9338 = vmatprep.subr.mxu0 0.0
        %9339 = vmatpush2.msra.mxu0 0.0
        %9340 = vmatprep.subr.mxu0 0.0
        %9341 = vmatpush2.msra.mxu0 0.0
        %9342 = vmatprep.subr.mxu0 0.0
        %9343 = vmatpush2.msra.mxu0 0.0
        %9344 = vmatprep.subr.mxu0 0.0
        %9345 = vmatpush2.msra.mxu0 0.0
        %9346 = vmatprep.subr.mxu0 0.0
        %9347 = vmatpush2.msra.mxu0 0.0
        %9348 = vmatprep.mubr.f32.mxu0 0.0
        %9349 = vmatmul.mubr.f32.gmra.mxu0 %v9282
        %v9350 = vpop.f32.mrf.mxu0
        %v9351 = vadd.f32 0.0, %v9350
        %v9352 = vpop.f32.mrf.mxu0
        %9353 = vdwg.mxu0
        %v9355 = vsel %vm1699, %v7254, 0
        %9357 = vmatprep.subr.mxu0 0.0
        %9358 = vmatpush1.msra.mxu0 0.0
        %9359 = vmatprep.subr.mxu0 0.0
        %9360 = vmatpush1.msra.mxu0 0.0
        %9361 = vmatprep.subr.mxu0 0.0
        %9362 = vmatpush1.msra.mxu0 0.0
        %9363 = vmatprep.subr.mxu0 0.0
        %9364 = vmatpush1.msra.mxu0 0.0
        %9365 = vmatprep.subr.mxu0 0.0
        %9366 = vmatpush1.msra.mxu0 0.0
        %9367 = vmatprep.subr.mxu0 0.0
        %9368 = vmatpush1.msra.mxu0 0.0
        %9369 = vmatprep.subr.mxu0 0.0
        %9370 = vmatpush1.msra.mxu0 0.0
        %9371 = vmatprep.subr.mxu0 0.0
        %9372 = vmatpush1.msra.mxu0 0.0
        %9373 = vmatprep.subr.mxu0 0.0
        %9374 = vmatpush1.msra.mxu0 0.0
        %9375 = vmatprep.subr.mxu0 0.0
        %9376 = vmatpush1.msra.mxu0 0.0
        %9377 = vmatprep.subr.mxu0 0.0
        %9378 = vmatpush1.msra.mxu0 0.0
        %9379 = vmatprep.subr.mxu0 0.0
        %9380 = vmatpush1.msra.mxu0 0.0
        %9381 = vmatprep.subr.mxu0 0.0
        %9382 = vmatpush1.msra.mxu0 0.0
        %9383 = vmatprep.subr.mxu0 0.0
        %9384 = vmatpush1.msra.mxu0 0.0
        %9385 = vmatprep.subr.mxu0 0.0
        %9386 = vmatpush1.msra.mxu0 %v8546
        %9387 = vmatprep.subr.mxu0 0.0
        %9388 = vmatpush1.msra.mxu0 %v8410
        %9389 = vmatprep.subr.mxu0 0.0
        %9390 = vmatpush2.msra.mxu0 0.0
        %9391 = vmatprep.subr.mxu0 0.0
        %9392 = vmatpush2.msra.mxu0 0.0
        %9393 = vmatprep.subr.mxu0 0.0
        %9394 = vmatpush2.msra.mxu0 0.0
        %9395 = vmatprep.subr.mxu0 0.0
        %9396 = vmatpush2.msra.mxu0 0.0
        %9397 = vmatprep.subr.mxu0 0.0
        %9398 = vmatpush2.msra.mxu0 0.0
        %9399 = vmatprep.subr.mxu0 0.0
        %9400 = vmatpush2.msra.mxu0 0.0
        %9401 = vmatprep.subr.mxu0 0.0
        %9402 = vmatpush2.msra.mxu0 0.0
        %9403 = vmatprep.subr.mxu0 0.0
        %9404 = vmatpush2.msra.mxu0 0.0
        %9405 = vmatprep.subr.mxu0 0.0
        %9406 = vmatpush2.msra.mxu0 0.0
        %9407 = vmatprep.subr.mxu0 0.0
        %9408 = vmatpush2.msra.mxu0 0.0
        %9409 = vmatprep.subr.mxu0 0.0
        %9410 = vmatpush2.msra.mxu0 0.0
        %9411 = vmatprep.subr.mxu0 0.0
        %9412 = vmatpush2.msra.mxu0 0.0
        %9413 = vmatprep.subr.mxu0 0.0
        %9414 = vmatpush2.msra.mxu0 0.0
        %9415 = vmatprep.subr.mxu0 0.0
        %9416 = vmatpush2.msra.mxu0 0.0
        %9417 = vmatprep.subr.mxu0 0.0
        %9418 = vmatpush2.msra.mxu0 0.0
        %9419 = vmatprep.subr.mxu0 0.0
        %9420 = vmatpush2.msra.mxu0 0.0
        %9421 = vmatprep.mubr.f32.mxu0 0.0
        %9422 = vmatmul.mubr.f32.gmra.mxu0 %v9355
        %v9423 = vpop.f32.mrf.mxu0
        %v9424 = vadd.f32 0.0, %v9423
        %v9425 = vpop.f32.mrf.mxu0
        %9426 = vdwg.mxu0
        %v9428 = vsel %vm1699, %v7255, 0
        %9430 = vmatprep.subr.mxu0 0.0
        %9431 = vmatpush1.msra.mxu0 0.0
        %9432 = vmatprep.subr.mxu0 0.0
        %9433 = vmatpush1.msra.mxu0 0.0
        %9434 = vmatprep.subr.mxu0 0.0
        %9435 = vmatpush1.msra.mxu0 0.0
        %9436 = vmatprep.subr.mxu0 0.0
        %9437 = vmatpush1.msra.mxu0 0.0
        %9438 = vmatprep.subr.mxu0 0.0
        %9439 = vmatpush1.msra.mxu0 0.0
        %9440 = vmatprep.subr.mxu0 0.0
        %9441 = vmatpush1.msra.mxu0 0.0
        %9442 = vmatprep.subr.mxu0 0.0
        %9443 = vmatpush1.msra.mxu0 0.0
        %9444 = vmatprep.subr.mxu0 0.0
        %9445 = vmatpush1.msra.mxu0 0.0
        %9446 = vmatprep.subr.mxu0 0.0
        %9447 = vmatpush1.msra.mxu0 0.0
        %9448 = vmatprep.subr.mxu0 0.0
        %9449 = vmatpush1.msra.mxu0 0.0
        %9450 = vmatprep.subr.mxu0 0.0
        %9451 = vmatpush1.msra.mxu0 0.0
        %9452 = vmatprep.subr.mxu0 0.0
        %9453 = vmatpush1.msra.mxu0 0.0
        %9454 = vmatprep.subr.mxu0 0.0
        %9455 = vmatpush1.msra.mxu0 0.0
        %9456 = vmatprep.subr.mxu0 0.0
        %9457 = vmatpush1.msra.mxu0 0.0
        %9458 = vmatprep.subr.mxu0 0.0
        %9459 = vmatpush1.msra.mxu0 %v8547
        %9460 = vmatprep.subr.mxu0 0.0
        %9461 = vmatpush1.msra.mxu0 %v8411
        %9462 = vmatprep.subr.mxu0 0.0
        %9463 = vmatpush2.msra.mxu0 0.0
        %9464 = vmatprep.subr.mxu0 0.0
        %9465 = vmatpush2.msra.mxu0 0.0
        %9466 = vmatprep.subr.mxu0 0.0
        %9467 = vmatpush2.msra.mxu0 0.0
        %9468 = vmatprep.subr.mxu0 0.0
        %9469 = vmatpush2.msra.mxu0 0.0
        %9470 = vmatprep.subr.mxu0 0.0
        %9471 = vmatpush2.msra.mxu0 0.0
        %9472 = vmatprep.subr.mxu0 0.0
        %9473 = vmatpush2.msra.mxu0 0.0
        %9474 = vmatprep.subr.mxu0 0.0
        %9475 = vmatpush2.msra.mxu0 0.0
        %9476 = vmatprep.subr.mxu0 0.0
        %9477 = vmatpush2.msra.mxu0 0.0
        %9478 = vmatprep.subr.mxu0 0.0
        %9479 = vmatpush2.msra.mxu0 0.0
        %9480 = vmatprep.subr.mxu0 0.0
        %9481 = vmatpush2.msra.mxu0 0.0
        %9482 = vmatprep.subr.mxu0 0.0
        %9483 = vmatpush2.msra.mxu0 0.0
        %9484 = vmatprep.subr.mxu0 0.0
        %9485 = vmatpush2.msra.mxu0 0.0
        %9486 = vmatprep.subr.mxu0 0.0
        %9487 = vmatpush2.msra.mxu0 0.0
        %9488 = vmatprep.subr.mxu0 0.0
        %9489 = vmatpush2.msra.mxu0 0.0
        %9490 = vmatprep.subr.mxu0 0.0
        %9491 = vmatpush2.msra.mxu0 0.0
        %9492 = vmatprep.subr.mxu0 0.0
        %9493 = vmatpush2.msra.mxu0 0.0
        %9494 = vmatprep.mubr.f32.mxu0 0.0
        %9495 = vmatmul.mubr.f32.gmra.mxu0 %v9428
        %v9496 = vpop.f32.mrf.mxu0
        %v9497 = vadd.f32 0.0, %v9496
        %v9498 = vpop.f32.mrf.mxu0
        %9499 = vdwg.mxu0
        %v9501 = vsel %vm1699, %v7256, 0
        %9503 = vmatprep.subr.mxu0 0.0
        %9504 = vmatpush1.msra.mxu0 0.0
        %9505 = vmatprep.subr.mxu0 0.0
        %9506 = vmatpush1.msra.mxu0 0.0
        %9507 = vmatprep.subr.mxu0 0.0
        %9508 = vmatpush1.msra.mxu0 0.0
        %9509 = vmatprep.subr.mxu0 0.0
        %9510 = vmatpush1.msra.mxu0 0.0
        %9511 = vmatprep.subr.mxu0 0.0
        %9512 = vmatpush1.msra.mxu0 0.0
        %9513 = vmatprep.subr.mxu0 0.0
        %9514 = vmatpush1.msra.mxu0 0.0
        %9515 = vmatprep.subr.mxu0 0.0
        %9516 = vmatpush1.msra.mxu0 0.0
        %9517 = vmatprep.subr.mxu0 0.0
        %9518 = vmatpush1.msra.mxu0 0.0
        %9519 = vmatprep.subr.mxu0 0.0
        %9520 = vmatpush1.msra.mxu0 0.0
        %9521 = vmatprep.subr.mxu0 0.0
        %9522 = vmatpush1.msra.mxu0 0.0
        %9523 = vmatprep.subr.mxu0 0.0
        %9524 = vmatpush1.msra.mxu0 0.0
        %9525 = vmatprep.subr.mxu0 0.0
        %9526 = vmatpush1.msra.mxu0 0.0
        %9527 = vmatprep.subr.mxu0 0.0
        %9528 = vmatpush1.msra.mxu0 0.0
        %9529 = vmatprep.subr.mxu0 0.0
        %9530 = vmatpush1.msra.mxu0 0.0
        %9531 = vmatprep.subr.mxu0 0.0
        %9532 = vmatpush1.msra.mxu0 %v8548
        %9533 = vmatprep.subr.mxu0 0.0
        %9534 = vmatpush1.msra.mxu0 %v8412
        %9535 = vmatprep.subr.mxu0 0.0
        %9536 = vmatpush2.msra.mxu0 0.0
        %9537 = vmatprep.subr.mxu0 0.0
        %9538 = vmatpush2.msra.mxu0 0.0
        %9539 = vmatprep.subr.mxu0 0.0
        %9540 = vmatpush2.msra.mxu0 0.0
        %9541 = vmatprep.subr.mxu0 0.0
        %9542 = vmatpush2.msra.mxu0 0.0
        %9543 = vmatprep.subr.mxu0 0.0
        %9544 = vmatpush2.msra.mxu0 0.0
        %9545 = vmatprep.subr.mxu0 0.0
        %9546 = vmatpush2.msra.mxu0 0.0
        %9547 = vmatprep.subr.mxu0 0.0
        %9548 = vmatpush2.msra.mxu0 0.0
        %9549 = vmatprep.subr.mxu0 0.0
        %9550 = vmatpush2.msra.mxu0 0.0
        %9551 = vmatprep.subr.mxu0 0.0
        %9552 = vmatpush2.msra.mxu0 0.0
        %9553 = vmatprep.subr.mxu0 0.0
        %9554 = vmatpush2.msra.mxu0 0.0
        %9555 = vmatprep.subr.mxu0 0.0
        %9556 = vmatpush2.msra.mxu0 0.0
        %9557 = vmatprep.subr.mxu0 0.0
        %9558 = vmatpush2.msra.mxu0 0.0
        %9559 = vmatprep.subr.mxu0 0.0
        %9560 = vmatpush2.msra.mxu0 0.0
        %9561 = vmatprep.subr.mxu0 0.0
        %9562 = vmatpush2.msra.mxu0 0.0
        %9563 = vmatprep.subr.mxu0 0.0
        %9564 = vmatpush2.msra.mxu0 0.0
        %9565 = vmatprep.subr.mxu0 0.0
        %9566 = vmatpush2.msra.mxu0 0.0
        %9567 = vmatprep.mubr.f32.mxu0 0.0
        %9568 = vmatmul.mubr.f32.gmra.mxu0 %v9501
        %v9569 = vpop.f32.mrf.mxu0
        %v9570 = vadd.f32 0.0, %v9569
        %v9571 = vpop.f32.mrf.mxu0
        %9572 = vdwg.mxu0
        %v9574 = vsel %vm1699, %v7257, 0
        %9576 = vmatprep.subr.mxu0 0.0
        %9577 = vmatpush1.msra.mxu0 0.0
        %9578 = vmatprep.subr.mxu0 0.0
        %9579 = vmatpush1.msra.mxu0 0.0
        %9580 = vmatprep.subr.mxu0 0.0
        %9581 = vmatpush1.msra.mxu0 0.0
        %9582 = vmatprep.subr.mxu0 0.0
        %9583 = vmatpush1.msra.mxu0 0.0
        %9584 = vmatprep.subr.mxu0 0.0
        %9585 = vmatpush1.msra.mxu0 0.0
        %9586 = vmatprep.subr.mxu0 0.0
        %9587 = vmatpush1.msra.mxu0 0.0
        %9588 = vmatprep.subr.mxu0 0.0
        %9589 = vmatpush1.msra.mxu0 0.0
        %9590 = vmatprep.subr.mxu0 0.0
        %9591 = vmatpush1.msra.mxu0 0.0
        %9592 = vmatprep.subr.mxu0 0.0
        %9593 = vmatpush1.msra.mxu0 0.0
        %9594 = vmatprep.subr.mxu0 0.0
        %9595 = vmatpush1.msra.mxu0 0.0
        %9596 = vmatprep.subr.mxu0 0.0
        %9597 = vmatpush1.msra.mxu0 0.0
        %9598 = vmatprep.subr.mxu0 0.0
        %9599 = vmatpush1.msra.mxu0 0.0
        %9600 = vmatprep.subr.mxu0 0.0
        %9601 = vmatpush1.msra.mxu0 0.0
        %9602 = vmatprep.subr.mxu0 0.0
        %9603 = vmatpush1.msra.mxu0 0.0
        %9604 = vmatprep.subr.mxu0 0.0
        %9605 = vmatpush1.msra.mxu0 %v8549
        %9606 = vmatprep.subr.mxu0 0.0
        %9607 = vmatpush1.msra.mxu0 %v8413
        %9608 = vmatprep.subr.mxu0 0.0
        %9609 = vmatpush2.msra.mxu0 0.0
        %9610 = vmatprep.subr.mxu0 0.0
        %9611 = vmatpush2.msra.mxu0 0.0
        %9612 = vmatprep.subr.mxu0 0.0
        %9613 = vmatpush2.msra.mxu0 0.0
        %9614 = vmatprep.subr.mxu0 0.0
        %9615 = vmatpush2.msra.mxu0 0.0
        %9616 = vmatprep.subr.mxu0 0.0
        %9617 = vmatpush2.msra.mxu0 0.0
        %9618 = vmatprep.subr.mxu0 0.0
        %9619 = vmatpush2.msra.mxu0 0.0
        %9620 = vmatprep.subr.mxu0 0.0
        %9621 = vmatpush2.msra.mxu0 0.0
        %9622 = vmatprep.subr.mxu0 0.0
        %9623 = vmatpush2.msra.mxu0 0.0
        %9624 = vmatprep.subr.mxu0 0.0
        %9625 = vmatpush2.msra.mxu0 0.0
        %9626 = vmatprep.subr.mxu0 0.0
        %9627 = vmatpush2.msra.mxu0 0.0
        %9628 = vmatprep.subr.mxu0 0.0
        %9629 = vmatpush2.msra.mxu0 0.0
        %9630 = vmatprep.subr.mxu0 0.0
        %9631 = vmatpush2.msra.mxu0 0.0
        %9632 = vmatprep.subr.mxu0 0.0
        %9633 = vmatpush2.msra.mxu0 0.0
        %9634 = vmatprep.subr.mxu0 0.0
        %9635 = vmatpush2.msra.mxu0 0.0
        %9636 = vmatprep.subr.mxu0 0.0
        %9637 = vmatpush2.msra.mxu0 0.0
        %9638 = vmatprep.subr.mxu0 0.0
        %9639 = vmatpush2.msra.mxu0 0.0
        %9640 = vmatprep.mubr.f32.mxu0 0.0
        %9641 = vmatmul.mubr.f32.gmra.mxu0 %v9574
        %v9642 = vpop.f32.mrf.mxu0
        %v9643 = vadd.f32 0.0, %v9642
        %v9644 = vpop.f32.mrf.mxu0
        %9645 = vdwg.mxu0
        %v9647 = vsel %vm1699, %v7258, 0
        %9649 = vmatprep.subr.mxu0 0.0
        %9650 = vmatpush1.msra.mxu0 0.0
        %9651 = vmatprep.subr.mxu0 0.0
        %9652 = vmatpush1.msra.mxu0 0.0
        %9653 = vmatprep.subr.mxu0 0.0
        %9654 = vmatpush1.msra.mxu0 0.0
        %9655 = vmatprep.subr.mxu0 0.0
        %9656 = vmatpush1.msra.mxu0 0.0
        %9657 = vmatprep.subr.mxu0 0.0
        %9658 = vmatpush1.msra.mxu0 0.0
        %9659 = vmatprep.subr.mxu0 0.0
        %9660 = vmatpush1.msra.mxu0 0.0
        %9661 = vmatprep.subr.mxu0 0.0
        %9662 = vmatpush1.msra.mxu0 0.0
        %9663 = vmatprep.subr.mxu0 0.0
        %9664 = vmatpush1.msra.mxu0 0.0
        %9665 = vmatprep.subr.mxu0 0.0
        %9666 = vmatpush1.msra.mxu0 0.0
        %9667 = vmatprep.subr.mxu0 0.0
        %9668 = vmatpush1.msra.mxu0 0.0
        %9669 = vmatprep.subr.mxu0 0.0
        %9670 = vmatpush1.msra.mxu0 0.0
        %9671 = vmatprep.subr.mxu0 0.0
        %9672 = vmatpush1.msra.mxu0 0.0
        %9673 = vmatprep.subr.mxu0 0.0
        %9674 = vmatpush1.msra.mxu0 0.0
        %9675 = vmatprep.subr.mxu0 0.0
        %9676 = vmatpush1.msra.mxu0 0.0
        %9677 = vmatprep.subr.mxu0 0.0
        %9678 = vmatpush1.msra.mxu0 %v8550
        %9679 = vmatprep.subr.mxu0 0.0
        %9680 = vmatpush1.msra.mxu0 %v8414
        %9681 = vmatprep.subr.mxu0 0.0
        %9682 = vmatpush2.msra.mxu0 0.0
        %9683 = vmatprep.subr.mxu0 0.0
        %9684 = vmatpush2.msra.mxu0 0.0
        %9685 = vmatprep.subr.mxu0 0.0
        %9686 = vmatpush2.msra.mxu0 0.0
        %9687 = vmatprep.subr.mxu0 0.0
        %9688 = vmatpush2.msra.mxu0 0.0
        %9689 = vmatprep.subr.mxu0 0.0
        %9690 = vmatpush2.msra.mxu0 0.0
        %9691 = vmatprep.subr.mxu0 0.0
        %9692 = vmatpush2.msra.mxu0 0.0
        %9693 = vmatprep.subr.mxu0 0.0
        %9694 = vmatpush2.msra.mxu0 0.0
        %9695 = vmatprep.subr.mxu0 0.0
        %9696 = vmatpush2.msra.mxu0 0.0
        %9697 = vmatprep.subr.mxu0 0.0
        %9698 = vmatpush2.msra.mxu0 0.0
        %9699 = vmatprep.subr.mxu0 0.0
        %9700 = vmatpush2.msra.mxu0 0.0
        %9701 = vmatprep.subr.mxu0 0.0
        %9702 = vmatpush2.msra.mxu0 0.0
        %9703 = vmatprep.subr.mxu0 0.0
        %9704 = vmatpush2.msra.mxu0 0.0
        %9705 = vmatprep.subr.mxu0 0.0
        %9706 = vmatpush2.msra.mxu0 0.0
        %9707 = vmatprep.subr.mxu0 0.0
        %9708 = vmatpush2.msra.mxu0 0.0
        %9709 = vmatprep.subr.mxu0 0.0
        %9710 = vmatpush2.msra.mxu0 0.0
        %9711 = vmatprep.subr.mxu0 0.0
        %9712 = vmatpush2.msra.mxu0 0.0
        %9713 = vmatprep.mubr.f32.mxu0 0.0
        %9714 = vmatmul.mubr.f32.gmra.mxu0 %v9647
        %v9715 = vpop.f32.mrf.mxu0
        %v9716 = vadd.f32 0.0, %v9715
        %v9717 = vpop.f32.mrf.mxu0
        %9718 = vdwg.mxu0
        %v9719 = vadd.f32 %v5576, %v8621
        %v9720 = vadd.f32 %v5649, %v8694
        %v9721 = vadd.f32 %v5722, %v8767
        %v9722 = vadd.f32 %v5795, %v8840
        %v9723 = vadd.f32 %v5868, %v8913
        %v9724 = vadd.f32 %v5941, %v8986
        %v9725 = vadd.f32 %v6014, %v9059
        %v9726 = vadd.f32 %v6087, %v9132
        %v9727 = vadd.f32 %v6160, %v9205
        %v9728 = vadd.f32 %v6233, %v9278
        %v9729 = vadd.f32 %v6306, %v9351
        %v9730 = vadd.f32 %v6379, %v9424
        %v9731 = vadd.f32 %v6452, %v9497
        %v9732 = vadd.f32 %v6525, %v9570
        %v9733 = vadd.f32 %v6598, %v9643
        %v9734 = vadd.f32 %v6671, %v9716
        %v9735 = vcombine.low %v9719, %v9721
        %v9736 = vcombine.high %v9719, %v9721
        %v9738 = vunpack.c.l.s4 1983009808
        %v9739 = vunpack.c.0.s8 %v9738
        %v9740 = vlaneseq
        %v9741 = vshrl.u32 %v9740, 7
        %v9742 = vsub.s32 %v9739, %v9741
        %v9743 = vrot.slane %v9735, %v9742
        %v9745 = vunpack.c.l.s4 1983009808
        %v9746 = vunpack.c.0.s8 %v9745
        %v9747 = vlaneseq
        %v9748 = vshrl.u32 %v9747, 7
        %v9749 = vsub.s32 %v9746, %v9748
        %v9750 = vrot.slane %v9736, %v9749
        %v9751 = vcombine.low %v9720, %v9722
        %v9752 = vcombine.high %v9720, %v9722
        %v9754 = vunpack.c.l.s4 1983009808
        %v9755 = vunpack.c.0.s8 %v9754
        %v9756 = vlaneseq
        %v9757 = vshrl.u32 %v9756, 7
        %v9758 = vsub.s32 %v9755, %v9757
        %v9759 = vrot.slane %v9751, %v9758
        %v9761 = vunpack.c.l.s4 1983009808
        %v9762 = vunpack.c.0.s8 %v9761
        %v9763 = vlaneseq
        %v9764 = vshrl.u32 %v9763, 7
        %v9765 = vsub.s32 %v9762, %v9764
        %v9766 = vrot.slane %v9752, %v9765
        %v9767 = vcombine.low %v9723, %v9725
        %v9768 = vcombine.high %v9723, %v9725
        %v9770 = vunpack.c.l.s4 1983009808
        %v9771 = vunpack.c.0.s8 %v9770
        %v9772 = vlaneseq
        %v9773 = vshrl.u32 %v9772, 7
        %v9774 = vsub.s32 %v9771, %v9773
        %v9775 = vrot.slane %v9767, %v9774
        %v9777 = vunpack.c.l.s4 1983009808
        %v9778 = vunpack.c.0.s8 %v9777
        %v9779 = vlaneseq
        %v9780 = vshrl.u32 %v9779, 7
        %v9781 = vsub.s32 %v9778, %v9780
        %v9782 = vrot.slane %v9768, %v9781
        %v9783 = vcombine.low %v9724, %v9726
        %v9784 = vcombine.high %v9724, %v9726
        %v9786 = vunpack.c.l.s4 1983009808
        %v9787 = vunpack.c.0.s8 %v9786
        %v9788 = vlaneseq
        %v9789 = vshrl.u32 %v9788, 7
        %v9790 = vsub.s32 %v9787, %v9789
        %v9791 = vrot.slane %v9783, %v9790
        %v9793 = vunpack.c.l.s4 1983009808
        %v9794 = vunpack.c.0.s8 %v9793
        %v9795 = vlaneseq
        %v9796 = vshrl.u32 %v9795, 7
        %v9797 = vsub.s32 %v9794, %v9796
        %v9798 = vrot.slane %v9784, %v9797
        %v9799 = vcombine.low %v9743, %v9759
        %v9800 = vcombine.high %v9743, %v9759
        %v9802 = vunpack.c.l.s4 1934713408
        %v9803 = vunpack.c.0.s8 %v9802
        %v9804 = vlaneseq
        %v9805 = vshrl.u32 %v9804, 7
        %v9806 = vsub.s32 %v9803, %v9805
        %v9807 = vrot.slane %v9799, %v9806
        %v9809 = vunpack.c.l.s4 1934713408
        %v9810 = vunpack.c.0.s8 %v9809
        %v9811 = vlaneseq
        %v9812 = vshrl.u32 %v9811, 7
        %v9813 = vsub.s32 %v9810, %v9812
        %v9814 = vrot.slane %v9800, %v9813
        %v9815 = vcombine.low %v9750, %v9766
        %v9816 = vcombine.high %v9750, %v9766
        %v9818 = vunpack.c.l.s4 1934713408
        %v9819 = vunpack.c.0.s8 %v9818
        %v9820 = vlaneseq
        %v9821 = vshrl.u32 %v9820, 7
        %v9822 = vsub.s32 %v9819, %v9821
        %v9823 = vrot.slane %v9815, %v9822
        %v9825 = vunpack.c.l.s4 1934713408
        %v9826 = vunpack.c.0.s8 %v9825
        %v9827 = vlaneseq
        %v9828 = vshrl.u32 %v9827, 7
        %v9829 = vsub.s32 %v9826, %v9828
        %v9830 = vrot.slane %v9816, %v9829
        %v9831 = vcombine.low %v9775, %v9791
        %v9832 = vcombine.high %v9775, %v9791
        %v9834 = vunpack.c.l.s4 1934713408
        %v9835 = vunpack.c.0.s8 %v9834
        %v9836 = vlaneseq
        %v9837 = vshrl.u32 %v9836, 7
        %v9838 = vsub.s32 %v9835, %v9837
        %v9839 = vrot.slane %v9831, %v9838
        %v9841 = vunpack.c.l.s4 1934713408
        %v9842 = vunpack.c.0.s8 %v9841
        %v9843 = vlaneseq
        %v9844 = vshrl.u32 %v9843, 7
        %v9845 = vsub.s32 %v9842, %v9844
        %v9846 = vrot.slane %v9832, %v9845
        %v9847 = vcombine.low %v9782, %v9798
        %v9848 = vcombine.high %v9782, %v9798
        %v9850 = vunpack.c.l.s4 1934713408
        %v9851 = vunpack.c.0.s8 %v9850
        %v9852 = vlaneseq
        %v9853 = vshrl.u32 %v9852, 7
        %v9854 = vsub.s32 %v9851, %v9853
        %v9855 = vrot.slane %v9847, %v9854
        %v9857 = vunpack.c.l.s4 1934713408
        %v9858 = vunpack.c.0.s8 %v9857
        %v9859 = vlaneseq
        %v9860 = vshrl.u32 %v9859, 7
        %v9861 = vsub.s32 %v9858, %v9860
        %v9862 = vrot.slane %v9848, %v9861
        %v9863 = vcombine.low %v9807, %v9839
        %v9864 = vcombine.high %v9807, %v9839
        %v9865 = vcombine.low %v9814, %v9846
        %v9866 = vcombine.high %v9814, %v9846
        %v9867 = vcombine.low %v9823, %v9855
        %v9868 = vcombine.high %v9823, %v9855
        %v9869 = vcombine.low %v9830, %v9862
        %v9870 = vcombine.high %v9830, %v9862
        %v9871 = vcombine.low %v9727, %v9729
        %v9872 = vcombine.high %v9727, %v9729
        %v9874 = vunpack.c.l.s4 1983009808
        %v9875 = vunpack.c.0.s8 %v9874
        %v9876 = vlaneseq
        %v9877 = vshrl.u32 %v9876, 7
        %v9878 = vsub.s32 %v9875, %v9877
        %v9879 = vrot.slane %v9871, %v9878
        %v9881 = vunpack.c.l.s4 1983009808
        %v9882 = vunpack.c.0.s8 %v9881
        %v9883 = vlaneseq
        %v9884 = vshrl.u32 %v9883, 7
        %v9885 = vsub.s32 %v9882, %v9884
        %v9886 = vrot.slane %v9872, %v9885
        %v9887 = vcombine.low %v9728, %v9730
        %v9888 = vcombine.high %v9728, %v9730
        %v9890 = vunpack.c.l.s4 1983009808
        %v9891 = vunpack.c.0.s8 %v9890
        %v9892 = vlaneseq
        %v9893 = vshrl.u32 %v9892, 7
        %v9894 = vsub.s32 %v9891, %v9893
        %v9895 = vrot.slane %v9887, %v9894
        %v9897 = vunpack.c.l.s4 1983009808
        %v9898 = vunpack.c.0.s8 %v9897
        %v9899 = vlaneseq
        %v9900 = vshrl.u32 %v9899, 7
        %v9901 = vsub.s32 %v9898, %v9900
        %v9902 = vrot.slane %v9888, %v9901
        %v9903 = vcombine.low %v9731, %v9733
        %v9904 = vcombine.high %v9731, %v9733
        %v9906 = vunpack.c.l.s4 1983009808
        %v9907 = vunpack.c.0.s8 %v9906
        %v9908 = vlaneseq
        %v9909 = vshrl.u32 %v9908, 7
        %v9910 = vsub.s32 %v9907, %v9909
        %v9911 = vrot.slane %v9903, %v9910
        %v9913 = vunpack.c.l.s4 1983009808
        %v9914 = vunpack.c.0.s8 %v9913
        %v9915 = vlaneseq
        %v9916 = vshrl.u32 %v9915, 7
        %v9917 = vsub.s32 %v9914, %v9916
        %v9918 = vrot.slane %v9904, %v9917
        %v9919 = vcombine.low %v9732, %v9734
        %v9920 = vcombine.high %v9732, %v9734
        %v9922 = vunpack.c.l.s4 1983009808
        %v9923 = vunpack.c.0.s8 %v9922
        %v9924 = vlaneseq
        %v9925 = vshrl.u32 %v9924, 7
        %v9926 = vsub.s32 %v9923, %v9925
        %v9927 = vrot.slane %v9919, %v9926
        %v9929 = vunpack.c.l.s4 1983009808
        %v9930 = vunpack.c.0.s8 %v9929
        %v9931 = vlaneseq
        %v9932 = vshrl.u32 %v9931, 7
        %v9933 = vsub.s32 %v9930, %v9932
        %v9934 = vrot.slane %v9920, %v9933
        %v9935 = vcombine.low %v9879, %v9895
        %v9936 = vcombine.high %v9879, %v9895
        %v9938 = vunpack.c.l.s4 1934713408
        %v9939 = vunpack.c.0.s8 %v9938
        %v9940 = vlaneseq
        %v9941 = vshrl.u32 %v9940, 7
        %v9942 = vsub.s32 %v9939, %v9941
        %v9943 = vrot.slane %v9935, %v9942
        %v9945 = vunpack.c.l.s4 1934713408
        %v9946 = vunpack.c.0.s8 %v9945
        %v9947 = vlaneseq
        %v9948 = vshrl.u32 %v9947, 7
        %v9949 = vsub.s32 %v9946, %v9948
        %v9950 = vrot.slane %v9936, %v9949
        %v9951 = vcombine.low %v9886, %v9902
        %v9952 = vcombine.high %v9886, %v9902
        %v9954 = vunpack.c.l.s4 1934713408
        %v9955 = vunpack.c.0.s8 %v9954
        %v9956 = vlaneseq
        %v9957 = vshrl.u32 %v9956, 7
        %v9958 = vsub.s32 %v9955, %v9957
        %v9959 = vrot.slane %v9951, %v9958
        %v9961 = vunpack.c.l.s4 1934713408
        %v9962 = vunpack.c.0.s8 %v9961
        %v9963 = vlaneseq
        %v9964 = vshrl.u32 %v9963, 7
        %v9965 = vsub.s32 %v9962, %v9964
        %v9966 = vrot.slane %v9952, %v9965
        %v9967 = vcombine.low %v9911, %v9927
        %v9968 = vcombine.high %v9911, %v9927
        %v9970 = vunpack.c.l.s4 1934713408
        %v9971 = vunpack.c.0.s8 %v9970
        %v9972 = vlaneseq
        %v9973 = vshrl.u32 %v9972, 7
        %v9974 = vsub.s32 %v9971, %v9973
        %v9975 = vrot.slane %v9967, %v9974
        %v9977 = vunpack.c.l.s4 1934713408
        %v9978 = vunpack.c.0.s8 %v9977
        %v9979 = vlaneseq
        %v9980 = vshrl.u32 %v9979, 7
        %v9981 = vsub.s32 %v9978, %v9980
        %v9982 = vrot.slane %v9968, %v9981
        %v9983 = vcombine.low %v9918, %v9934
        %v9984 = vcombine.high %v9918, %v9934
        %v9986 = vunpack.c.l.s4 1934713408
        %v9987 = vunpack.c.0.s8 %v9986
        %v9988 = vlaneseq
        %v9989 = vshrl.u32 %v9988, 7
        %v9990 = vsub.s32 %v9987, %v9989
        %v9991 = vrot.slane %v9983, %v9990
        %v9993 = vunpack.c.l.s4 1934713408
        %v9994 = vunpack.c.0.s8 %v9993
        %v9995 = vlaneseq
        %v9996 = vshrl.u32 %v9995, 7
        %v9997 = vsub.s32 %v9994, %v9996
        %v9998 = vrot.slane %v9984, %v9997
        %v9999 = vcombine.low %v9943, %v9975
        %v10000 = vcombine.high %v9943, %v9975
        %v10001 = vcombine.low %v9950, %v9982
        %v10002 = vcombine.high %v9950, %v9982
        %v10003 = vcombine.low %v9959, %v9991
        %v10004 = vcombine.high %v9959, %v9991
        %v10005 = vcombine.low %v9966, %v9998
        %v10006 = vcombine.high %v9966, %v9998
        %10009 = vrot.lane.b32.xlu0 %v9864, 16
        %v10010 = vpop.permute.xlu0 %10009
        %10011 = vrot.lane.b32.xlu0 %v10000, 16
        %v10012 = vpop.permute.xlu0 %10011
        %10017 = vrot.lane.b32.xlu0 %v9865, 32
        %v10018 = vpop.permute.xlu0 %10017
        %10019 = vrot.lane.b32.xlu0 %v10001, 32
        %v10020 = vpop.permute.xlu0 %10019
        %10025 = vrot.lane.b32.xlu0 %v9866, 48
        %v10026 = vpop.permute.xlu0 %10025
        %10027 = vrot.lane.b32.xlu0 %v10002, 48
        %v10028 = vpop.permute.xlu0 %10027
        %10033 = vrot.lane.b32.xlu0 %v9867, 64
        %v10034 = vpop.permute.xlu0 %10033
        %10035 = vrot.lane.b32.xlu0 %v10003, 64
        %v10036 = vpop.permute.xlu0 %10035
        %10041 = vrot.lane.b32.xlu0 %v9868, 80
        %v10042 = vpop.permute.xlu0 %10041
        %10043 = vrot.lane.b32.xlu0 %v10004, 80
        %v10044 = vpop.permute.xlu0 %10043
        %10049 = vrot.lane.b32.xlu0 %v9869, 96
        %v10050 = vpop.permute.xlu0 %10049
        %10051 = vrot.lane.b32.xlu0 %v10005, 96
        %v10052 = vpop.permute.xlu0 %10051
        %10057 = vrot.lane.b32.xlu0 %v9870, 112
        %v10058 = vpop.permute.xlu0 %10057
        %10059 = vrot.lane.b32.xlu0 %v10006, 112
        %v10060 = vpop.permute.xlu0 %10059
        %v10063 = vsel %vm1699, %v9863, %v10010
        %v10064 = vsel %vm1699, %v9999, %v10012
        %v10065 = vsel %vm1701, %v10063, %v10018
        %v10066 = vsel %vm1701, %v10064, %v10020
        %v10067 = vsel %vm1703, %v10065, %v10026
        %v10068 = vsel %vm1703, %v10066, %v10028
        %v10069 = vsel %vm1705, %v10067, %v10034
        %v10070 = vsel %vm1705, %v10068, %v10036
        %v10071 = vsel %vm1707, %v10069, %v10042
        %v10072 = vsel %vm1707, %v10070, %v10044
        %v10073 = vsel %vm1709, %v10071, %v10050
        %v10074 = vsel %vm1709, %v10072, %v10052
        %v10075 = vsel %vm1711, %v10073, %v10058
        %v10076 = vsel %vm1711, %v10074, %v10060
        %v10077 = vld [vmem:[%s11] sm:$0xff]
        %v10078 = vld [vmem:[%s11 + $0x8] sm:$0xff]
        %10080 = vset.pattern.permute.xlu0 0
        %10081 = vperm.xlu0 %10080, %v10077
        %v10082 = vpop.permute.xlu0 %10081
        %10085 = vset.pattern.permute.xlu0 0
        %10086 = vperm.xlu0 %10085, %v10078
        %v10087 = vpop.permute.xlu0 %10086
        %v10089 = vmul.f32 %v10075, %v10082
        %v10090 = vmul.f32 %v10076, %v10087
        %v10091 = vld [vmem:[%s12] sm:$0xff]
        %v10092 = vld [vmem:[%s12 + $0x8] sm:$0xff]
        %10094 = vset.pattern.permute.xlu0 0
        %10095 = vperm.xlu0 %10094, %v10091
        %v10096 = vpop.permute.xlu0 %10095
        %10099 = vset.pattern.permute.xlu0 0
        %10100 = vperm.xlu0 %10099, %v10092
        %v10101 = vpop.permute.xlu0 %10100
        %v10103 = vadd.f32 %v10089, %v10096
        %v10104 = vadd.f32 %v10090, %v10101
        %v10105 = vld [vmem:[%s13] sm:$0xff]
        %v10106 = vld [vmem:[%s13 + $0x8] sm:$0xff]
        %v10108 = vsel %vm595, %v10105, 0
        %v10111 = vsel %vm595, %v10106, 0
        %10113 = vmatprep.subr.mxu0 0.0
        %10114 = vmatpush1.msra.mxu0 0.0
        %10115 = vmatprep.subr.mxu0 0.0
        %10116 = vmatpush1.msra.mxu0 0.0
        %10117 = vmatprep.subr.mxu0 0.0
        %10118 = vmatpush1.msra.mxu0 0.0
        %10119 = vmatprep.subr.mxu0 0.0
        %10120 = vmatpush1.msra.mxu0 0.0
        %10121 = vmatprep.subr.mxu0 0.0
        %10122 = vmatpush1.msra.mxu0 0.0
        %10123 = vmatprep.subr.mxu0 0.0
        %10124 = vmatpush1.msra.mxu0 0.0
        %10125 = vmatprep.subr.mxu0 0.0
        %10126 = vmatpush1.msra.mxu0 0.0
        %10127 = vmatprep.subr.mxu0 0.0
        %10128 = vmatpush1.msra.mxu0 0.0
        %10129 = vmatprep.subr.mxu0 0.0
        %10130 = vmatpush1.msra.mxu0 0.0
        %10131 = vmatprep.subr.mxu0 0.0
        %10132 = vmatpush1.msra.mxu0 0.0
        %10133 = vmatprep.subr.mxu0 0.0
        %10134 = vmatpush1.msra.mxu0 0.0
        %10135 = vmatprep.subr.mxu0 0.0
        %10136 = vmatpush1.msra.mxu0 0.0
        %10137 = vmatprep.subr.mxu0 0.0
        %10138 = vmatpush1.msra.mxu0 0.0
        %10139 = vmatprep.subr.mxu0 0.0
        %10140 = vmatpush1.msra.mxu0 0.0
        %10141 = vmatprep.subr.mxu0 0.0
        %10142 = vmatpush1.msra.mxu0 0.0
        %10143 = vmatprep.subr.mxu0 0.0
        %10144 = vmatpush1.msra.mxu0 %v768
        %10145 = vmatprep.subr.mxu0 0.0
        %10146 = vmatpush2.msra.mxu0 0.0
        %10147 = vmatprep.subr.mxu0 0.0
        %10148 = vmatpush2.msra.mxu0 0.0
        %10149 = vmatprep.subr.mxu0 0.0
        %10150 = vmatpush2.msra.mxu0 0.0
        %10151 = vmatprep.subr.mxu0 0.0
        %10152 = vmatpush2.msra.mxu0 0.0
        %10153 = vmatprep.subr.mxu0 0.0
        %10154 = vmatpush2.msra.mxu0 0.0
        %10155 = vmatprep.subr.mxu0 0.0
        %10156 = vmatpush2.msra.mxu0 0.0
        %10157 = vmatprep.subr.mxu0 0.0
        %10158 = vmatpush2.msra.mxu0 0.0
        %10159 = vmatprep.subr.mxu0 0.0
        %10160 = vmatpush2.msra.mxu0 0.0
        %10161 = vmatprep.subr.mxu0 0.0
        %10162 = vmatpush2.msra.mxu0 0.0
        %10163 = vmatprep.subr.mxu0 0.0
        %10164 = vmatpush2.msra.mxu0 0.0
        %10165 = vmatprep.subr.mxu0 0.0
        %10166 = vmatpush2.msra.mxu0 0.0
        %10167 = vmatprep.subr.mxu0 0.0
        %10168 = vmatpush2.msra.mxu0 0.0
        %10169 = vmatprep.subr.mxu0 0.0
        %10170 = vmatpush2.msra.mxu0 0.0
        %10171 = vmatprep.subr.mxu0 0.0
        %10172 = vmatpush2.msra.mxu0 0.0
        %10173 = vmatprep.subr.mxu0 0.0
        %10174 = vmatpush2.msra.mxu0 0.0
        %10175 = vmatprep.subr.mxu0 0.0
        %10176 = vmatpush2.msra.mxu0 0.0
        %10177 = vmatprep.mubr.f32.mxu0 0.0
        %10178 = vmatmul.mubr.f32.gmra.mxu0 %v10108
        %v10179 = vpop.f32.mrf.mxu0
        %v10180 = vadd.f32 0.0, %v10179
        %v10181 = vpop.f32.mrf.mxu0
        %10182 = vmatprep.mubr.f32.mxu0 0.0
        %10183 = vmatmul.mubr.f32.gmra.mxu0 %v10111
        %v10184 = vpop.f32.mrf.mxu0
        %v10185 = vadd.f32 0.0, %v10184
        %v10186 = vpop.f32.mrf.mxu0
        %10187 = vdwg.mxu0
        %v10188 = vadd.f32 %v10103, %v10180
        %v10189 = vadd.f32 %v10104, %v10185
        %v10190 = vld [vmem:[%s14] sm:$0xff]
        %v10191 = vld [vmem:[%s14 + $0x8] sm:$0xff]
        %10193 = vset.pattern.permute.xlu0 0
        %10194 = vperm.xlu0 %10193, %v10190
        %v10195 = vpop.permute.xlu0 %10194
        %10198 = vset.pattern.permute.xlu0 0
        %10199 = vperm.xlu0 %10198, %v10191
        %v10200 = vpop.permute.xlu0 %10199
        %v10202 = vadd.f32 %v10188, %v10195
        %v10203 = vadd.f32 %v10189, %v10200
        %v10204 = vmax.f32 %v10202, 0.0
        %v10205 = vmax.f32 %v10203, 0.0
        %10206 = vst [vmem:[%s485] sm:$0xff] %v10204
        %10207 = vst [vmem:[%s485 + $0x8] sm:$0xff] %v10205
        %s10208 = sand.u32 %s357, 1
        %s10209 = scalar_lea.sflag [#allocation3], %s10208
        %s10210 = sand.u32 %s357, 1
        %s10211 = smul.addr %s10210, 16
        %s10212 = scalar_lea.vmem [#allocation2], %s10211
        // Predicated region
        $region81: #{tpu_custom_call.1} parent=79 // pred_check
          %p10213 = pneg %p367
        $region82: #{tpu_custom_call.1} parent=79 // pred_check_branch
          %10215 = sbr.rel (%p10213) target = $region84
        $region83: #{tpu_custom_call.1} parent=79 // pred_region
          %s10217 = ssub.s32 256, 256
          %10218 = vsyncadd %s10209, %s10217
          %s10219 = smul.addr %s29, 2
          %s10220 = smul.addr %s10219, 128
          %s10221 = scalar_lea.hbm %s15, %s10220
          %s10222 = sshll.u32 %s10212, 4
          %s10223 = int_to_ptr.vmem [resolvable:$true] %s10222
          %10228 = dma.vmem_to_hbm [thread:$0]  %s10223, 256, %s10221, %s10209, 128, 128, 8
        $region84: #{tpu_custom_call.1} parent=79 // pred_fallthru
          _
      $region80: #{tpu_custom_call.1} parent=5 // pred_fallthru
        _
      %p10229 = scmp.le.s32.totalorder 2, %s24
      // Predicated region
      $region85: #{tpu_custom_call.1} parent=5 // pred_check
        %p10230 = pneg %p10229
      $region86: #{tpu_custom_call.1} parent=5 // pred_check_branch
        %10232 = sbr.rel (%p10230) target = $region88
      $region87: #{tpu_custom_call.1} parent=5 // pred_region
        %s10233 = ssub.s32 %s24, 2
        // Predicated region
        $region89: #{tpu_custom_call.1} parent=87 // pred_check
          %p10234 = pneg %p373
        $region90: #{tpu_custom_call.1} parent=87 // pred_check_branch
          %10236 = sbr.rel (%p10234) target = $region92
        $region91: #{tpu_custom_call.1} parent=87 // pred_region
          %s10237 = sand.u32 %s358, 1
          %s10238 = scalar_lea.sflag [#allocation3], %s10237
          %s10239 = sand.u32 %s358, 1
          %s10240 = smul.addr %s10239, 16
          %s10241 = scalar_lea.vmem [#allocation2], %s10240
          %10242 = dma.done %s10238, 256
        $region92: #{tpu_custom_call.1} parent=87 // pred_fallthru
          _
      $region88: #{tpu_custom_call.1} parent=5 // pred_fallthru
        _
    $region6: #{tpu_custom_call.1} parent=1 // loop_footer
      %s28 = sadd.s32 1, %s24
    $region7: #{tpu_custom_call.1} parent=1 // loop_footer_branch
      %23 = sbr.rel target = $region3
    $region8: #{tpu_custom_call.1} parent=1 // loop_exit
      _
    %10243 = vsyncpa [#allocation3], 1
    %s10244 = scalar_lea.sflag [#allocation3], 1
    %10245 = vsyncpa %s10244, 1

</llo_original>
